<compile_context>
chip_gen: v5e
topology: v5e:2x2
jax: 0.10.0
libtpu: 0.0.40
codegen_flags: <defaults>
</compile_context>

<pallas_src>
import functools
import math

import jax
import jax.numpy as jnp
from jax.experimental import pallas as pl
from jax.experimental.pallas import tpu as pltpu


# ----------------------------------------------------------------------------
# In-kernel helper: 3x3 conv (+bias, +ReLU) as KH*KW accumulating MXU matmuls
# over a phase-split, spatially-flattened activation tile resident in VMEM.
# ----------------------------------------------------------------------------
def _conv_acc(x_ref, w_ref, b_ref, *, stride, KH, KW, Ho, Wq):
    """Returns relu(conv(x) + b) as an (Ho*Wq, Cout) f32 value.

    x_ref : (1, stride*stride, Hq*Wq, Cin)  bf16  phase-split padded activations
    w_ref : (KH*KW, Cin, Cout)              bf16
    b_ref : (1, Cout)                       f32

    Row m = h*Wq + w of the result holds output pixel (h, w); columns with
    w >= Wo are junk (conv evaluated inside the zero padding) and must be
    masked / cropped by the caller.
    """
    M = Ho * Wq
    Cout = w_ref.shape[-1]
    acc = jnp.broadcast_to(b_ref[...], (M, Cout)).astype(jnp.float32)
    for kh in range(KH):
        for kw in range(KW):
            phase = (kh % stride) * stride + (kw % stride)
            start = (kh // stride) * Wq + (kw // stride)
            lhs = x_ref[0, phase, pl.ds(start, M), :]          # (M, Cin) bf16
            acc = acc + jnp.dot(lhs, w_ref[kh * KW + kw],
                                preferred_element_type=jnp.float32)
    return jnp.maximum(acc, 0.0)                               # fused ReLU


# ----------------------------------------------------------------------------
# Kernel 1: layer_in (stride-2) + ReLU + all deep stride-1 convs (+ residual),
# fully VMEM-resident via two ping-pong padded-plane scratch buffers.
#
# Plane layout (flat (R, C) f32 scratch): flat index delta + i*Wp + j holds the
# zero-padded feature map P[i, j], i.e. P[i, j] = act[i-1, j-1] inside and 0 on
# the 1-pixel border.  A stride-1 3x3 conv tap (kh, kw) is then just the slice
# plane[delta + kh*Wp + kw : ... + M] against the (M = Ho*Wp)-row output grid.
# ----------------------------------------------------------------------------
def _head_kernel(*refs, stride, KH, KW, Ho, Wp, n_deep, residual, delta):
    if n_deep == 0:
        x_ref, w_ref, b_ref, o_ref = refs
        act = _conv_acc(x_ref, w_ref, b_ref,
                        stride=stride, KH=KH, KW=KW, Ho=Ho, Wq=Wp)
        o_ref[0] = act.astype(o_ref.dtype)
        return

    (x_ref, w_ref, b_ref, wd_ref, bd_ref, mask_ref, o_ref, pa, pb) = refs
    M = Ho * Wp
    C = w_ref.shape[-1]
    maskb = mask_ref[...]                      # (M, 1) f32: 1 where w < Wo
    base = delta + Wp + 1                      # 8-aligned interior offset

    # layer_in: stride-2 conv via phase-split taps; mask junk columns so the
    # padded plane keeps zero borders.
    act = _conv_acc(x_ref, w_ref, b_ref,
                    stride=stride, KH=KH, KW=KW, Ho=Ho, Wq=Wp) * maskb

    pa[...] = jnp.zeros_like(pa)
    pb[...] = jnp.zeros_like(pb)
    pa[pl.ds(base, M), :] = act                # write interior of padded plane

    for li in range(n_deep):
        src, dst = (pa, pb) if li % 2 == 0 else (pb, pa)
        acc = jnp.broadcast_to(bd_ref[li], (M, C)).astype(jnp.float32)
        for kh in range(KH):
            for kw in range(KW):
                lhs = src[pl.ds(delta + kh * Wp + kw, M), :].astype(jnp.bfloat16)
                acc = acc + jnp.dot(lhs, wd_ref[li, kh * KW + kw],
                                    preferred_element_type=jnp.float32)
        new = jnp.maximum(acc, 0.0) * maskb    # ReLU + zero the junk columns
        if residual:                           # out = relu(conv(out)) + out
            new = new + src[pl.ds(base, M), :]
        if li == n_deep - 1:
            o_ref[0] = new.astype(o_ref.dtype)
        else:
            dst[pl.ds(base, M), :] = new


# ----------------------------------------------------------------------------
# Kernel 2: conv_out (stride-2) + ReLU + MaxPool2d(3,3) + flatten + fc_out.
# ----------------------------------------------------------------------------
def _conv_pool_fc_kernel(x_ref, w_ref, b_ref, wfc_ref, bfc_ref, o_ref, *,
                         stride, KH, KW, Ho, Wq, pool, pool_stride, PH, PW):
    acc = _conv_acc(x_ref, w_ref, b_ref,
                    stride=stride, KH=KH, KW=KW, Ho=Ho, Wq=Wq)  # (Ho*Wq, Cout)
    out_dim = o_ref.shape[-1]
    logits = jnp.broadcast_to(bfc_ref[...], (1, out_dim)).astype(jnp.float32)
    for oh in range(PH):
        for ow in range(PW):
            win = None
            for dh in range(pool):
                r = (oh * pool_stride + dh) * Wq + ow * pool_stride
                rows = acc[r:r + pool, :]                       # (pool, Cout)
                win = rows if win is None else jnp.maximum(win, rows)
            m = jnp.max(win, axis=0, keepdims=True)             # (1, Cout)
            logits = logits + jnp.dot(m.astype(wfc_ref.dtype),
                                      wfc_ref[oh * PW + ow],
                                      preferred_element_type=jnp.float32)
    o_ref[0] = logits.astype(o_ref.dtype)                       # (1, out_dim)


# ----------------------------------------------------------------------------
# Wrapper-side layout plumbing (pure XLA, ~1x HBM pass): pad, split into
# stride*stride phases, flatten spatial, cast to bf16.
# ----------------------------------------------------------------------------
def _phase_split_flat(x_nhwc, *, stride, pad, KH, KW, wq=None):
    N, H, W, C = x_nhwc.shape
    s = stride
    Ho = (H + 2 * pad - KH) // s + 1
    Wo = (W + 2 * pad - KW) // s + 1
    Hq = Ho + (KH - 1) // s + 1      # guard rows: flat tap slices may overrun
    Wq = wq if wq is not None else Wo + (KW - 1) // s
    assert Wq >= Wo + (KW - 1) // s
    Ht, Wt = Hq * s, Wq * s
    xp = jnp.pad(x_nhwc, ((0, 0), (pad, pad), (pad, pad), (0, 0)))
    xp = xp[:, :min(xp.shape[1], Ht), :min(xp.shape[2], Wt), :]
    xp = jnp.pad(xp, ((0, 0), (0, Ht - xp.shape[1]), (0, Wt - xp.shape[2]), (0, 0)))
    ph = xp.reshape(N, Hq, s, Wq, s, C).transpose(0, 2, 4, 1, 3, 5)
    ph = ph.reshape(N, s * s, Hq * Wq, C).astype(jnp.bfloat16)
    return ph, Ho, Wo, Hq, Wq


def convnet_head(x_nhwc, w_in, b_in, deep_wb, *, residual=False, stride=2):
    """relu(layer_in(x)) followed by all deep stride-1 conv layers, one kernel."""
    N, H, W, Cin = x_nhwc.shape
    KH, KW, _, C = w_in.shape
    n_deep = len(deep_wb)

    Ho = (H + 2 - KH) // stride + 1
    Wo = (W + 2 - KW) // stride + 1
    Wp = Wo + 2                       # plane width = Wo + 1-pixel pad each side
    ph, Ho, Wo, Hq, Wq = _phase_split_flat(x_nhwc, stride=stride, pad=1,
                                           KH=KH, KW=KW, wq=Wp)
    M = Ho * Wq
    delta = (-(Wq + 1)) % 8                            # align interior store
    R = -(-(delta + 2 * Wq + 2 + M) // 8) * 8          # plane rows (w/ guard)

    in_specs = [
        pl.BlockSpec((1, stride * stride, Hq * Wq, Cin), lambda n: (n, 0, 0, 0)),
        pl.BlockSpec((KH * KW, Cin, C), lambda n: (0, 0, 0)),
        pl.BlockSpec((1, C), lambda n: (0, 0)),
    ]
    args = [ph,
            w_in.reshape(KH * KW, Cin, C).astype(jnp.bfloat16),
            b_in.reshape(1, C).astype(jnp.float32)]
    scratch = []
    if n_deep:
        wd = jnp.stack([w.reshape(KH * KW, C, C) for w, _ in deep_wb]
                       ).astype(jnp.bfloat16)                    # (n_deep,9,C,C)
        bd = jnp.stack([b.reshape(1, C) for _, b in deep_wb]
                       ).astype(jnp.float32)                     # (n_deep,1,C)
        mask = jnp.tile(jnp.arange(Wq) < Wo, (Ho,)).astype(jnp.float32)[:, None]
        in_specs += [
            pl.BlockSpec((n_deep, KH * KW, C, C), lambda n: (0, 0, 0, 0)),
            pl.BlockSpec((n_deep, 1, C), lambda n: (0, 0, 0)),
            pl.BlockSpec((M, 1), lambda n: (0, 0)),
        ]
        args += [wd, bd, mask]
        scratch = [pltpu.VMEM((R, C), jnp.float32),
                   pltpu.VMEM((R, C), jnp.float32)]

    kernel = functools.partial(_head_kernel, stride=stride, KH=KH, KW=KW,
                               Ho=Ho, Wp=Wq, n_deep=n_deep,
                               residual=residual, delta=delta)
    out = pl.pallas_call(
        kernel,
        out_shape=jax.ShapeDtypeStruct((N, M, C), jnp.bfloat16),
        grid_spec=pltpu.PrefetchScalarGridSpec(
            num_scalar_prefetch=0,
            grid=(N,),
            in_specs=in_specs,
            out_specs=pl.BlockSpec((1, M, C), lambda n: (n, 0, 0)),
            scratch_shapes=scratch),
        compiler_params=pltpu.CompilerParams(dimension_semantics=("parallel",)),
    )(*args)
    # crop the junk columns (w >= Wo) and restore NHWC
    return out.reshape(N, Ho, Wq, C)[:, :, :Wo, :]


def conv3x3_relu_pool_fc(x_nhwc, w, b, w_fc, b_fc, *, stride,
                         pool=3, pool_stride=3):
    N, H, W, Cin = x_nhwc.shape
    KH, KW, _, Cout = w.shape
    ph, Ho, Wo, _Hq, Wq = _phase_split_flat(x_nhwc, stride=stride, pad=1,
                                            KH=KH, KW=KW)
    PH = (Ho - pool) // pool_stride + 1
    PW = (Wo - pool) // pool_stride + 1
    fin, out_dim = w_fc.shape
    assert fin == Cout * PH * PW, (fin, Cout, PH, PW)
    # torch's .flatten(1) on NCHW orders features as (c, oh, ow); regroup so the
    # kernel can index the fc weight by pooled position p = oh*PW + ow.
    wfc_r = w_fc.reshape(Cout, PH * PW, out_dim).transpose(1, 0, 2)

    kernel = functools.partial(
        _conv_pool_fc_kernel, stride=stride, KH=KH, KW=KW, Ho=Ho, Wq=Wq,
        pool=pool, pool_stride=pool_stride, PH=PH, PW=PW)
    out = pl.pallas_call(
        kernel,
        out_shape=jax.ShapeDtypeStruct((N, 1, out_dim), jnp.float32),
        grid_spec=pltpu.PrefetchScalarGridSpec(
            num_scalar_prefetch=0,
            grid=(N,),
            in_specs=[
                pl.BlockSpec((1, stride * stride, _Hq * Wq, Cin),
                             lambda n: (n, 0, 0, 0)),
                pl.BlockSpec((KH * KW, Cin, Cout), lambda n: (0, 0, 0)),
                pl.BlockSpec((1, Cout), lambda n: (0, 0)),
                pl.BlockSpec((PH * PW, Cout, out_dim), lambda n: (0, 0, 0)),
                pl.BlockSpec((1, out_dim), lambda n: (0, 0)),
            ],
            out_specs=pl.BlockSpec((1, 1, out_dim), lambda n: (n, 0, 0)),
        ),
        compiler_params=pltpu.CompilerParams(dimension_semantics=("parallel",)),
    )(ph,
      w.reshape(KH * KW, Cin, Cout).astype(jnp.bfloat16),
      b.reshape(1, Cout).astype(jnp.float32),
      wfc_r.astype(jnp.bfloat16),
      b_fc.reshape(1, out_dim).astype(jnp.float32))
    return out.reshape(N, out_dim)


# ----------------------------------------------------------------------------
# Parameter init (deterministic, PyTorch-style uniform) and forward pass
# ----------------------------------------------------------------------------
def _conv_init(key, cin, cout):
    kw, kb = jax.random.split(key)
    bound = 1.0 / math.sqrt(cin * 9.0)
    w = jax.random.uniform(kw, (3, 3, cin, cout), jnp.float32, -bound, bound)
    b = jax.random.uniform(kb, (cout,), jnp.float32, -bound, bound)
    return w, b


def _linear_init(key, fin, fout):
    kw, kb = jax.random.split(key)
    bound = 1.0 / math.sqrt(float(fin))
    w = jax.random.uniform(kw, (fin, fout), jnp.float32, -bound, bound)
    b = jax.random.uniform(kb, (fout,), jnp.float32, -bound, bound)
    return w, b


def init_convnet_params(key, input_dim, hidden_dim, out_dim, depth=3):
    n_deep = depth - 2
    keys = jax.random.split(key, 3 + n_deep)
    return {
        "layer_in": _conv_init(keys[0], input_dim, hidden_dim),
        "conv_deep": [_conv_init(keys[1 + i], hidden_dim, hidden_dim)
                      for i in range(n_deep)],
        "conv_out": _conv_init(keys[1 + n_deep], hidden_dim, hidden_dim),
        "fc_out": _linear_init(keys[2 + n_deep], 128, out_dim),
    }


def convnet_forward(params, x_nchw, *, residual_block=False):
    x = jnp.transpose(x_nchw, (0, 2, 3, 1))                    # NCHW -> NHWC
    w_in, b_in = params["layer_in"]
    # kernel 1: relu(layer_in(x)) + all deep conv layers (+ residual)
    out = convnet_head(x, w_in, b_in, params["conv_deep"],
                       residual=residual_block, stride=2)
    w_o, b_o = params["conv_out"]
    w_fc, b_fc = params["fc_out"]
    # kernel 2: relu(conv_out(.)) + maxpool(3,3) + flatten + fc_out
    return conv3x3_relu_pool_fc(out, w_o, b_o, w_fc, b_fc, stride=2)


if __name__ == "__main__":
    # fc_out has in_features=128 = hidden_dim * 2 * 2, which pins the geometry:
    # 32x32 -> /2 -> 16x16 -> (deep) 16x16 -> /2 -> 8x8 -> pool(3,3) -> 2x2.
    input_dim, hidden_dim, out_dim, depth = 4, 32, 10, 3
    batch, spatial = 2, 32

    key = jax.random.PRNGKey(0)
    kx, kp = jax.random.split(key)
    x = jax.random.normal(kx, (batch, input_dim, spatial, spatial), jnp.float32)
    params = init_convnet_params(kp, input_dim, hidden_dim, out_dim, depth)

    fwd = jax.jit(functools.partial(convnet_forward, residual_block=False))
    logits = fwd(params, x)
    jax.block_until_ready(logits)
    assert logits.shape == (batch, out_dim), logits.shape
    assert logits.dtype == jnp.float32
    print("KERNEL_OK")
</pallas_src>

<mosaic_0001>
module attributes {stable_mosaic.version = 11 : i64} {
  func.func @_head_kernel(%arg0: i32, %arg1: memref<1x4x324x4xbf16, #tpu.memory_space<vmem>>, %arg2: memref<9x4x32xbf16, #tpu.memory_space<vmem>>, %arg3: memref<1x32xf32, #tpu.memory_space<vmem>>, %arg4: memref<1x9x32x32xbf16, #tpu.memory_space<vmem>>, %arg5: memref<1x1x32xf32, #tpu.memory_space<vmem>>, %arg6: memref<288x1xf32, #tpu.memory_space<vmem>>, %arg7: memref<1x288x32xbf16, #tpu.memory_space<vmem>>, %arg8: memref<336x32xf32, #tpu.memory_space<vmem>>, %arg9: memref<336x32xf32, #tpu.memory_space<vmem>>) attributes {dimension_semantics = [#tpu.dimension_semantics<parallel>], iteration_bounds = array<i64: 2>, scalar_prefetch = 0 : i64, scratch_operands = 2 : i64, tpu.core_type = #tpu.core_type<tc>, window_params = [{transform_indices = @transform_0, window_bounds = array<i64: 1, 4, 324, 4>}, {pipeline_mode = #tpu.pipeline_mode<synchronous>, transform_indices = @transform_1, window_bounds = array<i64: 9, 4, 32>}, {pipeline_mode = #tpu.pipeline_mode<synchronous>, transform_indices = @transform_2, window_bounds = array<i64: 1, 32>}, {pipeline_mode = #tpu.pipeline_mode<synchronous>, transform_indices = @transform_3, window_bounds = array<i64: 1, 9, 32, 32>}, {pipeline_mode = #tpu.pipeline_mode<synchronous>, transform_indices = @transform_4, window_bounds = array<i64: 1, 1, 32>}, {pipeline_mode = #tpu.pipeline_mode<synchronous>, transform_indices = @transform_5, window_bounds = array<i64: 288, 1>}, {transform_indices = @transform_6, window_bounds = array<i64: 1, 288, 32>}]} {
    %c0 = arith.constant 0 : index
    %c0_0 = arith.constant 0 : index
    %0 = vector.load %arg6[%c0, %c0_0] : memref<288x1xf32, #tpu.memory_space<vmem>>, vector<288x1xf32>
    %c0_1 = arith.constant 0 : index
    %c0_2 = arith.constant 0 : index
    %1 = vector.load %arg3[%c0_1, %c0_2] : memref<1x32xf32, #tpu.memory_space<vmem>>, vector<1x32xf32>
    %2 = vector.shape_cast %1 : vector<1x32xf32> to vector<1x32xf32>
    %3 = vector.broadcast %2 : vector<1x32xf32> to vector<288x32xf32>
    %c0_3 = arith.constant 0 : index
    %c0_4 = arith.constant 0 : index
    %c0_5 = arith.constant 0 : index
    %c0_6 = arith.constant 0 : index
    %4 = vector.load %arg1[%c0_3, %c0_4, %c0_5, %c0_6] : memref<1x4x324x4xbf16, #tpu.memory_space<vmem>>, vector<1x1x288x4xbf16>
    %5 = vector.shape_cast %4 : vector<1x1x288x4xbf16> to vector<288x4xbf16>
    %c0_7 = arith.constant 0 : index
    %c0_8 = arith.constant 0 : index
    %c0_9 = arith.constant 0 : index
    %6 = vector.load %arg2[%c0_7, %c0_8, %c0_9] : memref<9x4x32xbf16, #tpu.memory_space<vmem>>, vector<1x4x32xbf16>
    %7 = vector.shape_cast %6 : vector<1x4x32xbf16> to vector<4x32xbf16>
    %cst = arith.constant dense<0.000000e+00> : vector<288x32xf32>
    %8 = tpu.matmul %5, %7, %cst {dimension_numbers = #tpu.dot_dimension_numbers<[1], [0], [0], [1], [0, 0, 1, 1], [], []>} : vector<288x4xbf16>, vector<4x32xbf16>, vector<288x32xf32> -> vector<288x32xf32>
    %9 = arith.addf %3, %8 : vector<288x32xf32>
    %c0_10 = arith.constant 0 : index
    %c1 = arith.constant 1 : index
    %c0_11 = arith.constant 0 : index
    %c0_12 = arith.constant 0 : index
    %10 = vector.load %arg1[%c0_10, %c1, %c0_11, %c0_12] : memref<1x4x324x4xbf16, #tpu.memory_space<vmem>>, vector<1x1x288x4xbf16>
    %11 = vector.shape_cast %10 : vector<1x1x288x4xbf16> to vector<288x4xbf16>
    %c1_13 = arith.constant 1 : index
    %c0_14 = arith.constant 0 : index
    %c0_15 = arith.constant 0 : index
    %12 = vector.load %arg2[%c1_13, %c0_14, %c0_15] : memref<9x4x32xbf16, #tpu.memory_space<vmem>>, vector<1x4x32xbf16>
    %13 = vector.shape_cast %12 : vector<1x4x32xbf16> to vector<4x32xbf16>
    %cst_16 = arith.constant dense<0.000000e+00> : vector<288x32xf32>
    %14 = tpu.matmul %11, %13, %cst_16 {dimension_numbers = #tpu.dot_dimension_numbers<[1], [0], [0], [1], [0, 0, 1, 1], [], []>} : vector<288x4xbf16>, vector<4x32xbf16>, vector<288x32xf32> -> vector<288x32xf32>
    %15 = arith.addf %9, %14 : vector<288x32xf32>
    %c0_17 = arith.constant 0 : index
    %c0_18 = arith.constant 0 : index
    %c1_19 = arith.constant 1 : index
    %c0_20 = arith.constant 0 : index
    %16 = vector.load %arg1[%c0_17, %c0_18, %c1_19, %c0_20] : memref<1x4x324x4xbf16, #tpu.memory_space<vmem>>, vector<1x1x288x4xbf16>
    %17 = vector.shape_cast %16 : vector<1x1x288x4xbf16> to vector<288x4xbf16>
    %c2 = arith.constant 2 : index
    %c0_21 = arith.constant 0 : index
    %c0_22 = arith.constant 0 : index
    %18 = vector.load %arg2[%c2, %c0_21, %c0_22] : memref<9x4x32xbf16, #tpu.memory_space<vmem>>, vector<1x4x32xbf16>
    %19 = vector.shape_cast %18 : vector<1x4x32xbf16> to vector<4x32xbf16>
    %cst_23 = arith.constant dense<0.000000e+00> : vector<288x32xf32>
    %20 = tpu.matmul %17, %19, %cst_23 {dimension_numbers = #tpu.dot_dimension_numbers<[1], [0], [0], [1], [0, 0, 1, 1], [], []>} : vector<288x4xbf16>, vector<4x32xbf16>, vector<288x32xf32> -> vector<288x32xf32>
    %21 = arith.addf %15, %20 : vector<288x32xf32>
    %c0_24 = arith.constant 0 : index
    %c2_25 = arith.constant 2 : index
    %c0_26 = arith.constant 0 : index
    %c0_27 = arith.constant 0 : index
    %22 = vector.load %arg1[%c0_24, %c2_25, %c0_26, %c0_27] : memref<1x4x324x4xbf16, #tpu.memory_space<vmem>>, vector<1x1x288x4xbf16>
    %23 = vector.shape_cast %22 : vector<1x1x288x4xbf16> to vector<288x4xbf16>
    %c3 = arith.constant 3 : index
    %c0_28 = arith.constant 0 : index
    %c0_29 = arith.constant 0 : index
    %24 = vector.load %arg2[%c3, %c0_28, %c0_29] : memref<9x4x32xbf16, #tpu.memory_space<vmem>>, vector<1x4x32xbf16>
    %25 = vector.shape_cast %24 : vector<1x4x32xbf16> to vector<4x32xbf16>
    %cst_30 = arith.constant dense<0.000000e+00> : vector<288x32xf32>
    %26 = tpu.matmul %23, %25, %cst_30 {dimension_numbers = #tpu.dot_dimension_numbers<[1], [0], [0], [1], [0, 0, 1, 1], [], []>} : vector<288x4xbf16>, vector<4x32xbf16>, vector<288x32xf32> -> vector<288x32xf32>
    %27 = arith.addf %21, %26 : vector<288x32xf32>
    %c0_31 = arith.constant 0 : index
    %c3_32 = arith.constant 3 : index
    %c0_33 = arith.constant 0 : index
    %c0_34 = arith.constant 0 : index
    %28 = vector.load %arg1[%c0_31, %c3_32, %c0_33, %c0_34] : memref<1x4x324x4xbf16, #tpu.memory_space<vmem>>, vector<1x1x288x4xbf16>
    %29 = vector.shape_cast %28 : vector<1x1x288x4xbf16> to vector<288x4xbf16>
    %c4 = arith.constant 4 : index
    %c0_35 = arith.constant 0 : index
    %c0_36 = arith.constant 0 : index
    %30 = vector.load %arg2[%c4, %c0_35, %c0_36] : memref<9x4x32xbf16, #tpu.memory_space<vmem>>, vector<1x4x32xbf16>
    %31 = vector.shape_cast %30 : vector<1x4x32xbf16> to vector<4x32xbf16>
    %cst_37 = arith.constant dense<0.000000e+00> : vector<288x32xf32>
    %32 = tpu.matmul %29, %31, %cst_37 {dimension_numbers = #tpu.dot_dimension_numbers<[1], [0], [0], [1], [0, 0, 1, 1], [], []>} : vector<288x4xbf16>, vector<4x32xbf16>, vector<288x32xf32> -> vector<288x32xf32>
    %33 = arith.addf %27, %32 : vector<288x32xf32>
    %c0_38 = arith.constant 0 : index
    %c2_39 = arith.constant 2 : index
    %c1_40 = arith.constant 1 : index
    %c0_41 = arith.constant 0 : index
    %34 = vector.load %arg1[%c0_38, %c2_39, %c1_40, %c0_41] : memref<1x4x324x4xbf16, #tpu.memory_space<vmem>>, vector<1x1x288x4xbf16>
    %35 = vector.shape_cast %34 : vector<1x1x288x4xbf16> to vector<288x4xbf16>
    %c5 = arith.constant 5 : index
    %c0_42 = arith.constant 0 : index
    %c0_43 = arith.constant 0 : index
    %36 = vector.load %arg2[%c5, %c0_42, %c0_43] : memref<9x4x32xbf16, #tpu.memory_space<vmem>>, vector<1x4x32xbf16>
    %37 = vector.shape_cast %36 : vector<1x4x32xbf16> to vector<4x32xbf16>
    %cst_44 = arith.constant dense<0.000000e+00> : vector<288x32xf32>
    %38 = tpu.matmul %35, %37, %cst_44 {dimension_numbers = #tpu.dot_dimension_numbers<[1], [0], [0], [1], [0, 0, 1, 1], [], []>} : vector<288x4xbf16>, vector<4x32xbf16>, vector<288x32xf32> -> vector<288x32xf32>
    %39 = arith.addf %33, %38 : vector<288x32xf32>
    %c0_45 = arith.constant 0 : index
    %c0_46 = arith.constant 0 : index
    %c18 = arith.constant 18 : index
    %c0_47 = arith.constant 0 : index
    %40 = vector.load %arg1[%c0_45, %c0_46, %c18, %c0_47] : memref<1x4x324x4xbf16, #tpu.memory_space<vmem>>, vector<1x1x288x4xbf16>
    %41 = vector.shape_cast %40 : vector<1x1x288x4xbf16> to vector<288x4xbf16>
    %c6 = arith.constant 6 : index
    %c0_48 = arith.constant 0 : index
    %c0_49 = arith.constant 0 : index
    %42 = vector.load %arg2[%c6, %c0_48, %c0_49] : memref<9x4x32xbf16, #tpu.memory_space<vmem>>, vector<1x4x32xbf16>
    %43 = vector.shape_cast %42 : vector<1x4x32xbf16> to vector<4x32xbf16>
    %cst_50 = arith.constant dense<0.000000e+00> : vector<288x32xf32>
    %44 = tpu.matmul %41, %43, %cst_50 {dimension_numbers = #tpu.dot_dimension_numbers<[1], [0], [0], [1], [0, 0, 1, 1], [], []>} : vector<288x4xbf16>, vector<4x32xbf16>, vector<288x32xf32> -> vector<288x32xf32>
    %45 = arith.addf %39, %44 : vector<288x32xf32>
    %c0_51 = arith.constant 0 : index
    %c1_52 = arith.constant 1 : index
    %c18_53 = arith.constant 18 : index
    %c0_54 = arith.constant 0 : index
    %46 = vector.load %arg1[%c0_51, %c1_52, %c18_53, %c0_54] : memref<1x4x324x4xbf16, #tpu.memory_space<vmem>>, vector<1x1x288x4xbf16>
    %47 = vector.shape_cast %46 : vector<1x1x288x4xbf16> to vector<288x4xbf16>
    %c7 = arith.constant 7 : index
    %c0_55 = arith.constant 0 : index
    %c0_56 = arith.constant 0 : index
    %48 = vector.load %arg2[%c7, %c0_55, %c0_56] : memref<9x4x32xbf16, #tpu.memory_space<vmem>>, vector<1x4x32xbf16>
    %49 = vector.shape_cast %48 : vector<1x4x32xbf16> to vector<4x32xbf16>
    %cst_57 = arith.constant dense<0.000000e+00> : vector<288x32xf32>
    %50 = tpu.matmul %47, %49, %cst_57 {dimension_numbers = #tpu.dot_dimension_numbers<[1], [0], [0], [1], [0, 0, 1, 1], [], []>} : vector<288x4xbf16>, vector<4x32xbf16>, vector<288x32xf32> -> vector<288x32xf32>
    %51 = arith.addf %45, %50 : vector<288x32xf32>
    %c0_58 = arith.constant 0 : index
    %c0_59 = arith.constant 0 : index
    %c19 = arith.constant 19 : index
    %c0_60 = arith.constant 0 : index
    %52 = vector.load %arg1[%c0_58, %c0_59, %c19, %c0_60] : memref<1x4x324x4xbf16, #tpu.memory_space<vmem>>, vector<1x1x288x4xbf16>
    %53 = vector.shape_cast %52 : vector<1x1x288x4xbf16> to vector<288x4xbf16>
    %c8 = arith.constant 8 : index
    %c0_61 = arith.constant 0 : index
    %c0_62 = arith.constant 0 : index
    %54 = vector.load %arg2[%c8, %c0_61, %c0_62] : memref<9x4x32xbf16, #tpu.memory_space<vmem>>, vector<1x4x32xbf16>
    %55 = vector.shape_cast %54 : vector<1x4x32xbf16> to vector<4x32xbf16>
    %cst_63 = arith.constant dense<0.000000e+00> : vector<288x32xf32>
    %56 = tpu.matmul %53, %55, %cst_63 {dimension_numbers = #tpu.dot_dimension_numbers<[1], [0], [0], [1], [0, 0, 1, 1], [], []>} : vector<288x4xbf16>, vector<4x32xbf16>, vector<288x32xf32> -> vector<288x32xf32>
    %57 = arith.addf %51, %56 : vector<288x32xf32>
    %cst_64 = arith.constant 0.000000e+00 : f32
    %58 = vector.broadcast %cst_64 : f32 to vector<288x32xf32>
    %59 = arith.maximumf %57, %58 : vector<288x32xf32>
    %60 = vector.broadcast %0 : vector<288x1xf32> to vector<288x32xf32>
    %61 = arith.mulf %59, %60 : vector<288x32xf32>
    %cst_65 = arith.constant 0.000000e+00 : f32
    %62 = vector.broadcast %cst_65 : f32 to vector<336x32xf32>
    %c0_66 = arith.constant 0 : index
    %c0_67 = arith.constant 0 : index
    %63 = vector.load %arg8[%c0_66, %c0_67] : memref<336x32xf32, #tpu.memory_space<vmem>>, vector<336x32xf32>
    tpu.vector_store %arg8[%c0_66, %c0_67], %62 {strides = array<i32>} : memref<336x32xf32, #tpu.memory_space<vmem>>, vector<336x32xf32>,
    %cst_68 = arith.constant 0.000000e+00 : f32
    %64 = vector.broadcast %cst_68 : f32 to vector<336x32xf32>
    %c0_69 = arith.constant 0 : index
    %c0_70 = arith.constant 0 : index
    %65 = vector.load %arg9[%c0_69, %c0_70] : memref<336x32xf32, #tpu.memory_space<vmem>>, vector<336x32xf32>
    tpu.vector_store %arg9[%c0_69, %c0_70], %64 {strides = array<i32>} : memref<336x32xf32, #tpu.memory_space<vmem>>, vector<336x32xf32>,
    %c24 = arith.constant 24 : index
    %c0_71 = arith.constant 0 : index
    %66 = vector.load %arg8[%c24, %c0_71] : memref<336x32xf32, #tpu.memory_space<vmem>>, vector<288x32xf32>
    tpu.vector_store %arg8[%c24, %c0_71], %61 {strides = array<i32>} : memref<336x32xf32, #tpu.memory_space<vmem>>, vector<288x32xf32>,
    %c0_72 = arith.constant 0 : index
    %c0_73 = arith.constant 0 : index
    %c0_74 = arith.constant 0 : index
    %67 = vector.load %arg5[%c0_72, %c0_73, %c0_74] : memref<1x1x32xf32, #tpu.memory_space<vmem>>, vector<1x1x32xf32>
    %68 = vector.shape_cast %67 : vector<1x1x32xf32> to vector<1x32xf32>
    %69 = vector.shape_cast %68 : vector<1x32xf32> to vector<1x32xf32>
    %70 = vector.broadcast %69 : vector<1x32xf32> to vector<288x32xf32>
    %c5_75 = arith.constant 5 : index
    %c0_76 = arith.constant 0 : index
    %71 = vector.load %arg8[%c5_75, %c0_76] : memref<336x32xf32, #tpu.memory_space<vmem>>, vector<288x32xf32>
    %72 = arith.truncf %71 : vector<288x32xf32> to vector<288x32xbf16>
    %c0_77 = arith.constant 0 : index
    %c0_78 = arith.constant 0 : index
    %c0_79 = arith.constant 0 : index
    %c0_80 = arith.constant 0 : index
    %73 = vector.load %arg4[%c0_77, %c0_78, %c0_79, %c0_80] : memref<1x9x32x32xbf16, #tpu.memory_space<vmem>>, vector<1x1x32x32xbf16>
    %74 = vector.shape_cast %73 : vector<1x1x32x32xbf16> to vector<32x32xbf16>
    %cst_81 = arith.constant dense<0.000000e+00> : vector<288x32xf32>
    %75 = tpu.matmul %72, %74, %cst_81 {dimension_numbers = #tpu.dot_dimension_numbers<[1], [0], [0], [1], [0, 0, 1, 1], [], []>} : vector<288x32xbf16>, vector<32x32xbf16>, vector<288x32xf32> -> vector<288x32xf32>
    %76 = arith.addf %70, %75 : vector<288x32xf32>
    %c6_82 = arith.constant 6 : index
    %c0_83 = arith.constant 0 : index
    %77 = vector.load %arg8[%c6_82, %c0_83] : memref<336x32xf32, #tpu.memory_space<vmem>>, vector<288x32xf32>
    %78 = arith.truncf %77 : vector<288x32xf32> to vector<288x32xbf16>
    %c0_84 = arith.constant 0 : index
    %c1_85 = arith.constant 1 : index
    %c0_86 = arith.constant 0 : index
    %c0_87 = arith.constant 0 : index
    %79 = vector.load %arg4[%c0_84, %c1_85, %c0_86, %c0_87] : memref<1x9x32x32xbf16, #tpu.memory_space<vmem>>, vector<1x1x32x32xbf16>
    %80 = vector.shape_cast %79 : vector<1x1x32x32xbf16> to vector<32x32xbf16>
    %cst_88 = arith.constant dense<0.000000e+00> : vector<288x32xf32>
    %81 = tpu.matmul %78, %80, %cst_88 {dimension_numbers = #tpu.dot_dimension_numbers<[1], [0], [0], [1], [0, 0, 1, 1], [], []>} : vector<288x32xbf16>, vector<32x32xbf16>, vector<288x32xf32> -> vector<288x32xf32>
    %82 = arith.addf %76, %81 : vector<288x32xf32>
    %c7_89 = arith.constant 7 : index
    %c0_90 = arith.constant 0 : index
    %83 = vector.load %arg8[%c7_89, %c0_90] : memref<336x32xf32, #tpu.memory_space<vmem>>, vector<288x32xf32>
    %84 = arith.truncf %83 : vector<288x32xf32> to vector<288x32xbf16>
    %c0_91 = arith.constant 0 : index
    %c2_92 = arith.constant 2 : index
    %c0_93 = arith.constant 0 : index
    %c0_94 = arith.constant 0 : index
    %85 = vector.load %arg4[%c0_91, %c2_92, %c0_93, %c0_94] : memref<1x9x32x32xbf16, #tpu.memory_space<vmem>>, vector<1x1x32x32xbf16>
    %86 = vector.shape_cast %85 : vector<1x1x32x32xbf16> to vector<32x32xbf16>
    %cst_95 = arith.constant dense<0.000000e+00> : vector<288x32xf32>
    %87 = tpu.matmul %84, %86, %cst_95 {dimension_numbers = #tpu.dot_dimension_numbers<[1], [0], [0], [1], [0, 0, 1, 1], [], []>} : vector<288x32xbf16>, vector<32x32xbf16>, vector<288x32xf32> -> vector<288x32xf32>
    %88 = arith.addf %82, %87 : vector<288x32xf32>
    %c23 = arith.constant 23 : index
    %c0_96 = arith.constant 0 : index
    %89 = vector.load %arg8[%c23, %c0_96] : memref<336x32xf32, #tpu.memory_space<vmem>>, vector<288x32xf32>
    %90 = arith.truncf %89 : vector<288x32xf32> to vector<288x32xbf16>
    %c0_97 = arith.constant 0 : index
    %c3_98 = arith.constant 3 : index
    %c0_99 = arith.constant 0 : index
    %c0_100 = arith.constant 0 : index
    %91 = vector.load %arg4[%c0_97, %c3_98, %c0_99, %c0_100] : memref<1x9x32x32xbf16, #tpu.memory_space<vmem>>, vector<1x1x32x32xbf16>
    %92 = vector.shape_cast %91 : vector<1x1x32x32xbf16> to vector<32x32xbf16>
    %cst_101 = arith.constant dense<0.000000e+00> : vector<288x32xf32>
    %93 = tpu.matmul %90, %92, %cst_101 {dimension_numbers = #tpu.dot_dimension_numbers<[1], [0], [0], [1], [0, 0, 1, 1], [], []>} : vector<288x32xbf16>, vector<32x32xbf16>, vector<288x32xf32> -> vector<288x32xf32>
    %94 = arith.addf %88, %93 : vector<288x32xf32>
    %c24_102 = arith.constant 24 : index
    %c0_103 = arith.constant 0 : index
    %95 = vector.load %arg8[%c24_102, %c0_103] : memref<336x32xf32, #tpu.memory_space<vmem>>, vector<288x32xf32>
    %96 = arith.truncf %95 : vector<288x32xf32> to vector<288x32xbf16>
    %c0_104 = arith.constant 0 : index
    %c4_105 = arith.constant 4 : index
    %c0_106 = arith.constant 0 : index
    %c0_107 = arith.constant 0 : index
    %97 = vector.load %arg4[%c0_104, %c4_105, %c0_106, %c0_107] : memref<1x9x32x32xbf16, #tpu.memory_space<vmem>>, vector<1x1x32x32xbf16>
    %98 = vector.shape_cast %97 : vector<1x1x32x32xbf16> to vector<32x32xbf16>
    %cst_108 = arith.constant dense<0.000000e+00> : vector<288x32xf32>
    %99 = tpu.matmul %96, %98, %cst_108 {dimension_numbers = #tpu.dot_dimension_numbers<[1], [0], [0], [1], [0, 0, 1, 1], [], []>} : vector<288x32xbf16>, vector<32x32xbf16>, vector<288x32xf32> -> vector<288x32xf32>
    %100 = arith.addf %94, %99 : vector<288x32xf32>
    %c25 = arith.constant 25 : index
    %c0_109 = arith.constant 0 : index
    %101 = vector.load %arg8[%c25, %c0_109] : memref<336x32xf32, #tpu.memory_space<vmem>>, vector<288x32xf32>
    %102 = arith.truncf %101 : vector<288x32xf32> to vector<288x32xbf16>
    %c0_110 = arith.constant 0 : index
    %c5_111 = arith.constant 5 : index
    %c0_112 = arith.constant 0 : index
    %c0_113 = arith.constant 0 : index
    %103 = vector.load %arg4[%c0_110, %c5_111, %c0_112, %c0_113] : memref<1x9x32x32xbf16, #tpu.memory_space<vmem>>, vector<1x1x32x32xbf16>
    %104 = vector.shape_cast %103 : vector<1x1x32x32xbf16> to vector<32x32xbf16>
    %cst_114 = arith.constant dense<0.000000e+00> : vector<288x32xf32>
    %105 = tpu.matmul %102, %104, %cst_114 {dimension_numbers = #tpu.dot_dimension_numbers<[1], [0], [0], [1], [0, 0, 1, 1], [], []>} : vector<288x32xbf16>, vector<32x32xbf16>, vector<288x32xf32> -> vector<288x32xf32>
    %106 = arith.addf %100, %105 : vector<288x32xf32>
    %c41 = arith.constant 41 : index
    %c0_115 = arith.constant 0 : index
    %107 = vector.load %arg8[%c41, %c0_115] : memref<336x32xf32, #tpu.memory_space<vmem>>, vector<288x32xf32>
    %108 = arith.truncf %107 : vector<288x32xf32> to vector<288x32xbf16>
    %c0_116 = arith.constant 0 : index
    %c6_117 = arith.constant 6 : index
    %c0_118 = arith.constant 0 : index
    %c0_119 = arith.constant 0 : index
    %109 = vector.load %arg4[%c0_116, %c6_117, %c0_118, %c0_119] : memref<1x9x32x32xbf16, #tpu.memory_space<vmem>>, vector<1x1x32x32xbf16>
    %110 = vector.shape_cast %109 : vector<1x1x32x32xbf16> to vector<32x32xbf16>
    %cst_120 = arith.constant dense<0.000000e+00> : vector<288x32xf32>
    %111 = tpu.matmul %108, %110, %cst_120 {dimension_numbers = #tpu.dot_dimension_numbers<[1], [0], [0], [1], [0, 0, 1, 1], [], []>} : vector<288x32xbf16>, vector<32x32xbf16>, vector<288x32xf32> -> vector<288x32xf32>
    %112 = arith.addf %106, %111 : vector<288x32xf32>
    %c42 = arith.constant 42 : index
    %c0_121 = arith.constant 0 : index
    %113 = vector.load %arg8[%c42, %c0_121] : memref<336x32xf32, #tpu.memory_space<vmem>>, vector<288x32xf32>
    %114 = arith.truncf %113 : vector<288x32xf32> to vector<288x32xbf16>
    %c0_122 = arith.constant 0 : index
    %c7_123 = arith.constant 7 : index
    %c0_124 = arith.constant 0 : index
    %c0_125 = arith.constant 0 : index
    %115 = vector.load %arg4[%c0_122, %c7_123, %c0_124, %c0_125] : memref<1x9x32x32xbf16, #tpu.memory_space<vmem>>, vector<1x1x32x32xbf16>
    %116 = vector.shape_cast %115 : vector<1x1x32x32xbf16> to vector<32x32xbf16>
    %cst_126 = arith.constant dense<0.000000e+00> : vector<288x32xf32>
    %117 = tpu.matmul %114, %116, %cst_126 {dimension_numbers = #tpu.dot_dimension_numbers<[1], [0], [0], [1], [0, 0, 1, 1], [], []>} : vector<288x32xbf16>, vector<32x32xbf16>, vector<288x32xf32> -> vector<288x32xf32>
    %118 = arith.addf %112, %117 : vector<288x32xf32>
    %c43 = arith.constant 43 : index
    %c0_127 = arith.constant 0 : index
    %119 = vector.load %arg8[%c43, %c0_127] : memref<336x32xf32, #tpu.memory_space<vmem>>, vector<288x32xf32>
    %120 = arith.truncf %119 : vector<288x32xf32> to vector<288x32xbf16>
    %c0_128 = arith.constant 0 : index
    %c8_129 = arith.constant 8 : index
    %c0_130 = arith.constant 0 : index
    %c0_131 = arith.constant 0 : index
    %121 = vector.load %arg4[%c0_128, %c8_129, %c0_130, %c0_131] : memref<1x9x32x32xbf16, #tpu.memory_space<vmem>>, vector<1x1x32x32xbf16>
    %122 = vector.shape_cast %121 : vector<1x1x32x32xbf16> to vector<32x32xbf16>
    %cst_132 = arith.constant dense<0.000000e+00> : vector<288x32xf32>
    %123 = tpu.matmul %120, %122, %cst_132 {dimension_numbers = #tpu.dot_dimension_numbers<[1], [0], [0], [1], [0, 0, 1, 1], [], []>} : vector<288x32xbf16>, vector<32x32xbf16>, vector<288x32xf32> -> vector<288x32xf32>
    %124 = arith.addf %118, %123 : vector<288x32xf32>
    %cst_133 = arith.constant 0.000000e+00 : f32
    %125 = vector.broadcast %cst_133 : f32 to vector<288x32xf32>
    %126 = arith.maximumf %124, %125 : vector<288x32xf32>
    %127 = vector.broadcast %0 : vector<288x1xf32> to vector<288x32xf32>
    %128 = arith.mulf %126, %127 : vector<288x32xf32>
    %129 = arith.truncf %128 : vector<288x32xf32> to vector<288x32xbf16>
    %c0_134 = arith.constant 0 : index
    %c0_135 = arith.constant 0 : index
    %c0_136 = arith.constant 0 : index
    %130 = vector.load %arg7[%c0_134, %c0_135, %c0_136] : memref<1x288x32xbf16, #tpu.memory_space<vmem>>, vector<1x288x32xbf16>
    %131 = vector.shape_cast %130 : vector<1x288x32xbf16> to vector<288x32xbf16>
    %132 = vector.shape_cast %129 : vector<288x32xbf16> to vector<1x288x32xbf16>
    tpu.vector_store %arg7[%c0_134, %c0_135, %c0_136], %132 {strides = array<i32>} : memref<1x288x32xbf16, #tpu.memory_space<vmem>>, vector<1x288x32xbf16>,
    return
  }
  func.func @transform_0(%arg0: i32) -> (i32, i32, i32, i32) {
    %c0_i32 = arith.constant 0 : i32
    %c0_i32_0 = arith.constant 0 : i32
    %c0_i32_1 = arith.constant 0 : i32
    %c0_i32_2 = arith.constant 0 : i32
    return %arg0, %c0_i32, %c0_i32_0, %c0_i32_1 : i32, i32, i32, i32
  }
  func.func @transform_1(%arg0: i32) -> (i32, i32, i32) {
    %c0_i32 = arith.constant 0 : i32
    %c0_i32_0 = arith.constant 0 : i32
    %c0_i32_1 = arith.constant 0 : i32
    %c0_i32_2 = arith.constant 0 : i32
    return %c0_i32, %c0_i32_0, %c0_i32_1 : i32, i32, i32
  }
  func.func @transform_2(%arg0: i32) -> (i32, i32) {
    %c0_i32 = arith.constant 0 : i32
    %c0_i32_0 = arith.constant 0 : i32
    %c0_i32_1 = arith.constant 0 : i32
    return %c0_i32, %c0_i32_0 : i32, i32
  }
  func.func @transform_3(%arg0: i32) -> (i32, i32, i32, i32) {
    %c0_i32 = arith.constant 0 : i32
    %c0_i32_0 = arith.constant 0 : i32
    %c0_i32_1 = arith.constant 0 : i32
    %c0_i32_2 = arith.constant 0 : i32
    %c0_i32_3 = arith.constant 0 : i32
    return %c0_i32, %c0_i32_0, %c0_i32_1, %c0_i32_2 : i32, i32, i32, i32
  }
  func.func @transform_4(%arg0: i32) -> (i32, i32, i32) {
    %c0_i32 = arith.constant 0 : i32
    %c0_i32_0 = arith.constant 0 : i32
    %c0_i32_1 = arith.constant 0 : i32
    %c0_i32_2 = arith.constant 0 : i32
    return %c0_i32, %c0_i32_0, %c0_i32_1 : i32, i32, i32
  }
  func.func @transform_5(%arg0: i32) -> (i32, i32) {
    %c0_i32 = arith.constant 0 : i32
    %c0_i32_0 = arith.constant 0 : i32
    %c0_i32_1 = arith.constant 0 : i32
    return %c0_i32, %c0_i32_0 : i32, i32
  }
  func.func @transform_6(%arg0: i32) -> (i32, i32, i32) {
    %c0_i32 = arith.constant 0 : i32
    %c0_i32_0 = arith.constant 0 : i32
    %c0_i32_1 = arith.constant 0 : i32
    return %arg0, %c0_i32, %c0_i32_0 : i32, i32, i32
  }
}

module attributes {stable_mosaic.version = 11 : i64} {
  func.func @_conv_pool_fc_kernel(%arg0: i32, %arg1: memref<1x4x90x32xbf16, #tpu.memory_space<vmem>>, %arg2: memref<9x32x32xbf16, #tpu.memory_space<vmem>>, %arg3: memref<1x32xf32, #tpu.memory_space<vmem>>, %arg4: memref<4x32x10xbf16, #tpu.memory_space<vmem>>, %arg5: memref<1x10xf32, #tpu.memory_space<vmem>>, %arg6: memref<1x1x10xf32, #tpu.memory_space<vmem>>) attributes {dimension_semantics = [#tpu.dimension_semantics<parallel>], iteration_bounds = array<i64: 2>, scalar_prefetch = 0 : i64, scratch_operands = 0 : i64, tpu.core_type = #tpu.core_type<tc>, window_params = [{transform_indices = @transform_0, window_bounds = array<i64: 1, 4, 90, 32>}, {pipeline_mode = #tpu.pipeline_mode<synchronous>, transform_indices = @transform_1, window_bounds = array<i64: 9, 32, 32>}, {pipeline_mode = #tpu.pipeline_mode<synchronous>, transform_indices = @transform_2, window_bounds = array<i64: 1, 32>}, {pipeline_mode = #tpu.pipeline_mode<synchronous>, transform_indices = @transform_3, window_bounds = array<i64: 4, 32, 10>}, {pipeline_mode = #tpu.pipeline_mode<synchronous>, transform_indices = @transform_4, window_bounds = array<i64: 1, 10>}, {transform_indices = @transform_5, window_bounds = array<i64: 1, 1, 10>}]} {
    %c0 = arith.constant 0 : index
    %c0_0 = arith.constant 0 : index
    %0 = vector.load %arg3[%c0, %c0_0] : memref<1x32xf32, #tpu.memory_space<vmem>>, vector<1x32xf32>
    %1 = vector.shape_cast %0 : vector<1x32xf32> to vector<1x32xf32>
    %2 = vector.broadcast %1 : vector<1x32xf32> to vector<72x32xf32>
    %c0_1 = arith.constant 0 : index
    %c0_2 = arith.constant 0 : index
    %c0_3 = arith.constant 0 : index
    %c0_4 = arith.constant 0 : index
    %3 = vector.load %arg1[%c0_1, %c0_2, %c0_3, %c0_4] : memref<1x4x90x32xbf16, #tpu.memory_space<vmem>>, vector<1x1x72x32xbf16>
    %4 = vector.shape_cast %3 : vector<1x1x72x32xbf16> to vector<72x32xbf16>
    %c0_5 = arith.constant 0 : index
    %c0_6 = arith.constant 0 : index
    %c0_7 = arith.constant 0 : index
    %5 = vector.load %arg2[%c0_5, %c0_6, %c0_7] : memref<9x32x32xbf16, #tpu.memory_space<vmem>>, vector<1x32x32xbf16>
    %6 = vector.shape_cast %5 : vector<1x32x32xbf16> to vector<32x32xbf16>
    %cst = arith.constant dense<0.000000e+00> : vector<72x32xf32>
    %7 = tpu.matmul %4, %6, %cst {dimension_numbers = #tpu.dot_dimension_numbers<[1], [0], [0], [1], [0, 0, 1, 1], [], []>} : vector<72x32xbf16>, vector<32x32xbf16>, vector<72x32xf32> -> vector<72x32xf32>
    %8 = arith.addf %2, %7 : vector<72x32xf32>
    %c0_8 = arith.constant 0 : index
    %c1 = arith.constant 1 : index
    %c0_9 = arith.constant 0 : index
    %c0_10 = arith.constant 0 : index
    %9 = vector.load %arg1[%c0_8, %c1, %c0_9, %c0_10] : memref<1x4x90x32xbf16, #tpu.memory_space<vmem>>, vector<1x1x72x32xbf16>
    %10 = vector.shape_cast %9 : vector<1x1x72x32xbf16> to vector<72x32xbf16>
    %c1_11 = arith.constant 1 : index
    %c0_12 = arith.constant 0 : index
    %c0_13 = arith.constant 0 : index
    %11 = vector.load %arg2[%c1_11, %c0_12, %c0_13] : memref<9x32x32xbf16, #tpu.memory_space<vmem>>, vector<1x32x32xbf16>
    %12 = vector.shape_cast %11 : vector<1x32x32xbf16> to vector<32x32xbf16>
    %cst_14 = arith.constant dense<0.000000e+00> : vector<72x32xf32>
    %13 = tpu.matmul %10, %12, %cst_14 {dimension_numbers = #tpu.dot_dimension_numbers<[1], [0], [0], [1], [0, 0, 1, 1], [], []>} : vector<72x32xbf16>, vector<32x32xbf16>, vector<72x32xf32> -> vector<72x32xf32>
    %14 = arith.addf %8, %13 : vector<72x32xf32>
    %c0_15 = arith.constant 0 : index
    %c0_16 = arith.constant 0 : index
    %c1_17 = arith.constant 1 : index
    %c0_18 = arith.constant 0 : index
    %15 = vector.load %arg1[%c0_15, %c0_16, %c1_17, %c0_18] : memref<1x4x90x32xbf16, #tpu.memory_space<vmem>>, vector<1x1x72x32xbf16>
    %16 = vector.shape_cast %15 : vector<1x1x72x32xbf16> to vector<72x32xbf16>
    %c2 = arith.constant 2 : index
    %c0_19 = arith.constant 0 : index
    %c0_20 = arith.constant 0 : index
    %17 = vector.load %arg2[%c2, %c0_19, %c0_20] : memref<9x32x32xbf16, #tpu.memory_space<vmem>>, vector<1x32x32xbf16>
    %18 = vector.shape_cast %17 : vector<1x32x32xbf16> to vector<32x32xbf16>
    %cst_21 = arith.constant dense<0.000000e+00> : vector<72x32xf32>
    %19 = tpu.matmul %16, %18, %cst_21 {dimension_numbers = #tpu.dot_dimension_numbers<[1], [0], [0], [1], [0, 0, 1, 1], [], []>} : vector<72x32xbf16>, vector<32x32xbf16>, vector<72x32xf32> -> vector<72x32xf32>
    %20 = arith.addf %14, %19 : vector<72x32xf32>
    %c0_22 = arith.constant 0 : index
    %c2_23 = arith.constant 2 : index
    %c0_24 = arith.constant 0 : index
    %c0_25 = arith.constant 0 : index
    %21 = vector.load %arg1[%c0_22, %c2_23, %c0_24, %c0_25] : memref<1x4x90x32xbf16, #tpu.memory_space<vmem>>, vector<1x1x72x32xbf16>
    %22 = vector.shape_cast %21 : vector<1x1x72x32xbf16> to vector<72x32xbf16>
    %c3 = arith.constant 3 : index
    %c0_26 = arith.constant 0 : index
    %c0_27 = arith.constant 0 : index
    %23 = vector.load %arg2[%c3, %c0_26, %c0_27] : memref<9x32x32xbf16, #tpu.memory_space<vmem>>, vector<1x32x32xbf16>
    %24 = vector.shape_cast %23 : vector<1x32x32xbf16> to vector<32x32xbf16>
    %cst_28 = arith.constant dense<0.000000e+00> : vector<72x32xf32>
    %25 = tpu.matmul %22, %24, %cst_28 {dimension_numbers = #tpu.dot_dimension_numbers<[1], [0], [0], [1], [0, 0, 1, 1], [], []>} : vector<72x32xbf16>, vector<32x32xbf16>, vector<72x32xf32> -> vector<72x32xf32>
    %26 = arith.addf %20, %25 : vector<72x32xf32>
    %c0_29 = arith.constant 0 : index
    %c3_30 = arith.constant 3 : index
    %c0_31 = arith.constant 0 : index
    %c0_32 = arith.constant 0 : index
    %27 = vector.load %arg1[%c0_29, %c3_30, %c0_31, %c0_32] : memref<1x4x90x32xbf16, #tpu.memory_space<vmem>>, vector<1x1x72x32xbf16>
    %28 = vector.shape_cast %27 : vector<1x1x72x32xbf16> to vector<72x32xbf16>
    %c4 = arith.constant 4 : index
    %c0_33 = arith.constant 0 : index
    %c0_34 = arith.constant 0 : index
    %29 = vector.load %arg2[%c4, %c0_33, %c0_34] : memref<9x32x32xbf16, #tpu.memory_space<vmem>>, vector<1x32x32xbf16>
    %30 = vector.shape_cast %29 : vector<1x32x32xbf16> to vector<32x32xbf16>
    %cst_35 = arith.constant dense<0.000000e+00> : vector<72x32xf32>
    %31 = tpu.matmul %28, %30, %cst_35 {dimension_numbers = #tpu.dot_dimension_numbers<[1], [0], [0], [1], [0, 0, 1, 1], [], []>} : vector<72x32xbf16>, vector<32x32xbf16>, vector<72x32xf32> -> vector<72x32xf32>
    %32 = arith.addf %26, %31 : vector<72x32xf32>
    %c0_36 = arith.constant 0 : index
    %c2_37 = arith.constant 2 : index
    %c1_38 = arith.constant 1 : index
    %c0_39 = arith.constant 0 : index
    %33 = vector.load %arg1[%c0_36, %c2_37, %c1_38, %c0_39] : memref<1x4x90x32xbf16, #tpu.memory_space<vmem>>, vector<1x1x72x32xbf16>
    %34 = vector.shape_cast %33 : vector<1x1x72x32xbf16> to vector<72x32xbf16>
    %c5 = arith.constant 5 : index
    %c0_40 = arith.constant 0 : index
    %c0_41 = arith.constant 0 : index
    %35 = vector.load %arg2[%c5, %c0_40, %c0_41] : memref<9x32x32xbf16, #tpu.memory_space<vmem>>, vector<1x32x32xbf16>
    %36 = vector.shape_cast %35 : vector<1x32x32xbf16> to vector<32x32xbf16>
    %cst_42 = arith.constant dense<0.000000e+00> : vector<72x32xf32>
    %37 = tpu.matmul %34, %36, %cst_42 {dimension_numbers = #tpu.dot_dimension_numbers<[1], [0], [0], [1], [0, 0, 1, 1], [], []>} : vector<72x32xbf16>, vector<32x32xbf16>, vector<72x32xf32> -> vector<72x32xf32>
    %38 = arith.addf %32, %37 : vector<72x32xf32>
    %c0_43 = arith.constant 0 : index
    %c0_44 = arith.constant 0 : index
    %c9 = arith.constant 9 : index
    %c0_45 = arith.constant 0 : index
    %39 = vector.load %arg1[%c0_43, %c0_44, %c9, %c0_45] : memref<1x4x90x32xbf16, #tpu.memory_space<vmem>>, vector<1x1x72x32xbf16>
    %40 = vector.shape_cast %39 : vector<1x1x72x32xbf16> to vector<72x32xbf16>
    %c6 = arith.constant 6 : index
    %c0_46 = arith.constant 0 : index
    %c0_47 = arith.constant 0 : index
    %41 = vector.load %arg2[%c6, %c0_46, %c0_47] : memref<9x32x32xbf16, #tpu.memory_space<vmem>>, vector<1x32x32xbf16>
    %42 = vector.shape_cast %41 : vector<1x32x32xbf16> to vector<32x32xbf16>
    %cst_48 = arith.constant dense<0.000000e+00> : vector<72x32xf32>
    %43 = tpu.matmul %40, %42, %cst_48 {dimension_numbers = #tpu.dot_dimension_numbers<[1], [0], [0], [1], [0, 0, 1, 1], [], []>} : vector<72x32xbf16>, vector<32x32xbf16>, vector<72x32xf32> -> vector<72x32xf32>
    %44 = arith.addf %38, %43 : vector<72x32xf32>
    %c0_49 = arith.constant 0 : index
    %c1_50 = arith.constant 1 : index
    %c9_51 = arith.constant 9 : index
    %c0_52 = arith.constant 0 : index
    %45 = vector.load %arg1[%c0_49, %c1_50, %c9_51, %c0_52] : memref<1x4x90x32xbf16, #tpu.memory_space<vmem>>, vector<1x1x72x32xbf16>
    %46 = vector.shape_cast %45 : vector<1x1x72x32xbf16> to vector<72x32xbf16>
    %c7 = arith.constant 7 : index
    %c0_53 = arith.constant 0 : index
    %c0_54 = arith.constant 0 : index
    %47 = vector.load %arg2[%c7, %c0_53, %c0_54] : memref<9x32x32xbf16, #tpu.memory_space<vmem>>, vector<1x32x32xbf16>
    %48 = vector.shape_cast %47 : vector<1x32x32xbf16> to vector<32x32xbf16>
    %cst_55 = arith.constant dense<0.000000e+00> : vector<72x32xf32>
    %49 = tpu.matmul %46, %48, %cst_55 {dimension_numbers = #tpu.dot_dimension_numbers<[1], [0], [0], [1], [0, 0, 1, 1], [], []>} : vector<72x32xbf16>, vector<32x32xbf16>, vector<72x32xf32> -> vector<72x32xf32>
    %50 = arith.addf %44, %49 : vector<72x32xf32>
    %c0_56 = arith.constant 0 : index
    %c0_57 = arith.constant 0 : index
    %c10 = arith.constant 10 : index
    %c0_58 = arith.constant 0 : index
    %51 = vector.load %arg1[%c0_56, %c0_57, %c10, %c0_58] : memref<1x4x90x32xbf16, #tpu.memory_space<vmem>>, vector<1x1x72x32xbf16>
    %52 = vector.shape_cast %51 : vector<1x1x72x32xbf16> to vector<72x32xbf16>
    %c8 = arith.constant 8 : index
    %c0_59 = arith.constant 0 : index
    %c0_60 = arith.constant 0 : index
    %53 = vector.load %arg2[%c8, %c0_59, %c0_60] : memref<9x32x32xbf16, #tpu.memory_space<vmem>>, vector<1x32x32xbf16>
    %54 = vector.shape_cast %53 : vector<1x32x32xbf16> to vector<32x32xbf16>
    %cst_61 = arith.constant dense<0.000000e+00> : vector<72x32xf32>
    %55 = tpu.matmul %52, %54, %cst_61 {dimension_numbers = #tpu.dot_dimension_numbers<[1], [0], [0], [1], [0, 0, 1, 1], [], []>} : vector<72x32xbf16>, vector<32x32xbf16>, vector<72x32xf32> -> vector<72x32xf32>
    %56 = arith.addf %50, %55 : vector<72x32xf32>
    %cst_62 = arith.constant 0.000000e+00 : f32
    %57 = vector.broadcast %cst_62 : f32 to vector<72x32xf32>
    %58 = arith.maximumf %56, %57 : vector<72x32xf32>
    %c0_63 = arith.constant 0 : index
    %c0_64 = arith.constant 0 : index
    %59 = vector.load %arg5[%c0_63, %c0_64] : memref<1x10xf32, #tpu.memory_space<vmem>>, vector<1x10xf32>
    %60 = vector.extract_strided_slice %58 {offsets = [0, 0], sizes = [3, 32], strides = [1, 1]} : vector<72x32xf32> to vector<3x32xf32>
    %61 = vector.extract_strided_slice %58 {offsets = [9, 0], sizes = [3, 32], strides = [1, 1]} : vector<72x32xf32> to vector<3x32xf32>
    %62 = arith.maximumf %60, %61 : vector<3x32xf32>
    %63 = vector.extract_strided_slice %58 {offsets = [18, 0], sizes = [3, 32], strides = [1, 1]} : vector<72x32xf32> to vector<3x32xf32>
    %64 = arith.maximumf %62, %63 : vector<3x32xf32>
    %cst_65 = arith.constant dense<0xFF800000> : vector<32xf32>
    %65 = vector.multi_reduction <maximumf>, %64, %cst_65 [0] : vector<3x32xf32> to vector<32xf32>
    %66 = vector.shape_cast %65 : vector<32xf32> to vector<1x32xf32>
    %67 = arith.truncf %66 : vector<1x32xf32> to vector<1x32xbf16>
    %c0_66 = arith.constant 0 : index
    %c0_67 = arith.constant 0 : index
    %c0_68 = arith.constant 0 : index
    %68 = vector.load %arg4[%c0_66, %c0_67, %c0_68] : memref<4x32x10xbf16, #tpu.memory_space<vmem>>, vector<1x32x10xbf16>
    %69 = vector.shape_cast %68 : vector<1x32x10xbf16> to vector<32x10xbf16>
    %cst_69 = arith.constant dense<0.000000e+00> : vector<1x10xf32>
    %70 = tpu.matmul %67, %69, %cst_69 {dimension_numbers = #tpu.dot_dimension_numbers<[1], [0], [0], [1], [0, 0, 1, 1], [], []>} : vector<1x32xbf16>, vector<32x10xbf16>, vector<1x10xf32> -> vector<1x10xf32>
    %71 = arith.addf %59, %70 : vector<1x10xf32>
    %72 = vector.extract_strided_slice %58 {offsets = [3, 0], sizes = [3, 32], strides = [1, 1]} : vector<72x32xf32> to vector<3x32xf32>
    %73 = vector.extract_strided_slice %58 {offsets = [12, 0], sizes = [3, 32], strides = [1, 1]} : vector<72x32xf32> to vector<3x32xf32>
    %74 = arith.maximumf %72, %73 : vector<3x32xf32>
    %75 = vector.extract_strided_slice %58 {offsets = [21, 0], sizes = [3, 32], strides = [1, 1]} : vector<72x32xf32> to vector<3x32xf32>
    %76 = arith.maximumf %74, %75 : vector<3x32xf32>
    %cst_70 = arith.constant dense<0xFF800000> : vector<32xf32>
    %77 = vector.multi_reduction <maximumf>, %76, %cst_70 [0] : vector<3x32xf32> to vector<32xf32>
    %78 = vector.shape_cast %77 : vector<32xf32> to vector<1x32xf32>
    %79 = arith.truncf %78 : vector<1x32xf32> to vector<1x32xbf16>
    %c1_71 = arith.constant 1 : index
    %c0_72 = arith.constant 0 : index
    %c0_73 = arith.constant 0 : index
    %80 = vector.load %arg4[%c1_71, %c0_72, %c0_73] : memref<4x32x10xbf16, #tpu.memory_space<vmem>>, vector<1x32x10xbf16>
    %81 = vector.shape_cast %80 : vector<1x32x10xbf16> to vector<32x10xbf16>
    %cst_74 = arith.constant dense<0.000000e+00> : vector<1x10xf32>
    %82 = tpu.matmul %79, %81, %cst_74 {dimension_numbers = #tpu.dot_dimension_numbers<[1], [0], [0], [1], [0, 0, 1, 1], [], []>} : vector<1x32xbf16>, vector<32x10xbf16>, vector<1x10xf32> -> vector<1x10xf32>
    %83 = arith.addf %71, %82 : vector<1x10xf32>
    %84 = vector.extract_strided_slice %58 {offsets = [27, 0], sizes = [3, 32], strides = [1, 1]} : vector<72x32xf32> to vector<3x32xf32>
    %85 = vector.extract_strided_slice %58 {offsets = [36, 0], sizes = [3, 32], strides = [1, 1]} : vector<72x32xf32> to vector<3x32xf32>
    %86 = arith.maximumf %84, %85 : vector<3x32xf32>
    %87 = vector.extract_strided_slice %58 {offsets = [45, 0], sizes = [3, 32], strides = [1, 1]} : vector<72x32xf32> to vector<3x32xf32>
    %88 = arith.maximumf %86, %87 : vector<3x32xf32>
    %cst_75 = arith.constant dense<0xFF800000> : vector<32xf32>
    %89 = vector.multi_reduction <maximumf>, %88, %cst_75 [0] : vector<3x32xf32> to vector<32xf32>
    %90 = vector.shape_cast %89 : vector<32xf32> to vector<1x32xf32>
    %91 = arith.truncf %90 : vector<1x32xf32> to vector<1x32xbf16>
    %c2_76 = arith.constant 2 : index
    %c0_77 = arith.constant 0 : index
    %c0_78 = arith.constant 0 : index
    %92 = vector.load %arg4[%c2_76, %c0_77, %c0_78] : memref<4x32x10xbf16, #tpu.memory_space<vmem>>, vector<1x32x10xbf16>
    %93 = vector.shape_cast %92 : vector<1x32x10xbf16> to vector<32x10xbf16>
    %cst_79 = arith.constant dense<0.000000e+00> : vector<1x10xf32>
    %94 = tpu.matmul %91, %93, %cst_79 {dimension_numbers = #tpu.dot_dimension_numbers<[1], [0], [0], [1], [0, 0, 1, 1], [], []>} : vector<1x32xbf16>, vector<32x10xbf16>, vector<1x10xf32> -> vector<1x10xf32>
    %95 = arith.addf %83, %94 : vector<1x10xf32>
    %96 = vector.extract_strided_slice %58 {offsets = [30, 0], sizes = [3, 32], strides = [1, 1]} : vector<72x32xf32> to vector<3x32xf32>
    %97 = vector.extract_strided_slice %58 {offsets = [39, 0], sizes = [3, 32], strides = [1, 1]} : vector<72x32xf32> to vector<3x32xf32>
    %98 = arith.maximumf %96, %97 : vector<3x32xf32>
    %99 = vector.extract_strided_slice %58 {offsets = [48, 0], sizes = [3, 32], strides = [1, 1]} : vector<72x32xf32> to vector<3x32xf32>
    %100 = arith.maximumf %98, %99 : vector<3x32xf32>
    %cst_80 = arith.constant dense<0xFF800000> : vector<32xf32>
    %101 = vector.multi_reduction <maximumf>, %100, %cst_80 [0] : vector<3x32xf32> to vector<32xf32>
    %102 = vector.shape_cast %101 : vector<32xf32> to vector<1x32xf32>
    %103 = arith.truncf %102 : vector<1x32xf32> to vector<1x32xbf16>
    %c3_81 = arith.constant 3 : index
    %c0_82 = arith.constant 0 : index
    %c0_83 = arith.constant 0 : index
    %104 = vector.load %arg4[%c3_81, %c0_82, %c0_83] : memref<4x32x10xbf16, #tpu.memory_space<vmem>>, vector<1x32x10xbf16>
    %105 = vector.shape_cast %104 : vector<1x32x10xbf16> to vector<32x10xbf16>
    %cst_84 = arith.constant dense<0.000000e+00> : vector<1x10xf32>
    %106 = tpu.matmul %103, %105, %cst_84 {dimension_numbers = #tpu.dot_dimension_numbers<[1], [0], [0], [1], [0, 0, 1, 1], [], []>} : vector<1x32xbf16>, vector<32x10xbf16>, vector<1x10xf32> -> vector<1x10xf32>
    %107 = arith.addf %95, %106 : vector<1x10xf32>
    %c0_85 = arith.constant 0 : index
    %c0_86 = arith.constant 0 : index
    %c0_87 = arith.constant 0 : index
    %108 = vector.load %arg6[%c0_85, %c0_86, %c0_87] : memref<1x1x10xf32, #tpu.memory_space<vmem>>, vector<1x1x10xf32>
    %109 = vector.shape_cast %108 : vector<1x1x10xf32> to vector<1x10xf32>
    %110 = vector.shape_cast %107 : vector<1x10xf32> to vector<1x1x10xf32>
    tpu.vector_store %arg6[%c0_85, %c0_86, %c0_87], %110 {strides = array<i32>} : memref<1x1x10xf32, #tpu.memory_space<vmem>>, vector<1x1x10xf32>,
    return
  }
  func.func @transform_0(%arg0: i32) -> (i32, i32, i32, i32) {
    %c0_i32 = arith.constant 0 : i32
    %c0_i32_0 = arith.constant 0 : i32
    %c0_i32_1 = arith.constant 0 : i32
    %c0_i32_2 = arith.constant 0 : i32
    return %arg0, %c0_i32, %c0_i32_0, %c0_i32_1 : i32, i32, i32, i32
  }
  func.func @transform_1(%arg0: i32) -> (i32, i32, i32) {
    %c0_i32 = arith.constant 0 : i32
    %c0_i32_0 = arith.constant 0 : i32
    %c0_i32_1 = arith.constant 0 : i32
    %c0_i32_2 = arith.constant 0 : i32
    return %c0_i32, %c0_i32_0, %c0_i32_1 : i32, i32, i32
  }
  func.func @transform_2(%arg0: i32) -> (i32, i32) {
    %c0_i32 = arith.constant 0 : i32
    %c0_i32_0 = arith.constant 0 : i32
    %c0_i32_1 = arith.constant 0 : i32
    return %c0_i32, %c0_i32_0 : i32, i32
  }
  func.func @transform_3(%arg0: i32) -> (i32, i32, i32) {
    %c0_i32 = arith.constant 0 : i32
    %c0_i32_0 = arith.constant 0 : i32
    %c0_i32_1 = arith.constant 0 : i32
    %c0_i32_2 = arith.constant 0 : i32
    return %c0_i32, %c0_i32_0, %c0_i32_1 : i32, i32, i32
  }
  func.func @transform_4(%arg0: i32) -> (i32, i32) {
    %c0_i32 = arith.constant 0 : i32
    %c0_i32_0 = arith.constant 0 : i32
    %c0_i32_1 = arith.constant 0 : i32
    return %c0_i32, %c0_i32_0 : i32, i32
  }
  func.func @transform_5(%arg0: i32) -> (i32, i32, i32) {
    %c0_i32 = arith.constant 0 : i32
    %c0_i32_0 = arith.constant 0 : i32
    %c0_i32_1 = arith.constant 0 : i32
    return %arg0, %c0_i32, %c0_i32_0 : i32, i32, i32
  }
}

</mosaic_0001>

<llo_original>
// kernel: convnet_forward.3
$region0: #{convnet_forward.3}
  #allocation0 [shape = 'u32[]', space=smem, size = 0x4, offset = 0x4, fixed_abs, tag = 'smem constant byte address 0x4 - core index']
  #allocation1 [shape = 'u32[72,128]{1,0:T(1,128)}', space=vmem, size = 0x9000, scoped, tag = 'internal scratch']
  %s0 = inlined_call_operand.vmem [shape: bf16[2,4,90,32], index: 0, kind: input, shape index: {}]
  %s1 = inlined_call_operand.vmem [shape: bf16[9,32,32], index: 1, kind: input, shape index: {}]
  %s2 = inlined_call_operand.vmem [shape: f32[1,32], index: 2, kind: input, shape index: {}]
  %s3 = inlined_call_operand.vmem [shape: bf16[4,32,10], index: 3, kind: input, shape index: {}]
  %s4 = inlined_call_operand.vmem [shape: f32[1,10], index: 4, kind: input, shape index: {}]
  %s5 = inlined_call_operand.hbm [shape: f32[2,1,10], index: 5, kind: output, shape index: {}]
  %s6 = sld [smem:[#allocation0]]
  $region53: #{convnet_forward.3} parent=0
    _
  %s8 = ssub.s32 1, %s6
  %s9 = scalar_select 0, %s8, %s6
  $region1: #{convnet_forward.3} parent=0
    #allocation2 [shape = 'u8[1024]{0}', space=vmem, size = 0x400, scoped, tag = 'output window, operand 0']
    #allocation3 [shape = 's32[2]{0}', space=sflag, size = 0x8, scoped, tag = 'scoped memory for convnet_forward.3']
    %10 = vsyncpa [#allocation3], 0
    %s11 = scalar_lea.sflag [#allocation3], 1
    %12 = vsyncpa %s11, 0
    loop: start=0, step=1, limit=4
    $region2: #{convnet_forward.3} parent=1 // loop_pre_header
      _
    $region3: #{convnet_forward.3} parent=1 // loop_header
      %s14 = sphi 0, %s18
      %p15 = scmp.ge.s32.totalorder %s14, 4
      %s24 = sphi 0, %s26
      %s27 = sphi 0, %s24
      %s28 = sphi 0, %s27
      %s44 = sphi 0, %s28
      %s48 = sphi 0, %s48
      %s50 = sphi 0, %s48
      %s51 = sphi 0, %s50
      %s65 = sphi 0, %s51
      %s69 = sphi 0, %s69
      %s71 = sphi 0, %s69
      %s72 = sphi 0, %s71
      %s86 = sphi 0, %s72
      %s90 = sphi 0, %s90
      %s92 = sphi 0, %s90
      %s93 = sphi 0, %s92
      %s107 = sphi 0, %s93
      %s111 = sphi 0, %s111
      %s113 = sphi 0, %s111
      %s114 = sphi 0, %s113
      %s128 = sphi 0, %s114
      %s134 = sphi 0, %s136
      %s137 = sphi 0, %s134
      %s138 = sphi 0, %s137
      %s154 = sphi 0, %s138
    $region4: #{convnet_forward.3} parent=1 // loop_header_branch
      %17 = sbr.rel (%p15) target = $region8
    $region5: #{convnet_forward.3} parent=1 // loop_body
      %s19 = ssub.s32 %s14, 1
      %s20 = ssub.s32 %s14, 2
      %s21 = sadd.s32 %s14, 1
      %s22 = ssub.s32 %s14, %s21
      %p23 = scmp.eq.s32.totalorder %s22, 0
      %s25 = sadd.s32 %s24, 1
      %s26 = scalar_select %p23, %s24, %s25
      %p29 = pneg %p23
      %p30 = scmp.eq.s32.totalorder %s14, 1
      %p31 = por %p29, %p30
      %p32 = scmp.ne.s32.totalorder %s24, %s27
      %p33 = scmp.eq.s32.totalorder %s14, 0
      %p34 = por %p32, %p33
      %p35 = scmp.ne.s32.totalorder %s24, %s27
      %p36 = scmp.eq.s32.totalorder %s19, 1
      %p37 = por %p35, %p36
      %p38 = scmp.ne.s32.totalorder %s27, %s28
      %p39 = scmp.eq.s32.totalorder %s19, 0
      %p40 = por %p38, %p39
      %p41 = scmp.ne.s32.totalorder %s27, %s28
      %p42 = scmp.eq.s32.totalorder %s20, 1
      %p43 = por %p41, %p42
      %p45 = scmp.ne.s32.totalorder %s28, %s44
      %p46 = scmp.eq.s32.totalorder %s20, 0
      %p47 = por %p45, %p46
      %s49 = sadd.s32 %s48, 1
      %p52 = scmp.eq.s32.totalorder %s14, 1
      %p53 = scmp.ne.s32.totalorder %s48, %s50
      %p54 = scmp.eq.s32.totalorder %s14, 0
      %p55 = por %p53, %p54
      %p56 = scmp.ne.s32.totalorder %s48, %s50
      %p57 = scmp.eq.s32.totalorder %s19, 1
      %p58 = por %p56, %p57
      %p59 = scmp.ne.s32.totalorder %s50, %s51
      %p60 = scmp.eq.s32.totalorder %s19, 0
      %p61 = por %p59, %p60
      %p62 = scmp.ne.s32.totalorder %s50, %s51
      %p63 = scmp.eq.s32.totalorder %s20, 1
      %p64 = por %p62, %p63
      %p66 = scmp.ne.s32.totalorder %s51, %s65
      %p67 = scmp.eq.s32.totalorder %s20, 0
      %p68 = por %p66, %p67
      %s70 = sadd.s32 %s69, 1
      %p73 = scmp.eq.s32.totalorder %s14, 1
      %p74 = scmp.ne.s32.totalorder %s69, %s71
      %p75 = scmp.eq.s32.totalorder %s14, 0
      %p76 = por %p74, %p75
      %p77 = scmp.ne.s32.totalorder %s69, %s71
      %p78 = scmp.eq.s32.totalorder %s19, 1
      %p79 = por %p77, %p78
      %p80 = scmp.ne.s32.totalorder %s71, %s72
      %p81 = scmp.eq.s32.totalorder %s19, 0
      %p82 = por %p80, %p81
      %p83 = scmp.ne.s32.totalorder %s71, %s72
      %p84 = scmp.eq.s32.totalorder %s20, 1
      %p85 = por %p83, %p84
      %p87 = scmp.ne.s32.totalorder %s72, %s86
      %p88 = scmp.eq.s32.totalorder %s20, 0
      %p89 = por %p87, %p88
      %s91 = sadd.s32 %s90, 1
      %p94 = scmp.eq.s32.totalorder %s14, 1
      %p95 = scmp.ne.s32.totalorder %s90, %s92
      %p96 = scmp.eq.s32.totalorder %s14, 0
      %p97 = por %p95, %p96
      %p98 = scmp.ne.s32.totalorder %s90, %s92
      %p99 = scmp.eq.s32.totalorder %s19, 1
      %p100 = por %p98, %p99
      %p101 = scmp.ne.s32.totalorder %s92, %s93
      %p102 = scmp.eq.s32.totalorder %s19, 0
      %p103 = por %p101, %p102
      %p104 = scmp.ne.s32.totalorder %s92, %s93
      %p105 = scmp.eq.s32.totalorder %s20, 1
      %p106 = por %p104, %p105
      %p108 = scmp.ne.s32.totalorder %s93, %s107
      %p109 = scmp.eq.s32.totalorder %s20, 0
      %p110 = por %p108, %p109
      %s112 = sadd.s32 %s111, 1
      %p115 = scmp.eq.s32.totalorder %s14, 1
      %p116 = scmp.ne.s32.totalorder %s111, %s113
      %p117 = scmp.eq.s32.totalorder %s14, 0
      %p118 = por %p116, %p117
      %p119 = scmp.ne.s32.totalorder %s111, %s113
      %p120 = scmp.eq.s32.totalorder %s19, 1
      %p121 = por %p119, %p120
      %p122 = scmp.ne.s32.totalorder %s113, %s114
      %p123 = scmp.eq.s32.totalorder %s19, 0
      %p124 = por %p122, %p123
      %p125 = scmp.ne.s32.totalorder %s113, %s114
      %p126 = scmp.eq.s32.totalorder %s20, 1
      %p127 = por %p125, %p126
      %p129 = scmp.ne.s32.totalorder %s114, %s128
      %p130 = scmp.eq.s32.totalorder %s20, 0
      %p131 = por %p129, %p130
      %s132 = ssub.s32 %s14, %s21
      %p133 = scmp.eq.s32.totalorder %s132, 0
      %s135 = sadd.s32 %s134, 1
      %s136 = scalar_select %p133, %s134, %s135
      %p139 = pneg %p133
      %p140 = scmp.eq.s32.totalorder %s14, 1
      %p141 = por %p139, %p140
      %p142 = scmp.ne.s32.totalorder %s134, %s137
      %p143 = scmp.eq.s32.totalorder %s14, 0
      %p144 = por %p142, %p143
      %p145 = scmp.ne.s32.totalorder %s134, %s137
      %p146 = scmp.eq.s32.totalorder %s19, 1
      %p147 = por %p145, %p146
      %p148 = scmp.ne.s32.totalorder %s137, %s138
      %p149 = scmp.eq.s32.totalorder %s19, 0
      %p150 = por %p148, %p149
      %p151 = scmp.ne.s32.totalorder %s137, %s138
      %p152 = scmp.eq.s32.totalorder %s20, 1
      %p153 = por %p151, %p152
      %p155 = scmp.ne.s32.totalorder %s138, %s154
      %p156 = scmp.eq.s32.totalorder %s20, 0
      %p157 = por %p155, %p156
      %p158 = scmp.le.s32.totalorder 1, %s14
      %p159 = scmp.lt.s32.totalorder %s14, 3
      %p160 = pnand %p158, %p159
      %p161 = pneg %p160
      // Predicated region
      $region9: #{convnet_forward.3} parent=5 // pred_check
        _
      $region10: #{convnet_forward.3} parent=5 // pred_check_branch
        %163 = sbr.rel (%p160) target = $region12
      $region11: #{convnet_forward.3} parent=5 // pred_region
        %s164 = ssub.s32 %s14, 1
        // Predicated region
        $region13: #{convnet_forward.3} parent=11 // pred_check
          %p165 = pneg %p61
        $region14: #{convnet_forward.3} parent=11 // pred_check_branch
          %167 = sbr.rel (%p165) target = $region16
        $region15: #{convnet_forward.3} parent=11 // pred_region
          _
        $region16: #{convnet_forward.3} parent=11 // pred_fallthru
          _
        // Predicated region
        $region17: #{convnet_forward.3} parent=11 // pred_check
          %p168 = pneg %p82
        $region18: #{convnet_forward.3} parent=11 // pred_check_branch
          %170 = sbr.rel (%p168) target = $region20
        $region19: #{convnet_forward.3} parent=11 // pred_region
          _
        $region20: #{convnet_forward.3} parent=11 // pred_fallthru
          _
        // Predicated region
        $region21: #{convnet_forward.3} parent=11 // pred_check
          %p171 = pneg %p103
        $region22: #{convnet_forward.3} parent=11 // pred_check_branch
          %173 = sbr.rel (%p171) target = $region24
        $region23: #{convnet_forward.3} parent=11 // pred_region
          _
        $region24: #{convnet_forward.3} parent=11 // pred_fallthru
          _
        // Predicated region
        $region25: #{convnet_forward.3} parent=11 // pred_check
          %p174 = pneg %p124
        $region26: #{convnet_forward.3} parent=11 // pred_check_branch
          %176 = sbr.rel (%p174) target = $region28
        $region27: #{convnet_forward.3} parent=11 // pred_region
          _
        $region28: #{convnet_forward.3} parent=11 // pred_fallthru
          _
      $region12: #{convnet_forward.3} parent=5 // pred_fallthru
        _
      %p177 = scmp.lt.s32.totalorder %s14, 2
      // Predicated region
      $region29: #{convnet_forward.3} parent=5 // pred_check
        %p178 = pneg %p177
      $region30: #{convnet_forward.3} parent=5 // pred_check_branch
        %180 = sbr.rel (%p178) target = $region32
      $region31: #{convnet_forward.3} parent=5 // pred_region
        // Predicated region
        $region33: #{convnet_forward.3} parent=31 // pred_check
          %p181 = pneg %p34
        $region34: #{convnet_forward.3} parent=31 // pred_check_branch
          %183 = sbr.rel (%p181) target = $region36
        $region35: #{convnet_forward.3} parent=31 // pred_region
          %p184 = scmp.lt.s32.totalorder %s14, 1
          %s185 = scalar_select %p184, %s14, 1
          %s186 = smul.addr %s185, 48
          %s187 = smul.addr %s186, 4
          %s188 = scalar_lea.vmem %s0, %s187
        $region36: #{convnet_forward.3} parent=31 // pred_fallthru
          _
      $region32: #{convnet_forward.3} parent=5 // pred_fallthru
        _
      %p189 = scmp.le.s32.totalorder 1, %s14
      %p190 = scmp.lt.s32.totalorder %s14, 3
      %p191 = pnand %p189, %p190
      %p192 = pneg %p191
      // Predicated region
      $region37: #{convnet_forward.3} parent=5 // pred_check
        _
      $region38: #{convnet_forward.3} parent=5 // pred_check_branch
        %194 = sbr.rel (%p191) target = $region40
      $region39: #{convnet_forward.3} parent=5 // pred_region
        %s195 = ssub.s32 %s14, 1
        %p196 = scmp.lt.s32.totalorder %s19, 1
        %s197 = scalar_select %p196, %s19, 1
        %s198 = smul.addr %s197, 48
        %s199 = smul.addr %s198, 4
        %s200 = scalar_lea.vmem %s0, %s199
        %p201 = pneg %p40
        %p202 = pneg %p37
        %p203 = pneg %p61
        %p204 = pneg %p58
        %p205 = pneg %p82
        %p206 = pneg %p79
        %p207 = pneg %p103
        %p208 = pneg %p100
        %p209 = pneg %p124
        %p210 = pneg %p121
        %p211 = pneg %p150
        %p212 = pneg %p147
        %s213 = sand.u32 %s137, 1
        %s214 = scalar_lea.sflag [#allocation3], %s213
        %s215 = sand.u32 %s137, 1
        %s216 = scalar_lea.vmem [#allocation2], %s215
        %p217 = scmp.lt.s32.totalorder %s19, 1
        %s218 = scalar_select %p217, %s19, 1
        %s219 = smul.addr %s218, 48
        %s220 = smul.addr %s219, 4
        %s221 = scalar_lea.vmem %s0, %s220
        %v223 = vld [vmem:[%s2] sm:$0x1]
        %v225 = vperm.slane %v223, 0
        %v227 = vld [vmem:[%s221] sm:$0xf]
        %v228 = vld [vmem:[%s221 + $0x4] sm:$0xf]
        %v229 = vld [vmem:[%s221 + $0x8] sm:$0xf]
        %v230 = vld [vmem:[%s221 + $0xc] sm:$0xf]
        %v231 = vld [vmem:[%s221 + $0x10] sm:$0xf]
        %v232 = vld [vmem:[%s221 + $0x14] sm:$0xf]
        %v233 = vld [vmem:[%s221 + $0x18] sm:$0xf]
        %v234 = vld [vmem:[%s221 + $0x1c] sm:$0xf]
        %v235 = vld [vmem:[%s221 + $0x20] sm:$0xf]
        %v236 = vld [vmem:[%s1] sm:$0xf]
        %v237 = vld [vmem:[%s1 + $0x4] sm:$0xf]
        %v238 = vld [vmem:[%s1 + $0x8] sm:$0xf]
        %v239 = vld [vmem:[%s1 + $0xc] sm:$0xf]
        %v249 = vunpack.c.l.b16 %v227
        %v250 = vunpack.c.l.b16 %v228
        %v251 = vunpack.c.l.b16 %v229
        %v252 = vunpack.c.l.b16 %v230
        %v253 = vunpack.c.l.b16 %v231
        %v254 = vunpack.c.l.b16 %v232
        %v255 = vunpack.c.l.b16 %v233
        %v256 = vunpack.c.l.b16 %v234
        %v257 = vunpack.c.l.b16 %v235
        %v258 = vpack.c.b16 %v250, %v249
        %v259 = vpack.c.b16 %v252, %v251
        %v260 = vpack.c.b16 %v254, %v253
        %v261 = vpack.c.b16 %v256, %v255
        %v262 = vpack.c.b16 %v257, %v257
        %v267 = vunpack.c.l.b16 %v236
        %v268 = vunpack.c.l.b16 %v237
        %v269 = vunpack.c.l.b16 %v238
        %v270 = vunpack.c.l.b16 %v239
        %v271 = vpack.c.b16 %v268, %v267
        %v272 = vpack.c.b16 %v270, %v269
        %vm275 = vcmask 261120
        %v277 = vsel %vm275, %v258, 0
        %v280 = vsel %vm275, %v259, 0
        %v283 = vsel %vm275, %v260, 0
        %v286 = vsel %vm275, %v261, 0
        %v289 = vsel %vm275, %v262, 0
        %291 = vmatpush.bf16.msra.mxu0 0
        %292 = vmatpush.bf16.msra.mxu0 0
        %293 = vmatpush.bf16.msra.mxu0 0
        %294 = vmatpush.bf16.msra.mxu0 0
        %295 = vmatpush.bf16.msra.mxu0 0
        %296 = vmatpush.bf16.msra.mxu0 0
        %297 = vmatpush.bf16.msra.mxu0 %v272
        %298 = vmatpush.bf16.msra.mxu0 %v271
        %299 = vmatmul.bf16.gmra.mxu0 %v277
        %v300 = vpop.f32.mrf.mxu0
        %v301 = vadd.f32 0.0, %v300
        %v302 = vpop.f32.mrf.mxu0
        %v303 = vadd.f32 0.0, %v302
        %304 = vmatmul.bf16.gmra.mxu0 %v280
        %v305 = vpop.f32.mrf.mxu0
        %v306 = vadd.f32 0.0, %v305
        %v307 = vpop.f32.mrf.mxu0
        %v308 = vadd.f32 0.0, %v307
        %309 = vmatmul.bf16.gmra.mxu0 %v283
        %v310 = vpop.f32.mrf.mxu0
        %v311 = vadd.f32 0.0, %v310
        %v312 = vpop.f32.mrf.mxu0
        %v313 = vadd.f32 0.0, %v312
        %314 = vmatmul.bf16.gmra.mxu0 %v286
        %v315 = vpop.f32.mrf.mxu0
        %v316 = vadd.f32 0.0, %v315
        %v317 = vpop.f32.mrf.mxu0
        %318 = vmatmul.bf16.gmra.mxu0 %v289
        %v319 = vpop.f32.mrf.mxu0
        %v320 = vpop.f32.mrf.mxu0
        %321 = vdwg.mxu0
        %v322 = vadd.f32 %v225, %v301
        %v323 = vadd.f32 %v225, %v303
        %v324 = vadd.f32 %v225, %v306
        %v325 = vadd.f32 %v225, %v308
        %v326 = vadd.f32 %v225, %v311
        %v327 = vadd.f32 %v225, %v313
        %v328 = vadd.f32 %v225, %v316
        %s329 = scalar_lea.vmem %s221, 48
        %v330 = vld [vmem:[%s329] sm:$0xf]
        %v331 = vld [vmem:[%s329 + $0x4] sm:$0xf]
        %v332 = vld [vmem:[%s329 + $0x8] sm:$0xf]
        %v333 = vld [vmem:[%s329 + $0xc] sm:$0xf]
        %v334 = vld [vmem:[%s329 + $0x10] sm:$0xf]
        %v335 = vld [vmem:[%s329 + $0x14] sm:$0xf]
        %v336 = vld [vmem:[%s329 + $0x18] sm:$0xf]
        %v337 = vld [vmem:[%s329 + $0x1c] sm:$0xf]
        %v338 = vld [vmem:[%s329 + $0x20] sm:$0xf]
        %s339 = scalar_lea.vmem %s1, 16
        %v340 = vld [vmem:[%s339] sm:$0xf]
        %v341 = vld [vmem:[%s339 + $0x4] sm:$0xf]
        %v342 = vld [vmem:[%s339 + $0x8] sm:$0xf]
        %v343 = vld [vmem:[%s339 + $0xc] sm:$0xf]
        %v353 = vunpack.c.l.b16 %v330
        %v354 = vunpack.c.l.b16 %v331
        %v355 = vunpack.c.l.b16 %v332
        %v356 = vunpack.c.l.b16 %v333
        %v357 = vunpack.c.l.b16 %v334
        %v358 = vunpack.c.l.b16 %v335
        %v359 = vunpack.c.l.b16 %v336
        %v360 = vunpack.c.l.b16 %v337
        %v361 = vunpack.c.l.b16 %v338
        %v362 = vpack.c.b16 %v354, %v353
        %v363 = vpack.c.b16 %v356, %v355
        %v364 = vpack.c.b16 %v358, %v357
        %v365 = vpack.c.b16 %v360, %v359
        %v366 = vpack.c.b16 %v361, %v361
        %v371 = vunpack.c.l.b16 %v340
        %v372 = vunpack.c.l.b16 %v341
        %v373 = vunpack.c.l.b16 %v342
        %v374 = vunpack.c.l.b16 %v343
        %v375 = vpack.c.b16 %v372, %v371
        %v376 = vpack.c.b16 %v374, %v373
        %v380 = vsel %vm275, %v362, 0
        %v383 = vsel %vm275, %v363, 0
        %v386 = vsel %vm275, %v364, 0
        %v389 = vsel %vm275, %v365, 0
        %v392 = vsel %vm275, %v366, 0
        %394 = vmatpush.bf16.msra.mxu0 0
        %395 = vmatpush.bf16.msra.mxu0 0
        %396 = vmatpush.bf16.msra.mxu0 0
        %397 = vmatpush.bf16.msra.mxu0 0
        %398 = vmatpush.bf16.msra.mxu0 0
        %399 = vmatpush.bf16.msra.mxu0 0
        %400 = vmatpush.bf16.msra.mxu0 %v376
        %401 = vmatpush.bf16.msra.mxu0 %v375
        %402 = vmatmul.bf16.gmra.mxu0 %v380
        %v403 = vpop.f32.mrf.mxu0
        %v404 = vadd.f32 0.0, %v403
        %v405 = vpop.f32.mrf.mxu0
        %v406 = vadd.f32 0.0, %v405
        %407 = vmatmul.bf16.gmra.mxu0 %v383
        %v408 = vpop.f32.mrf.mxu0
        %v409 = vadd.f32 0.0, %v408
        %v410 = vpop.f32.mrf.mxu0
        %v411 = vadd.f32 0.0, %v410
        %412 = vmatmul.bf16.gmra.mxu0 %v386
        %v413 = vpop.f32.mrf.mxu0
        %v414 = vadd.f32 0.0, %v413
        %v415 = vpop.f32.mrf.mxu0
        %v416 = vadd.f32 0.0, %v415
        %417 = vmatmul.bf16.gmra.mxu0 %v389
        %v418 = vpop.f32.mrf.mxu0
        %v419 = vadd.f32 0.0, %v418
        %v420 = vpop.f32.mrf.mxu0
        %421 = vmatmul.bf16.gmra.mxu0 %v392
        %v422 = vpop.f32.mrf.mxu0
        %v423 = vpop.f32.mrf.mxu0
        %424 = vdwg.mxu0
        %v425 = vadd.f32 %v322, %v404
        %v426 = vadd.f32 %v323, %v406
        %v427 = vadd.f32 %v324, %v409
        %v428 = vadd.f32 %v325, %v411
        %v429 = vadd.f32 %v326, %v414
        %v430 = vadd.f32 %v327, %v416
        %v431 = vadd.f32 %v328, %v419
        %v432 = vld [vmem:[%s221] sm:$0xf]
        %v433 = vld [vmem:[%s221 + $0x4] sm:$0xf]
        %v434 = vld [vmem:[%s221 + $0x8] sm:$0xf]
        %v435 = vld [vmem:[%s221 + $0xc] sm:$0xf]
        %v436 = vld [vmem:[%s221 + $0x10] sm:$0xf]
        %v437 = vld [vmem:[%s221 + $0x14] sm:$0xf]
        %v438 = vld [vmem:[%s221 + $0x18] sm:$0xf]
        %v439 = vld [vmem:[%s221 + $0x1c] sm:$0xf]
        %v440 = vld [vmem:[%s221 + $0x20] sm:$0xf]
        %v441 = vld [vmem:[%s221 + $0x24] sm:$0x1]
        %s442 = scalar_lea.vmem %s1, 32
        %v443 = vld [vmem:[%s442] sm:$0xf]
        %v444 = vld [vmem:[%s442 + $0x4] sm:$0xf]
        %v445 = vld [vmem:[%s442 + $0x8] sm:$0xf]
        %v446 = vld [vmem:[%s442 + $0xc] sm:$0xf]
        %v457 = vunpack.c.l.b16 %v432
        %v458 = vunpack.c.l.b16 %v433
        %v459 = vunpack.c.l.b16 %v434
        %v460 = vunpack.c.l.b16 %v435
        %v461 = vunpack.c.l.b16 %v436
        %v462 = vunpack.c.l.b16 %v437
        %v463 = vunpack.c.l.b16 %v438
        %v464 = vunpack.c.l.b16 %v439
        %v465 = vunpack.c.l.b16 %v440
        %v466 = vunpack.c.l.b16 %v441
        %v467 = vpack.c.b16 %v458, %v457
        %v468 = vpack.c.b16 %v460, %v459
        %v469 = vpack.c.b16 %v462, %v461
        %v470 = vpack.c.b16 %v464, %v463
        %v471 = vpack.c.b16 %v466, %v465
        %vm472 = vsmask.f32 7424
        %v474 = vshrl.u32 %v467, 16
        %v476 = vshll.u32 %v467, 16
        %v478 = vrot.slane %v476, 1
        %v479 = vor.u32 %v474, %v478
        %v481 = vshll.u32 %v468, 16
        %v483 = vrot.slane %v481, 1
        %v484 = vsel %vm472, %v479, %v483
        %v485 = vshrl.u32 %v468, 16
        %v487 = vor.u32 %v485, %v483
        %v489 = vshll.u32 %v469, 16
        %v491 = vrot.slane %v489, 1
        %v492 = vsel %vm472, %v487, %v491
        %v493 = vshrl.u32 %v469, 16
        %v495 = vor.u32 %v493, %v491
        %v497 = vshll.u32 %v470, 16
        %v499 = vrot.slane %v497, 1
        %v500 = vsel %vm472, %v495, %v499
        %v501 = vshrl.u32 %v470, 16
        %v503 = vor.u32 %v501, %v499
        %v505 = vshll.u32 %v471, 16
        %v507 = vrot.slane %v505, 1
        %v508 = vsel %vm472, %v503, %v507
        %v509 = vshrl.u32 %v471, 16
        %v511 = vor.u32 %v509, %v507
        %v516 = vunpack.c.l.b16 %v443
        %v517 = vunpack.c.l.b16 %v444
        %v518 = vunpack.c.l.b16 %v445
        %v519 = vunpack.c.l.b16 %v446
        %v520 = vpack.c.b16 %v517, %v516
        %v521 = vpack.c.b16 %v519, %v518
        %v525 = vsel %vm275, %v484, 0
        %v528 = vsel %vm275, %v492, 0
        %v531 = vsel %vm275, %v500, 0
        %v534 = vsel %vm275, %v508, 0
        %v537 = vsel %vm275, %v511, 0
        %539 = vmatpush.bf16.msra.mxu0 0
        %540 = vmatpush.bf16.msra.mxu0 0
        %541 = vmatpush.bf16.msra.mxu0 0
        %542 = vmatpush.bf16.msra.mxu0 0
        %543 = vmatpush.bf16.msra.mxu0 0
        %544 = vmatpush.bf16.msra.mxu0 0
        %545 = vmatpush.bf16.msra.mxu0 %v521
        %546 = vmatpush.bf16.msra.mxu0 %v520
        %547 = vmatmul.bf16.gmra.mxu0 %v525
        %v548 = vpop.f32.mrf.mxu0
        %v549 = vadd.f32 0.0, %v548
        %v550 = vpop.f32.mrf.mxu0
        %v551 = vadd.f32 0.0, %v550
        %552 = vmatmul.bf16.gmra.mxu0 %v528
        %v553 = vpop.f32.mrf.mxu0
        %v554 = vadd.f32 0.0, %v553
        %v555 = vpop.f32.mrf.mxu0
        %v556 = vadd.f32 0.0, %v555
        %557 = vmatmul.bf16.gmra.mxu0 %v531
        %v558 = vpop.f32.mrf.mxu0
        %v559 = vadd.f32 0.0, %v558
        %v560 = vpop.f32.mrf.mxu0
        %v561 = vadd.f32 0.0, %v560
        %562 = vmatmul.bf16.gmra.mxu0 %v534
        %v563 = vpop.f32.mrf.mxu0
        %v564 = vadd.f32 0.0, %v563
        %v565 = vpop.f32.mrf.mxu0
        %566 = vmatmul.bf16.gmra.mxu0 %v537
        %v567 = vpop.f32.mrf.mxu0
        %v568 = vpop.f32.mrf.mxu0
        %569 = vdwg.mxu0
        %v570 = vadd.f32 %v425, %v549
        %v571 = vadd.f32 %v426, %v551
        %v572 = vadd.f32 %v427, %v554
        %v573 = vadd.f32 %v428, %v556
        %v574 = vadd.f32 %v429, %v559
        %v575 = vadd.f32 %v430, %v561
        %v576 = vadd.f32 %v431, %v564
        %s577 = scalar_lea.vmem %s221, 96
        %v578 = vld [vmem:[%s577] sm:$0xf]
        %v579 = vld [vmem:[%s577 + $0x4] sm:$0xf]
        %v580 = vld [vmem:[%s577 + $0x8] sm:$0xf]
        %v581 = vld [vmem:[%s577 + $0xc] sm:$0xf]
        %v582 = vld [vmem:[%s577 + $0x10] sm:$0xf]
        %v583 = vld [vmem:[%s577 + $0x14] sm:$0xf]
        %v584 = vld [vmem:[%s577 + $0x18] sm:$0xf]
        %v585 = vld [vmem:[%s577 + $0x1c] sm:$0xf]
        %v586 = vld [vmem:[%s577 + $0x20] sm:$0xf]
        %s587 = scalar_lea.vmem %s1, 48
        %v588 = vld [vmem:[%s587] sm:$0xf]
        %v589 = vld [vmem:[%s587 + $0x4] sm:$0xf]
        %v590 = vld [vmem:[%s587 + $0x8] sm:$0xf]
        %v591 = vld [vmem:[%s587 + $0xc] sm:$0xf]
        %v601 = vunpack.c.l.b16 %v578
        %v602 = vunpack.c.l.b16 %v579
        %v603 = vunpack.c.l.b16 %v580
        %v604 = vunpack.c.l.b16 %v581
        %v605 = vunpack.c.l.b16 %v582
        %v606 = vunpack.c.l.b16 %v583
        %v607 = vunpack.c.l.b16 %v584
        %v608 = vunpack.c.l.b16 %v585
        %v609 = vunpack.c.l.b16 %v586
        %v610 = vpack.c.b16 %v602, %v601
        %v611 = vpack.c.b16 %v604, %v603
        %v612 = vpack.c.b16 %v606, %v605
        %v613 = vpack.c.b16 %v608, %v607
        %v614 = vpack.c.b16 %v609, %v609
        %v619 = vunpack.c.l.b16 %v588
        %v620 = vunpack.c.l.b16 %v589
        %v621 = vunpack.c.l.b16 %v590
        %v622 = vunpack.c.l.b16 %v591
        %v623 = vpack.c.b16 %v620, %v619
        %v624 = vpack.c.b16 %v622, %v621
        %v628 = vsel %vm275, %v610, 0
        %v631 = vsel %vm275, %v611, 0
        %v634 = vsel %vm275, %v612, 0
        %v637 = vsel %vm275, %v613, 0
        %v640 = vsel %vm275, %v614, 0
        %642 = vmatpush.bf16.msra.mxu0 0
        %643 = vmatpush.bf16.msra.mxu0 0
        %644 = vmatpush.bf16.msra.mxu0 0
        %645 = vmatpush.bf16.msra.mxu0 0
        %646 = vmatpush.bf16.msra.mxu0 0
        %647 = vmatpush.bf16.msra.mxu0 0
        %648 = vmatpush.bf16.msra.mxu0 %v624
        %649 = vmatpush.bf16.msra.mxu0 %v623
        %650 = vmatmul.bf16.gmra.mxu0 %v628
        %v651 = vpop.f32.mrf.mxu0
        %v652 = vadd.f32 0.0, %v651
        %v653 = vpop.f32.mrf.mxu0
        %v654 = vadd.f32 0.0, %v653
        %655 = vmatmul.bf16.gmra.mxu0 %v631
        %v656 = vpop.f32.mrf.mxu0
        %v657 = vadd.f32 0.0, %v656
        %v658 = vpop.f32.mrf.mxu0
        %v659 = vadd.f32 0.0, %v658
        %660 = vmatmul.bf16.gmra.mxu0 %v634
        %v661 = vpop.f32.mrf.mxu0
        %v662 = vadd.f32 0.0, %v661
        %v663 = vpop.f32.mrf.mxu0
        %v664 = vadd.f32 0.0, %v663
        %665 = vmatmul.bf16.gmra.mxu0 %v637
        %v666 = vpop.f32.mrf.mxu0
        %v667 = vadd.f32 0.0, %v666
        %v668 = vpop.f32.mrf.mxu0
        %669 = vmatmul.bf16.gmra.mxu0 %v640
        %v670 = vpop.f32.mrf.mxu0
        %v671 = vpop.f32.mrf.mxu0
        %672 = vdwg.mxu0
        %v673 = vadd.f32 %v570, %v652
        %v674 = vadd.f32 %v571, %v654
        %v675 = vadd.f32 %v572, %v657
        %v676 = vadd.f32 %v573, %v659
        %v677 = vadd.f32 %v574, %v662
        %v678 = vadd.f32 %v575, %v664
        %v679 = vadd.f32 %v576, %v667
        %s680 = scalar_lea.vmem %s221, 144
        %v681 = vld [vmem:[%s680] sm:$0xf]
        %v682 = vld [vmem:[%s680 + $0x4] sm:$0xf]
        %v683 = vld [vmem:[%s680 + $0x8] sm:$0xf]
        %v684 = vld [vmem:[%s680 + $0xc] sm:$0xf]
        %v685 = vld [vmem:[%s680 + $0x10] sm:$0xf]
        %v686 = vld [vmem:[%s680 + $0x14] sm:$0xf]
        %v687 = vld [vmem:[%s680 + $0x18] sm:$0xf]
        %v688 = vld [vmem:[%s680 + $0x1c] sm:$0xf]
        %v689 = vld [vmem:[%s680 + $0x20] sm:$0xf]
        %s690 = scalar_lea.vmem %s1, 64
        %v691 = vld [vmem:[%s690] sm:$0xf]
        %v692 = vld [vmem:[%s690 + $0x4] sm:$0xf]
        %v693 = vld [vmem:[%s690 + $0x8] sm:$0xf]
        %v694 = vld [vmem:[%s690 + $0xc] sm:$0xf]
        %v704 = vunpack.c.l.b16 %v681
        %v705 = vunpack.c.l.b16 %v682
        %v706 = vunpack.c.l.b16 %v683
        %v707 = vunpack.c.l.b16 %v684
        %v708 = vunpack.c.l.b16 %v685
        %v709 = vunpack.c.l.b16 %v686
        %v710 = vunpack.c.l.b16 %v687
        %v711 = vunpack.c.l.b16 %v688
        %v712 = vunpack.c.l.b16 %v689
        %v713 = vpack.c.b16 %v705, %v704
        %v714 = vpack.c.b16 %v707, %v706
        %v715 = vpack.c.b16 %v709, %v708
        %v716 = vpack.c.b16 %v711, %v710
        %v717 = vpack.c.b16 %v712, %v712
        %v722 = vunpack.c.l.b16 %v691
        %v723 = vunpack.c.l.b16 %v692
        %v724 = vunpack.c.l.b16 %v693
        %v725 = vunpack.c.l.b16 %v694
        %v726 = vpack.c.b16 %v723, %v722
        %v727 = vpack.c.b16 %v725, %v724
        %v731 = vsel %vm275, %v713, 0
        %v734 = vsel %vm275, %v714, 0
        %v737 = vsel %vm275, %v715, 0
        %v740 = vsel %vm275, %v716, 0
        %v743 = vsel %vm275, %v717, 0
        %745 = vmatpush.bf16.msra.mxu0 0
        %746 = vmatpush.bf16.msra.mxu0 0
        %747 = vmatpush.bf16.msra.mxu0 0
        %748 = vmatpush.bf16.msra.mxu0 0
        %749 = vmatpush.bf16.msra.mxu0 0
        %750 = vmatpush.bf16.msra.mxu0 0
        %751 = vmatpush.bf16.msra.mxu0 %v727
        %752 = vmatpush.bf16.msra.mxu0 %v726
        %753 = vmatmul.bf16.gmra.mxu0 %v731
        %v754 = vpop.f32.mrf.mxu0
        %v755 = vadd.f32 0.0, %v754
        %v756 = vpop.f32.mrf.mxu0
        %v757 = vadd.f32 0.0, %v756
        %758 = vmatmul.bf16.gmra.mxu0 %v734
        %v759 = vpop.f32.mrf.mxu0
        %v760 = vadd.f32 0.0, %v759
        %v761 = vpop.f32.mrf.mxu0
        %v762 = vadd.f32 0.0, %v761
        %763 = vmatmul.bf16.gmra.mxu0 %v737
        %v764 = vpop.f32.mrf.mxu0
        %v765 = vadd.f32 0.0, %v764
        %v766 = vpop.f32.mrf.mxu0
        %v767 = vadd.f32 0.0, %v766
        %768 = vmatmul.bf16.gmra.mxu0 %v740
        %v769 = vpop.f32.mrf.mxu0
        %v770 = vadd.f32 0.0, %v769
        %v771 = vpop.f32.mrf.mxu0
        %772 = vmatmul.bf16.gmra.mxu0 %v743
        %v773 = vpop.f32.mrf.mxu0
        %v774 = vpop.f32.mrf.mxu0
        %775 = vdwg.mxu0
        %v776 = vadd.f32 %v673, %v755
        %v777 = vadd.f32 %v674, %v757
        %v778 = vadd.f32 %v675, %v760
        %v779 = vadd.f32 %v676, %v762
        %v780 = vadd.f32 %v677, %v765
        %v781 = vadd.f32 %v678, %v767
        %v782 = vadd.f32 %v679, %v770
        %v783 = vld [vmem:[%s577] sm:$0xf]
        %v784 = vld [vmem:[%s577 + $0x4] sm:$0xf]
        %v785 = vld [vmem:[%s577 + $0x8] sm:$0xf]
        %v786 = vld [vmem:[%s577 + $0xc] sm:$0xf]
        %v787 = vld [vmem:[%s577 + $0x10] sm:$0xf]
        %v788 = vld [vmem:[%s577 + $0x14] sm:$0xf]
        %v789 = vld [vmem:[%s577 + $0x18] sm:$0xf]
        %v790 = vld [vmem:[%s577 + $0x1c] sm:$0xf]
        %v791 = vld [vmem:[%s577 + $0x20] sm:$0xf]
        %v792 = vld [vmem:[%s577 + $0x24] sm:$0x1]
        %s793 = scalar_lea.vmem %s1, 80
        %v794 = vld [vmem:[%s793] sm:$0xf]
        %v795 = vld [vmem:[%s793 + $0x4] sm:$0xf]
        %v796 = vld [vmem:[%s793 + $0x8] sm:$0xf]
        %v797 = vld [vmem:[%s793 + $0xc] sm:$0xf]
        %v808 = vunpack.c.l.b16 %v783
        %v809 = vunpack.c.l.b16 %v784
        %v810 = vunpack.c.l.b16 %v785
        %v811 = vunpack.c.l.b16 %v786
        %v812 = vunpack.c.l.b16 %v787
        %v813 = vunpack.c.l.b16 %v788
        %v814 = vunpack.c.l.b16 %v789
        %v815 = vunpack.c.l.b16 %v790
        %v816 = vunpack.c.l.b16 %v791
        %v817 = vunpack.c.l.b16 %v792
        %v818 = vpack.c.b16 %v809, %v808
        %v819 = vpack.c.b16 %v811, %v810
        %v820 = vpack.c.b16 %v813, %v812
        %v821 = vpack.c.b16 %v815, %v814
        %v822 = vpack.c.b16 %v817, %v816
        %v824 = vshrl.u32 %v818, 16
        %v826 = vshll.u32 %v818, 16
        %v828 = vrot.slane %v826, 1
        %v829 = vor.u32 %v824, %v828
        %v831 = vshll.u32 %v819, 16
        %v833 = vrot.slane %v831, 1
        %v834 = vsel %vm472, %v829, %v833
        %v835 = vshrl.u32 %v819, 16
        %v837 = vor.u32 %v835, %v833
        %v839 = vshll.u32 %v820, 16
        %v841 = vrot.slane %v839, 1
        %v842 = vsel %vm472, %v837, %v841
        %v843 = vshrl.u32 %v820, 16
        %v845 = vor.u32 %v843, %v841
        %v847 = vshll.u32 %v821, 16
        %v849 = vrot.slane %v847, 1
        %v850 = vsel %vm472, %v845, %v849
        %v851 = vshrl.u32 %v821, 16
        %v853 = vor.u32 %v851, %v849
        %v855 = vshll.u32 %v822, 16
        %v857 = vrot.slane %v855, 1
        %v858 = vsel %vm472, %v853, %v857
        %v859 = vshrl.u32 %v822, 16
        %v861 = vor.u32 %v859, %v857
        %v866 = vunpack.c.l.b16 %v794
        %v867 = vunpack.c.l.b16 %v795
        %v868 = vunpack.c.l.b16 %v796
        %v869 = vunpack.c.l.b16 %v797
        %v870 = vpack.c.b16 %v867, %v866
        %v871 = vpack.c.b16 %v869, %v868
        %v875 = vsel %vm275, %v834, 0
        %v878 = vsel %vm275, %v842, 0
        %v881 = vsel %vm275, %v850, 0
        %v884 = vsel %vm275, %v858, 0
        %v887 = vsel %vm275, %v861, 0
        %889 = vmatpush.bf16.msra.mxu0 0
        %890 = vmatpush.bf16.msra.mxu0 0
        %891 = vmatpush.bf16.msra.mxu0 0
        %892 = vmatpush.bf16.msra.mxu0 0
        %893 = vmatpush.bf16.msra.mxu0 0
        %894 = vmatpush.bf16.msra.mxu0 0
        %895 = vmatpush.bf16.msra.mxu0 %v871
        %896 = vmatpush.bf16.msra.mxu0 %v870
        %897 = vmatmul.bf16.gmra.mxu0 %v875
        %v898 = vpop.f32.mrf.mxu0
        %v899 = vadd.f32 0.0, %v898
        %v900 = vpop.f32.mrf.mxu0
        %v901 = vadd.f32 0.0, %v900
        %902 = vmatmul.bf16.gmra.mxu0 %v878
        %v903 = vpop.f32.mrf.mxu0
        %v904 = vadd.f32 0.0, %v903
        %v905 = vpop.f32.mrf.mxu0
        %v906 = vadd.f32 0.0, %v905
        %907 = vmatmul.bf16.gmra.mxu0 %v881
        %v908 = vpop.f32.mrf.mxu0
        %v909 = vadd.f32 0.0, %v908
        %v910 = vpop.f32.mrf.mxu0
        %v911 = vadd.f32 0.0, %v910
        %912 = vmatmul.bf16.gmra.mxu0 %v884
        %v913 = vpop.f32.mrf.mxu0
        %v914 = vadd.f32 0.0, %v913
        %v915 = vpop.f32.mrf.mxu0
        %916 = vmatmul.bf16.gmra.mxu0 %v887
        %v917 = vpop.f32.mrf.mxu0
        %v918 = vpop.f32.mrf.mxu0
        %919 = vdwg.mxu0
        %v920 = vadd.f32 %v776, %v899
        %v921 = vadd.f32 %v777, %v901
        %v922 = vadd.f32 %v778, %v904
        %v923 = vadd.f32 %v779, %v906
        %v924 = vadd.f32 %v780, %v909
        %v925 = vadd.f32 %v781, %v911
        %v926 = vadd.f32 %v782, %v914
        %v927 = vld [vmem:[%s221 + $0x4] sm:$0xf]
        %v928 = vld [vmem:[%s221 + $0x8] sm:$0xf]
        %v929 = vld [vmem:[%s221 + $0xc] sm:$0xf]
        %v930 = vld [vmem:[%s221 + $0x10] sm:$0xf]
        %v931 = vld [vmem:[%s221 + $0x14] sm:$0xf]
        %v932 = vld [vmem:[%s221 + $0x18] sm:$0xf]
        %v933 = vld [vmem:[%s221 + $0x1c] sm:$0xf]
        %v934 = vld [vmem:[%s221 + $0x20] sm:$0xf]
        %v935 = vld [vmem:[%s221 + $0x24] sm:$0xf]
        %v936 = vld [vmem:[%s221 + $0x28] sm:$0x1]
        %s937 = scalar_lea.vmem %s1, 96
        %v938 = vld [vmem:[%s937] sm:$0xf]
        %v939 = vld [vmem:[%s937 + $0x4] sm:$0xf]
        %v940 = vld [vmem:[%s937 + $0x8] sm:$0xf]
        %v941 = vld [vmem:[%s937 + $0xc] sm:$0xf]
        %v952 = vunpack.c.l.b16 %v927
        %v953 = vunpack.c.l.b16 %v928
        %v954 = vunpack.c.l.b16 %v929
        %v955 = vunpack.c.l.b16 %v930
        %v956 = vunpack.c.l.b16 %v931
        %v957 = vunpack.c.l.b16 %v932
        %v958 = vunpack.c.l.b16 %v933
        %v959 = vunpack.c.l.b16 %v934
        %v960 = vunpack.c.l.b16 %v935
        %v961 = vunpack.c.l.b16 %v936
        %v962 = vpack.c.b16 %v953, %v952
        %v963 = vpack.c.b16 %v955, %v954
        %v964 = vpack.c.b16 %v957, %v956
        %v965 = vpack.c.b16 %v959, %v958
        %v966 = vpack.c.b16 %v961, %v960
        %v968 = vshrl.u32 %v962, 16
        %v970 = vshll.u32 %v962, 16
        %v972 = vrot.slane %v970, 1
        %v973 = vor.u32 %v968, %v972
        %v975 = vshll.u32 %v963, 16
        %v977 = vrot.slane %v975, 1
        %v978 = vsel %vm472, %v973, %v977
        %v979 = vshrl.u32 %v963, 16
        %v981 = vor.u32 %v979, %v977
        %v983 = vshll.u32 %v964, 16
        %v985 = vrot.slane %v983, 1
        %v986 = vsel %vm472, %v981, %v985
        %v987 = vshrl.u32 %v964, 16
        %v989 = vor.u32 %v987, %v985
        %v991 = vshll.u32 %v965, 16
        %v993 = vrot.slane %v991, 1
        %v994 = vsel %vm472, %v989, %v993
        %v995 = vshrl.u32 %v965, 16
        %v997 = vor.u32 %v995, %v993
        %v999 = vshll.u32 %v966, 16
        %v1001 = vrot.slane %v999, 1
        %v1002 = vsel %vm472, %v997, %v1001
        %v1003 = vshrl.u32 %v966, 16
        %v1005 = vor.u32 %v1003, %v1001
        %v1010 = vunpack.c.l.b16 %v938
        %v1011 = vunpack.c.l.b16 %v939
        %v1012 = vunpack.c.l.b16 %v940
        %v1013 = vunpack.c.l.b16 %v941
        %v1014 = vpack.c.b16 %v1011, %v1010
        %v1015 = vpack.c.b16 %v1013, %v1012
        %v1019 = vsel %vm275, %v978, 0
        %v1022 = vsel %vm275, %v986, 0
        %v1025 = vsel %vm275, %v994, 0
        %v1028 = vsel %vm275, %v1002, 0
        %v1031 = vsel %vm275, %v1005, 0
        %1033 = vmatpush.bf16.msra.mxu0 0
        %1034 = vmatpush.bf16.msra.mxu0 0
        %1035 = vmatpush.bf16.msra.mxu0 0
        %1036 = vmatpush.bf16.msra.mxu0 0
        %1037 = vmatpush.bf16.msra.mxu0 0
        %1038 = vmatpush.bf16.msra.mxu0 0
        %1039 = vmatpush.bf16.msra.mxu0 %v1015
        %1040 = vmatpush.bf16.msra.mxu0 %v1014
        %1041 = vmatmul.bf16.gmra.mxu0 %v1019
        %v1042 = vpop.f32.mrf.mxu0
        %v1043 = vadd.f32 0.0, %v1042
        %v1044 = vpop.f32.mrf.mxu0
        %v1045 = vadd.f32 0.0, %v1044
        %1046 = vmatmul.bf16.gmra.mxu0 %v1022
        %v1047 = vpop.f32.mrf.mxu0
        %v1048 = vadd.f32 0.0, %v1047
        %v1049 = vpop.f32.mrf.mxu0
        %v1050 = vadd.f32 0.0, %v1049
        %1051 = vmatmul.bf16.gmra.mxu0 %v1025
        %v1052 = vpop.f32.mrf.mxu0
        %v1053 = vadd.f32 0.0, %v1052
        %v1054 = vpop.f32.mrf.mxu0
        %v1055 = vadd.f32 0.0, %v1054
        %1056 = vmatmul.bf16.gmra.mxu0 %v1028
        %v1057 = vpop.f32.mrf.mxu0
        %v1058 = vadd.f32 0.0, %v1057
        %v1059 = vpop.f32.mrf.mxu0
        %1060 = vmatmul.bf16.gmra.mxu0 %v1031
        %v1061 = vpop.f32.mrf.mxu0
        %v1062 = vpop.f32.mrf.mxu0
        %1063 = vdwg.mxu0
        %v1064 = vadd.f32 %v920, %v1043
        %v1065 = vadd.f32 %v921, %v1045
        %v1066 = vadd.f32 %v922, %v1048
        %v1067 = vadd.f32 %v923, %v1050
        %v1068 = vadd.f32 %v924, %v1053
        %v1069 = vadd.f32 %v925, %v1055
        %v1070 = vadd.f32 %v926, %v1058
        %v1071 = vld [vmem:[%s329 + $0x4] sm:$0xf]
        %v1072 = vld [vmem:[%s329 + $0x8] sm:$0xf]
        %v1073 = vld [vmem:[%s329 + $0xc] sm:$0xf]
        %v1074 = vld [vmem:[%s329 + $0x10] sm:$0xf]
        %v1075 = vld [vmem:[%s329 + $0x14] sm:$0xf]
        %v1076 = vld [vmem:[%s329 + $0x18] sm:$0xf]
        %v1077 = vld [vmem:[%s329 + $0x1c] sm:$0xf]
        %v1078 = vld [vmem:[%s329 + $0x20] sm:$0xf]
        %v1079 = vld [vmem:[%s329 + $0x24] sm:$0xf]
        %v1080 = vld [vmem:[%s329 + $0x28] sm:$0x1]
        %s1081 = scalar_lea.vmem %s1, 112
        %v1082 = vld [vmem:[%s1081] sm:$0xf]
        %v1083 = vld [vmem:[%s1081 + $0x4] sm:$0xf]
        %v1084 = vld [vmem:[%s1081 + $0x8] sm:$0xf]
        %v1085 = vld [vmem:[%s1081 + $0xc] sm:$0xf]
        %v1096 = vunpack.c.l.b16 %v1071
        %v1097 = vunpack.c.l.b16 %v1072
        %v1098 = vunpack.c.l.b16 %v1073
        %v1099 = vunpack.c.l.b16 %v1074
        %v1100 = vunpack.c.l.b16 %v1075
        %v1101 = vunpack.c.l.b16 %v1076
        %v1102 = vunpack.c.l.b16 %v1077
        %v1103 = vunpack.c.l.b16 %v1078
        %v1104 = vunpack.c.l.b16 %v1079
        %v1105 = vunpack.c.l.b16 %v1080
        %v1106 = vpack.c.b16 %v1097, %v1096
        %v1107 = vpack.c.b16 %v1099, %v1098
        %v1108 = vpack.c.b16 %v1101, %v1100
        %v1109 = vpack.c.b16 %v1103, %v1102
        %v1110 = vpack.c.b16 %v1105, %v1104
        %v1112 = vshrl.u32 %v1106, 16
        %v1114 = vshll.u32 %v1106, 16
        %v1116 = vrot.slane %v1114, 1
        %v1117 = vor.u32 %v1112, %v1116
        %v1119 = vshll.u32 %v1107, 16
        %v1121 = vrot.slane %v1119, 1
        %v1122 = vsel %vm472, %v1117, %v1121
        %v1123 = vshrl.u32 %v1107, 16
        %v1125 = vor.u32 %v1123, %v1121
        %v1127 = vshll.u32 %v1108, 16
        %v1129 = vrot.slane %v1127, 1
        %v1130 = vsel %vm472, %v1125, %v1129
        %v1131 = vshrl.u32 %v1108, 16
        %v1133 = vor.u32 %v1131, %v1129
        %v1135 = vshll.u32 %v1109, 16
        %v1137 = vrot.slane %v1135, 1
        %v1138 = vsel %vm472, %v1133, %v1137
        %v1139 = vshrl.u32 %v1109, 16
        %v1141 = vor.u32 %v1139, %v1137
        %v1143 = vshll.u32 %v1110, 16
        %v1145 = vrot.slane %v1143, 1
        %v1146 = vsel %vm472, %v1141, %v1145
        %v1147 = vshrl.u32 %v1110, 16
        %v1149 = vor.u32 %v1147, %v1145
        %v1154 = vunpack.c.l.b16 %v1082
        %v1155 = vunpack.c.l.b16 %v1083
        %v1156 = vunpack.c.l.b16 %v1084
        %v1157 = vunpack.c.l.b16 %v1085
        %v1158 = vpack.c.b16 %v1155, %v1154
        %v1159 = vpack.c.b16 %v1157, %v1156
        %v1163 = vsel %vm275, %v1122, 0
        %v1166 = vsel %vm275, %v1130, 0
        %v1169 = vsel %vm275, %v1138, 0
        %v1172 = vsel %vm275, %v1146, 0
        %v1175 = vsel %vm275, %v1149, 0
        %1177 = vmatpush.bf16.msra.mxu0 0
        %1178 = vmatpush.bf16.msra.mxu0 0
        %1179 = vmatpush.bf16.msra.mxu0 0
        %1180 = vmatpush.bf16.msra.mxu0 0
        %1181 = vmatpush.bf16.msra.mxu0 0
        %1182 = vmatpush.bf16.msra.mxu0 0
        %1183 = vmatpush.bf16.msra.mxu0 %v1159
        %1184 = vmatpush.bf16.msra.mxu0 %v1158
        %1185 = vmatmul.bf16.gmra.mxu0 %v1163
        %v1186 = vpop.f32.mrf.mxu0
        %v1187 = vadd.f32 0.0, %v1186
        %v1188 = vpop.f32.mrf.mxu0
        %v1189 = vadd.f32 0.0, %v1188
        %1190 = vmatmul.bf16.gmra.mxu0 %v1166
        %v1191 = vpop.f32.mrf.mxu0
        %v1192 = vadd.f32 0.0, %v1191
        %v1193 = vpop.f32.mrf.mxu0
        %v1194 = vadd.f32 0.0, %v1193
        %1195 = vmatmul.bf16.gmra.mxu0 %v1169
        %v1196 = vpop.f32.mrf.mxu0
        %v1197 = vadd.f32 0.0, %v1196
        %v1198 = vpop.f32.mrf.mxu0
        %v1199 = vadd.f32 0.0, %v1198
        %1200 = vmatmul.bf16.gmra.mxu0 %v1172
        %v1201 = vpop.f32.mrf.mxu0
        %v1202 = vadd.f32 0.0, %v1201
        %v1203 = vpop.f32.mrf.mxu0
        %1204 = vmatmul.bf16.gmra.mxu0 %v1175
        %v1205 = vpop.f32.mrf.mxu0
        %v1206 = vpop.f32.mrf.mxu0
        %1207 = vdwg.mxu0
        %v1208 = vadd.f32 %v1064, %v1187
        %v1209 = vadd.f32 %v1065, %v1189
        %v1210 = vadd.f32 %v1066, %v1192
        %v1211 = vadd.f32 %v1067, %v1194
        %v1212 = vadd.f32 %v1068, %v1197
        %v1213 = vadd.f32 %v1069, %v1199
        %v1214 = vadd.f32 %v1070, %v1202
        %v1215 = vld [vmem:[%s221 + $0x4] sm:$0xe]
        %s1216 = scalar_lea.vmem %s1, 128
        %v1217 = vld [vmem:[%s1216] sm:$0xf]
        %v1218 = vld [vmem:[%s1216 + $0x4] sm:$0xf]
        %v1219 = vld [vmem:[%s1216 + $0x8] sm:$0xf]
        %v1220 = vld [vmem:[%s1216 + $0xc] sm:$0xf]
        %v1222 = vunpack.c.l.b16 %v1215
        %v1223 = vpack.c.b16 %v953, %v1222
        %vm1224 = vcmask 1046528
        %v1225 = vrot.slane %v1223, 1
        %v1226 = vrot.slane %v963, 1
        %v1227 = vsel %vm1224, %v1225, %v1226
        %v1228 = vrot.slane %v964, 1
        %v1229 = vsel %vm1224, %v1226, %v1228
        %v1230 = vrot.slane %v965, 1
        %v1231 = vsel %vm1224, %v1228, %v1230
        %v1232 = vrot.slane %v966, 1
        %v1233 = vsel %vm1224, %v1230, %v1232
        %v1238 = vunpack.c.l.b16 %v1217
        %v1239 = vunpack.c.l.b16 %v1218
        %v1240 = vunpack.c.l.b16 %v1219
        %v1241 = vunpack.c.l.b16 %v1220
        %v1242 = vpack.c.b16 %v1239, %v1238
        %v1243 = vpack.c.b16 %v1241, %v1240
        %v1247 = vsel %vm275, %v1227, 0
        %v1250 = vsel %vm275, %v1229, 0
        %v1253 = vsel %vm275, %v1231, 0
        %v1256 = vsel %vm275, %v1233, 0
        %v1259 = vsel %vm275, %v1232, 0
        %1261 = vmatpush.bf16.msra.mxu0 0
        %1262 = vmatpush.bf16.msra.mxu0 0
        %1263 = vmatpush.bf16.msra.mxu0 0
        %1264 = vmatpush.bf16.msra.mxu0 0
        %1265 = vmatpush.bf16.msra.mxu0 0
        %1266 = vmatpush.bf16.msra.mxu0 0
        %1267 = vmatpush.bf16.msra.mxu0 %v1243
        %1268 = vmatpush.bf16.msra.mxu0 %v1242
        %1269 = vmatmul.bf16.gmra.mxu0 %v1247
        %v1270 = vpop.f32.mrf.mxu0
        %v1271 = vadd.f32 0.0, %v1270
        %v1272 = vpop.f32.mrf.mxu0
        %v1273 = vadd.f32 0.0, %v1272
        %1274 = vmatmul.bf16.gmra.mxu0 %v1250
        %v1275 = vpop.f32.mrf.mxu0
        %v1276 = vadd.f32 0.0, %v1275
        %v1277 = vpop.f32.mrf.mxu0
        %v1278 = vadd.f32 0.0, %v1277
        %1279 = vmatmul.bf16.gmra.mxu0 %v1253
        %v1280 = vpop.f32.mrf.mxu0
        %v1281 = vadd.f32 0.0, %v1280
        %v1282 = vpop.f32.mrf.mxu0
        %v1283 = vadd.f32 0.0, %v1282
        %1284 = vmatmul.bf16.gmra.mxu0 %v1256
        %v1285 = vpop.f32.mrf.mxu0
        %v1286 = vadd.f32 0.0, %v1285
        %v1287 = vpop.f32.mrf.mxu0
        %1288 = vmatmul.bf16.gmra.mxu0 %v1259
        %v1289 = vpop.f32.mrf.mxu0
        %v1290 = vpop.f32.mrf.mxu0
        %1291 = vdwg.mxu0
        %v1292 = vadd.f32 %v1208, %v1271
        %v1293 = vadd.f32 %v1209, %v1273
        %v1294 = vadd.f32 %v1210, %v1276
        %v1295 = vadd.f32 %v1211, %v1278
        %v1296 = vadd.f32 %v1212, %v1281
        %v1297 = vadd.f32 %v1213, %v1283
        %v1298 = vadd.f32 %v1214, %v1286
        %v1299 = vmax.f32 %v1292, 0.0
        %v1300 = vmax.f32 %v1293, 0.0
        %v1301 = vmax.f32 %v1294, 0.0
        %v1302 = vmax.f32 %v1295, 0.0
        %v1303 = vmax.f32 %v1296, 0.0
        %v1304 = vmax.f32 %v1297, 0.0
        %v1305 = vmax.f32 %v1298, 0.0
        %v1306 = vld [vmem:[%s4] sm:$0x1]
        %v1308 = vrot.slane %v1300, 1
        %v1310 = vmax.f32 %v1299, %v1308
        %v1312 = vrot.slane %v1301, 2
        %v1314 = vmax.f32 %v1310, %v1312
        %vm1315 = vcmask 256000
        %v1316 = vsel %vm1315, %v1314, -inf
        %v1317 = vrot.slane %v1316, 4
        %v1318 = vmax.f32 %v1316, %v1317
        %v1319 = vrot.slane %v1318, 2
        %v1320 = vmax.f32 %v1318, %v1319
        %v1321 = vrot.slane %v1320, 1
        %v1322 = vmax.f32 %v1320, %v1321
        %v1323 = vpack.c.bf16 %v1322, %v1322
        %v1324 = vld [vmem:[%s3] sm:$0xf]
        %v1325 = vld [vmem:[%s3 + $0x4] sm:$0xf]
        %v1326 = vld [vmem:[%s3 + $0x8] sm:$0xf]
        %v1327 = vld [vmem:[%s3 + $0xc] sm:$0xf]
        %v1332 = vunpack.c.l.b16 %v1324
        %v1333 = vunpack.c.l.b16 %v1325
        %v1334 = vunpack.c.l.b16 %v1326
        %v1335 = vunpack.c.l.b16 %v1327
        %v1336 = vpack.c.b16 %v1333, %v1332
        %v1337 = vpack.c.b16 %v1335, %v1334
        %v1341 = vsel %vm275, %v1323, 0
        %1343 = vmatpush.bf16.msra.mxu0 0
        %1344 = vmatpush.bf16.msra.mxu0 0
        %1345 = vmatpush.bf16.msra.mxu0 0
        %1346 = vmatpush.bf16.msra.mxu0 0
        %1347 = vmatpush.bf16.msra.mxu0 0
        %1348 = vmatpush.bf16.msra.mxu0 0
        %1349 = vmatpush.bf16.msra.mxu0 %v1337
        %1350 = vmatpush.bf16.msra.mxu0 %v1336
        %1351 = vmatmul.bf16.gmra.mxu0 %v1341
        %v1352 = vpop.f32.mrf.mxu0
        %v1353 = vadd.f32 0.0, %v1352
        %v1354 = vpop.f32.mrf.mxu0
        %1355 = vdwg.mxu0
        %v1356 = vadd.f32 %v1306, %v1353
        %vm1357 = vcmask 259075
        %v1358 = vsel %vm1357, %v1314, -inf
        %v1359 = vrot.slane %v1358, 4
        %v1360 = vmax.f32 %v1358, %v1359
        %v1361 = vrot.slane %v1360, 2
        %v1362 = vmax.f32 %v1360, %v1361
        %v1363 = vrot.slane %v1362, 1
        %v1364 = vmax.f32 %v1362, %v1363
        %v1365 = vpack.c.bf16 %v1364, %v1364
        %s1366 = scalar_lea.vmem %s3, 16
        %v1367 = vld [vmem:[%s1366] sm:$0xf]
        %v1368 = vld [vmem:[%s1366 + $0x4] sm:$0xf]
        %v1369 = vld [vmem:[%s1366 + $0x8] sm:$0xf]
        %v1370 = vld [vmem:[%s1366 + $0xc] sm:$0xf]
        %v1375 = vunpack.c.l.b16 %v1367
        %v1376 = vunpack.c.l.b16 %v1368
        %v1377 = vunpack.c.l.b16 %v1369
        %v1378 = vunpack.c.l.b16 %v1370
        %v1379 = vpack.c.b16 %v1376, %v1375
        %v1380 = vpack.c.b16 %v1378, %v1377
        %v1384 = vsel %vm275, %v1365, 0
        %1386 = vmatpush.bf16.msra.mxu0 0
        %1387 = vmatpush.bf16.msra.mxu0 0
        %1388 = vmatpush.bf16.msra.mxu0 0
        %1389 = vmatpush.bf16.msra.mxu0 0
        %1390 = vmatpush.bf16.msra.mxu0 0
        %1391 = vmatpush.bf16.msra.mxu0 0
        %1392 = vmatpush.bf16.msra.mxu0 %v1380
        %1393 = vmatpush.bf16.msra.mxu0 %v1379
        %1394 = vmatmul.bf16.gmra.mxu0 %v1384
        %v1395 = vpop.f32.mrf.mxu0
        %v1396 = vadd.f32 0.0, %v1395
        %v1397 = vpop.f32.mrf.mxu0
        %1398 = vdwg.mxu0
        %v1399 = vadd.f32 %v1356, %v1396
        %v1401 = vrot.slane %v1303, 1
        %v1403 = vmax.f32 %v1302, %v1401
        %v1405 = vrot.slane %v1304, 2
        %v1407 = vmax.f32 %v1403, %v1405
        %v1408 = vsel %vm1357, %v1407, -inf
        %v1409 = vrot.slane %v1408, 4
        %v1410 = vmax.f32 %v1408, %v1409
        %v1411 = vrot.slane %v1410, 2
        %v1412 = vmax.f32 %v1410, %v1411
        %v1413 = vrot.slane %v1412, 1
        %v1414 = vmax.f32 %v1412, %v1413
        %v1415 = vpack.c.bf16 %v1414, %v1414
        %s1416 = scalar_lea.vmem %s3, 32
        %v1417 = vld [vmem:[%s1416] sm:$0xf]
        %v1418 = vld [vmem:[%s1416 + $0x4] sm:$0xf]
        %v1419 = vld [vmem:[%s1416 + $0x8] sm:$0xf]
        %v1420 = vld [vmem:[%s1416 + $0xc] sm:$0xf]
        %v1425 = vunpack.c.l.b16 %v1417
        %v1426 = vunpack.c.l.b16 %v1418
        %v1427 = vunpack.c.l.b16 %v1419
        %v1428 = vunpack.c.l.b16 %v1420
        %v1429 = vpack.c.b16 %v1426, %v1425
        %v1430 = vpack.c.b16 %v1428, %v1427
        %v1434 = vsel %vm275, %v1415, 0
        %1436 = vmatpush.bf16.msra.mxu0 0
        %1437 = vmatpush.bf16.msra.mxu0 0
        %1438 = vmatpush.bf16.msra.mxu0 0
        %1439 = vmatpush.bf16.msra.mxu0 0
        %1440 = vmatpush.bf16.msra.mxu0 0
        %1441 = vmatpush.bf16.msra.mxu0 0
        %1442 = vmatpush.bf16.msra.mxu0 %v1430
        %1443 = vmatpush.bf16.msra.mxu0 %v1429
        %1444 = vmatmul.bf16.gmra.mxu0 %v1434
        %v1445 = vpop.f32.mrf.mxu0
        %v1446 = vadd.f32 0.0, %v1445
        %v1447 = vpop.f32.mrf.mxu0
        %1448 = vdwg.mxu0
        %v1449 = vadd.f32 %v1399, %v1446
        %vm1450 = vcmask 1046528
        %v1451 = vrot.slane %v1304, 1
        %v1452 = vsel %vm1450, %v1401, %v1451
        %v1455 = vmax.f32 %v1302, %v1452
        %v1456 = vmax.f32 %v1303, %v1451
        %v1458 = vrot.slane %v1305, 2
        %v1460 = vmax.f32 %v1455, %v1458
        %v1461 = vmax.f32 %v1456, %v1458
        %vm1462 = vcmask 261126
        %v1463 = vsel %vm1462, %v1460, -inf
        %vm1464 = vcmask 253952
        %v1465 = vsel %vm1464, %v1461, -inf
        %v1466 = vmax.f32 %v1463, %v1465
        %v1467 = vrot.slane %v1466, 4
        %v1468 = vmax.f32 %v1466, %v1467
        %v1469 = vrot.slane %v1468, 2
        %v1470 = vmax.f32 %v1468, %v1469
        %v1471 = vrot.slane %v1470, 1
        %v1472 = vmax.f32 %v1470, %v1471
        %v1473 = vpack.c.bf16 %v1472, %v1472
        %s1474 = scalar_lea.vmem %s3, 48
        %v1475 = vld [vmem:[%s1474] sm:$0xf]
        %v1476 = vld [vmem:[%s1474 + $0x4] sm:$0xf]
        %v1477 = vld [vmem:[%s1474 + $0x8] sm:$0xf]
        %v1478 = vld [vmem:[%s1474 + $0xc] sm:$0xf]
        %v1483 = vunpack.c.l.b16 %v1475
        %v1484 = vunpack.c.l.b16 %v1476
        %v1485 = vunpack.c.l.b16 %v1477
        %v1486 = vunpack.c.l.b16 %v1478
        %v1487 = vpack.c.b16 %v1484, %v1483
        %v1488 = vpack.c.b16 %v1486, %v1485
        %v1492 = vsel %vm275, %v1473, 0
        %1494 = vmatpush.bf16.msra.mxu0 0
        %1495 = vmatpush.bf16.msra.mxu0 0
        %1496 = vmatpush.bf16.msra.mxu0 0
        %1497 = vmatpush.bf16.msra.mxu0 0
        %1498 = vmatpush.bf16.msra.mxu0 0
        %1499 = vmatpush.bf16.msra.mxu0 0
        %1500 = vmatpush.bf16.msra.mxu0 %v1488
        %1501 = vmatpush.bf16.msra.mxu0 %v1487
        %1502 = vmatmul.bf16.gmra.mxu0 %v1492
        %v1503 = vpop.f32.mrf.mxu0
        %v1504 = vadd.f32 0.0, %v1503
        %v1505 = vpop.f32.mrf.mxu0
        %1506 = vdwg.mxu0
        %v1507 = vadd.f32 %v1449, %v1504
        %vm1508 = vcmask 73728
        %1509 = vst.msk [vmem:[%s216] sm:$0x1] %vm1508, %v1507
        %s1510 = sand.u32 %s137, 1
        %s1511 = scalar_lea.sflag [#allocation3], %s1510
        %s1512 = sand.u32 %s137, 1
        %s1513 = scalar_lea.vmem [#allocation2], %s1512
        // Predicated region
        $region41: #{convnet_forward.3} parent=39 // pred_check
          %p1514 = pneg %p147
        $region42: #{convnet_forward.3} parent=39 // pred_check_branch
          %1516 = sbr.rel (%p1514) target = $region44
        $region43: #{convnet_forward.3} parent=39 // pred_region
          %1518 = vsyncadd %s1511, 0
          %s1519 = scalar_lea.hbm %s5, %s19
          %s1521 = sshll.u32 %s1513, 4
          %s1522 = int_to_ptr.vmem [resolvable:$true] %s1521
          %s1523 = sshll.u32 %s1519, 4
          %s1524 = int_to_ptr.hbm [resolvable:$true] %s1523
          %1526 = dma.vmem_to_hbm [thread:$0]  %s1522, 16, %s1524, %s1511
        $region44: #{convnet_forward.3} parent=39 // pred_fallthru
          _
      $region40: #{convnet_forward.3} parent=5 // pred_fallthru
        _
      %p1527 = scmp.le.s32.totalorder 2, %s14
      // Predicated region
      $region45: #{convnet_forward.3} parent=5 // pred_check
        %p1528 = pneg %p1527
      $region46: #{convnet_forward.3} parent=5 // pred_check_branch
        %1530 = sbr.rel (%p1528) target = $region48
      $region47: #{convnet_forward.3} parent=5 // pred_region
        %s1531 = ssub.s32 %s14, 2
        // Predicated region
        $region49: #{convnet_forward.3} parent=47 // pred_check
          %p1532 = pneg %p153
        $region50: #{convnet_forward.3} parent=47 // pred_check_branch
          %1534 = sbr.rel (%p1532) target = $region52
        $region51: #{convnet_forward.3} parent=47 // pred_region
          %s1535 = sand.u32 %s138, 1
          %s1536 = scalar_lea.sflag [#allocation3], %s1535
          %s1537 = sand.u32 %s138, 1
          %s1538 = scalar_lea.vmem [#allocation2], %s1537
          %1540 = dma.done %s1536, 16
        $region52: #{convnet_forward.3} parent=47 // pred_fallthru
          _
      $region48: #{convnet_forward.3} parent=5 // pred_fallthru
        _
    $region6: #{convnet_forward.3} parent=1 // loop_footer
      %s18 = sadd.s32 1, %s14
    $region7: #{convnet_forward.3} parent=1 // loop_footer_branch
      %13 = sbr.rel target = $region3
    $region8: #{convnet_forward.3} parent=1 // loop_exit
      _
    %1541 = vsyncpa [#allocation3], 1
    %s1542 = scalar_lea.sflag [#allocation3], 1
    %1543 = vsyncpa %s1542, 1

// kernel: convnet_forward.2
$region0: #{convnet_forward.2}
  #allocation0 [shape = 'u32[]', space=smem, size = 0x4, offset = 0x4, fixed_abs, tag = 'smem constant byte address 0x4 - core index']
  #allocation1 [shape = 'u32[72,128]{1,0:T(1,128)}', space=vmem, size = 0x9000, scoped, tag = 'internal scratch']
  #allocation2 [shape = 'f32[336,32]{1,0:T(8,128)}', space=vmem, size = 0x2a000, scoped, tag = 'scratch operand']
  #allocation3 [shape = 'f32[336,32]{1,0:T(8,128)}', space=vmem, size = 0x2a000, scoped, tag = 'scratch operand']
  %s0 = inlined_call_operand.vmem [shape: bf16[2,4,324,4], index: 0, kind: input, shape index: {}]
  %s1 = inlined_call_operand.vmem [shape: bf16[9,4,32], index: 1, kind: input, shape index: {}]
  %s2 = inlined_call_operand.vmem [shape: f32[1,32], index: 2, kind: input, shape index: {}]
  %s3 = inlined_call_operand.vmem [shape: bf16[1,9,32,32], index: 3, kind: input, shape index: {}]
  %s4 = inlined_call_operand.vmem [shape: f32[1,1,32], index: 4, kind: input, shape index: {}]
  %s5 = inlined_call_operand.vmem [shape: f32[288,1], index: 5, kind: input, shape index: {}]
  %s6 = inlined_call_operand.vmem [shape: bf16[2,288,32], index: 6, kind: output, shape index: {}]
  %s7 = sld [smem:[#allocation0]]
  $region57: #{convnet_forward.2} parent=0
    _
  %s9 = ssub.s32 1, %s7
  %s10 = scalar_select 0, %s9, %s7
  loop: start=0, step=1, limit=4
  $region2: #{convnet_forward.2} parent=0 // loop_pre_header
    _
  $region3: #{convnet_forward.2} parent=0 // loop_header
    %s12 = sphi 0, %s16
    %p13 = scmp.ge.s32.totalorder %s12, 4
    %s22 = sphi 0, %s24
    %s25 = sphi 0, %s22
    %s26 = sphi 0, %s25
    %s42 = sphi 0, %s26
    %s46 = sphi 0, %s46
    %s48 = sphi 0, %s46
    %s49 = sphi 0, %s48
    %s63 = sphi 0, %s49
    %s67 = sphi 0, %s67
    %s69 = sphi 0, %s67
    %s70 = sphi 0, %s69
    %s84 = sphi 0, %s70
    %s88 = sphi 0, %s88
    %s90 = sphi 0, %s88
    %s91 = sphi 0, %s90
    %s105 = sphi 0, %s91
    %s109 = sphi 0, %s109
    %s111 = sphi 0, %s109
    %s112 = sphi 0, %s111
    %s126 = sphi 0, %s112
    %s130 = sphi 0, %s130
    %s132 = sphi 0, %s130
    %s133 = sphi 0, %s132
    %s147 = sphi 0, %s133
    %s153 = sphi 0, %s155
    %s156 = sphi 0, %s153
    %s157 = sphi 0, %s156
    %s173 = sphi 0, %s157
  $region4: #{convnet_forward.2} parent=0 // loop_header_branch
    %15 = sbr.rel (%p13) target = $region8
  $region5: #{convnet_forward.2} parent=0 // loop_body
    %s17 = ssub.s32 %s12, 1
    %s18 = ssub.s32 %s12, 2
    %s19 = sadd.s32 %s12, 1
    %s20 = ssub.s32 %s12, %s19
    %p21 = scmp.eq.s32.totalorder %s20, 0
    %s23 = sadd.s32 %s22, 1
    %s24 = scalar_select %p21, %s22, %s23
    %p27 = pneg %p21
    %p28 = scmp.eq.s32.totalorder %s12, 1
    %p29 = por %p27, %p28
    %p30 = scmp.ne.s32.totalorder %s22, %s25
    %p31 = scmp.eq.s32.totalorder %s12, 0
    %p32 = por %p30, %p31
    %p33 = scmp.ne.s32.totalorder %s22, %s25
    %p34 = scmp.eq.s32.totalorder %s17, 1
    %p35 = por %p33, %p34
    %p36 = scmp.ne.s32.totalorder %s25, %s26
    %p37 = scmp.eq.s32.totalorder %s17, 0
    %p38 = por %p36, %p37
    %p39 = scmp.ne.s32.totalorder %s25, %s26
    %p40 = scmp.eq.s32.totalorder %s18, 1
    %p41 = por %p39, %p40
    %p43 = scmp.ne.s32.totalorder %s26, %s42
    %p44 = scmp.eq.s32.totalorder %s18, 0
    %p45 = por %p43, %p44
    %s47 = sadd.s32 %s46, 1
    %p50 = scmp.eq.s32.totalorder %s12, 1
    %p51 = scmp.ne.s32.totalorder %s46, %s48
    %p52 = scmp.eq.s32.totalorder %s12, 0
    %p53 = por %p51, %p52
    %p54 = scmp.ne.s32.totalorder %s46, %s48
    %p55 = scmp.eq.s32.totalorder %s17, 1
    %p56 = por %p54, %p55
    %p57 = scmp.ne.s32.totalorder %s48, %s49
    %p58 = scmp.eq.s32.totalorder %s17, 0
    %p59 = por %p57, %p58
    %p60 = scmp.ne.s32.totalorder %s48, %s49
    %p61 = scmp.eq.s32.totalorder %s18, 1
    %p62 = por %p60, %p61
    %p64 = scmp.ne.s32.totalorder %s49, %s63
    %p65 = scmp.eq.s32.totalorder %s18, 0
    %p66 = por %p64, %p65
    %s68 = sadd.s32 %s67, 1
    %p71 = scmp.eq.s32.totalorder %s12, 1
    %p72 = scmp.ne.s32.totalorder %s67, %s69
    %p73 = scmp.eq.s32.totalorder %s12, 0
    %p74 = por %p72, %p73
    %p75 = scmp.ne.s32.totalorder %s67, %s69
    %p76 = scmp.eq.s32.totalorder %s17, 1
    %p77 = por %p75, %p76
    %p78 = scmp.ne.s32.totalorder %s69, %s70
    %p79 = scmp.eq.s32.totalorder %s17, 0
    %p80 = por %p78, %p79
    %p81 = scmp.ne.s32.totalorder %s69, %s70
    %p82 = scmp.eq.s32.totalorder %s18, 1
    %p83 = por %p81, %p82
    %p85 = scmp.ne.s32.totalorder %s70, %s84
    %p86 = scmp.eq.s32.totalorder %s18, 0
    %p87 = por %p85, %p86
    %s89 = sadd.s32 %s88, 1
    %p92 = scmp.eq.s32.totalorder %s12, 1
    %p93 = scmp.ne.s32.totalorder %s88, %s90
    %p94 = scmp.eq.s32.totalorder %s12, 0
    %p95 = por %p93, %p94
    %p96 = scmp.ne.s32.totalorder %s88, %s90
    %p97 = scmp.eq.s32.totalorder %s17, 1
    %p98 = por %p96, %p97
    %p99 = scmp.ne.s32.totalorder %s90, %s91
    %p100 = scmp.eq.s32.totalorder %s17, 0
    %p101 = por %p99, %p100
    %p102 = scmp.ne.s32.totalorder %s90, %s91
    %p103 = scmp.eq.s32.totalorder %s18, 1
    %p104 = por %p102, %p103
    %p106 = scmp.ne.s32.totalorder %s91, %s105
    %p107 = scmp.eq.s32.totalorder %s18, 0
    %p108 = por %p106, %p107
    %s110 = sadd.s32 %s109, 1
    %p113 = scmp.eq.s32.totalorder %s12, 1
    %p114 = scmp.ne.s32.totalorder %s109, %s111
    %p115 = scmp.eq.s32.totalorder %s12, 0
    %p116 = por %p114, %p115
    %p117 = scmp.ne.s32.totalorder %s109, %s111
    %p118 = scmp.eq.s32.totalorder %s17, 1
    %p119 = por %p117, %p118
    %p120 = scmp.ne.s32.totalorder %s111, %s112
    %p121 = scmp.eq.s32.totalorder %s17, 0
    %p122 = por %p120, %p121
    %p123 = scmp.ne.s32.totalorder %s111, %s112
    %p124 = scmp.eq.s32.totalorder %s18, 1
    %p125 = por %p123, %p124
    %p127 = scmp.ne.s32.totalorder %s112, %s126
    %p128 = scmp.eq.s32.totalorder %s18, 0
    %p129 = por %p127, %p128
    %s131 = sadd.s32 %s130, 1
    %p134 = scmp.eq.s32.totalorder %s12, 1
    %p135 = scmp.ne.s32.totalorder %s130, %s132
    %p136 = scmp.eq.s32.totalorder %s12, 0
    %p137 = por %p135, %p136
    %p138 = scmp.ne.s32.totalorder %s130, %s132
    %p139 = scmp.eq.s32.totalorder %s17, 1
    %p140 = por %p138, %p139
    %p141 = scmp.ne.s32.totalorder %s132, %s133
    %p142 = scmp.eq.s32.totalorder %s17, 0
    %p143 = por %p141, %p142
    %p144 = scmp.ne.s32.totalorder %s132, %s133
    %p145 = scmp.eq.s32.totalorder %s18, 1
    %p146 = por %p144, %p145
    %p148 = scmp.ne.s32.totalorder %s133, %s147
    %p149 = scmp.eq.s32.totalorder %s18, 0
    %p150 = por %p148, %p149
    %s151 = ssub.s32 %s12, %s19
    %p152 = scmp.eq.s32.totalorder %s151, 0
    %s154 = sadd.s32 %s153, 1
    %s155 = scalar_select %p152, %s153, %s154
    %p158 = pneg %p152
    %p159 = scmp.eq.s32.totalorder %s12, 1
    %p160 = por %p158, %p159
    %p161 = scmp.ne.s32.totalorder %s153, %s156
    %p162 = scmp.eq.s32.totalorder %s12, 0
    %p163 = por %p161, %p162
    %p164 = scmp.ne.s32.totalorder %s153, %s156
    %p165 = scmp.eq.s32.totalorder %s17, 1
    %p166 = por %p164, %p165
    %p167 = scmp.ne.s32.totalorder %s156, %s157
    %p168 = scmp.eq.s32.totalorder %s17, 0
    %p169 = por %p167, %p168
    %p170 = scmp.ne.s32.totalorder %s156, %s157
    %p171 = scmp.eq.s32.totalorder %s18, 1
    %p172 = por %p170, %p171
    %p174 = scmp.ne.s32.totalorder %s157, %s173
    %p175 = scmp.eq.s32.totalorder %s18, 0
    %p176 = por %p174, %p175
    %p177 = scmp.le.s32.totalorder 1, %s12
    %p178 = scmp.lt.s32.totalorder %s12, 3
    %p179 = pnand %p177, %p178
    %p180 = pneg %p179
    // Predicated region
    $region9: #{convnet_forward.2} parent=5 // pred_check
      _
    $region10: #{convnet_forward.2} parent=5 // pred_check_branch
      %182 = sbr.rel (%p179) target = $region12
    $region11: #{convnet_forward.2} parent=5 // pred_region
      %s183 = ssub.s32 %s12, 1
      // Predicated region
      $region13: #{convnet_forward.2} parent=11 // pred_check
        %p184 = pneg %p59
      $region14: #{convnet_forward.2} parent=11 // pred_check_branch
        %186 = sbr.rel (%p184) target = $region16
      $region15: #{convnet_forward.2} parent=11 // pred_region
        _
      $region16: #{convnet_forward.2} parent=11 // pred_fallthru
        _
      // Predicated region
      $region17: #{convnet_forward.2} parent=11 // pred_check
        %p187 = pneg %p80
      $region18: #{convnet_forward.2} parent=11 // pred_check_branch
        %189 = sbr.rel (%p187) target = $region20
      $region19: #{convnet_forward.2} parent=11 // pred_region
        _
      $region20: #{convnet_forward.2} parent=11 // pred_fallthru
        _
      // Predicated region
      $region21: #{convnet_forward.2} parent=11 // pred_check
        %p190 = pneg %p101
      $region22: #{convnet_forward.2} parent=11 // pred_check_branch
        %192 = sbr.rel (%p190) target = $region24
      $region23: #{convnet_forward.2} parent=11 // pred_region
        _
      $region24: #{convnet_forward.2} parent=11 // pred_fallthru
        _
      // Predicated region
      $region25: #{convnet_forward.2} parent=11 // pred_check
        %p193 = pneg %p122
      $region26: #{convnet_forward.2} parent=11 // pred_check_branch
        %195 = sbr.rel (%p193) target = $region28
      $region27: #{convnet_forward.2} parent=11 // pred_region
        _
      $region28: #{convnet_forward.2} parent=11 // pred_fallthru
        _
      // Predicated region
      $region29: #{convnet_forward.2} parent=11 // pred_check
        %p196 = pneg %p143
      $region30: #{convnet_forward.2} parent=11 // pred_check_branch
        %198 = sbr.rel (%p196) target = $region32
      $region31: #{convnet_forward.2} parent=11 // pred_region
        _
      $region32: #{convnet_forward.2} parent=11 // pred_fallthru
        _
    $region12: #{convnet_forward.2} parent=5 // pred_fallthru
      _
    %p199 = scmp.lt.s32.totalorder %s12, 2
    // Predicated region
    $region33: #{convnet_forward.2} parent=5 // pred_check
      %p200 = pneg %p199
    $region34: #{convnet_forward.2} parent=5 // pred_check_branch
      %202 = sbr.rel (%p200) target = $region36
    $region35: #{convnet_forward.2} parent=5 // pred_region
      // Predicated region
      $region37: #{convnet_forward.2} parent=35 // pred_check
        %p203 = pneg %p32
      $region38: #{convnet_forward.2} parent=35 // pred_check_branch
        %205 = sbr.rel (%p203) target = $region40
      $region39: #{convnet_forward.2} parent=35 // pred_region
        %p206 = scmp.lt.s32.totalorder %s12, 1
        %s207 = scalar_select %p206, %s12, 1
        %s208 = smul.addr %s207, 164
        %s209 = smul.addr %s208, 4
        %s210 = scalar_lea.vmem %s0, %s209
      $region40: #{convnet_forward.2} parent=35 // pred_fallthru
        _
    $region36: #{convnet_forward.2} parent=5 // pred_fallthru
      _
    %p211 = scmp.le.s32.totalorder 1, %s12
    %p212 = scmp.lt.s32.totalorder %s12, 3
    %p213 = pnand %p211, %p212
    %p214 = pneg %p213
    // Predicated region
    $region41: #{convnet_forward.2} parent=5 // pred_check
      _
    $region42: #{convnet_forward.2} parent=5 // pred_check_branch
      %216 = sbr.rel (%p213) target = $region44
    $region43: #{convnet_forward.2} parent=5 // pred_region
      %s217 = ssub.s32 %s12, 1
      %p218 = scmp.lt.s32.totalorder %s17, 1
      %s219 = scalar_select %p218, %s17, 1
      %s220 = smul.addr %s219, 164
      %s221 = smul.addr %s220, 4
      %s222 = scalar_lea.vmem %s0, %s221
      %p223 = pneg %p38
      %p224 = pneg %p35
      %p225 = pneg %p59
      %p226 = pneg %p56
      %p227 = pneg %p80
      %p228 = pneg %p77
      %p229 = pneg %p101
      %p230 = pneg %p98
      %p231 = pneg %p122
      %p232 = pneg %p119
      %p233 = pneg %p143
      %p234 = pneg %p140
      %p235 = pneg %p169
      %p236 = pneg %p166
      %p237 = scmp.lt.s32.totalorder %s17, 1
      %s238 = scalar_select %p237, %s17, 1
      %s239 = smul.addr %s238, 36
      %s240 = smul.addr %s239, 4
      %s241 = scalar_lea.vmem %s6, %s240
      %p242 = scmp.lt.s32.totalorder %s17, 1
      %s243 = scalar_select %p242, %s17, 1
      %s244 = smul.addr %s243, 164
      %s245 = smul.addr %s244, 4
      %s246 = scalar_lea.vmem %s0, %s245
      %p247 = scmp.lt.s32.totalorder %s17, 1
      %s248 = scalar_select %p247, %s17, 1
      %s249 = smul.addr %s248, 36
      %s250 = smul.addr %s249, 4
      %s251 = scalar_lea.vmem %s6, %s250
      %v253 = vld [vmem:[%s5] sm:$0xff]
      %v254 = vld [vmem:[%s5 + $0x8] sm:$0xff]
      %v255 = vld [vmem:[%s5 + $0x10] sm:$0xff]
      %v256 = vld [vmem:[%s5 + $0x18] sm:$0xff]
      %v257 = vld [vmem:[%s5 + $0x20] sm:$0xff]
      %v258 = vld [vmem:[%s5 + $0x28] sm:$0xff]
      %v259 = vld [vmem:[%s5 + $0x30] sm:$0xff]
      %v260 = vld [vmem:[%s5 + $0x38] sm:$0xff]
      %v261 = vld [vmem:[%s5 + $0x40] sm:$0xff]
      %v262 = vld [vmem:[%s5 + $0x48] sm:$0xff]
      %v263 = vld [vmem:[%s5 + $0x50] sm:$0xff]
      %v264 = vld [vmem:[%s5 + $0x58] sm:$0xff]
      %v265 = vld [vmem:[%s5 + $0x60] sm:$0xff]
      %v266 = vld [vmem:[%s5 + $0x68] sm:$0xff]
      %v267 = vld [vmem:[%s5 + $0x70] sm:$0xff]
      %v268 = vld [vmem:[%s5 + $0x78] sm:$0xff]
      %v269 = vld [vmem:[%s5 + $0x80] sm:$0xff]
      %v270 = vld [vmem:[%s5 + $0x88] sm:$0xff]
      %v271 = vld [vmem:[%s5 + $0x90] sm:$0xff]
      %v272 = vld [vmem:[%s5 + $0x98] sm:$0xff]
      %v273 = vld [vmem:[%s5 + $0xa0] sm:$0xff]
      %v274 = vld [vmem:[%s5 + $0xa8] sm:$0xff]
      %v275 = vld [vmem:[%s5 + $0xb0] sm:$0xff]
      %v276 = vld [vmem:[%s5 + $0xb8] sm:$0xff]
      %v277 = vld [vmem:[%s5 + $0xc0] sm:$0xff]
      %v278 = vld [vmem:[%s5 + $0xc8] sm:$0xff]
      %v279 = vld [vmem:[%s5 + $0xd0] sm:$0xff]
      %v280 = vld [vmem:[%s5 + $0xd8] sm:$0xff]
      %v281 = vld [vmem:[%s5 + $0xe0] sm:$0xff]
      %v282 = vld [vmem:[%s5 + $0xe8] sm:$0xff]
      %v283 = vld [vmem:[%s5 + $0xf0] sm:$0xff]
      %v284 = vld [vmem:[%s5 + $0xf8] sm:$0xff]
      %v285 = vld [vmem:[%s5 + $0x100] sm:$0xff]
      %v286 = vld [vmem:[%s5 + $0x108] sm:$0xff]
      %v287 = vld [vmem:[%s5 + $0x110] sm:$0xff]
      %v288 = vld [vmem:[%s5 + $0x118] sm:$0xff]
      %v289 = vld [vmem:[%s2] sm:$0x1]
      %v291 = vperm.slane %v289, 0
      %v293 = vld [vmem:[%s246] sm:$0xf]
      %v294 = vld [vmem:[%s246 + $0x4] sm:$0xf]
      %v295 = vld [vmem:[%s246 + $0x8] sm:$0xf]
      %v296 = vld [vmem:[%s246 + $0xc] sm:$0xf]
      %v297 = vld [vmem:[%s246 + $0x10] sm:$0xf]
      %v298 = vld [vmem:[%s246 + $0x14] sm:$0xf]
      %v299 = vld [vmem:[%s246 + $0x18] sm:$0xf]
      %v300 = vld [vmem:[%s246 + $0x1c] sm:$0xf]
      %v301 = vld [vmem:[%s246 + $0x20] sm:$0xf]
      %v302 = vld [vmem:[%s246 + $0x24] sm:$0xf]
      %v303 = vld [vmem:[%s246 + $0x28] sm:$0xf]
      %v304 = vld [vmem:[%s246 + $0x2c] sm:$0xf]
      %v305 = vld [vmem:[%s246 + $0x30] sm:$0xf]
      %v306 = vld [vmem:[%s246 + $0x34] sm:$0xf]
      %v307 = vld [vmem:[%s246 + $0x38] sm:$0xf]
      %v308 = vld [vmem:[%s246 + $0x3c] sm:$0xf]
      %v309 = vld [vmem:[%s246 + $0x40] sm:$0xf]
      %v310 = vld [vmem:[%s246 + $0x44] sm:$0xf]
      %v311 = vld [vmem:[%s246 + $0x48] sm:$0xf]
      %v312 = vld [vmem:[%s246 + $0x4c] sm:$0xf]
      %v313 = vld [vmem:[%s246 + $0x50] sm:$0xf]
      %v314 = vld [vmem:[%s246 + $0x54] sm:$0xf]
      %v315 = vld [vmem:[%s246 + $0x58] sm:$0xf]
      %v316 = vld [vmem:[%s246 + $0x5c] sm:$0xf]
      %v317 = vld [vmem:[%s246 + $0x60] sm:$0xf]
      %v318 = vld [vmem:[%s246 + $0x64] sm:$0xf]
      %v319 = vld [vmem:[%s246 + $0x68] sm:$0xf]
      %v320 = vld [vmem:[%s246 + $0x6c] sm:$0xf]
      %v321 = vld [vmem:[%s246 + $0x70] sm:$0xf]
      %v322 = vld [vmem:[%s246 + $0x74] sm:$0xf]
      %v323 = vld [vmem:[%s246 + $0x78] sm:$0xf]
      %v324 = vld [vmem:[%s246 + $0x7c] sm:$0xf]
      %v325 = vld [vmem:[%s246 + $0x80] sm:$0xf]
      %v326 = vld [vmem:[%s246 + $0x84] sm:$0xf]
      %v327 = vld [vmem:[%s246 + $0x88] sm:$0xf]
      %v328 = vld [vmem:[%s246 + $0x8c] sm:$0xf]
      %v329 = vld [vmem:[%s1] sm:$0x3]
      %v366 = vunpack.c.l.b16 %v293
      %v367 = vunpack.c.l.b16 %v294
      %v368 = vunpack.c.l.b16 %v295
      %v369 = vunpack.c.l.b16 %v296
      %v370 = vunpack.c.l.b16 %v297
      %v371 = vunpack.c.l.b16 %v298
      %v372 = vunpack.c.l.b16 %v299
      %v373 = vunpack.c.l.b16 %v300
      %v374 = vunpack.c.l.b16 %v301
      %v375 = vunpack.c.l.b16 %v302
      %v376 = vunpack.c.l.b16 %v303
      %v377 = vunpack.c.l.b16 %v304
      %v378 = vunpack.c.l.b16 %v305
      %v379 = vunpack.c.l.b16 %v306
      %v380 = vunpack.c.l.b16 %v307
      %v381 = vunpack.c.l.b16 %v308
      %v382 = vunpack.c.l.b16 %v309
      %v383 = vunpack.c.l.b16 %v310
      %v384 = vunpack.c.l.b16 %v311
      %v385 = vunpack.c.l.b16 %v312
      %v386 = vunpack.c.l.b16 %v313
      %v387 = vunpack.c.l.b16 %v314
      %v388 = vunpack.c.l.b16 %v315
      %v389 = vunpack.c.l.b16 %v316
      %v390 = vunpack.c.l.b16 %v317
      %v391 = vunpack.c.l.b16 %v318
      %v392 = vunpack.c.l.b16 %v319
      %v393 = vunpack.c.l.b16 %v320
      %v394 = vunpack.c.l.b16 %v321
      %v395 = vunpack.c.l.b16 %v322
      %v396 = vunpack.c.l.b16 %v323
      %v397 = vunpack.c.l.b16 %v324
      %v398 = vunpack.c.l.b16 %v325
      %v399 = vunpack.c.l.b16 %v326
      %v400 = vunpack.c.l.b16 %v327
      %v401 = vunpack.c.l.b16 %v328
      %v402 = vpack.c.b16 %v367, %v366
      %v403 = vpack.c.b16 %v369, %v368
      %v404 = vpack.c.b16 %v371, %v370
      %v405 = vpack.c.b16 %v373, %v372
      %v406 = vpack.c.b16 %v375, %v374
      %v407 = vpack.c.b16 %v377, %v376
      %v408 = vpack.c.b16 %v379, %v378
      %v409 = vpack.c.b16 %v381, %v380
      %v410 = vpack.c.b16 %v383, %v382
      %v411 = vpack.c.b16 %v385, %v384
      %v412 = vpack.c.b16 %v387, %v386
      %v413 = vpack.c.b16 %v389, %v388
      %v414 = vpack.c.b16 %v391, %v390
      %v415 = vpack.c.b16 %v393, %v392
      %v416 = vpack.c.b16 %v395, %v394
      %v417 = vpack.c.b16 %v397, %v396
      %v418 = vpack.c.b16 %v399, %v398
      %v419 = vpack.c.b16 %v401, %v400
      %vm420 = vcmask 31744
      %v422 = vsel %vm420, %v402, 0
      %v425 = vsel %vm420, %v403, 0
      %v428 = vsel %vm420, %v404, 0
      %v431 = vsel %vm420, %v405, 0
      %v434 = vsel %vm420, %v406, 0
      %v437 = vsel %vm420, %v407, 0
      %v440 = vsel %vm420, %v408, 0
      %v443 = vsel %vm420, %v409, 0
      %v446 = vsel %vm420, %v410, 0
      %v449 = vsel %vm420, %v411, 0
      %v452 = vsel %vm420, %v412, 0
      %v455 = vsel %vm420, %v413, 0
      %v458 = vsel %vm420, %v414, 0
      %v461 = vsel %vm420, %v415, 0
      %v464 = vsel %vm420, %v416, 0
      %v467 = vsel %vm420, %v417, 0
      %v470 = vsel %vm420, %v418, 0
      %v473 = vsel %vm420, %v419, 0
      %vm475 = vcmask 1041408
      %v477 = vsel %vm475, %v329, 0
      %479 = vmatpush.bf16.msra.mxu0 0
      %480 = vmatpush.bf16.msra.mxu0 0
      %481 = vmatpush.bf16.msra.mxu0 0
      %482 = vmatpush.bf16.msra.mxu0 0
      %483 = vmatpush.bf16.msra.mxu0 0
      %484 = vmatpush.bf16.msra.mxu0 0
      %485 = vmatpush.bf16.msra.mxu0 0
      %486 = vmatpush.bf16.msra.mxu0 %v477
      %487 = vmatmul.bf16.gmra.mxu0 %v422
      %v488 = vpop.f32.mrf.mxu0
      %v489 = vadd.f32 0.0, %v488
      %v490 = vpop.f32.mrf.mxu0
      %v491 = vadd.f32 0.0, %v490
      %492 = vmatmul.bf16.gmra.mxu0 %v425
      %v493 = vpop.f32.mrf.mxu0
      %v494 = vadd.f32 0.0, %v493
      %v495 = vpop.f32.mrf.mxu0
      %v496 = vadd.f32 0.0, %v495
      %497 = vmatmul.bf16.gmra.mxu0 %v428
      %v498 = vpop.f32.mrf.mxu0
      %v499 = vadd.f32 0.0, %v498
      %v500 = vpop.f32.mrf.mxu0
      %v501 = vadd.f32 0.0, %v500
      %502 = vmatmul.bf16.gmra.mxu0 %v431
      %v503 = vpop.f32.mrf.mxu0
      %v504 = vadd.f32 0.0, %v503
      %v505 = vpop.f32.mrf.mxu0
      %v506 = vadd.f32 0.0, %v505
      %507 = vmatmul.bf16.gmra.mxu0 %v434
      %v508 = vpop.f32.mrf.mxu0
      %v509 = vadd.f32 0.0, %v508
      %v510 = vpop.f32.mrf.mxu0
      %v511 = vadd.f32 0.0, %v510
      %512 = vmatmul.bf16.gmra.mxu0 %v437
      %v513 = vpop.f32.mrf.mxu0
      %v514 = vadd.f32 0.0, %v513
      %v515 = vpop.f32.mrf.mxu0
      %v516 = vadd.f32 0.0, %v515
      %517 = vmatmul.bf16.gmra.mxu0 %v440
      %v518 = vpop.f32.mrf.mxu0
      %v519 = vadd.f32 0.0, %v518
      %v520 = vpop.f32.mrf.mxu0
      %v521 = vadd.f32 0.0, %v520
      %522 = vmatmul.bf16.gmra.mxu0 %v443
      %v523 = vpop.f32.mrf.mxu0
      %v524 = vadd.f32 0.0, %v523
      %v525 = vpop.f32.mrf.mxu0
      %v526 = vadd.f32 0.0, %v525
      %527 = vmatmul.bf16.gmra.mxu0 %v446
      %v528 = vpop.f32.mrf.mxu0
      %v529 = vadd.f32 0.0, %v528
      %v530 = vpop.f32.mrf.mxu0
      %v531 = vadd.f32 0.0, %v530
      %532 = vmatmul.bf16.gmra.mxu0 %v449
      %v533 = vpop.f32.mrf.mxu0
      %v534 = vadd.f32 0.0, %v533
      %v535 = vpop.f32.mrf.mxu0
      %v536 = vadd.f32 0.0, %v535
      %537 = vmatmul.bf16.gmra.mxu0 %v452
      %v538 = vpop.f32.mrf.mxu0
      %v539 = vadd.f32 0.0, %v538
      %v540 = vpop.f32.mrf.mxu0
      %v541 = vadd.f32 0.0, %v540
      %542 = vmatmul.bf16.gmra.mxu0 %v455
      %v543 = vpop.f32.mrf.mxu0
      %v544 = vadd.f32 0.0, %v543
      %v545 = vpop.f32.mrf.mxu0
      %v546 = vadd.f32 0.0, %v545
      %547 = vmatmul.bf16.gmra.mxu0 %v458
      %v548 = vpop.f32.mrf.mxu0
      %v549 = vadd.f32 0.0, %v548
      %v550 = vpop.f32.mrf.mxu0
      %v551 = vadd.f32 0.0, %v550
      %552 = vmatmul.bf16.gmra.mxu0 %v461
      %v553 = vpop.f32.mrf.mxu0
      %v554 = vadd.f32 0.0, %v553
      %v555 = vpop.f32.mrf.mxu0
      %v556 = vadd.f32 0.0, %v555
      %557 = vmatmul.bf16.gmra.mxu0 %v464
      %v558 = vpop.f32.mrf.mxu0
      %v559 = vadd.f32 0.0, %v558
      %v560 = vpop.f32.mrf.mxu0
      %v561 = vadd.f32 0.0, %v560
      %562 = vmatmul.bf16.gmra.mxu0 %v467
      %v563 = vpop.f32.mrf.mxu0
      %v564 = vadd.f32 0.0, %v563
      %v565 = vpop.f32.mrf.mxu0
      %v566 = vadd.f32 0.0, %v565
      %567 = vmatmul.bf16.gmra.mxu0 %v470
      %v568 = vpop.f32.mrf.mxu0
      %v569 = vadd.f32 0.0, %v568
      %v570 = vpop.f32.mrf.mxu0
      %v571 = vadd.f32 0.0, %v570
      %572 = vmatmul.bf16.gmra.mxu0 %v473
      %v573 = vpop.f32.mrf.mxu0
      %v574 = vadd.f32 0.0, %v573
      %v575 = vpop.f32.mrf.mxu0
      %v576 = vadd.f32 0.0, %v575
      %577 = vdwg.mxu0
      %v578 = vadd.f32 %v291, %v489
      %v579 = vadd.f32 %v291, %v491
      %v580 = vadd.f32 %v291, %v494
      %v581 = vadd.f32 %v291, %v496
      %v582 = vadd.f32 %v291, %v499
      %v583 = vadd.f32 %v291, %v501
      %v584 = vadd.f32 %v291, %v504
      %v585 = vadd.f32 %v291, %v506
      %v586 = vadd.f32 %v291, %v509
      %v587 = vadd.f32 %v291, %v511
      %v588 = vadd.f32 %v291, %v514
      %v589 = vadd.f32 %v291, %v516
      %v590 = vadd.f32 %v291, %v519
      %v591 = vadd.f32 %v291, %v521
      %v592 = vadd.f32 %v291, %v524
      %v593 = vadd.f32 %v291, %v526
      %v594 = vadd.f32 %v291, %v529
      %v595 = vadd.f32 %v291, %v531
      %v596 = vadd.f32 %v291, %v534
      %v597 = vadd.f32 %v291, %v536
      %v598 = vadd.f32 %v291, %v539
      %v599 = vadd.f32 %v291, %v541
      %v600 = vadd.f32 %v291, %v544
      %v601 = vadd.f32 %v291, %v546
      %v602 = vadd.f32 %v291, %v549
      %v603 = vadd.f32 %v291, %v551
      %v604 = vadd.f32 %v291, %v554
      %v605 = vadd.f32 %v291, %v556
      %v606 = vadd.f32 %v291, %v559
      %v607 = vadd.f32 %v291, %v561
      %v608 = vadd.f32 %v291, %v564
      %v609 = vadd.f32 %v291, %v566
      %v610 = vadd.f32 %v291, %v569
      %v611 = vadd.f32 %v291, %v571
      %v612 = vadd.f32 %v291, %v574
      %v613 = vadd.f32 %v291, %v576
      %s614 = scalar_lea.vmem %s246, 164
      %v615 = vld [vmem:[%s614] sm:$0xf]
      %v616 = vld [vmem:[%s614 + $0x4] sm:$0xf]
      %v617 = vld [vmem:[%s614 + $0x8] sm:$0xf]
      %v618 = vld [vmem:[%s614 + $0xc] sm:$0xf]
      %v619 = vld [vmem:[%s614 + $0x10] sm:$0xf]
      %v620 = vld [vmem:[%s614 + $0x14] sm:$0xf]
      %v621 = vld [vmem:[%s614 + $0x18] sm:$0xf]
      %v622 = vld [vmem:[%s614 + $0x1c] sm:$0xf]
      %v623 = vld [vmem:[%s614 + $0x20] sm:$0xf]
      %v624 = vld [vmem:[%s614 + $0x24] sm:$0xf]
      %v625 = vld [vmem:[%s614 + $0x28] sm:$0xf]
      %v626 = vld [vmem:[%s614 + $0x2c] sm:$0xf]
      %v627 = vld [vmem:[%s614 + $0x30] sm:$0xf]
      %v628 = vld [vmem:[%s614 + $0x34] sm:$0xf]
      %v629 = vld [vmem:[%s614 + $0x38] sm:$0xf]
      %v630 = vld [vmem:[%s614 + $0x3c] sm:$0xf]
      %v631 = vld [vmem:[%s614 + $0x40] sm:$0xf]
      %v632 = vld [vmem:[%s614 + $0x44] sm:$0xf]
      %v633 = vld [vmem:[%s614 + $0x48] sm:$0xf]
      %v634 = vld [vmem:[%s614 + $0x4c] sm:$0xf]
      %v635 = vld [vmem:[%s614 + $0x50] sm:$0xf]
      %v636 = vld [vmem:[%s614 + $0x54] sm:$0xf]
      %v637 = vld [vmem:[%s614 + $0x58] sm:$0xf]
      %v638 = vld [vmem:[%s614 + $0x5c] sm:$0xf]
      %v639 = vld [vmem:[%s614 + $0x60] sm:$0xf]
      %v640 = vld [vmem:[%s614 + $0x64] sm:$0xf]
      %v641 = vld [vmem:[%s614 + $0x68] sm:$0xf]
      %v642 = vld [vmem:[%s614 + $0x6c] sm:$0xf]
      %v643 = vld [vmem:[%s614 + $0x70] sm:$0xf]
      %v644 = vld [vmem:[%s614 + $0x74] sm:$0xf]
      %v645 = vld [vmem:[%s614 + $0x78] sm:$0xf]
      %v646 = vld [vmem:[%s614 + $0x7c] sm:$0xf]
      %v647 = vld [vmem:[%s614 + $0x80] sm:$0xf]
      %v648 = vld [vmem:[%s614 + $0x84] sm:$0xf]
      %v649 = vld [vmem:[%s614 + $0x88] sm:$0xf]
      %v650 = vld [vmem:[%s614 + $0x8c] sm:$0xf]
      %s651 = scalar_lea.vmem %s1, 2
      %v652 = vld [vmem:[%s651] sm:$0x3]
      %v689 = vunpack.c.l.b16 %v615
      %v690 = vunpack.c.l.b16 %v616
      %v691 = vunpack.c.l.b16 %v617
      %v692 = vunpack.c.l.b16 %v618
      %v693 = vunpack.c.l.b16 %v619
      %v694 = vunpack.c.l.b16 %v620
      %v695 = vunpack.c.l.b16 %v621
      %v696 = vunpack.c.l.b16 %v622
      %v697 = vunpack.c.l.b16 %v623
      %v698 = vunpack.c.l.b16 %v624
      %v699 = vunpack.c.l.b16 %v625
      %v700 = vunpack.c.l.b16 %v626
      %v701 = vunpack.c.l.b16 %v627
      %v702 = vunpack.c.l.b16 %v628
      %v703 = vunpack.c.l.b16 %v629
      %v704 = vunpack.c.l.b16 %v630
      %v705 = vunpack.c.l.b16 %v631
      %v706 = vunpack.c.l.b16 %v632
      %v707 = vunpack.c.l.b16 %v633
      %v708 = vunpack.c.l.b16 %v634
      %v709 = vunpack.c.l.b16 %v635
      %v710 = vunpack.c.l.b16 %v636
      %v711 = vunpack.c.l.b16 %v637
      %v712 = vunpack.c.l.b16 %v638
      %v713 = vunpack.c.l.b16 %v639
      %v714 = vunpack.c.l.b16 %v640
      %v715 = vunpack.c.l.b16 %v641
      %v716 = vunpack.c.l.b16 %v642
      %v717 = vunpack.c.l.b16 %v643
      %v718 = vunpack.c.l.b16 %v644
      %v719 = vunpack.c.l.b16 %v645
      %v720 = vunpack.c.l.b16 %v646
      %v721 = vunpack.c.l.b16 %v647
      %v722 = vunpack.c.l.b16 %v648
      %v723 = vunpack.c.l.b16 %v649
      %v724 = vunpack.c.l.b16 %v650
      %v725 = vpack.c.b16 %v690, %v689
      %v726 = vpack.c.b16 %v692, %v691
      %v727 = vpack.c.b16 %v694, %v693
      %v728 = vpack.c.b16 %v696, %v695
      %v729 = vpack.c.b16 %v698, %v697
      %v730 = vpack.c.b16 %v700, %v699
      %v731 = vpack.c.b16 %v702, %v701
      %v732 = vpack.c.b16 %v704, %v703
      %v733 = vpack.c.b16 %v706, %v705
      %v734 = vpack.c.b16 %v708, %v707
      %v735 = vpack.c.b16 %v710, %v709
      %v736 = vpack.c.b16 %v712, %v711
      %v737 = vpack.c.b16 %v714, %v713
      %v738 = vpack.c.b16 %v716, %v715
      %v739 = vpack.c.b16 %v718, %v717
      %v740 = vpack.c.b16 %v720, %v719
      %v741 = vpack.c.b16 %v722, %v721
      %v742 = vpack.c.b16 %v724, %v723
      %v744 = vsel %vm420, %v725, 0
      %v747 = vsel %vm420, %v726, 0
      %v750 = vsel %vm420, %v727, 0
      %v753 = vsel %vm420, %v728, 0
      %v756 = vsel %vm420, %v729, 0
      %v759 = vsel %vm420, %v730, 0
      %v762 = vsel %vm420, %v731, 0
      %v765 = vsel %vm420, %v732, 0
      %v768 = vsel %vm420, %v733, 0
      %v771 = vsel %vm420, %v734, 0
      %v774 = vsel %vm420, %v735, 0
      %v777 = vsel %vm420, %v736, 0
      %v780 = vsel %vm420, %v737, 0
      %v783 = vsel %vm420, %v738, 0
      %v786 = vsel %vm420, %v739, 0
      %v789 = vsel %vm420, %v740, 0
      %v792 = vsel %vm420, %v741, 0
      %v795 = vsel %vm420, %v742, 0
      %v798 = vsel %vm475, %v652, 0
      %800 = vmatpush.bf16.msra.mxu0 0
      %801 = vmatpush.bf16.msra.mxu0 0
      %802 = vmatpush.bf16.msra.mxu0 0
      %803 = vmatpush.bf16.msra.mxu0 0
      %804 = vmatpush.bf16.msra.mxu0 0
      %805 = vmatpush.bf16.msra.mxu0 0
      %806 = vmatpush.bf16.msra.mxu0 0
      %807 = vmatpush.bf16.msra.mxu0 %v798
      %808 = vmatmul.bf16.gmra.mxu0 %v744
      %v809 = vpop.f32.mrf.mxu0
      %v810 = vadd.f32 0.0, %v809
      %v811 = vpop.f32.mrf.mxu0
      %v812 = vadd.f32 0.0, %v811
      %813 = vmatmul.bf16.gmra.mxu0 %v747
      %v814 = vpop.f32.mrf.mxu0
      %v815 = vadd.f32 0.0, %v814
      %v816 = vpop.f32.mrf.mxu0
      %v817 = vadd.f32 0.0, %v816
      %818 = vmatmul.bf16.gmra.mxu0 %v750
      %v819 = vpop.f32.mrf.mxu0
      %v820 = vadd.f32 0.0, %v819
      %v821 = vpop.f32.mrf.mxu0
      %v822 = vadd.f32 0.0, %v821
      %823 = vmatmul.bf16.gmra.mxu0 %v753
      %v824 = vpop.f32.mrf.mxu0
      %v825 = vadd.f32 0.0, %v824
      %v826 = vpop.f32.mrf.mxu0
      %v827 = vadd.f32 0.0, %v826
      %828 = vmatmul.bf16.gmra.mxu0 %v756
      %v829 = vpop.f32.mrf.mxu0
      %v830 = vadd.f32 0.0, %v829
      %v831 = vpop.f32.mrf.mxu0
      %v832 = vadd.f32 0.0, %v831
      %833 = vmatmul.bf16.gmra.mxu0 %v759
      %v834 = vpop.f32.mrf.mxu0
      %v835 = vadd.f32 0.0, %v834
      %v836 = vpop.f32.mrf.mxu0
      %v837 = vadd.f32 0.0, %v836
      %838 = vmatmul.bf16.gmra.mxu0 %v762
      %v839 = vpop.f32.mrf.mxu0
      %v840 = vadd.f32 0.0, %v839
      %v841 = vpop.f32.mrf.mxu0
      %v842 = vadd.f32 0.0, %v841
      %843 = vmatmul.bf16.gmra.mxu0 %v765
      %v844 = vpop.f32.mrf.mxu0
      %v845 = vadd.f32 0.0, %v844
      %v846 = vpop.f32.mrf.mxu0
      %v847 = vadd.f32 0.0, %v846
      %848 = vmatmul.bf16.gmra.mxu0 %v768
      %v849 = vpop.f32.mrf.mxu0
      %v850 = vadd.f32 0.0, %v849
      %v851 = vpop.f32.mrf.mxu0
      %v852 = vadd.f32 0.0, %v851
      %853 = vmatmul.bf16.gmra.mxu0 %v771
      %v854 = vpop.f32.mrf.mxu0
      %v855 = vadd.f32 0.0, %v854
      %v856 = vpop.f32.mrf.mxu0
      %v857 = vadd.f32 0.0, %v856
      %858 = vmatmul.bf16.gmra.mxu0 %v774
      %v859 = vpop.f32.mrf.mxu0
      %v860 = vadd.f32 0.0, %v859
      %v861 = vpop.f32.mrf.mxu0
      %v862 = vadd.f32 0.0, %v861
      %863 = vmatmul.bf16.gmra.mxu0 %v777
      %v864 = vpop.f32.mrf.mxu0
      %v865 = vadd.f32 0.0, %v864
      %v866 = vpop.f32.mrf.mxu0
      %v867 = vadd.f32 0.0, %v866
      %868 = vmatmul.bf16.gmra.mxu0 %v780
      %v869 = vpop.f32.mrf.mxu0
      %v870 = vadd.f32 0.0, %v869
      %v871 = vpop.f32.mrf.mxu0
      %v872 = vadd.f32 0.0, %v871
      %873 = vmatmul.bf16.gmra.mxu0 %v783
      %v874 = vpop.f32.mrf.mxu0
      %v875 = vadd.f32 0.0, %v874
      %v876 = vpop.f32.mrf.mxu0
      %v877 = vadd.f32 0.0, %v876
      %878 = vmatmul.bf16.gmra.mxu0 %v786
      %v879 = vpop.f32.mrf.mxu0
      %v880 = vadd.f32 0.0, %v879
      %v881 = vpop.f32.mrf.mxu0
      %v882 = vadd.f32 0.0, %v881
      %883 = vmatmul.bf16.gmra.mxu0 %v789
      %v884 = vpop.f32.mrf.mxu0
      %v885 = vadd.f32 0.0, %v884
      %v886 = vpop.f32.mrf.mxu0
      %v887 = vadd.f32 0.0, %v886
      %888 = vmatmul.bf16.gmra.mxu0 %v792
      %v889 = vpop.f32.mrf.mxu0
      %v890 = vadd.f32 0.0, %v889
      %v891 = vpop.f32.mrf.mxu0
      %v892 = vadd.f32 0.0, %v891
      %893 = vmatmul.bf16.gmra.mxu0 %v795
      %v894 = vpop.f32.mrf.mxu0
      %v895 = vadd.f32 0.0, %v894
      %v896 = vpop.f32.mrf.mxu0
      %v897 = vadd.f32 0.0, %v896
      %898 = vdwg.mxu0
      %v899 = vadd.f32 %v578, %v810
      %v900 = vadd.f32 %v579, %v812
      %v901 = vadd.f32 %v580, %v815
      %v902 = vadd.f32 %v581, %v817
      %v903 = vadd.f32 %v582, %v820
      %v904 = vadd.f32 %v583, %v822
      %v905 = vadd.f32 %v584, %v825
      %v906 = vadd.f32 %v585, %v827
      %v907 = vadd.f32 %v586, %v830
      %v908 = vadd.f32 %v587, %v832
      %v909 = vadd.f32 %v588, %v835
      %v910 = vadd.f32 %v589, %v837
      %v911 = vadd.f32 %v590, %v840
      %v912 = vadd.f32 %v591, %v842
      %v913 = vadd.f32 %v592, %v845
      %v914 = vadd.f32 %v593, %v847
      %v915 = vadd.f32 %v594, %v850
      %v916 = vadd.f32 %v595, %v852
      %v917 = vadd.f32 %v596, %v855
      %v918 = vadd.f32 %v597, %v857
      %v919 = vadd.f32 %v598, %v860
      %v920 = vadd.f32 %v599, %v862
      %v921 = vadd.f32 %v600, %v865
      %v922 = vadd.f32 %v601, %v867
      %v923 = vadd.f32 %v602, %v870
      %v924 = vadd.f32 %v603, %v872
      %v925 = vadd.f32 %v604, %v875
      %v926 = vadd.f32 %v605, %v877
      %v927 = vadd.f32 %v606, %v880
      %v928 = vadd.f32 %v607, %v882
      %v929 = vadd.f32 %v608, %v885
      %v930 = vadd.f32 %v609, %v887
      %v931 = vadd.f32 %v610, %v890
      %v932 = vadd.f32 %v611, %v892
      %v933 = vadd.f32 %v612, %v895
      %v934 = vadd.f32 %v613, %v897
      %v935 = vld [vmem:[%s246] sm:$0xf]
      %v936 = vld [vmem:[%s246 + $0x4] sm:$0xf]
      %v937 = vld [vmem:[%s246 + $0x8] sm:$0xf]
      %v938 = vld [vmem:[%s246 + $0xc] sm:$0xf]
      %v939 = vld [vmem:[%s246 + $0x10] sm:$0xf]
      %v940 = vld [vmem:[%s246 + $0x14] sm:$0xf]
      %v941 = vld [vmem:[%s246 + $0x18] sm:$0xf]
      %v942 = vld [vmem:[%s246 + $0x1c] sm:$0xf]
      %v943 = vld [vmem:[%s246 + $0x20] sm:$0xf]
      %v944 = vld [vmem:[%s246 + $0x24] sm:$0xf]
      %v945 = vld [vmem:[%s246 + $0x28] sm:$0xf]
      %v946 = vld [vmem:[%s246 + $0x2c] sm:$0xf]
      %v947 = vld [vmem:[%s246 + $0x30] sm:$0xf]
      %v948 = vld [vmem:[%s246 + $0x34] sm:$0xf]
      %v949 = vld [vmem:[%s246 + $0x38] sm:$0xf]
      %v950 = vld [vmem:[%s246 + $0x3c] sm:$0xf]
      %v951 = vld [vmem:[%s246 + $0x40] sm:$0xf]
      %v952 = vld [vmem:[%s246 + $0x44] sm:$0xf]
      %v953 = vld [vmem:[%s246 + $0x48] sm:$0xf]
      %v954 = vld [vmem:[%s246 + $0x4c] sm:$0xf]
      %v955 = vld [vmem:[%s246 + $0x50] sm:$0xf]
      %v956 = vld [vmem:[%s246 + $0x54] sm:$0xf]
      %v957 = vld [vmem:[%s246 + $0x58] sm:$0xf]
      %v958 = vld [vmem:[%s246 + $0x5c] sm:$0xf]
      %v959 = vld [vmem:[%s246 + $0x60] sm:$0xf]
      %v960 = vld [vmem:[%s246 + $0x64] sm:$0xf]
      %v961 = vld [vmem:[%s246 + $0x68] sm:$0xf]
      %v962 = vld [vmem:[%s246 + $0x6c] sm:$0xf]
      %v963 = vld [vmem:[%s246 + $0x70] sm:$0xf]
      %v964 = vld [vmem:[%s246 + $0x74] sm:$0xf]
      %v965 = vld [vmem:[%s246 + $0x78] sm:$0xf]
      %v966 = vld [vmem:[%s246 + $0x7c] sm:$0xf]
      %v967 = vld [vmem:[%s246 + $0x80] sm:$0xf]
      %v968 = vld [vmem:[%s246 + $0x84] sm:$0xf]
      %v969 = vld [vmem:[%s246 + $0x88] sm:$0xf]
      %v970 = vld [vmem:[%s246 + $0x8c] sm:$0xf]
      %v971 = vld [vmem:[%s246 + $0x90] sm:$0x1]
      %s972 = scalar_lea.vmem %s1, 4
      %v973 = vld [vmem:[%s972] sm:$0x3]
      %v1011 = vunpack.c.l.b16 %v935
      %v1012 = vunpack.c.l.b16 %v936
      %v1013 = vunpack.c.l.b16 %v937
      %v1014 = vunpack.c.l.b16 %v938
      %v1015 = vunpack.c.l.b16 %v939
      %v1016 = vunpack.c.l.b16 %v940
      %v1017 = vunpack.c.l.b16 %v941
      %v1018 = vunpack.c.l.b16 %v942
      %v1019 = vunpack.c.l.b16 %v943
      %v1020 = vunpack.c.l.b16 %v944
      %v1021 = vunpack.c.l.b16 %v945
      %v1022 = vunpack.c.l.b16 %v946
      %v1023 = vunpack.c.l.b16 %v947
      %v1024 = vunpack.c.l.b16 %v948
      %v1025 = vunpack.c.l.b16 %v949
      %v1026 = vunpack.c.l.b16 %v950
      %v1027 = vunpack.c.l.b16 %v951
      %v1028 = vunpack.c.l.b16 %v952
      %v1029 = vunpack.c.l.b16 %v953
      %v1030 = vunpack.c.l.b16 %v954
      %v1031 = vunpack.c.l.b16 %v955
      %v1032 = vunpack.c.l.b16 %v956
      %v1033 = vunpack.c.l.b16 %v957
      %v1034 = vunpack.c.l.b16 %v958
      %v1035 = vunpack.c.l.b16 %v959
      %v1036 = vunpack.c.l.b16 %v960
      %v1037 = vunpack.c.l.b16 %v961
      %v1038 = vunpack.c.l.b16 %v962
      %v1039 = vunpack.c.l.b16 %v963
      %v1040 = vunpack.c.l.b16 %v964
      %v1041 = vunpack.c.l.b16 %v965
      %v1042 = vunpack.c.l.b16 %v966
      %v1043 = vunpack.c.l.b16 %v967
      %v1044 = vunpack.c.l.b16 %v968
      %v1045 = vunpack.c.l.b16 %v969
      %v1046 = vunpack.c.l.b16 %v970
      %v1047 = vunpack.c.l.b16 %v971
      %v1048 = vpack.c.b16 %v1012, %v1011
      %v1049 = vpack.c.b16 %v1014, %v1013
      %v1050 = vpack.c.b16 %v1016, %v1015
      %v1051 = vpack.c.b16 %v1018, %v1017
      %v1052 = vpack.c.b16 %v1020, %v1019
      %v1053 = vpack.c.b16 %v1022, %v1021
      %v1054 = vpack.c.b16 %v1024, %v1023
      %v1055 = vpack.c.b16 %v1026, %v1025
      %v1056 = vpack.c.b16 %v1028, %v1027
      %v1057 = vpack.c.b16 %v1030, %v1029
      %v1058 = vpack.c.b16 %v1032, %v1031
      %v1059 = vpack.c.b16 %v1034, %v1033
      %v1060 = vpack.c.b16 %v1036, %v1035
      %v1061 = vpack.c.b16 %v1038, %v1037
      %v1062 = vpack.c.b16 %v1040, %v1039
      %v1063 = vpack.c.b16 %v1042, %v1041
      %v1064 = vpack.c.b16 %v1044, %v1043
      %v1065 = vpack.c.b16 %v1046, %v1045
      %v1066 = vpack.c.b16 %v1047, %v1047
      %vm1067 = vsmask.f32 7424
      %v1069 = vshrl.u32 %v1048, 16
      %v1071 = vshll.u32 %v1048, 16
      %v1073 = vrot.slane %v1071, 1
      %v1074 = vor.u32 %v1069, %v1073
      %v1076 = vshll.u32 %v1049, 16
      %v1078 = vrot.slane %v1076, 1
      %v1079 = vsel %vm1067, %v1074, %v1078
      %v1080 = vshrl.u32 %v1049, 16
      %v1082 = vor.u32 %v1080, %v1078
      %v1084 = vshll.u32 %v1050, 16
      %v1086 = vrot.slane %v1084, 1
      %v1087 = vsel %vm1067, %v1082, %v1086
      %v1088 = vshrl.u32 %v1050, 16
      %v1090 = vor.u32 %v1088, %v1086
      %v1092 = vshll.u32 %v1051, 16
      %v1094 = vrot.slane %v1092, 1
      %v1095 = vsel %vm1067, %v1090, %v1094
      %v1096 = vshrl.u32 %v1051, 16
      %v1098 = vor.u32 %v1096, %v1094
      %v1100 = vshll.u32 %v1052, 16
      %v1102 = vrot.slane %v1100, 1
      %v1103 = vsel %vm1067, %v1098, %v1102
      %v1104 = vshrl.u32 %v1052, 16
      %v1106 = vor.u32 %v1104, %v1102
      %v1108 = vshll.u32 %v1053, 16
      %v1110 = vrot.slane %v1108, 1
      %v1111 = vsel %vm1067, %v1106, %v1110
      %v1112 = vshrl.u32 %v1053, 16
      %v1114 = vor.u32 %v1112, %v1110
      %v1116 = vshll.u32 %v1054, 16
      %v1118 = vrot.slane %v1116, 1
      %v1119 = vsel %vm1067, %v1114, %v1118
      %v1120 = vshrl.u32 %v1054, 16
      %v1122 = vor.u32 %v1120, %v1118
      %v1124 = vshll.u32 %v1055, 16
      %v1126 = vrot.slane %v1124, 1
      %v1127 = vsel %vm1067, %v1122, %v1126
      %v1128 = vshrl.u32 %v1055, 16
      %v1130 = vor.u32 %v1128, %v1126
      %v1132 = vshll.u32 %v1056, 16
      %v1134 = vrot.slane %v1132, 1
      %v1135 = vsel %vm1067, %v1130, %v1134
      %v1136 = vshrl.u32 %v1056, 16
      %v1138 = vor.u32 %v1136, %v1134
      %v1140 = vshll.u32 %v1057, 16
      %v1142 = vrot.slane %v1140, 1
      %v1143 = vsel %vm1067, %v1138, %v1142
      %v1144 = vshrl.u32 %v1057, 16
      %v1146 = vor.u32 %v1144, %v1142
      %v1148 = vshll.u32 %v1058, 16
      %v1150 = vrot.slane %v1148, 1
      %v1151 = vsel %vm1067, %v1146, %v1150
      %v1152 = vshrl.u32 %v1058, 16
      %v1154 = vor.u32 %v1152, %v1150
      %v1156 = vshll.u32 %v1059, 16
      %v1158 = vrot.slane %v1156, 1
      %v1159 = vsel %vm1067, %v1154, %v1158
      %v1160 = vshrl.u32 %v1059, 16
      %v1162 = vor.u32 %v1160, %v1158
      %v1164 = vshll.u32 %v1060, 16
      %v1166 = vrot.slane %v1164, 1
      %v1167 = vsel %vm1067, %v1162, %v1166
      %v1168 = vshrl.u32 %v1060, 16
      %v1170 = vor.u32 %v1168, %v1166
      %v1172 = vshll.u32 %v1061, 16
      %v1174 = vrot.slane %v1172, 1
      %v1175 = vsel %vm1067, %v1170, %v1174
      %v1176 = vshrl.u32 %v1061, 16
      %v1178 = vor.u32 %v1176, %v1174
      %v1180 = vshll.u32 %v1062, 16
      %v1182 = vrot.slane %v1180, 1
      %v1183 = vsel %vm1067, %v1178, %v1182
      %v1184 = vshrl.u32 %v1062, 16
      %v1186 = vor.u32 %v1184, %v1182
      %v1188 = vshll.u32 %v1063, 16
      %v1190 = vrot.slane %v1188, 1
      %v1191 = vsel %vm1067, %v1186, %v1190
      %v1192 = vshrl.u32 %v1063, 16
      %v1194 = vor.u32 %v1192, %v1190
      %v1196 = vshll.u32 %v1064, 16
      %v1198 = vrot.slane %v1196, 1
      %v1199 = vsel %vm1067, %v1194, %v1198
      %v1200 = vshrl.u32 %v1064, 16
      %v1202 = vor.u32 %v1200, %v1198
      %v1204 = vshll.u32 %v1065, 16
      %v1206 = vrot.slane %v1204, 1
      %v1207 = vsel %vm1067, %v1202, %v1206
      %v1208 = vshrl.u32 %v1065, 16
      %v1210 = vor.u32 %v1208, %v1206
      %v1212 = vshll.u32 %v1066, 16
      %v1214 = vrot.slane %v1212, 1
      %v1215 = vsel %vm1067, %v1210, %v1214
      %v1217 = vsel %vm420, %v1079, 0
      %v1220 = vsel %vm420, %v1087, 0
      %v1223 = vsel %vm420, %v1095, 0
      %v1226 = vsel %vm420, %v1103, 0
      %v1229 = vsel %vm420, %v1111, 0
      %v1232 = vsel %vm420, %v1119, 0
      %v1235 = vsel %vm420, %v1127, 0
      %v1238 = vsel %vm420, %v1135, 0
      %v1241 = vsel %vm420, %v1143, 0
      %v1244 = vsel %vm420, %v1151, 0
      %v1247 = vsel %vm420, %v1159, 0
      %v1250 = vsel %vm420, %v1167, 0
      %v1253 = vsel %vm420, %v1175, 0
      %v1256 = vsel %vm420, %v1183, 0
      %v1259 = vsel %vm420, %v1191, 0
      %v1262 = vsel %vm420, %v1199, 0
      %v1265 = vsel %vm420, %v1207, 0
      %v1268 = vsel %vm420, %v1215, 0
      %v1271 = vsel %vm475, %v973, 0
      %1273 = vmatpush.bf16.msra.mxu0 0
      %1274 = vmatpush.bf16.msra.mxu0 0
      %1275 = vmatpush.bf16.msra.mxu0 0
      %1276 = vmatpush.bf16.msra.mxu0 0
      %1277 = vmatpush.bf16.msra.mxu0 0
      %1278 = vmatpush.bf16.msra.mxu0 0
      %1279 = vmatpush.bf16.msra.mxu0 0
      %1280 = vmatpush.bf16.msra.mxu0 %v1271
      %1281 = vmatmul.bf16.gmra.mxu0 %v1217
      %v1282 = vpop.f32.mrf.mxu0
      %v1283 = vadd.f32 0.0, %v1282
      %v1284 = vpop.f32.mrf.mxu0
      %v1285 = vadd.f32 0.0, %v1284
      %1286 = vmatmul.bf16.gmra.mxu0 %v1220
      %v1287 = vpop.f32.mrf.mxu0
      %v1288 = vadd.f32 0.0, %v1287
      %v1289 = vpop.f32.mrf.mxu0
      %v1290 = vadd.f32 0.0, %v1289
      %1291 = vmatmul.bf16.gmra.mxu0 %v1223
      %v1292 = vpop.f32.mrf.mxu0
      %v1293 = vadd.f32 0.0, %v1292
      %v1294 = vpop.f32.mrf.mxu0
      %v1295 = vadd.f32 0.0, %v1294
      %1296 = vmatmul.bf16.gmra.mxu0 %v1226
      %v1297 = vpop.f32.mrf.mxu0
      %v1298 = vadd.f32 0.0, %v1297
      %v1299 = vpop.f32.mrf.mxu0
      %v1300 = vadd.f32 0.0, %v1299
      %1301 = vmatmul.bf16.gmra.mxu0 %v1229
      %v1302 = vpop.f32.mrf.mxu0
      %v1303 = vadd.f32 0.0, %v1302
      %v1304 = vpop.f32.mrf.mxu0
      %v1305 = vadd.f32 0.0, %v1304
      %1306 = vmatmul.bf16.gmra.mxu0 %v1232
      %v1307 = vpop.f32.mrf.mxu0
      %v1308 = vadd.f32 0.0, %v1307
      %v1309 = vpop.f32.mrf.mxu0
      %v1310 = vadd.f32 0.0, %v1309
      %1311 = vmatmul.bf16.gmra.mxu0 %v1235
      %v1312 = vpop.f32.mrf.mxu0
      %v1313 = vadd.f32 0.0, %v1312
      %v1314 = vpop.f32.mrf.mxu0
      %v1315 = vadd.f32 0.0, %v1314
      %1316 = vmatmul.bf16.gmra.mxu0 %v1238
      %v1317 = vpop.f32.mrf.mxu0
      %v1318 = vadd.f32 0.0, %v1317
      %v1319 = vpop.f32.mrf.mxu0
      %v1320 = vadd.f32 0.0, %v1319
      %1321 = vmatmul.bf16.gmra.mxu0 %v1241
      %v1322 = vpop.f32.mrf.mxu0
      %v1323 = vadd.f32 0.0, %v1322
      %v1324 = vpop.f32.mrf.mxu0
      %v1325 = vadd.f32 0.0, %v1324
      %1326 = vmatmul.bf16.gmra.mxu0 %v1244
      %v1327 = vpop.f32.mrf.mxu0
      %v1328 = vadd.f32 0.0, %v1327
      %v1329 = vpop.f32.mrf.mxu0
      %v1330 = vadd.f32 0.0, %v1329
      %1331 = vmatmul.bf16.gmra.mxu0 %v1247
      %v1332 = vpop.f32.mrf.mxu0
      %v1333 = vadd.f32 0.0, %v1332
      %v1334 = vpop.f32.mrf.mxu0
      %v1335 = vadd.f32 0.0, %v1334
      %1336 = vmatmul.bf16.gmra.mxu0 %v1250
      %v1337 = vpop.f32.mrf.mxu0
      %v1338 = vadd.f32 0.0, %v1337
      %v1339 = vpop.f32.mrf.mxu0
      %v1340 = vadd.f32 0.0, %v1339
      %1341 = vmatmul.bf16.gmra.mxu0 %v1253
      %v1342 = vpop.f32.mrf.mxu0
      %v1343 = vadd.f32 0.0, %v1342
      %v1344 = vpop.f32.mrf.mxu0
      %v1345 = vadd.f32 0.0, %v1344
      %1346 = vmatmul.bf16.gmra.mxu0 %v1256
      %v1347 = vpop.f32.mrf.mxu0
      %v1348 = vadd.f32 0.0, %v1347
      %v1349 = vpop.f32.mrf.mxu0
      %v1350 = vadd.f32 0.0, %v1349
      %1351 = vmatmul.bf16.gmra.mxu0 %v1259
      %v1352 = vpop.f32.mrf.mxu0
      %v1353 = vadd.f32 0.0, %v1352
      %v1354 = vpop.f32.mrf.mxu0
      %v1355 = vadd.f32 0.0, %v1354
      %1356 = vmatmul.bf16.gmra.mxu0 %v1262
      %v1357 = vpop.f32.mrf.mxu0
      %v1358 = vadd.f32 0.0, %v1357
      %v1359 = vpop.f32.mrf.mxu0
      %v1360 = vadd.f32 0.0, %v1359
      %1361 = vmatmul.bf16.gmra.mxu0 %v1265
      %v1362 = vpop.f32.mrf.mxu0
      %v1363 = vadd.f32 0.0, %v1362
      %v1364 = vpop.f32.mrf.mxu0
      %v1365 = vadd.f32 0.0, %v1364
      %1366 = vmatmul.bf16.gmra.mxu0 %v1268
      %v1367 = vpop.f32.mrf.mxu0
      %v1368 = vadd.f32 0.0, %v1367
      %v1369 = vpop.f32.mrf.mxu0
      %v1370 = vadd.f32 0.0, %v1369
      %1371 = vdwg.mxu0
      %v1372 = vadd.f32 %v899, %v1283
      %v1373 = vadd.f32 %v900, %v1285
      %v1374 = vadd.f32 %v901, %v1288
      %v1375 = vadd.f32 %v902, %v1290
      %v1376 = vadd.f32 %v903, %v1293
      %v1377 = vadd.f32 %v904, %v1295
      %v1378 = vadd.f32 %v905, %v1298
      %v1379 = vadd.f32 %v906, %v1300
      %v1380 = vadd.f32 %v907, %v1303
      %v1381 = vadd.f32 %v908, %v1305
      %v1382 = vadd.f32 %v909, %v1308
      %v1383 = vadd.f32 %v910, %v1310
      %v1384 = vadd.f32 %v911, %v1313
      %v1385 = vadd.f32 %v912, %v1315
      %v1386 = vadd.f32 %v913, %v1318
      %v1387 = vadd.f32 %v914, %v1320
      %v1388 = vadd.f32 %v915, %v1323
      %v1389 = vadd.f32 %v916, %v1325
      %v1390 = vadd.f32 %v917, %v1328
      %v1391 = vadd.f32 %v918, %v1330
      %v1392 = vadd.f32 %v919, %v1333
      %v1393 = vadd.f32 %v920, %v1335
      %v1394 = vadd.f32 %v921, %v1338
      %v1395 = vadd.f32 %v922, %v1340
      %v1396 = vadd.f32 %v923, %v1343
      %v1397 = vadd.f32 %v924, %v1345
      %v1398 = vadd.f32 %v925, %v1348
      %v1399 = vadd.f32 %v926, %v1350
      %v1400 = vadd.f32 %v927, %v1353
      %v1401 = vadd.f32 %v928, %v1355
      %v1402 = vadd.f32 %v929, %v1358
      %v1403 = vadd.f32 %v930, %v1360
      %v1404 = vadd.f32 %v931, %v1363
      %v1405 = vadd.f32 %v932, %v1365
      %v1406 = vadd.f32 %v933, %v1368
      %v1407 = vadd.f32 %v934, %v1370
      %s1408 = scalar_lea.vmem %s246, 328
      %v1409 = vld [vmem:[%s1408] sm:$0xf]
      %v1410 = vld [vmem:[%s1408 + $0x4] sm:$0xf]
      %v1411 = vld [vmem:[%s1408 + $0x8] sm:$0xf]
      %v1412 = vld [vmem:[%s1408 + $0xc] sm:$0xf]
      %v1413 = vld [vmem:[%s1408 + $0x10] sm:$0xf]
      %v1414 = vld [vmem:[%s1408 + $0x14] sm:$0xf]
      %v1415 = vld [vmem:[%s1408 + $0x18] sm:$0xf]
      %v1416 = vld [vmem:[%s1408 + $0x1c] sm:$0xf]
      %v1417 = vld [vmem:[%s1408 + $0x20] sm:$0xf]
      %v1418 = vld [vmem:[%s1408 + $0x24] sm:$0xf]
      %v1419 = vld [vmem:[%s1408 + $0x28] sm:$0xf]
      %v1420 = vld [vmem:[%s1408 + $0x2c] sm:$0xf]
      %v1421 = vld [vmem:[%s1408 + $0x30] sm:$0xf]
      %v1422 = vld [vmem:[%s1408 + $0x34] sm:$0xf]
      %v1423 = vld [vmem:[%s1408 + $0x38] sm:$0xf]
      %v1424 = vld [vmem:[%s1408 + $0x3c] sm:$0xf]
      %v1425 = vld [vmem:[%s1408 + $0x40] sm:$0xf]
      %v1426 = vld [vmem:[%s1408 + $0x44] sm:$0xf]
      %v1427 = vld [vmem:[%s1408 + $0x48] sm:$0xf]
      %v1428 = vld [vmem:[%s1408 + $0x4c] sm:$0xf]
      %v1429 = vld [vmem:[%s1408 + $0x50] sm:$0xf]
      %v1430 = vld [vmem:[%s1408 + $0x54] sm:$0xf]
      %v1431 = vld [vmem:[%s1408 + $0x58] sm:$0xf]
      %v1432 = vld [vmem:[%s1408 + $0x5c] sm:$0xf]
      %v1433 = vld [vmem:[%s1408 + $0x60] sm:$0xf]
      %v1434 = vld [vmem:[%s1408 + $0x64] sm:$0xf]
      %v1435 = vld [vmem:[%s1408 + $0x68] sm:$0xf]
      %v1436 = vld [vmem:[%s1408 + $0x6c] sm:$0xf]
      %v1437 = vld [vmem:[%s1408 + $0x70] sm:$0xf]
      %v1438 = vld [vmem:[%s1408 + $0x74] sm:$0xf]
      %v1439 = vld [vmem:[%s1408 + $0x78] sm:$0xf]
      %v1440 = vld [vmem:[%s1408 + $0x7c] sm:$0xf]
      %v1441 = vld [vmem:[%s1408 + $0x80] sm:$0xf]
      %v1442 = vld [vmem:[%s1408 + $0x84] sm:$0xf]
      %v1443 = vld [vmem:[%s1408 + $0x88] sm:$0xf]
      %v1444 = vld [vmem:[%s1408 + $0x8c] sm:$0xf]
      %s1445 = scalar_lea.vmem %s1, 6
      %v1446 = vld [vmem:[%s1445] sm:$0x3]
      %v1483 = vunpack.c.l.b16 %v1409
      %v1484 = vunpack.c.l.b16 %v1410
      %v1485 = vunpack.c.l.b16 %v1411
      %v1486 = vunpack.c.l.b16 %v1412
      %v1487 = vunpack.c.l.b16 %v1413
      %v1488 = vunpack.c.l.b16 %v1414
      %v1489 = vunpack.c.l.b16 %v1415
      %v1490 = vunpack.c.l.b16 %v1416
      %v1491 = vunpack.c.l.b16 %v1417
      %v1492 = vunpack.c.l.b16 %v1418
      %v1493 = vunpack.c.l.b16 %v1419
      %v1494 = vunpack.c.l.b16 %v1420
      %v1495 = vunpack.c.l.b16 %v1421
      %v1496 = vunpack.c.l.b16 %v1422
      %v1497 = vunpack.c.l.b16 %v1423
      %v1498 = vunpack.c.l.b16 %v1424
      %v1499 = vunpack.c.l.b16 %v1425
      %v1500 = vunpack.c.l.b16 %v1426
      %v1501 = vunpack.c.l.b16 %v1427
      %v1502 = vunpack.c.l.b16 %v1428
      %v1503 = vunpack.c.l.b16 %v1429
      %v1504 = vunpack.c.l.b16 %v1430
      %v1505 = vunpack.c.l.b16 %v1431
      %v1506 = vunpack.c.l.b16 %v1432
      %v1507 = vunpack.c.l.b16 %v1433
      %v1508 = vunpack.c.l.b16 %v1434
      %v1509 = vunpack.c.l.b16 %v1435
      %v1510 = vunpack.c.l.b16 %v1436
      %v1511 = vunpack.c.l.b16 %v1437
      %v1512 = vunpack.c.l.b16 %v1438
      %v1513 = vunpack.c.l.b16 %v1439
      %v1514 = vunpack.c.l.b16 %v1440
      %v1515 = vunpack.c.l.b16 %v1441
      %v1516 = vunpack.c.l.b16 %v1442
      %v1517 = vunpack.c.l.b16 %v1443
      %v1518 = vunpack.c.l.b16 %v1444
      %v1519 = vpack.c.b16 %v1484, %v1483
      %v1520 = vpack.c.b16 %v1486, %v1485
      %v1521 = vpack.c.b16 %v1488, %v1487
      %v1522 = vpack.c.b16 %v1490, %v1489
      %v1523 = vpack.c.b16 %v1492, %v1491
      %v1524 = vpack.c.b16 %v1494, %v1493
      %v1525 = vpack.c.b16 %v1496, %v1495
      %v1526 = vpack.c.b16 %v1498, %v1497
      %v1527 = vpack.c.b16 %v1500, %v1499
      %v1528 = vpack.c.b16 %v1502, %v1501
      %v1529 = vpack.c.b16 %v1504, %v1503
      %v1530 = vpack.c.b16 %v1506, %v1505
      %v1531 = vpack.c.b16 %v1508, %v1507
      %v1532 = vpack.c.b16 %v1510, %v1509
      %v1533 = vpack.c.b16 %v1512, %v1511
      %v1534 = vpack.c.b16 %v1514, %v1513
      %v1535 = vpack.c.b16 %v1516, %v1515
      %v1536 = vpack.c.b16 %v1518, %v1517
      %v1538 = vsel %vm420, %v1519, 0
      %v1541 = vsel %vm420, %v1520, 0
      %v1544 = vsel %vm420, %v1521, 0
      %v1547 = vsel %vm420, %v1522, 0
      %v1550 = vsel %vm420, %v1523, 0
      %v1553 = vsel %vm420, %v1524, 0
      %v1556 = vsel %vm420, %v1525, 0
      %v1559 = vsel %vm420, %v1526, 0
      %v1562 = vsel %vm420, %v1527, 0
      %v1565 = vsel %vm420, %v1528, 0
      %v1568 = vsel %vm420, %v1529, 0
      %v1571 = vsel %vm420, %v1530, 0
      %v1574 = vsel %vm420, %v1531, 0
      %v1577 = vsel %vm420, %v1532, 0
      %v1580 = vsel %vm420, %v1533, 0
      %v1583 = vsel %vm420, %v1534, 0
      %v1586 = vsel %vm420, %v1535, 0
      %v1589 = vsel %vm420, %v1536, 0
      %v1592 = vsel %vm475, %v1446, 0
      %1594 = vmatpush.bf16.msra.mxu0 0
      %1595 = vmatpush.bf16.msra.mxu0 0
      %1596 = vmatpush.bf16.msra.mxu0 0
      %1597 = vmatpush.bf16.msra.mxu0 0
      %1598 = vmatpush.bf16.msra.mxu0 0
      %1599 = vmatpush.bf16.msra.mxu0 0
      %1600 = vmatpush.bf16.msra.mxu0 0
      %1601 = vmatpush.bf16.msra.mxu0 %v1592
      %1602 = vmatmul.bf16.gmra.mxu0 %v1538
      %v1603 = vpop.f32.mrf.mxu0
      %v1604 = vadd.f32 0.0, %v1603
      %v1605 = vpop.f32.mrf.mxu0
      %v1606 = vadd.f32 0.0, %v1605
      %1607 = vmatmul.bf16.gmra.mxu0 %v1541
      %v1608 = vpop.f32.mrf.mxu0
      %v1609 = vadd.f32 0.0, %v1608
      %v1610 = vpop.f32.mrf.mxu0
      %v1611 = vadd.f32 0.0, %v1610
      %1612 = vmatmul.bf16.gmra.mxu0 %v1544
      %v1613 = vpop.f32.mrf.mxu0
      %v1614 = vadd.f32 0.0, %v1613
      %v1615 = vpop.f32.mrf.mxu0
      %v1616 = vadd.f32 0.0, %v1615
      %1617 = vmatmul.bf16.gmra.mxu0 %v1547
      %v1618 = vpop.f32.mrf.mxu0
      %v1619 = vadd.f32 0.0, %v1618
      %v1620 = vpop.f32.mrf.mxu0
      %v1621 = vadd.f32 0.0, %v1620
      %1622 = vmatmul.bf16.gmra.mxu0 %v1550
      %v1623 = vpop.f32.mrf.mxu0
      %v1624 = vadd.f32 0.0, %v1623
      %v1625 = vpop.f32.mrf.mxu0
      %v1626 = vadd.f32 0.0, %v1625
      %1627 = vmatmul.bf16.gmra.mxu0 %v1553
      %v1628 = vpop.f32.mrf.mxu0
      %v1629 = vadd.f32 0.0, %v1628
      %v1630 = vpop.f32.mrf.mxu0
      %v1631 = vadd.f32 0.0, %v1630
      %1632 = vmatmul.bf16.gmra.mxu0 %v1556
      %v1633 = vpop.f32.mrf.mxu0
      %v1634 = vadd.f32 0.0, %v1633
      %v1635 = vpop.f32.mrf.mxu0
      %v1636 = vadd.f32 0.0, %v1635
      %1637 = vmatmul.bf16.gmra.mxu0 %v1559
      %v1638 = vpop.f32.mrf.mxu0
      %v1639 = vadd.f32 0.0, %v1638
      %v1640 = vpop.f32.mrf.mxu0
      %v1641 = vadd.f32 0.0, %v1640
      %1642 = vmatmul.bf16.gmra.mxu0 %v1562
      %v1643 = vpop.f32.mrf.mxu0
      %v1644 = vadd.f32 0.0, %v1643
      %v1645 = vpop.f32.mrf.mxu0
      %v1646 = vadd.f32 0.0, %v1645
      %1647 = vmatmul.bf16.gmra.mxu0 %v1565
      %v1648 = vpop.f32.mrf.mxu0
      %v1649 = vadd.f32 0.0, %v1648
      %v1650 = vpop.f32.mrf.mxu0
      %v1651 = vadd.f32 0.0, %v1650
      %1652 = vmatmul.bf16.gmra.mxu0 %v1568
      %v1653 = vpop.f32.mrf.mxu0
      %v1654 = vadd.f32 0.0, %v1653
      %v1655 = vpop.f32.mrf.mxu0
      %v1656 = vadd.f32 0.0, %v1655
      %1657 = vmatmul.bf16.gmra.mxu0 %v1571
      %v1658 = vpop.f32.mrf.mxu0
      %v1659 = vadd.f32 0.0, %v1658
      %v1660 = vpop.f32.mrf.mxu0
      %v1661 = vadd.f32 0.0, %v1660
      %1662 = vmatmul.bf16.gmra.mxu0 %v1574
      %v1663 = vpop.f32.mrf.mxu0
      %v1664 = vadd.f32 0.0, %v1663
      %v1665 = vpop.f32.mrf.mxu0
      %v1666 = vadd.f32 0.0, %v1665
      %1667 = vmatmul.bf16.gmra.mxu0 %v1577
      %v1668 = vpop.f32.mrf.mxu0
      %v1669 = vadd.f32 0.0, %v1668
      %v1670 = vpop.f32.mrf.mxu0
      %v1671 = vadd.f32 0.0, %v1670
      %1672 = vmatmul.bf16.gmra.mxu0 %v1580
      %v1673 = vpop.f32.mrf.mxu0
      %v1674 = vadd.f32 0.0, %v1673
      %v1675 = vpop.f32.mrf.mxu0
      %v1676 = vadd.f32 0.0, %v1675
      %1677 = vmatmul.bf16.gmra.mxu0 %v1583
      %v1678 = vpop.f32.mrf.mxu0
      %v1679 = vadd.f32 0.0, %v1678
      %v1680 = vpop.f32.mrf.mxu0
      %v1681 = vadd.f32 0.0, %v1680
      %1682 = vmatmul.bf16.gmra.mxu0 %v1586
      %v1683 = vpop.f32.mrf.mxu0
      %v1684 = vadd.f32 0.0, %v1683
      %v1685 = vpop.f32.mrf.mxu0
      %v1686 = vadd.f32 0.0, %v1685
      %1687 = vmatmul.bf16.gmra.mxu0 %v1589
      %v1688 = vpop.f32.mrf.mxu0
      %v1689 = vadd.f32 0.0, %v1688
      %v1690 = vpop.f32.mrf.mxu0
      %v1691 = vadd.f32 0.0, %v1690
      %1692 = vdwg.mxu0
      %v1693 = vadd.f32 %v1372, %v1604
      %v1694 = vadd.f32 %v1373, %v1606
      %v1695 = vadd.f32 %v1374, %v1609
      %v1696 = vadd.f32 %v1375, %v1611
      %v1697 = vadd.f32 %v1376, %v1614
      %v1698 = vadd.f32 %v1377, %v1616
      %v1699 = vadd.f32 %v1378, %v1619
      %v1700 = vadd.f32 %v1379, %v1621
      %v1701 = vadd.f32 %v1380, %v1624
      %v1702 = vadd.f32 %v1381, %v1626
      %v1703 = vadd.f32 %v1382, %v1629
      %v1704 = vadd.f32 %v1383, %v1631
      %v1705 = vadd.f32 %v1384, %v1634
      %v1706 = vadd.f32 %v1385, %v1636
      %v1707 = vadd.f32 %v1386, %v1639
      %v1708 = vadd.f32 %v1387, %v1641
      %v1709 = vadd.f32 %v1388, %v1644
      %v1710 = vadd.f32 %v1389, %v1646
      %v1711 = vadd.f32 %v1390, %v1649
      %v1712 = vadd.f32 %v1391, %v1651
      %v1713 = vadd.f32 %v1392, %v1654
      %v1714 = vadd.f32 %v1393, %v1656
      %v1715 = vadd.f32 %v1394, %v1659
      %v1716 = vadd.f32 %v1395, %v1661
      %v1717 = vadd.f32 %v1396, %v1664
      %v1718 = vadd.f32 %v1397, %v1666
      %v1719 = vadd.f32 %v1398, %v1669
      %v1720 = vadd.f32 %v1399, %v1671
      %v1721 = vadd.f32 %v1400, %v1674
      %v1722 = vadd.f32 %v1401, %v1676
      %v1723 = vadd.f32 %v1402, %v1679
      %v1724 = vadd.f32 %v1403, %v1681
      %v1725 = vadd.f32 %v1404, %v1684
      %v1726 = vadd.f32 %v1405, %v1686
      %v1727 = vadd.f32 %v1406, %v1689
      %v1728 = vadd.f32 %v1407, %v1691
      %s1729 = scalar_lea.vmem %s246, 492
      %v1730 = vld [vmem:[%s1729] sm:$0xf]
      %v1731 = vld [vmem:[%s1729 + $0x4] sm:$0xf]
      %v1732 = vld [vmem:[%s1729 + $0x8] sm:$0xf]
      %v1733 = vld [vmem:[%s1729 + $0xc] sm:$0xf]
      %v1734 = vld [vmem:[%s1729 + $0x10] sm:$0xf]
      %v1735 = vld [vmem:[%s1729 + $0x14] sm:$0xf]
      %v1736 = vld [vmem:[%s1729 + $0x18] sm:$0xf]
      %v1737 = vld [vmem:[%s1729 + $0x1c] sm:$0xf]
      %v1738 = vld [vmem:[%s1729 + $0x20] sm:$0xf]
      %v1739 = vld [vmem:[%s1729 + $0x24] sm:$0xf]
      %v1740 = vld [vmem:[%s1729 + $0x28] sm:$0xf]
      %v1741 = vld [vmem:[%s1729 + $0x2c] sm:$0xf]
      %v1742 = vld [vmem:[%s1729 + $0x30] sm:$0xf]
      %v1743 = vld [vmem:[%s1729 + $0x34] sm:$0xf]
      %v1744 = vld [vmem:[%s1729 + $0x38] sm:$0xf]
      %v1745 = vld [vmem:[%s1729 + $0x3c] sm:$0xf]
      %v1746 = vld [vmem:[%s1729 + $0x40] sm:$0xf]
      %v1747 = vld [vmem:[%s1729 + $0x44] sm:$0xf]
      %v1748 = vld [vmem:[%s1729 + $0x48] sm:$0xf]
      %v1749 = vld [vmem:[%s1729 + $0x4c] sm:$0xf]
      %v1750 = vld [vmem:[%s1729 + $0x50] sm:$0xf]
      %v1751 = vld [vmem:[%s1729 + $0x54] sm:$0xf]
      %v1752 = vld [vmem:[%s1729 + $0x58] sm:$0xf]
      %v1753 = vld [vmem:[%s1729 + $0x5c] sm:$0xf]
      %v1754 = vld [vmem:[%s1729 + $0x60] sm:$0xf]
      %v1755 = vld [vmem:[%s1729 + $0x64] sm:$0xf]
      %v1756 = vld [vmem:[%s1729 + $0x68] sm:$0xf]
      %v1757 = vld [vmem:[%s1729 + $0x6c] sm:$0xf]
      %v1758 = vld [vmem:[%s1729 + $0x70] sm:$0xf]
      %v1759 = vld [vmem:[%s1729 + $0x74] sm:$0xf]
      %v1760 = vld [vmem:[%s1729 + $0x78] sm:$0xf]
      %v1761 = vld [vmem:[%s1729 + $0x7c] sm:$0xf]
      %v1762 = vld [vmem:[%s1729 + $0x80] sm:$0xf]
      %v1763 = vld [vmem:[%s1729 + $0x84] sm:$0xf]
      %v1764 = vld [vmem:[%s1729 + $0x88] sm:$0xf]
      %v1765 = vld [vmem:[%s1729 + $0x8c] sm:$0xf]
      %s1766 = scalar_lea.vmem %s1, 8
      %v1767 = vld [vmem:[%s1766] sm:$0x3]
      %v1804 = vunpack.c.l.b16 %v1730
      %v1805 = vunpack.c.l.b16 %v1731
      %v1806 = vunpack.c.l.b16 %v1732
      %v1807 = vunpack.c.l.b16 %v1733
      %v1808 = vunpack.c.l.b16 %v1734
      %v1809 = vunpack.c.l.b16 %v1735
      %v1810 = vunpack.c.l.b16 %v1736
      %v1811 = vunpack.c.l.b16 %v1737
      %v1812 = vunpack.c.l.b16 %v1738
      %v1813 = vunpack.c.l.b16 %v1739
      %v1814 = vunpack.c.l.b16 %v1740
      %v1815 = vunpack.c.l.b16 %v1741
      %v1816 = vunpack.c.l.b16 %v1742
      %v1817 = vunpack.c.l.b16 %v1743
      %v1818 = vunpack.c.l.b16 %v1744
      %v1819 = vunpack.c.l.b16 %v1745
      %v1820 = vunpack.c.l.b16 %v1746
      %v1821 = vunpack.c.l.b16 %v1747
      %v1822 = vunpack.c.l.b16 %v1748
      %v1823 = vunpack.c.l.b16 %v1749
      %v1824 = vunpack.c.l.b16 %v1750
      %v1825 = vunpack.c.l.b16 %v1751
      %v1826 = vunpack.c.l.b16 %v1752
      %v1827 = vunpack.c.l.b16 %v1753
      %v1828 = vunpack.c.l.b16 %v1754
      %v1829 = vunpack.c.l.b16 %v1755
      %v1830 = vunpack.c.l.b16 %v1756
      %v1831 = vunpack.c.l.b16 %v1757
      %v1832 = vunpack.c.l.b16 %v1758
      %v1833 = vunpack.c.l.b16 %v1759
      %v1834 = vunpack.c.l.b16 %v1760
      %v1835 = vunpack.c.l.b16 %v1761
      %v1836 = vunpack.c.l.b16 %v1762
      %v1837 = vunpack.c.l.b16 %v1763
      %v1838 = vunpack.c.l.b16 %v1764
      %v1839 = vunpack.c.l.b16 %v1765
      %v1840 = vpack.c.b16 %v1805, %v1804
      %v1841 = vpack.c.b16 %v1807, %v1806
      %v1842 = vpack.c.b16 %v1809, %v1808
      %v1843 = vpack.c.b16 %v1811, %v1810
      %v1844 = vpack.c.b16 %v1813, %v1812
      %v1845 = vpack.c.b16 %v1815, %v1814
      %v1846 = vpack.c.b16 %v1817, %v1816
      %v1847 = vpack.c.b16 %v1819, %v1818
      %v1848 = vpack.c.b16 %v1821, %v1820
      %v1849 = vpack.c.b16 %v1823, %v1822
      %v1850 = vpack.c.b16 %v1825, %v1824
      %v1851 = vpack.c.b16 %v1827, %v1826
      %v1852 = vpack.c.b16 %v1829, %v1828
      %v1853 = vpack.c.b16 %v1831, %v1830
      %v1854 = vpack.c.b16 %v1833, %v1832
      %v1855 = vpack.c.b16 %v1835, %v1834
      %v1856 = vpack.c.b16 %v1837, %v1836
      %v1857 = vpack.c.b16 %v1839, %v1838
      %v1859 = vsel %vm420, %v1840, 0
      %v1862 = vsel %vm420, %v1841, 0
      %v1865 = vsel %vm420, %v1842, 0
      %v1868 = vsel %vm420, %v1843, 0
      %v1871 = vsel %vm420, %v1844, 0
      %v1874 = vsel %vm420, %v1845, 0
      %v1877 = vsel %vm420, %v1846, 0
      %v1880 = vsel %vm420, %v1847, 0
      %v1883 = vsel %vm420, %v1848, 0
      %v1886 = vsel %vm420, %v1849, 0
      %v1889 = vsel %vm420, %v1850, 0
      %v1892 = vsel %vm420, %v1851, 0
      %v1895 = vsel %vm420, %v1852, 0
      %v1898 = vsel %vm420, %v1853, 0
      %v1901 = vsel %vm420, %v1854, 0
      %v1904 = vsel %vm420, %v1855, 0
      %v1907 = vsel %vm420, %v1856, 0
      %v1910 = vsel %vm420, %v1857, 0
      %v1913 = vsel %vm475, %v1767, 0
      %1915 = vmatpush.bf16.msra.mxu0 0
      %1916 = vmatpush.bf16.msra.mxu0 0
      %1917 = vmatpush.bf16.msra.mxu0 0
      %1918 = vmatpush.bf16.msra.mxu0 0
      %1919 = vmatpush.bf16.msra.mxu0 0
      %1920 = vmatpush.bf16.msra.mxu0 0
      %1921 = vmatpush.bf16.msra.mxu0 0
      %1922 = vmatpush.bf16.msra.mxu0 %v1913
      %1923 = vmatmul.bf16.gmra.mxu0 %v1859
      %v1924 = vpop.f32.mrf.mxu0
      %v1925 = vadd.f32 0.0, %v1924
      %v1926 = vpop.f32.mrf.mxu0
      %v1927 = vadd.f32 0.0, %v1926
      %1928 = vmatmul.bf16.gmra.mxu0 %v1862
      %v1929 = vpop.f32.mrf.mxu0
      %v1930 = vadd.f32 0.0, %v1929
      %v1931 = vpop.f32.mrf.mxu0
      %v1932 = vadd.f32 0.0, %v1931
      %1933 = vmatmul.bf16.gmra.mxu0 %v1865
      %v1934 = vpop.f32.mrf.mxu0
      %v1935 = vadd.f32 0.0, %v1934
      %v1936 = vpop.f32.mrf.mxu0
      %v1937 = vadd.f32 0.0, %v1936
      %1938 = vmatmul.bf16.gmra.mxu0 %v1868
      %v1939 = vpop.f32.mrf.mxu0
      %v1940 = vadd.f32 0.0, %v1939
      %v1941 = vpop.f32.mrf.mxu0
      %v1942 = vadd.f32 0.0, %v1941
      %1943 = vmatmul.bf16.gmra.mxu0 %v1871
      %v1944 = vpop.f32.mrf.mxu0
      %v1945 = vadd.f32 0.0, %v1944
      %v1946 = vpop.f32.mrf.mxu0
      %v1947 = vadd.f32 0.0, %v1946
      %1948 = vmatmul.bf16.gmra.mxu0 %v1874
      %v1949 = vpop.f32.mrf.mxu0
      %v1950 = vadd.f32 0.0, %v1949
      %v1951 = vpop.f32.mrf.mxu0
      %v1952 = vadd.f32 0.0, %v1951
      %1953 = vmatmul.bf16.gmra.mxu0 %v1877
      %v1954 = vpop.f32.mrf.mxu0
      %v1955 = vadd.f32 0.0, %v1954
      %v1956 = vpop.f32.mrf.mxu0
      %v1957 = vadd.f32 0.0, %v1956
      %1958 = vmatmul.bf16.gmra.mxu0 %v1880
      %v1959 = vpop.f32.mrf.mxu0
      %v1960 = vadd.f32 0.0, %v1959
      %v1961 = vpop.f32.mrf.mxu0
      %v1962 = vadd.f32 0.0, %v1961
      %1963 = vmatmul.bf16.gmra.mxu0 %v1883
      %v1964 = vpop.f32.mrf.mxu0
      %v1965 = vadd.f32 0.0, %v1964
      %v1966 = vpop.f32.mrf.mxu0
      %v1967 = vadd.f32 0.0, %v1966
      %1968 = vmatmul.bf16.gmra.mxu0 %v1886
      %v1969 = vpop.f32.mrf.mxu0
      %v1970 = vadd.f32 0.0, %v1969
      %v1971 = vpop.f32.mrf.mxu0
      %v1972 = vadd.f32 0.0, %v1971
      %1973 = vmatmul.bf16.gmra.mxu0 %v1889
      %v1974 = vpop.f32.mrf.mxu0
      %v1975 = vadd.f32 0.0, %v1974
      %v1976 = vpop.f32.mrf.mxu0
      %v1977 = vadd.f32 0.0, %v1976
      %1978 = vmatmul.bf16.gmra.mxu0 %v1892
      %v1979 = vpop.f32.mrf.mxu0
      %v1980 = vadd.f32 0.0, %v1979
      %v1981 = vpop.f32.mrf.mxu0
      %v1982 = vadd.f32 0.0, %v1981
      %1983 = vmatmul.bf16.gmra.mxu0 %v1895
      %v1984 = vpop.f32.mrf.mxu0
      %v1985 = vadd.f32 0.0, %v1984
      %v1986 = vpop.f32.mrf.mxu0
      %v1987 = vadd.f32 0.0, %v1986
      %1988 = vmatmul.bf16.gmra.mxu0 %v1898
      %v1989 = vpop.f32.mrf.mxu0
      %v1990 = vadd.f32 0.0, %v1989
      %v1991 = vpop.f32.mrf.mxu0
      %v1992 = vadd.f32 0.0, %v1991
      %1993 = vmatmul.bf16.gmra.mxu0 %v1901
      %v1994 = vpop.f32.mrf.mxu0
      %v1995 = vadd.f32 0.0, %v1994
      %v1996 = vpop.f32.mrf.mxu0
      %v1997 = vadd.f32 0.0, %v1996
      %1998 = vmatmul.bf16.gmra.mxu0 %v1904
      %v1999 = vpop.f32.mrf.mxu0
      %v2000 = vadd.f32 0.0, %v1999
      %v2001 = vpop.f32.mrf.mxu0
      %v2002 = vadd.f32 0.0, %v2001
      %2003 = vmatmul.bf16.gmra.mxu0 %v1907
      %v2004 = vpop.f32.mrf.mxu0
      %v2005 = vadd.f32 0.0, %v2004
      %v2006 = vpop.f32.mrf.mxu0
      %v2007 = vadd.f32 0.0, %v2006
      %2008 = vmatmul.bf16.gmra.mxu0 %v1910
      %v2009 = vpop.f32.mrf.mxu0
      %v2010 = vadd.f32 0.0, %v2009
      %v2011 = vpop.f32.mrf.mxu0
      %v2012 = vadd.f32 0.0, %v2011
      %2013 = vdwg.mxu0
      %v2014 = vadd.f32 %v1693, %v1925
      %v2015 = vadd.f32 %v1694, %v1927
      %v2016 = vadd.f32 %v1695, %v1930
      %v2017 = vadd.f32 %v1696, %v1932
      %v2018 = vadd.f32 %v1697, %v1935
      %v2019 = vadd.f32 %v1698, %v1937
      %v2020 = vadd.f32 %v1699, %v1940
      %v2021 = vadd.f32 %v1700, %v1942
      %v2022 = vadd.f32 %v1701, %v1945
      %v2023 = vadd.f32 %v1702, %v1947
      %v2024 = vadd.f32 %v1703, %v1950
      %v2025 = vadd.f32 %v1704, %v1952
      %v2026 = vadd.f32 %v1705, %v1955
      %v2027 = vadd.f32 %v1706, %v1957
      %v2028 = vadd.f32 %v1707, %v1960
      %v2029 = vadd.f32 %v1708, %v1962
      %v2030 = vadd.f32 %v1709, %v1965
      %v2031 = vadd.f32 %v1710, %v1967
      %v2032 = vadd.f32 %v1711, %v1970
      %v2033 = vadd.f32 %v1712, %v1972
      %v2034 = vadd.f32 %v1713, %v1975
      %v2035 = vadd.f32 %v1714, %v1977
      %v2036 = vadd.f32 %v1715, %v1980
      %v2037 = vadd.f32 %v1716, %v1982
      %v2038 = vadd.f32 %v1717, %v1985
      %v2039 = vadd.f32 %v1718, %v1987
      %v2040 = vadd.f32 %v1719, %v1990
      %v2041 = vadd.f32 %v1720, %v1992
      %v2042 = vadd.f32 %v1721, %v1995
      %v2043 = vadd.f32 %v1722, %v1997
      %v2044 = vadd.f32 %v1723, %v2000
      %v2045 = vadd.f32 %v1724, %v2002
      %v2046 = vadd.f32 %v1725, %v2005
      %v2047 = vadd.f32 %v1726, %v2007
      %v2048 = vadd.f32 %v1727, %v2010
      %v2049 = vadd.f32 %v1728, %v2012
      %v2050 = vld [vmem:[%s1408] sm:$0xf]
      %v2051 = vld [vmem:[%s1408 + $0x4] sm:$0xf]
      %v2052 = vld [vmem:[%s1408 + $0x8] sm:$0xf]
      %v2053 = vld [vmem:[%s1408 + $0xc] sm:$0xf]
      %v2054 = vld [vmem:[%s1408 + $0x10] sm:$0xf]
      %v2055 = vld [vmem:[%s1408 + $0x14] sm:$0xf]
      %v2056 = vld [vmem:[%s1408 + $0x18] sm:$0xf]
      %v2057 = vld [vmem:[%s1408 + $0x1c] sm:$0xf]
      %v2058 = vld [vmem:[%s1408 + $0x20] sm:$0xf]
      %v2059 = vld [vmem:[%s1408 + $0x24] sm:$0xf]
      %v2060 = vld [vmem:[%s1408 + $0x28] sm:$0xf]
      %v2061 = vld [vmem:[%s1408 + $0x2c] sm:$0xf]
      %v2062 = vld [vmem:[%s1408 + $0x30] sm:$0xf]
      %v2063 = vld [vmem:[%s1408 + $0x34] sm:$0xf]
      %v2064 = vld [vmem:[%s1408 + $0x38] sm:$0xf]
      %v2065 = vld [vmem:[%s1408 + $0x3c] sm:$0xf]
      %v2066 = vld [vmem:[%s1408 + $0x40] sm:$0xf]
      %v2067 = vld [vmem:[%s1408 + $0x44] sm:$0xf]
      %v2068 = vld [vmem:[%s1408 + $0x48] sm:$0xf]
      %v2069 = vld [vmem:[%s1408 + $0x4c] sm:$0xf]
      %v2070 = vld [vmem:[%s1408 + $0x50] sm:$0xf]
      %v2071 = vld [vmem:[%s1408 + $0x54] sm:$0xf]
      %v2072 = vld [vmem:[%s1408 + $0x58] sm:$0xf]
      %v2073 = vld [vmem:[%s1408 + $0x5c] sm:$0xf]
      %v2074 = vld [vmem:[%s1408 + $0x60] sm:$0xf]
      %v2075 = vld [vmem:[%s1408 + $0x64] sm:$0xf]
      %v2076 = vld [vmem:[%s1408 + $0x68] sm:$0xf]
      %v2077 = vld [vmem:[%s1408 + $0x6c] sm:$0xf]
      %v2078 = vld [vmem:[%s1408 + $0x70] sm:$0xf]
      %v2079 = vld [vmem:[%s1408 + $0x74] sm:$0xf]
      %v2080 = vld [vmem:[%s1408 + $0x78] sm:$0xf]
      %v2081 = vld [vmem:[%s1408 + $0x7c] sm:$0xf]
      %v2082 = vld [vmem:[%s1408 + $0x80] sm:$0xf]
      %v2083 = vld [vmem:[%s1408 + $0x84] sm:$0xf]
      %v2084 = vld [vmem:[%s1408 + $0x88] sm:$0xf]
      %v2085 = vld [vmem:[%s1408 + $0x8c] sm:$0xf]
      %v2086 = vld [vmem:[%s1408 + $0x90] sm:$0x1]
      %s2087 = scalar_lea.vmem %s1, 10
      %v2088 = vld [vmem:[%s2087] sm:$0x3]
      %v2126 = vunpack.c.l.b16 %v2050
      %v2127 = vunpack.c.l.b16 %v2051
      %v2128 = vunpack.c.l.b16 %v2052
      %v2129 = vunpack.c.l.b16 %v2053
      %v2130 = vunpack.c.l.b16 %v2054
      %v2131 = vunpack.c.l.b16 %v2055
      %v2132 = vunpack.c.l.b16 %v2056
      %v2133 = vunpack.c.l.b16 %v2057
      %v2134 = vunpack.c.l.b16 %v2058
      %v2135 = vunpack.c.l.b16 %v2059
      %v2136 = vunpack.c.l.b16 %v2060
      %v2137 = vunpack.c.l.b16 %v2061
      %v2138 = vunpack.c.l.b16 %v2062
      %v2139 = vunpack.c.l.b16 %v2063
      %v2140 = vunpack.c.l.b16 %v2064
      %v2141 = vunpack.c.l.b16 %v2065
      %v2142 = vunpack.c.l.b16 %v2066
      %v2143 = vunpack.c.l.b16 %v2067
      %v2144 = vunpack.c.l.b16 %v2068
      %v2145 = vunpack.c.l.b16 %v2069
      %v2146 = vunpack.c.l.b16 %v2070
      %v2147 = vunpack.c.l.b16 %v2071
      %v2148 = vunpack.c.l.b16 %v2072
      %v2149 = vunpack.c.l.b16 %v2073
      %v2150 = vunpack.c.l.b16 %v2074
      %v2151 = vunpack.c.l.b16 %v2075
      %v2152 = vunpack.c.l.b16 %v2076
      %v2153 = vunpack.c.l.b16 %v2077
      %v2154 = vunpack.c.l.b16 %v2078
      %v2155 = vunpack.c.l.b16 %v2079
      %v2156 = vunpack.c.l.b16 %v2080
      %v2157 = vunpack.c.l.b16 %v2081
      %v2158 = vunpack.c.l.b16 %v2082
      %v2159 = vunpack.c.l.b16 %v2083
      %v2160 = vunpack.c.l.b16 %v2084
      %v2161 = vunpack.c.l.b16 %v2085
      %v2162 = vunpack.c.l.b16 %v2086
      %v2163 = vpack.c.b16 %v2127, %v2126
      %v2164 = vpack.c.b16 %v2129, %v2128
      %v2165 = vpack.c.b16 %v2131, %v2130
      %v2166 = vpack.c.b16 %v2133, %v2132
      %v2167 = vpack.c.b16 %v2135, %v2134
      %v2168 = vpack.c.b16 %v2137, %v2136
      %v2169 = vpack.c.b16 %v2139, %v2138
      %v2170 = vpack.c.b16 %v2141, %v2140
      %v2171 = vpack.c.b16 %v2143, %v2142
      %v2172 = vpack.c.b16 %v2145, %v2144
      %v2173 = vpack.c.b16 %v2147, %v2146
      %v2174 = vpack.c.b16 %v2149, %v2148
      %v2175 = vpack.c.b16 %v2151, %v2150
      %v2176 = vpack.c.b16 %v2153, %v2152
      %v2177 = vpack.c.b16 %v2155, %v2154
      %v2178 = vpack.c.b16 %v2157, %v2156
      %v2179 = vpack.c.b16 %v2159, %v2158
      %v2180 = vpack.c.b16 %v2161, %v2160
      %v2181 = vpack.c.b16 %v2162, %v2162
      %v2183 = vshrl.u32 %v2163, 16
      %v2185 = vshll.u32 %v2163, 16
      %v2187 = vrot.slane %v2185, 1
      %v2188 = vor.u32 %v2183, %v2187
      %v2190 = vshll.u32 %v2164, 16
      %v2192 = vrot.slane %v2190, 1
      %v2193 = vsel %vm1067, %v2188, %v2192
      %v2194 = vshrl.u32 %v2164, 16
      %v2196 = vor.u32 %v2194, %v2192
      %v2198 = vshll.u32 %v2165, 16
      %v2200 = vrot.slane %v2198, 1
      %v2201 = vsel %vm1067, %v2196, %v2200
      %v2202 = vshrl.u32 %v2165, 16
      %v2204 = vor.u32 %v2202, %v2200
      %v2206 = vshll.u32 %v2166, 16
      %v2208 = vrot.slane %v2206, 1
      %v2209 = vsel %vm1067, %v2204, %v2208
      %v2210 = vshrl.u32 %v2166, 16
      %v2212 = vor.u32 %v2210, %v2208
      %v2214 = vshll.u32 %v2167, 16
      %v2216 = vrot.slane %v2214, 1
      %v2217 = vsel %vm1067, %v2212, %v2216
      %v2218 = vshrl.u32 %v2167, 16
      %v2220 = vor.u32 %v2218, %v2216
      %v2222 = vshll.u32 %v2168, 16
      %v2224 = vrot.slane %v2222, 1
      %v2225 = vsel %vm1067, %v2220, %v2224
      %v2226 = vshrl.u32 %v2168, 16
      %v2228 = vor.u32 %v2226, %v2224
      %v2230 = vshll.u32 %v2169, 16
      %v2232 = vrot.slane %v2230, 1
      %v2233 = vsel %vm1067, %v2228, %v2232
      %v2234 = vshrl.u32 %v2169, 16
      %v2236 = vor.u32 %v2234, %v2232
      %v2238 = vshll.u32 %v2170, 16
      %v2240 = vrot.slane %v2238, 1
      %v2241 = vsel %vm1067, %v2236, %v2240
      %v2242 = vshrl.u32 %v2170, 16
      %v2244 = vor.u32 %v2242, %v2240
      %v2246 = vshll.u32 %v2171, 16
      %v2248 = vrot.slane %v2246, 1
      %v2249 = vsel %vm1067, %v2244, %v2248
      %v2250 = vshrl.u32 %v2171, 16
      %v2252 = vor.u32 %v2250, %v2248
      %v2254 = vshll.u32 %v2172, 16
      %v2256 = vrot.slane %v2254, 1
      %v2257 = vsel %vm1067, %v2252, %v2256
      %v2258 = vshrl.u32 %v2172, 16
      %v2260 = vor.u32 %v2258, %v2256
      %v2262 = vshll.u32 %v2173, 16
      %v2264 = vrot.slane %v2262, 1
      %v2265 = vsel %vm1067, %v2260, %v2264
      %v2266 = vshrl.u32 %v2173, 16
      %v2268 = vor.u32 %v2266, %v2264
      %v2270 = vshll.u32 %v2174, 16
      %v2272 = vrot.slane %v2270, 1
      %v2273 = vsel %vm1067, %v2268, %v2272
      %v2274 = vshrl.u32 %v2174, 16
      %v2276 = vor.u32 %v2274, %v2272
      %v2278 = vshll.u32 %v2175, 16
      %v2280 = vrot.slane %v2278, 1
      %v2281 = vsel %vm1067, %v2276, %v2280
      %v2282 = vshrl.u32 %v2175, 16
      %v2284 = vor.u32 %v2282, %v2280
      %v2286 = vshll.u32 %v2176, 16
      %v2288 = vrot.slane %v2286, 1
      %v2289 = vsel %vm1067, %v2284, %v2288
      %v2290 = vshrl.u32 %v2176, 16
      %v2292 = vor.u32 %v2290, %v2288
      %v2294 = vshll.u32 %v2177, 16
      %v2296 = vrot.slane %v2294, 1
      %v2297 = vsel %vm1067, %v2292, %v2296
      %v2298 = vshrl.u32 %v2177, 16
      %v2300 = vor.u32 %v2298, %v2296
      %v2302 = vshll.u32 %v2178, 16
      %v2304 = vrot.slane %v2302, 1
      %v2305 = vsel %vm1067, %v2300, %v2304
      %v2306 = vshrl.u32 %v2178, 16
      %v2308 = vor.u32 %v2306, %v2304
      %v2310 = vshll.u32 %v2179, 16
      %v2312 = vrot.slane %v2310, 1
      %v2313 = vsel %vm1067, %v2308, %v2312
      %v2314 = vshrl.u32 %v2179, 16
      %v2316 = vor.u32 %v2314, %v2312
      %v2318 = vshll.u32 %v2180, 16
      %v2320 = vrot.slane %v2318, 1
      %v2321 = vsel %vm1067, %v2316, %v2320
      %v2322 = vshrl.u32 %v2180, 16
      %v2324 = vor.u32 %v2322, %v2320
      %v2326 = vshll.u32 %v2181, 16
      %v2328 = vrot.slane %v2326, 1
      %v2329 = vsel %vm1067, %v2324, %v2328
      %v2331 = vsel %vm420, %v2193, 0
      %v2334 = vsel %vm420, %v2201, 0
      %v2337 = vsel %vm420, %v2209, 0
      %v2340 = vsel %vm420, %v2217, 0
      %v2343 = vsel %vm420, %v2225, 0
      %v2346 = vsel %vm420, %v2233, 0
      %v2349 = vsel %vm420, %v2241, 0
      %v2352 = vsel %vm420, %v2249, 0
      %v2355 = vsel %vm420, %v2257, 0
      %v2358 = vsel %vm420, %v2265, 0
      %v2361 = vsel %vm420, %v2273, 0
      %v2364 = vsel %vm420, %v2281, 0
      %v2367 = vsel %vm420, %v2289, 0
      %v2370 = vsel %vm420, %v2297, 0
      %v2373 = vsel %vm420, %v2305, 0
      %v2376 = vsel %vm420, %v2313, 0
      %v2379 = vsel %vm420, %v2321, 0
      %v2382 = vsel %vm420, %v2329, 0
      %v2385 = vsel %vm475, %v2088, 0
      %2387 = vmatpush.bf16.msra.mxu0 0
      %2388 = vmatpush.bf16.msra.mxu0 0
      %2389 = vmatpush.bf16.msra.mxu0 0
      %2390 = vmatpush.bf16.msra.mxu0 0
      %2391 = vmatpush.bf16.msra.mxu0 0
      %2392 = vmatpush.bf16.msra.mxu0 0
      %2393 = vmatpush.bf16.msra.mxu0 0
      %2394 = vmatpush.bf16.msra.mxu0 %v2385
      %2395 = vmatmul.bf16.gmra.mxu0 %v2331
      %v2396 = vpop.f32.mrf.mxu0
      %v2397 = vadd.f32 0.0, %v2396
      %v2398 = vpop.f32.mrf.mxu0
      %v2399 = vadd.f32 0.0, %v2398
      %2400 = vmatmul.bf16.gmra.mxu0 %v2334
      %v2401 = vpop.f32.mrf.mxu0
      %v2402 = vadd.f32 0.0, %v2401
      %v2403 = vpop.f32.mrf.mxu0
      %v2404 = vadd.f32 0.0, %v2403
      %2405 = vmatmul.bf16.gmra.mxu0 %v2337
      %v2406 = vpop.f32.mrf.mxu0
      %v2407 = vadd.f32 0.0, %v2406
      %v2408 = vpop.f32.mrf.mxu0
      %v2409 = vadd.f32 0.0, %v2408
      %2410 = vmatmul.bf16.gmra.mxu0 %v2340
      %v2411 = vpop.f32.mrf.mxu0
      %v2412 = vadd.f32 0.0, %v2411
      %v2413 = vpop.f32.mrf.mxu0
      %v2414 = vadd.f32 0.0, %v2413
      %2415 = vmatmul.bf16.gmra.mxu0 %v2343
      %v2416 = vpop.f32.mrf.mxu0
      %v2417 = vadd.f32 0.0, %v2416
      %v2418 = vpop.f32.mrf.mxu0
      %v2419 = vadd.f32 0.0, %v2418
      %2420 = vmatmul.bf16.gmra.mxu0 %v2346
      %v2421 = vpop.f32.mrf.mxu0
      %v2422 = vadd.f32 0.0, %v2421
      %v2423 = vpop.f32.mrf.mxu0
      %v2424 = vadd.f32 0.0, %v2423
      %2425 = vmatmul.bf16.gmra.mxu0 %v2349
      %v2426 = vpop.f32.mrf.mxu0
      %v2427 = vadd.f32 0.0, %v2426
      %v2428 = vpop.f32.mrf.mxu0
      %v2429 = vadd.f32 0.0, %v2428
      %2430 = vmatmul.bf16.gmra.mxu0 %v2352
      %v2431 = vpop.f32.mrf.mxu0
      %v2432 = vadd.f32 0.0, %v2431
      %v2433 = vpop.f32.mrf.mxu0
      %v2434 = vadd.f32 0.0, %v2433
      %2435 = vmatmul.bf16.gmra.mxu0 %v2355
      %v2436 = vpop.f32.mrf.mxu0
      %v2437 = vadd.f32 0.0, %v2436
      %v2438 = vpop.f32.mrf.mxu0
      %v2439 = vadd.f32 0.0, %v2438
      %2440 = vmatmul.bf16.gmra.mxu0 %v2358
      %v2441 = vpop.f32.mrf.mxu0
      %v2442 = vadd.f32 0.0, %v2441
      %v2443 = vpop.f32.mrf.mxu0
      %v2444 = vadd.f32 0.0, %v2443
      %2445 = vmatmul.bf16.gmra.mxu0 %v2361
      %v2446 = vpop.f32.mrf.mxu0
      %v2447 = vadd.f32 0.0, %v2446
      %v2448 = vpop.f32.mrf.mxu0
      %v2449 = vadd.f32 0.0, %v2448
      %2450 = vmatmul.bf16.gmra.mxu0 %v2364
      %v2451 = vpop.f32.mrf.mxu0
      %v2452 = vadd.f32 0.0, %v2451
      %v2453 = vpop.f32.mrf.mxu0
      %v2454 = vadd.f32 0.0, %v2453
      %2455 = vmatmul.bf16.gmra.mxu0 %v2367
      %v2456 = vpop.f32.mrf.mxu0
      %v2457 = vadd.f32 0.0, %v2456
      %v2458 = vpop.f32.mrf.mxu0
      %v2459 = vadd.f32 0.0, %v2458
      %2460 = vmatmul.bf16.gmra.mxu0 %v2370
      %v2461 = vpop.f32.mrf.mxu0
      %v2462 = vadd.f32 0.0, %v2461
      %v2463 = vpop.f32.mrf.mxu0
      %v2464 = vadd.f32 0.0, %v2463
      %2465 = vmatmul.bf16.gmra.mxu0 %v2373
      %v2466 = vpop.f32.mrf.mxu0
      %v2467 = vadd.f32 0.0, %v2466
      %v2468 = vpop.f32.mrf.mxu0
      %v2469 = vadd.f32 0.0, %v2468
      %2470 = vmatmul.bf16.gmra.mxu0 %v2376
      %v2471 = vpop.f32.mrf.mxu0
      %v2472 = vadd.f32 0.0, %v2471
      %v2473 = vpop.f32.mrf.mxu0
      %v2474 = vadd.f32 0.0, %v2473
      %2475 = vmatmul.bf16.gmra.mxu0 %v2379
      %v2476 = vpop.f32.mrf.mxu0
      %v2477 = vadd.f32 0.0, %v2476
      %v2478 = vpop.f32.mrf.mxu0
      %v2479 = vadd.f32 0.0, %v2478
      %2480 = vmatmul.bf16.gmra.mxu0 %v2382
      %v2481 = vpop.f32.mrf.mxu0
      %v2482 = vadd.f32 0.0, %v2481
      %v2483 = vpop.f32.mrf.mxu0
      %v2484 = vadd.f32 0.0, %v2483
      %2485 = vdwg.mxu0
      %v2486 = vadd.f32 %v2014, %v2397
      %v2487 = vadd.f32 %v2015, %v2399
      %v2488 = vadd.f32 %v2016, %v2402
      %v2489 = vadd.f32 %v2017, %v2404
      %v2490 = vadd.f32 %v2018, %v2407
      %v2491 = vadd.f32 %v2019, %v2409
      %v2492 = vadd.f32 %v2020, %v2412
      %v2493 = vadd.f32 %v2021, %v2414
      %v2494 = vadd.f32 %v2022, %v2417
      %v2495 = vadd.f32 %v2023, %v2419
      %v2496 = vadd.f32 %v2024, %v2422
      %v2497 = vadd.f32 %v2025, %v2424
      %v2498 = vadd.f32 %v2026, %v2427
      %v2499 = vadd.f32 %v2027, %v2429
      %v2500 = vadd.f32 %v2028, %v2432
      %v2501 = vadd.f32 %v2029, %v2434
      %v2502 = vadd.f32 %v2030, %v2437
      %v2503 = vadd.f32 %v2031, %v2439
      %v2504 = vadd.f32 %v2032, %v2442
      %v2505 = vadd.f32 %v2033, %v2444
      %v2506 = vadd.f32 %v2034, %v2447
      %v2507 = vadd.f32 %v2035, %v2449
      %v2508 = vadd.f32 %v2036, %v2452
      %v2509 = vadd.f32 %v2037, %v2454
      %v2510 = vadd.f32 %v2038, %v2457
      %v2511 = vadd.f32 %v2039, %v2459
      %v2512 = vadd.f32 %v2040, %v2462
      %v2513 = vadd.f32 %v2041, %v2464
      %v2514 = vadd.f32 %v2042, %v2467
      %v2515 = vadd.f32 %v2043, %v2469
      %v2516 = vadd.f32 %v2044, %v2472
      %v2517 = vadd.f32 %v2045, %v2474
      %v2518 = vadd.f32 %v2046, %v2477
      %v2519 = vadd.f32 %v2047, %v2479
      %v2520 = vadd.f32 %v2048, %v2482
      %v2521 = vadd.f32 %v2049, %v2484
      %v2522 = vld [vmem:[%s246 + $0x8] sm:$0xe]
      %v2523 = vld [vmem:[%s246 + $0xc] sm:$0xf]
      %v2524 = vld [vmem:[%s246 + $0x10] sm:$0xf]
      %v2525 = vld [vmem:[%s246 + $0x14] sm:$0xf]
      %v2526 = vld [vmem:[%s246 + $0x18] sm:$0xf]
      %v2527 = vld [vmem:[%s246 + $0x1c] sm:$0xf]
      %v2528 = vld [vmem:[%s246 + $0x20] sm:$0xf]
      %v2529 = vld [vmem:[%s246 + $0x24] sm:$0xf]
      %v2530 = vld [vmem:[%s246 + $0x28] sm:$0xf]
      %v2531 = vld [vmem:[%s246 + $0x2c] sm:$0xf]
      %v2532 = vld [vmem:[%s246 + $0x30] sm:$0xf]
      %v2533 = vld [vmem:[%s246 + $0x34] sm:$0xf]
      %v2534 = vld [vmem:[%s246 + $0x38] sm:$0xf]
      %v2535 = vld [vmem:[%s246 + $0x3c] sm:$0xf]
      %v2536 = vld [vmem:[%s246 + $0x40] sm:$0xf]
      %v2537 = vld [vmem:[%s246 + $0x44] sm:$0xf]
      %v2538 = vld [vmem:[%s246 + $0x48] sm:$0xf]
      %v2539 = vld [vmem:[%s246 + $0x4c] sm:$0xf]
      %v2540 = vld [vmem:[%s246 + $0x50] sm:$0xf]
      %v2541 = vld [vmem:[%s246 + $0x54] sm:$0xf]
      %v2542 = vld [vmem:[%s246 + $0x58] sm:$0xf]
      %v2543 = vld [vmem:[%s246 + $0x5c] sm:$0xf]
      %v2544 = vld [vmem:[%s246 + $0x60] sm:$0xf]
      %v2545 = vld [vmem:[%s246 + $0x64] sm:$0xf]
      %v2546 = vld [vmem:[%s246 + $0x68] sm:$0xf]
      %v2547 = vld [vmem:[%s246 + $0x6c] sm:$0xf]
      %v2548 = vld [vmem:[%s246 + $0x70] sm:$0xf]
      %v2549 = vld [vmem:[%s246 + $0x74] sm:$0xf]
      %v2550 = vld [vmem:[%s246 + $0x78] sm:$0xf]
      %v2551 = vld [vmem:[%s246 + $0x7c] sm:$0xf]
      %v2552 = vld [vmem:[%s246 + $0x80] sm:$0xf]
      %v2553 = vld [vmem:[%s246 + $0x84] sm:$0xf]
      %v2554 = vld [vmem:[%s246 + $0x88] sm:$0xf]
      %v2555 = vld [vmem:[%s246 + $0x8c] sm:$0xf]
      %v2556 = vld [vmem:[%s246 + $0x90] sm:$0xf]
      %v2557 = vld [vmem:[%s246 + $0x94] sm:$0xf]
      %v2558 = vld [vmem:[%s246 + $0x98] sm:$0x1]
      %s2559 = scalar_lea.vmem %s1, 12
      %v2560 = vld [vmem:[%s2559] sm:$0x3]
      %v2598 = vunpack.c.l.b16 %v2522
      %v2599 = vunpack.c.l.b16 %v2523
      %v2600 = vunpack.c.l.b16 %v2524
      %v2601 = vunpack.c.l.b16 %v2525
      %v2602 = vunpack.c.l.b16 %v2526
      %v2603 = vunpack.c.l.b16 %v2527
      %v2604 = vunpack.c.l.b16 %v2528
      %v2605 = vunpack.c.l.b16 %v2529
      %v2606 = vunpack.c.l.b16 %v2530
      %v2607 = vunpack.c.l.b16 %v2531
      %v2608 = vunpack.c.l.b16 %v2532
      %v2609 = vunpack.c.l.b16 %v2533
      %v2610 = vunpack.c.l.b16 %v2534
      %v2611 = vunpack.c.l.b16 %v2535
      %v2612 = vunpack.c.l.b16 %v2536
      %v2613 = vunpack.c.l.b16 %v2537
      %v2614 = vunpack.c.l.b16 %v2538
      %v2615 = vunpack.c.l.b16 %v2539
      %v2616 = vunpack.c.l.b16 %v2540
      %v2617 = vunpack.c.l.b16 %v2541
      %v2618 = vunpack.c.l.b16 %v2542
      %v2619 = vunpack.c.l.b16 %v2543
      %v2620 = vunpack.c.l.b16 %v2544
      %v2621 = vunpack.c.l.b16 %v2545
      %v2622 = vunpack.c.l.b16 %v2546
      %v2623 = vunpack.c.l.b16 %v2547
      %v2624 = vunpack.c.l.b16 %v2548
      %v2625 = vunpack.c.l.b16 %v2549
      %v2626 = vunpack.c.l.b16 %v2550
      %v2627 = vunpack.c.l.b16 %v2551
      %v2628 = vunpack.c.l.b16 %v2552
      %v2629 = vunpack.c.l.b16 %v2553
      %v2630 = vunpack.c.l.b16 %v2554
      %v2631 = vunpack.c.l.b16 %v2555
      %v2632 = vunpack.c.l.b16 %v2556
      %v2633 = vunpack.c.l.b16 %v2557
      %v2634 = vunpack.c.l.b16 %v2558
      %v2635 = vpack.c.b16 %v2599, %v2598
      %v2636 = vpack.c.b16 %v2601, %v2600
      %v2637 = vpack.c.b16 %v2603, %v2602
      %v2638 = vpack.c.b16 %v2605, %v2604
      %v2639 = vpack.c.b16 %v2607, %v2606
      %v2640 = vpack.c.b16 %v2609, %v2608
      %v2641 = vpack.c.b16 %v2611, %v2610
      %v2642 = vpack.c.b16 %v2613, %v2612
      %v2643 = vpack.c.b16 %v2615, %v2614
      %v2644 = vpack.c.b16 %v2617, %v2616
      %v2645 = vpack.c.b16 %v2619, %v2618
      %v2646 = vpack.c.b16 %v2621, %v2620
      %v2647 = vpack.c.b16 %v2623, %v2622
      %v2648 = vpack.c.b16 %v2625, %v2624
      %v2649 = vpack.c.b16 %v2627, %v2626
      %v2650 = vpack.c.b16 %v2629, %v2628
      %v2651 = vpack.c.b16 %v2631, %v2630
      %v2652 = vpack.c.b16 %v2633, %v2632
      %v2653 = vpack.c.b16 %v2634, %v2634
      %vm2654 = vcmask 1046528
      %v2655 = vrot.slane %v2635, 1
      %v2656 = vrot.slane %v2636, 1
      %v2657 = vsel %vm2654, %v2655, %v2656
      %v2658 = vrot.slane %v2637, 1
      %v2659 = vsel %vm2654, %v2656, %v2658
      %v2660 = vrot.slane %v2638, 1
      %v2661 = vsel %vm2654, %v2658, %v2660
      %v2662 = vrot.slane %v2639, 1
      %v2663 = vsel %vm2654, %v2660, %v2662
      %v2664 = vrot.slane %v2640, 1
      %v2665 = vsel %vm2654, %v2662, %v2664
      %v2666 = vrot.slane %v2641, 1
      %v2667 = vsel %vm2654, %v2664, %v2666
      %v2668 = vrot.slane %v2642, 1
      %v2669 = vsel %vm2654, %v2666, %v2668
      %v2670 = vrot.slane %v2643, 1
      %v2671 = vsel %vm2654, %v2668, %v2670
      %v2672 = vrot.slane %v2644, 1
      %v2673 = vsel %vm2654, %v2670, %v2672
      %v2674 = vrot.slane %v2645, 1
      %v2675 = vsel %vm2654, %v2672, %v2674
      %v2676 = vrot.slane %v2646, 1
      %v2677 = vsel %vm2654, %v2674, %v2676
      %v2678 = vrot.slane %v2647, 1
      %v2679 = vsel %vm2654, %v2676, %v2678
      %v2680 = vrot.slane %v2648, 1
      %v2681 = vsel %vm2654, %v2678, %v2680
      %v2682 = vrot.slane %v2649, 1
      %v2683 = vsel %vm2654, %v2680, %v2682
      %v2684 = vrot.slane %v2650, 1
      %v2685 = vsel %vm2654, %v2682, %v2684
      %v2686 = vrot.slane %v2651, 1
      %v2687 = vsel %vm2654, %v2684, %v2686
      %v2688 = vrot.slane %v2652, 1
      %v2689 = vsel %vm2654, %v2686, %v2688
      %v2690 = vrot.slane %v2653, 1
      %v2691 = vsel %vm2654, %v2688, %v2690
      %v2693 = vsel %vm420, %v2657, 0
      %v2696 = vsel %vm420, %v2659, 0
      %v2699 = vsel %vm420, %v2661, 0
      %v2702 = vsel %vm420, %v2663, 0
      %v2705 = vsel %vm420, %v2665, 0
      %v2708 = vsel %vm420, %v2667, 0
      %v2711 = vsel %vm420, %v2669, 0
      %v2714 = vsel %vm420, %v2671, 0
      %v2717 = vsel %vm420, %v2673, 0
      %v2720 = vsel %vm420, %v2675, 0
      %v2723 = vsel %vm420, %v2677, 0
      %v2726 = vsel %vm420, %v2679, 0
      %v2729 = vsel %vm420, %v2681, 0
      %v2732 = vsel %vm420, %v2683, 0
      %v2735 = vsel %vm420, %v2685, 0
      %v2738 = vsel %vm420, %v2687, 0
      %v2741 = vsel %vm420, %v2689, 0
      %v2744 = vsel %vm420, %v2691, 0
      %v2747 = vsel %vm475, %v2560, 0
      %2749 = vmatpush.bf16.msra.mxu0 0
      %2750 = vmatpush.bf16.msra.mxu0 0
      %2751 = vmatpush.bf16.msra.mxu0 0
      %2752 = vmatpush.bf16.msra.mxu0 0
      %2753 = vmatpush.bf16.msra.mxu0 0
      %2754 = vmatpush.bf16.msra.mxu0 0
      %2755 = vmatpush.bf16.msra.mxu0 0
      %2756 = vmatpush.bf16.msra.mxu0 %v2747
      %2757 = vmatmul.bf16.gmra.mxu0 %v2693
      %v2758 = vpop.f32.mrf.mxu0
      %v2759 = vadd.f32 0.0, %v2758
      %v2760 = vpop.f32.mrf.mxu0
      %v2761 = vadd.f32 0.0, %v2760
      %2762 = vmatmul.bf16.gmra.mxu0 %v2696
      %v2763 = vpop.f32.mrf.mxu0
      %v2764 = vadd.f32 0.0, %v2763
      %v2765 = vpop.f32.mrf.mxu0
      %v2766 = vadd.f32 0.0, %v2765
      %2767 = vmatmul.bf16.gmra.mxu0 %v2699
      %v2768 = vpop.f32.mrf.mxu0
      %v2769 = vadd.f32 0.0, %v2768
      %v2770 = vpop.f32.mrf.mxu0
      %v2771 = vadd.f32 0.0, %v2770
      %2772 = vmatmul.bf16.gmra.mxu0 %v2702
      %v2773 = vpop.f32.mrf.mxu0
      %v2774 = vadd.f32 0.0, %v2773
      %v2775 = vpop.f32.mrf.mxu0
      %v2776 = vadd.f32 0.0, %v2775
      %2777 = vmatmul.bf16.gmra.mxu0 %v2705
      %v2778 = vpop.f32.mrf.mxu0
      %v2779 = vadd.f32 0.0, %v2778
      %v2780 = vpop.f32.mrf.mxu0
      %v2781 = vadd.f32 0.0, %v2780
      %2782 = vmatmul.bf16.gmra.mxu0 %v2708
      %v2783 = vpop.f32.mrf.mxu0
      %v2784 = vadd.f32 0.0, %v2783
      %v2785 = vpop.f32.mrf.mxu0
      %v2786 = vadd.f32 0.0, %v2785
      %2787 = vmatmul.bf16.gmra.mxu0 %v2711
      %v2788 = vpop.f32.mrf.mxu0
      %v2789 = vadd.f32 0.0, %v2788
      %v2790 = vpop.f32.mrf.mxu0
      %v2791 = vadd.f32 0.0, %v2790
      %2792 = vmatmul.bf16.gmra.mxu0 %v2714
      %v2793 = vpop.f32.mrf.mxu0
      %v2794 = vadd.f32 0.0, %v2793
      %v2795 = vpop.f32.mrf.mxu0
      %v2796 = vadd.f32 0.0, %v2795
      %2797 = vmatmul.bf16.gmra.mxu0 %v2717
      %v2798 = vpop.f32.mrf.mxu0
      %v2799 = vadd.f32 0.0, %v2798
      %v2800 = vpop.f32.mrf.mxu0
      %v2801 = vadd.f32 0.0, %v2800
      %2802 = vmatmul.bf16.gmra.mxu0 %v2720
      %v2803 = vpop.f32.mrf.mxu0
      %v2804 = vadd.f32 0.0, %v2803
      %v2805 = vpop.f32.mrf.mxu0
      %v2806 = vadd.f32 0.0, %v2805
      %2807 = vmatmul.bf16.gmra.mxu0 %v2723
      %v2808 = vpop.f32.mrf.mxu0
      %v2809 = vadd.f32 0.0, %v2808
      %v2810 = vpop.f32.mrf.mxu0
      %v2811 = vadd.f32 0.0, %v2810
      %2812 = vmatmul.bf16.gmra.mxu0 %v2726
      %v2813 = vpop.f32.mrf.mxu0
      %v2814 = vadd.f32 0.0, %v2813
      %v2815 = vpop.f32.mrf.mxu0
      %v2816 = vadd.f32 0.0, %v2815
      %2817 = vmatmul.bf16.gmra.mxu0 %v2729
      %v2818 = vpop.f32.mrf.mxu0
      %v2819 = vadd.f32 0.0, %v2818
      %v2820 = vpop.f32.mrf.mxu0
      %v2821 = vadd.f32 0.0, %v2820
      %2822 = vmatmul.bf16.gmra.mxu0 %v2732
      %v2823 = vpop.f32.mrf.mxu0
      %v2824 = vadd.f32 0.0, %v2823
      %v2825 = vpop.f32.mrf.mxu0
      %v2826 = vadd.f32 0.0, %v2825
      %2827 = vmatmul.bf16.gmra.mxu0 %v2735
      %v2828 = vpop.f32.mrf.mxu0
      %v2829 = vadd.f32 0.0, %v2828
      %v2830 = vpop.f32.mrf.mxu0
      %v2831 = vadd.f32 0.0, %v2830
      %2832 = vmatmul.bf16.gmra.mxu0 %v2738
      %v2833 = vpop.f32.mrf.mxu0
      %v2834 = vadd.f32 0.0, %v2833
      %v2835 = vpop.f32.mrf.mxu0
      %v2836 = vadd.f32 0.0, %v2835
      %2837 = vmatmul.bf16.gmra.mxu0 %v2741
      %v2838 = vpop.f32.mrf.mxu0
      %v2839 = vadd.f32 0.0, %v2838
      %v2840 = vpop.f32.mrf.mxu0
      %v2841 = vadd.f32 0.0, %v2840
      %2842 = vmatmul.bf16.gmra.mxu0 %v2744
      %v2843 = vpop.f32.mrf.mxu0
      %v2844 = vadd.f32 0.0, %v2843
      %v2845 = vpop.f32.mrf.mxu0
      %v2846 = vadd.f32 0.0, %v2845
      %2847 = vdwg.mxu0
      %v2848 = vadd.f32 %v2486, %v2759
      %v2849 = vadd.f32 %v2487, %v2761
      %v2850 = vadd.f32 %v2488, %v2764
      %v2851 = vadd.f32 %v2489, %v2766
      %v2852 = vadd.f32 %v2490, %v2769
      %v2853 = vadd.f32 %v2491, %v2771
      %v2854 = vadd.f32 %v2492, %v2774
      %v2855 = vadd.f32 %v2493, %v2776
      %v2856 = vadd.f32 %v2494, %v2779
      %v2857 = vadd.f32 %v2495, %v2781
      %v2858 = vadd.f32 %v2496, %v2784
      %v2859 = vadd.f32 %v2497, %v2786
      %v2860 = vadd.f32 %v2498, %v2789
      %v2861 = vadd.f32 %v2499, %v2791
      %v2862 = vadd.f32 %v2500, %v2794
      %v2863 = vadd.f32 %v2501, %v2796
      %v2864 = vadd.f32 %v2502, %v2799
      %v2865 = vadd.f32 %v2503, %v2801
      %v2866 = vadd.f32 %v2504, %v2804
      %v2867 = vadd.f32 %v2505, %v2806
      %v2868 = vadd.f32 %v2506, %v2809
      %v2869 = vadd.f32 %v2507, %v2811
      %v2870 = vadd.f32 %v2508, %v2814
      %v2871 = vadd.f32 %v2509, %v2816
      %v2872 = vadd.f32 %v2510, %v2819
      %v2873 = vadd.f32 %v2511, %v2821
      %v2874 = vadd.f32 %v2512, %v2824
      %v2875 = vadd.f32 %v2513, %v2826
      %v2876 = vadd.f32 %v2514, %v2829
      %v2877 = vadd.f32 %v2515, %v2831
      %v2878 = vadd.f32 %v2516, %v2834
      %v2879 = vadd.f32 %v2517, %v2836
      %v2880 = vadd.f32 %v2518, %v2839
      %v2881 = vadd.f32 %v2519, %v2841
      %v2882 = vadd.f32 %v2520, %v2844
      %v2883 = vadd.f32 %v2521, %v2846
      %v2884 = vld [vmem:[%s614 + $0x8] sm:$0xe]
      %v2885 = vld [vmem:[%s614 + $0xc] sm:$0xf]
      %v2886 = vld [vmem:[%s614 + $0x10] sm:$0xf]
      %v2887 = vld [vmem:[%s614 + $0x14] sm:$0xf]
      %v2888 = vld [vmem:[%s614 + $0x18] sm:$0xf]
      %v2889 = vld [vmem:[%s614 + $0x1c] sm:$0xf]
      %v2890 = vld [vmem:[%s614 + $0x20] sm:$0xf]
      %v2891 = vld [vmem:[%s614 + $0x24] sm:$0xf]
      %v2892 = vld [vmem:[%s614 + $0x28] sm:$0xf]
      %v2893 = vld [vmem:[%s614 + $0x2c] sm:$0xf]
      %v2894 = vld [vmem:[%s614 + $0x30] sm:$0xf]
      %v2895 = vld [vmem:[%s614 + $0x34] sm:$0xf]
      %v2896 = vld [vmem:[%s614 + $0x38] sm:$0xf]
      %v2897 = vld [vmem:[%s614 + $0x3c] sm:$0xf]
      %v2898 = vld [vmem:[%s614 + $0x40] sm:$0xf]
      %v2899 = vld [vmem:[%s614 + $0x44] sm:$0xf]
      %v2900 = vld [vmem:[%s614 + $0x48] sm:$0xf]
      %v2901 = vld [vmem:[%s614 + $0x4c] sm:$0xf]
      %v2902 = vld [vmem:[%s614 + $0x50] sm:$0xf]
      %v2903 = vld [vmem:[%s614 + $0x54] sm:$0xf]
      %v2904 = vld [vmem:[%s614 + $0x58] sm:$0xf]
      %v2905 = vld [vmem:[%s614 + $0x5c] sm:$0xf]
      %v2906 = vld [vmem:[%s614 + $0x60] sm:$0xf]
      %v2907 = vld [vmem:[%s614 + $0x64] sm:$0xf]
      %v2908 = vld [vmem:[%s614 + $0x68] sm:$0xf]
      %v2909 = vld [vmem:[%s614 + $0x6c] sm:$0xf]
      %v2910 = vld [vmem:[%s614 + $0x70] sm:$0xf]
      %v2911 = vld [vmem:[%s614 + $0x74] sm:$0xf]
      %v2912 = vld [vmem:[%s614 + $0x78] sm:$0xf]
      %v2913 = vld [vmem:[%s614 + $0x7c] sm:$0xf]
      %v2914 = vld [vmem:[%s614 + $0x80] sm:$0xf]
      %v2915 = vld [vmem:[%s614 + $0x84] sm:$0xf]
      %v2916 = vld [vmem:[%s614 + $0x88] sm:$0xf]
      %v2917 = vld [vmem:[%s614 + $0x8c] sm:$0xf]
      %v2918 = vld [vmem:[%s614 + $0x90] sm:$0xf]
      %v2919 = vld [vmem:[%s614 + $0x94] sm:$0xf]
      %v2920 = vld [vmem:[%s614 + $0x98] sm:$0x1]
      %s2921 = scalar_lea.vmem %s1, 14
      %v2922 = vld [vmem:[%s2921] sm:$0x3]
      %v2960 = vunpack.c.l.b16 %v2884
      %v2961 = vunpack.c.l.b16 %v2885
      %v2962 = vunpack.c.l.b16 %v2886
      %v2963 = vunpack.c.l.b16 %v2887
      %v2964 = vunpack.c.l.b16 %v2888
      %v2965 = vunpack.c.l.b16 %v2889
      %v2966 = vunpack.c.l.b16 %v2890
      %v2967 = vunpack.c.l.b16 %v2891
      %v2968 = vunpack.c.l.b16 %v2892
      %v2969 = vunpack.c.l.b16 %v2893
      %v2970 = vunpack.c.l.b16 %v2894
      %v2971 = vunpack.c.l.b16 %v2895
      %v2972 = vunpack.c.l.b16 %v2896
      %v2973 = vunpack.c.l.b16 %v2897
      %v2974 = vunpack.c.l.b16 %v2898
      %v2975 = vunpack.c.l.b16 %v2899
      %v2976 = vunpack.c.l.b16 %v2900
      %v2977 = vunpack.c.l.b16 %v2901
      %v2978 = vunpack.c.l.b16 %v2902
      %v2979 = vunpack.c.l.b16 %v2903
      %v2980 = vunpack.c.l.b16 %v2904
      %v2981 = vunpack.c.l.b16 %v2905
      %v2982 = vunpack.c.l.b16 %v2906
      %v2983 = vunpack.c.l.b16 %v2907
      %v2984 = vunpack.c.l.b16 %v2908
      %v2985 = vunpack.c.l.b16 %v2909
      %v2986 = vunpack.c.l.b16 %v2910
      %v2987 = vunpack.c.l.b16 %v2911
      %v2988 = vunpack.c.l.b16 %v2912
      %v2989 = vunpack.c.l.b16 %v2913
      %v2990 = vunpack.c.l.b16 %v2914
      %v2991 = vunpack.c.l.b16 %v2915
      %v2992 = vunpack.c.l.b16 %v2916
      %v2993 = vunpack.c.l.b16 %v2917
      %v2994 = vunpack.c.l.b16 %v2918
      %v2995 = vunpack.c.l.b16 %v2919
      %v2996 = vunpack.c.l.b16 %v2920
      %v2997 = vpack.c.b16 %v2961, %v2960
      %v2998 = vpack.c.b16 %v2963, %v2962
      %v2999 = vpack.c.b16 %v2965, %v2964
      %v3000 = vpack.c.b16 %v2967, %v2966
      %v3001 = vpack.c.b16 %v2969, %v2968
      %v3002 = vpack.c.b16 %v2971, %v2970
      %v3003 = vpack.c.b16 %v2973, %v2972
      %v3004 = vpack.c.b16 %v2975, %v2974
      %v3005 = vpack.c.b16 %v2977, %v2976
      %v3006 = vpack.c.b16 %v2979, %v2978
      %v3007 = vpack.c.b16 %v2981, %v2980
      %v3008 = vpack.c.b16 %v2983, %v2982
      %v3009 = vpack.c.b16 %v2985, %v2984
      %v3010 = vpack.c.b16 %v2987, %v2986
      %v3011 = vpack.c.b16 %v2989, %v2988
      %v3012 = vpack.c.b16 %v2991, %v2990
      %v3013 = vpack.c.b16 %v2993, %v2992
      %v3014 = vpack.c.b16 %v2995, %v2994
      %v3015 = vpack.c.b16 %v2996, %v2996
      %v3016 = vrot.slane %v2997, 1
      %v3017 = vrot.slane %v2998, 1
      %v3018 = vsel %vm2654, %v3016, %v3017
      %v3019 = vrot.slane %v2999, 1
      %v3020 = vsel %vm2654, %v3017, %v3019
      %v3021 = vrot.slane %v3000, 1
      %v3022 = vsel %vm2654, %v3019, %v3021
      %v3023 = vrot.slane %v3001, 1
      %v3024 = vsel %vm2654, %v3021, %v3023
      %v3025 = vrot.slane %v3002, 1
      %v3026 = vsel %vm2654, %v3023, %v3025
      %v3027 = vrot.slane %v3003, 1
      %v3028 = vsel %vm2654, %v3025, %v3027
      %v3029 = vrot.slane %v3004, 1
      %v3030 = vsel %vm2654, %v3027, %v3029
      %v3031 = vrot.slane %v3005, 1
      %v3032 = vsel %vm2654, %v3029, %v3031
      %v3033 = vrot.slane %v3006, 1
      %v3034 = vsel %vm2654, %v3031, %v3033
      %v3035 = vrot.slane %v3007, 1
      %v3036 = vsel %vm2654, %v3033, %v3035
      %v3037 = vrot.slane %v3008, 1
      %v3038 = vsel %vm2654, %v3035, %v3037
      %v3039 = vrot.slane %v3009, 1
      %v3040 = vsel %vm2654, %v3037, %v3039
      %v3041 = vrot.slane %v3010, 1
      %v3042 = vsel %vm2654, %v3039, %v3041
      %v3043 = vrot.slane %v3011, 1
      %v3044 = vsel %vm2654, %v3041, %v3043
      %v3045 = vrot.slane %v3012, 1
      %v3046 = vsel %vm2654, %v3043, %v3045
      %v3047 = vrot.slane %v3013, 1
      %v3048 = vsel %vm2654, %v3045, %v3047
      %v3049 = vrot.slane %v3014, 1
      %v3050 = vsel %vm2654, %v3047, %v3049
      %v3051 = vrot.slane %v3015, 1
      %v3052 = vsel %vm2654, %v3049, %v3051
      %v3054 = vsel %vm420, %v3018, 0
      %v3057 = vsel %vm420, %v3020, 0
      %v3060 = vsel %vm420, %v3022, 0
      %v3063 = vsel %vm420, %v3024, 0
      %v3066 = vsel %vm420, %v3026, 0
      %v3069 = vsel %vm420, %v3028, 0
      %v3072 = vsel %vm420, %v3030, 0
      %v3075 = vsel %vm420, %v3032, 0
      %v3078 = vsel %vm420, %v3034, 0
      %v3081 = vsel %vm420, %v3036, 0
      %v3084 = vsel %vm420, %v3038, 0
      %v3087 = vsel %vm420, %v3040, 0
      %v3090 = vsel %vm420, %v3042, 0
      %v3093 = vsel %vm420, %v3044, 0
      %v3096 = vsel %vm420, %v3046, 0
      %v3099 = vsel %vm420, %v3048, 0
      %v3102 = vsel %vm420, %v3050, 0
      %v3105 = vsel %vm420, %v3052, 0
      %v3108 = vsel %vm475, %v2922, 0
      %3110 = vmatpush.bf16.msra.mxu0 0
      %3111 = vmatpush.bf16.msra.mxu0 0
      %3112 = vmatpush.bf16.msra.mxu0 0
      %3113 = vmatpush.bf16.msra.mxu0 0
      %3114 = vmatpush.bf16.msra.mxu0 0
      %3115 = vmatpush.bf16.msra.mxu0 0
      %3116 = vmatpush.bf16.msra.mxu0 0
      %3117 = vmatpush.bf16.msra.mxu0 %v3108
      %3118 = vmatmul.bf16.gmra.mxu0 %v3054
      %v3119 = vpop.f32.mrf.mxu0
      %v3120 = vadd.f32 0.0, %v3119
      %v3121 = vpop.f32.mrf.mxu0
      %v3122 = vadd.f32 0.0, %v3121
      %3123 = vmatmul.bf16.gmra.mxu0 %v3057
      %v3124 = vpop.f32.mrf.mxu0
      %v3125 = vadd.f32 0.0, %v3124
      %v3126 = vpop.f32.mrf.mxu0
      %v3127 = vadd.f32 0.0, %v3126
      %3128 = vmatmul.bf16.gmra.mxu0 %v3060
      %v3129 = vpop.f32.mrf.mxu0
      %v3130 = vadd.f32 0.0, %v3129
      %v3131 = vpop.f32.mrf.mxu0
      %v3132 = vadd.f32 0.0, %v3131
      %3133 = vmatmul.bf16.gmra.mxu0 %v3063
      %v3134 = vpop.f32.mrf.mxu0
      %v3135 = vadd.f32 0.0, %v3134
      %v3136 = vpop.f32.mrf.mxu0
      %v3137 = vadd.f32 0.0, %v3136
      %3138 = vmatmul.bf16.gmra.mxu0 %v3066
      %v3139 = vpop.f32.mrf.mxu0
      %v3140 = vadd.f32 0.0, %v3139
      %v3141 = vpop.f32.mrf.mxu0
      %v3142 = vadd.f32 0.0, %v3141
      %3143 = vmatmul.bf16.gmra.mxu0 %v3069
      %v3144 = vpop.f32.mrf.mxu0
      %v3145 = vadd.f32 0.0, %v3144
      %v3146 = vpop.f32.mrf.mxu0
      %v3147 = vadd.f32 0.0, %v3146
      %3148 = vmatmul.bf16.gmra.mxu0 %v3072
      %v3149 = vpop.f32.mrf.mxu0
      %v3150 = vadd.f32 0.0, %v3149
      %v3151 = vpop.f32.mrf.mxu0
      %v3152 = vadd.f32 0.0, %v3151
      %3153 = vmatmul.bf16.gmra.mxu0 %v3075
      %v3154 = vpop.f32.mrf.mxu0
      %v3155 = vadd.f32 0.0, %v3154
      %v3156 = vpop.f32.mrf.mxu0
      %v3157 = vadd.f32 0.0, %v3156
      %3158 = vmatmul.bf16.gmra.mxu0 %v3078
      %v3159 = vpop.f32.mrf.mxu0
      %v3160 = vadd.f32 0.0, %v3159
      %v3161 = vpop.f32.mrf.mxu0
      %v3162 = vadd.f32 0.0, %v3161
      %3163 = vmatmul.bf16.gmra.mxu0 %v3081
      %v3164 = vpop.f32.mrf.mxu0
      %v3165 = vadd.f32 0.0, %v3164
      %v3166 = vpop.f32.mrf.mxu0
      %v3167 = vadd.f32 0.0, %v3166
      %3168 = vmatmul.bf16.gmra.mxu0 %v3084
      %v3169 = vpop.f32.mrf.mxu0
      %v3170 = vadd.f32 0.0, %v3169
      %v3171 = vpop.f32.mrf.mxu0
      %v3172 = vadd.f32 0.0, %v3171
      %3173 = vmatmul.bf16.gmra.mxu0 %v3087
      %v3174 = vpop.f32.mrf.mxu0
      %v3175 = vadd.f32 0.0, %v3174
      %v3176 = vpop.f32.mrf.mxu0
      %v3177 = vadd.f32 0.0, %v3176
      %3178 = vmatmul.bf16.gmra.mxu0 %v3090
      %v3179 = vpop.f32.mrf.mxu0
      %v3180 = vadd.f32 0.0, %v3179
      %v3181 = vpop.f32.mrf.mxu0
      %v3182 = vadd.f32 0.0, %v3181
      %3183 = vmatmul.bf16.gmra.mxu0 %v3093
      %v3184 = vpop.f32.mrf.mxu0
      %v3185 = vadd.f32 0.0, %v3184
      %v3186 = vpop.f32.mrf.mxu0
      %v3187 = vadd.f32 0.0, %v3186
      %3188 = vmatmul.bf16.gmra.mxu0 %v3096
      %v3189 = vpop.f32.mrf.mxu0
      %v3190 = vadd.f32 0.0, %v3189
      %v3191 = vpop.f32.mrf.mxu0
      %v3192 = vadd.f32 0.0, %v3191
      %3193 = vmatmul.bf16.gmra.mxu0 %v3099
      %v3194 = vpop.f32.mrf.mxu0
      %v3195 = vadd.f32 0.0, %v3194
      %v3196 = vpop.f32.mrf.mxu0
      %v3197 = vadd.f32 0.0, %v3196
      %3198 = vmatmul.bf16.gmra.mxu0 %v3102
      %v3199 = vpop.f32.mrf.mxu0
      %v3200 = vadd.f32 0.0, %v3199
      %v3201 = vpop.f32.mrf.mxu0
      %v3202 = vadd.f32 0.0, %v3201
      %3203 = vmatmul.bf16.gmra.mxu0 %v3105
      %v3204 = vpop.f32.mrf.mxu0
      %v3205 = vadd.f32 0.0, %v3204
      %v3206 = vpop.f32.mrf.mxu0
      %v3207 = vadd.f32 0.0, %v3206
      %3208 = vdwg.mxu0
      %v3209 = vadd.f32 %v2848, %v3120
      %v3210 = vadd.f32 %v2849, %v3122
      %v3211 = vadd.f32 %v2850, %v3125
      %v3212 = vadd.f32 %v2851, %v3127
      %v3213 = vadd.f32 %v2852, %v3130
      %v3214 = vadd.f32 %v2853, %v3132
      %v3215 = vadd.f32 %v2854, %v3135
      %v3216 = vadd.f32 %v2855, %v3137
      %v3217 = vadd.f32 %v2856, %v3140
      %v3218 = vadd.f32 %v2857, %v3142
      %v3219 = vadd.f32 %v2858, %v3145
      %v3220 = vadd.f32 %v2859, %v3147
      %v3221 = vadd.f32 %v2860, %v3150
      %v3222 = vadd.f32 %v2861, %v3152
      %v3223 = vadd.f32 %v2862, %v3155
      %v3224 = vadd.f32 %v2863, %v3157
      %v3225 = vadd.f32 %v2864, %v3160
      %v3226 = vadd.f32 %v2865, %v3162
      %v3227 = vadd.f32 %v2866, %v3165
      %v3228 = vadd.f32 %v2867, %v3167
      %v3229 = vadd.f32 %v2868, %v3170
      %v3230 = vadd.f32 %v2869, %v3172
      %v3231 = vadd.f32 %v2870, %v3175
      %v3232 = vadd.f32 %v2871, %v3177
      %v3233 = vadd.f32 %v2872, %v3180
      %v3234 = vadd.f32 %v2873, %v3182
      %v3235 = vadd.f32 %v2874, %v3185
      %v3236 = vadd.f32 %v2875, %v3187
      %v3237 = vadd.f32 %v2876, %v3190
      %v3238 = vadd.f32 %v2877, %v3192
      %v3239 = vadd.f32 %v2878, %v3195
      %v3240 = vadd.f32 %v2879, %v3197
      %v3241 = vadd.f32 %v2880, %v3200
      %v3242 = vadd.f32 %v2881, %v3202
      %v3243 = vadd.f32 %v2882, %v3205
      %v3244 = vadd.f32 %v2883, %v3207
      %v3245 = vld [vmem:[%s246 + $0x98] sm:$0x3]
      %s3246 = scalar_lea.vmem %s1, 16
      %v3247 = vld [vmem:[%s3246] sm:$0x3]
      %v3249 = vunpack.c.l.b16 %v3245
      %v3250 = vpack.c.b16 %v3249, %v3249
      %vm3251 = vsmask.f32 6400
      %v3253 = vshrl.u32 %v2635, 16
      %v3255 = vrot.slane %v3253, 1
      %v3256 = vshll.u32 %v2635, 16
      %v3258 = vrot.slane %v3256, 2
      %v3259 = vor.u32 %v3255, %v3258
      %v3261 = vshrl.u32 %v2636, 16
      %v3263 = vrot.slane %v3261, 1
      %v3264 = vshll.u32 %v2636, 16
      %v3266 = vrot.slane %v3264, 2
      %v3267 = vor.u32 %v3263, %v3266
      %v3268 = vsel %vm3251, %v3259, %v3267
      %v3270 = vshrl.u32 %v2637, 16
      %v3272 = vrot.slane %v3270, 1
      %v3273 = vshll.u32 %v2637, 16
      %v3275 = vrot.slane %v3273, 2
      %v3276 = vor.u32 %v3272, %v3275
      %v3277 = vsel %vm3251, %v3267, %v3276
      %v3279 = vshrl.u32 %v2638, 16
      %v3281 = vrot.slane %v3279, 1
      %v3282 = vshll.u32 %v2638, 16
      %v3284 = vrot.slane %v3282, 2
      %v3285 = vor.u32 %v3281, %v3284
      %v3286 = vsel %vm3251, %v3276, %v3285
      %v3288 = vshrl.u32 %v2639, 16
      %v3290 = vrot.slane %v3288, 1
      %v3291 = vshll.u32 %v2639, 16
      %v3293 = vrot.slane %v3291, 2
      %v3294 = vor.u32 %v3290, %v3293
      %v3295 = vsel %vm3251, %v3285, %v3294
      %v3297 = vshrl.u32 %v2640, 16
      %v3299 = vrot.slane %v3297, 1
      %v3300 = vshll.u32 %v2640, 16
      %v3302 = vrot.slane %v3300, 2
      %v3303 = vor.u32 %v3299, %v3302
      %v3304 = vsel %vm3251, %v3294, %v3303
      %v3306 = vshrl.u32 %v2641, 16
      %v3308 = vrot.slane %v3306, 1
      %v3309 = vshll.u32 %v2641, 16
      %v3311 = vrot.slane %v3309, 2
      %v3312 = vor.u32 %v3308, %v3311
      %v3313 = vsel %vm3251, %v3303, %v3312
      %v3315 = vshrl.u32 %v2642, 16
      %v3317 = vrot.slane %v3315, 1
      %v3318 = vshll.u32 %v2642, 16
      %v3320 = vrot.slane %v3318, 2
      %v3321 = vor.u32 %v3317, %v3320
      %v3322 = vsel %vm3251, %v3312, %v3321
      %v3324 = vshrl.u32 %v2643, 16
      %v3326 = vrot.slane %v3324, 1
      %v3327 = vshll.u32 %v2643, 16
      %v3329 = vrot.slane %v3327, 2
      %v3330 = vor.u32 %v3326, %v3329
      %v3331 = vsel %vm3251, %v3321, %v3330
      %v3333 = vshrl.u32 %v2644, 16
      %v3335 = vrot.slane %v3333, 1
      %v3336 = vshll.u32 %v2644, 16
      %v3338 = vrot.slane %v3336, 2
      %v3339 = vor.u32 %v3335, %v3338
      %v3340 = vsel %vm3251, %v3330, %v3339
      %v3342 = vshrl.u32 %v2645, 16
      %v3344 = vrot.slane %v3342, 1
      %v3345 = vshll.u32 %v2645, 16
      %v3347 = vrot.slane %v3345, 2
      %v3348 = vor.u32 %v3344, %v3347
      %v3349 = vsel %vm3251, %v3339, %v3348
      %v3351 = vshrl.u32 %v2646, 16
      %v3353 = vrot.slane %v3351, 1
      %v3354 = vshll.u32 %v2646, 16
      %v3356 = vrot.slane %v3354, 2
      %v3357 = vor.u32 %v3353, %v3356
      %v3358 = vsel %vm3251, %v3348, %v3357
      %v3360 = vshrl.u32 %v2647, 16
      %v3362 = vrot.slane %v3360, 1
      %v3363 = vshll.u32 %v2647, 16
      %v3365 = vrot.slane %v3363, 2
      %v3366 = vor.u32 %v3362, %v3365
      %v3367 = vsel %vm3251, %v3357, %v3366
      %v3369 = vshrl.u32 %v2648, 16
      %v3371 = vrot.slane %v3369, 1
      %v3372 = vshll.u32 %v2648, 16
      %v3374 = vrot.slane %v3372, 2
      %v3375 = vor.u32 %v3371, %v3374
      %v3376 = vsel %vm3251, %v3366, %v3375
      %v3378 = vshrl.u32 %v2649, 16
      %v3380 = vrot.slane %v3378, 1
      %v3381 = vshll.u32 %v2649, 16
      %v3383 = vrot.slane %v3381, 2
      %v3384 = vor.u32 %v3380, %v3383
      %v3385 = vsel %vm3251, %v3375, %v3384
      %v3387 = vshrl.u32 %v2650, 16
      %v3389 = vrot.slane %v3387, 1
      %v3390 = vshll.u32 %v2650, 16
      %v3392 = vrot.slane %v3390, 2
      %v3393 = vor.u32 %v3389, %v3392
      %v3394 = vsel %vm3251, %v3384, %v3393
      %v3396 = vshrl.u32 %v2651, 16
      %v3398 = vrot.slane %v3396, 1
      %v3399 = vshll.u32 %v2651, 16
      %v3401 = vrot.slane %v3399, 2
      %v3402 = vor.u32 %v3398, %v3401
      %v3403 = vsel %vm3251, %v3393, %v3402
      %v3405 = vshrl.u32 %v2652, 16
      %v3407 = vrot.slane %v3405, 1
      %v3408 = vshll.u32 %v2652, 16
      %v3410 = vrot.slane %v3408, 2
      %v3411 = vor.u32 %v3407, %v3410
      %v3412 = vsel %vm3251, %v3402, %v3411
      %v3414 = vshrl.u32 %v3250, 16
      %v3416 = vrot.slane %v3414, 1
      %v3417 = vshll.u32 %v3250, 16
      %v3419 = vrot.slane %v3417, 2
      %v3420 = vor.u32 %v3416, %v3419
      %v3421 = vsel %vm3251, %v3411, %v3420
      %v3423 = vsel %vm420, %v3268, 0
      %v3426 = vsel %vm420, %v3277, 0
      %v3429 = vsel %vm420, %v3286, 0
      %v3432 = vsel %vm420, %v3295, 0
      %v3435 = vsel %vm420, %v3304, 0
      %v3438 = vsel %vm420, %v3313, 0
      %v3441 = vsel %vm420, %v3322, 0
      %v3444 = vsel %vm420, %v3331, 0
      %v3447 = vsel %vm420, %v3340, 0
      %v3450 = vsel %vm420, %v3349, 0
      %v3453 = vsel %vm420, %v3358, 0
      %v3456 = vsel %vm420, %v3367, 0
      %v3459 = vsel %vm420, %v3376, 0
      %v3462 = vsel %vm420, %v3385, 0
      %v3465 = vsel %vm420, %v3394, 0
      %v3468 = vsel %vm420, %v3403, 0
      %v3471 = vsel %vm420, %v3412, 0
      %v3474 = vsel %vm420, %v3421, 0
      %v3477 = vsel %vm475, %v3247, 0
      %3479 = vmatpush.bf16.msra.mxu0 0
      %3480 = vmatpush.bf16.msra.mxu0 0
      %3481 = vmatpush.bf16.msra.mxu0 0
      %3482 = vmatpush.bf16.msra.mxu0 0
      %3483 = vmatpush.bf16.msra.mxu0 0
      %3484 = vmatpush.bf16.msra.mxu0 0
      %3485 = vmatpush.bf16.msra.mxu0 0
      %3486 = vmatpush.bf16.msra.mxu0 %v3477
      %3487 = vmatmul.bf16.gmra.mxu0 %v3423
      %v3488 = vpop.f32.mrf.mxu0
      %v3489 = vadd.f32 0.0, %v3488
      %v3490 = vpop.f32.mrf.mxu0
      %v3491 = vadd.f32 0.0, %v3490
      %3492 = vmatmul.bf16.gmra.mxu0 %v3426
      %v3493 = vpop.f32.mrf.mxu0
      %v3494 = vadd.f32 0.0, %v3493
      %v3495 = vpop.f32.mrf.mxu0
      %v3496 = vadd.f32 0.0, %v3495
      %3497 = vmatmul.bf16.gmra.mxu0 %v3429
      %v3498 = vpop.f32.mrf.mxu0
      %v3499 = vadd.f32 0.0, %v3498
      %v3500 = vpop.f32.mrf.mxu0
      %v3501 = vadd.f32 0.0, %v3500
      %3502 = vmatmul.bf16.gmra.mxu0 %v3432
      %v3503 = vpop.f32.mrf.mxu0
      %v3504 = vadd.f32 0.0, %v3503
      %v3505 = vpop.f32.mrf.mxu0
      %v3506 = vadd.f32 0.0, %v3505
      %3507 = vmatmul.bf16.gmra.mxu0 %v3435
      %v3508 = vpop.f32.mrf.mxu0
      %v3509 = vadd.f32 0.0, %v3508
      %v3510 = vpop.f32.mrf.mxu0
      %v3511 = vadd.f32 0.0, %v3510
      %3512 = vmatmul.bf16.gmra.mxu0 %v3438
      %v3513 = vpop.f32.mrf.mxu0
      %v3514 = vadd.f32 0.0, %v3513
      %v3515 = vpop.f32.mrf.mxu0
      %v3516 = vadd.f32 0.0, %v3515
      %3517 = vmatmul.bf16.gmra.mxu0 %v3441
      %v3518 = vpop.f32.mrf.mxu0
      %v3519 = vadd.f32 0.0, %v3518
      %v3520 = vpop.f32.mrf.mxu0
      %v3521 = vadd.f32 0.0, %v3520
      %3522 = vmatmul.bf16.gmra.mxu0 %v3444
      %v3523 = vpop.f32.mrf.mxu0
      %v3524 = vadd.f32 0.0, %v3523
      %v3525 = vpop.f32.mrf.mxu0
      %v3526 = vadd.f32 0.0, %v3525
      %3527 = vmatmul.bf16.gmra.mxu0 %v3447
      %v3528 = vpop.f32.mrf.mxu0
      %v3529 = vadd.f32 0.0, %v3528
      %v3530 = vpop.f32.mrf.mxu0
      %v3531 = vadd.f32 0.0, %v3530
      %3532 = vmatmul.bf16.gmra.mxu0 %v3450
      %v3533 = vpop.f32.mrf.mxu0
      %v3534 = vadd.f32 0.0, %v3533
      %v3535 = vpop.f32.mrf.mxu0
      %v3536 = vadd.f32 0.0, %v3535
      %3537 = vmatmul.bf16.gmra.mxu0 %v3453
      %v3538 = vpop.f32.mrf.mxu0
      %v3539 = vadd.f32 0.0, %v3538
      %v3540 = vpop.f32.mrf.mxu0
      %v3541 = vadd.f32 0.0, %v3540
      %3542 = vmatmul.bf16.gmra.mxu0 %v3456
      %v3543 = vpop.f32.mrf.mxu0
      %v3544 = vadd.f32 0.0, %v3543
      %v3545 = vpop.f32.mrf.mxu0
      %v3546 = vadd.f32 0.0, %v3545
      %3547 = vmatmul.bf16.gmra.mxu0 %v3459
      %v3548 = vpop.f32.mrf.mxu0
      %v3549 = vadd.f32 0.0, %v3548
      %v3550 = vpop.f32.mrf.mxu0
      %v3551 = vadd.f32 0.0, %v3550
      %3552 = vmatmul.bf16.gmra.mxu0 %v3462
      %v3553 = vpop.f32.mrf.mxu0
      %v3554 = vadd.f32 0.0, %v3553
      %v3555 = vpop.f32.mrf.mxu0
      %v3556 = vadd.f32 0.0, %v3555
      %3557 = vmatmul.bf16.gmra.mxu0 %v3465
      %v3558 = vpop.f32.mrf.mxu0
      %v3559 = vadd.f32 0.0, %v3558
      %v3560 = vpop.f32.mrf.mxu0
      %v3561 = vadd.f32 0.0, %v3560
      %3562 = vmatmul.bf16.gmra.mxu0 %v3468
      %v3563 = vpop.f32.mrf.mxu0
      %v3564 = vadd.f32 0.0, %v3563
      %v3565 = vpop.f32.mrf.mxu0
      %v3566 = vadd.f32 0.0, %v3565
      %3567 = vmatmul.bf16.gmra.mxu0 %v3471
      %v3568 = vpop.f32.mrf.mxu0
      %v3569 = vadd.f32 0.0, %v3568
      %v3570 = vpop.f32.mrf.mxu0
      %v3571 = vadd.f32 0.0, %v3570
      %3572 = vmatmul.bf16.gmra.mxu0 %v3474
      %v3573 = vpop.f32.mrf.mxu0
      %v3574 = vadd.f32 0.0, %v3573
      %v3575 = vpop.f32.mrf.mxu0
      %v3576 = vadd.f32 0.0, %v3575
      %3577 = vdwg.mxu0
      %v3578 = vadd.f32 %v3209, %v3489
      %v3579 = vadd.f32 %v3210, %v3491
      %v3580 = vadd.f32 %v3211, %v3494
      %v3581 = vadd.f32 %v3212, %v3496
      %v3582 = vadd.f32 %v3213, %v3499
      %v3583 = vadd.f32 %v3214, %v3501
      %v3584 = vadd.f32 %v3215, %v3504
      %v3585 = vadd.f32 %v3216, %v3506
      %v3586 = vadd.f32 %v3217, %v3509
      %v3587 = vadd.f32 %v3218, %v3511
      %v3588 = vadd.f32 %v3219, %v3514
      %v3589 = vadd.f32 %v3220, %v3516
      %v3590 = vadd.f32 %v3221, %v3519
      %v3591 = vadd.f32 %v3222, %v3521
      %v3592 = vadd.f32 %v3223, %v3524
      %v3593 = vadd.f32 %v3224, %v3526
      %v3594 = vadd.f32 %v3225, %v3529
      %v3595 = vadd.f32 %v3226, %v3531
      %v3596 = vadd.f32 %v3227, %v3534
      %v3597 = vadd.f32 %v3228, %v3536
      %v3598 = vadd.f32 %v3229, %v3539
      %v3599 = vadd.f32 %v3230, %v3541
      %v3600 = vadd.f32 %v3231, %v3544
      %v3601 = vadd.f32 %v3232, %v3546
      %v3602 = vadd.f32 %v3233, %v3549
      %v3603 = vadd.f32 %v3234, %v3551
      %v3604 = vadd.f32 %v3235, %v3554
      %v3605 = vadd.f32 %v3236, %v3556
      %v3606 = vadd.f32 %v3237, %v3559
      %v3607 = vadd.f32 %v3238, %v3561
      %v3608 = vadd.f32 %v3239, %v3564
      %v3609 = vadd.f32 %v3240, %v3566
      %v3610 = vadd.f32 %v3241, %v3569
      %v3611 = vadd.f32 %v3242, %v3571
      %v3612 = vadd.f32 %v3243, %v3574
      %v3613 = vadd.f32 %v3244, %v3576
      %v3614 = vmax.f32 %v3578, 0.0
      %v3615 = vmax.f32 %v3579, 0.0
      %v3616 = vmax.f32 %v3580, 0.0
      %v3617 = vmax.f32 %v3581, 0.0
      %v3618 = vmax.f32 %v3582, 0.0
      %v3619 = vmax.f32 %v3583, 0.0
      %v3620 = vmax.f32 %v3584, 0.0
      %v3621 = vmax.f32 %v3585, 0.0
      %v3622 = vmax.f32 %v3586, 0.0
      %v3623 = vmax.f32 %v3587, 0.0
      %v3624 = vmax.f32 %v3588, 0.0
      %v3625 = vmax.f32 %v3589, 0.0
      %v3626 = vmax.f32 %v3590, 0.0
      %v3627 = vmax.f32 %v3591, 0.0
      %v3628 = vmax.f32 %v3592, 0.0
      %v3629 = vmax.f32 %v3593, 0.0
      %v3630 = vmax.f32 %v3594, 0.0
      %v3631 = vmax.f32 %v3595, 0.0
      %v3632 = vmax.f32 %v3596, 0.0
      %v3633 = vmax.f32 %v3597, 0.0
      %v3634 = vmax.f32 %v3598, 0.0
      %v3635 = vmax.f32 %v3599, 0.0
      %v3636 = vmax.f32 %v3600, 0.0
      %v3637 = vmax.f32 %v3601, 0.0
      %v3638 = vmax.f32 %v3602, 0.0
      %v3639 = vmax.f32 %v3603, 0.0
      %v3640 = vmax.f32 %v3604, 0.0
      %v3641 = vmax.f32 %v3605, 0.0
      %v3642 = vmax.f32 %v3606, 0.0
      %v3643 = vmax.f32 %v3607, 0.0
      %v3644 = vmax.f32 %v3608, 0.0
      %v3645 = vmax.f32 %v3609, 0.0
      %v3646 = vmax.f32 %v3610, 0.0
      %v3647 = vmax.f32 %v3611, 0.0
      %v3648 = vmax.f32 %v3612, 0.0
      %v3649 = vmax.f32 %v3613, 0.0
      %3651 = vset.pattern.permute.xlu0 0
      %3652 = vperm.xlu0 %3651, %v253
      %v3653 = vpop.permute.xlu0 %3652
      %3656 = vset.pattern.permute.xlu0 0
      %3657 = vperm.xlu0 %3656, %v254
      %v3658 = vpop.permute.xlu0 %3657
      %3661 = vset.pattern.permute.xlu0 0
      %3662 = vperm.xlu0 %3661, %v255
      %v3663 = vpop.permute.xlu0 %3662
      %3666 = vset.pattern.permute.xlu0 0
      %3667 = vperm.xlu0 %3666, %v256
      %v3668 = vpop.permute.xlu0 %3667
      %3671 = vset.pattern.permute.xlu0 0
      %3672 = vperm.xlu0 %3671, %v257
      %v3673 = vpop.permute.xlu0 %3672
      %3676 = vset.pattern.permute.xlu0 0
      %3677 = vperm.xlu0 %3676, %v258
      %v3678 = vpop.permute.xlu0 %3677
      %3681 = vset.pattern.permute.xlu0 0
      %3682 = vperm.xlu0 %3681, %v259
      %v3683 = vpop.permute.xlu0 %3682
      %3686 = vset.pattern.permute.xlu0 0
      %3687 = vperm.xlu0 %3686, %v260
      %v3688 = vpop.permute.xlu0 %3687
      %3691 = vset.pattern.permute.xlu0 0
      %3692 = vperm.xlu0 %3691, %v261
      %v3693 = vpop.permute.xlu0 %3692
      %3696 = vset.pattern.permute.xlu0 0
      %3697 = vperm.xlu0 %3696, %v262
      %v3698 = vpop.permute.xlu0 %3697
      %3701 = vset.pattern.permute.xlu0 0
      %3702 = vperm.xlu0 %3701, %v263
      %v3703 = vpop.permute.xlu0 %3702
      %3706 = vset.pattern.permute.xlu0 0
      %3707 = vperm.xlu0 %3706, %v264
      %v3708 = vpop.permute.xlu0 %3707
      %3711 = vset.pattern.permute.xlu0 0
      %3712 = vperm.xlu0 %3711, %v265
      %v3713 = vpop.permute.xlu0 %3712
      %3716 = vset.pattern.permute.xlu0 0
      %3717 = vperm.xlu0 %3716, %v266
      %v3718 = vpop.permute.xlu0 %3717
      %3721 = vset.pattern.permute.xlu0 0
      %3722 = vperm.xlu0 %3721, %v267
      %v3723 = vpop.permute.xlu0 %3722
      %3726 = vset.pattern.permute.xlu0 0
      %3727 = vperm.xlu0 %3726, %v268
      %v3728 = vpop.permute.xlu0 %3727
      %3731 = vset.pattern.permute.xlu0 0
      %3732 = vperm.xlu0 %3731, %v269
      %v3733 = vpop.permute.xlu0 %3732
      %3736 = vset.pattern.permute.xlu0 0
      %3737 = vperm.xlu0 %3736, %v270
      %v3738 = vpop.permute.xlu0 %3737
      %3741 = vset.pattern.permute.xlu0 0
      %3742 = vperm.xlu0 %3741, %v271
      %v3743 = vpop.permute.xlu0 %3742
      %3746 = vset.pattern.permute.xlu0 0
      %3747 = vperm.xlu0 %3746, %v272
      %v3748 = vpop.permute.xlu0 %3747
      %3751 = vset.pattern.permute.xlu0 0
      %3752 = vperm.xlu0 %3751, %v273
      %v3753 = vpop.permute.xlu0 %3752
      %3756 = vset.pattern.permute.xlu0 0
      %3757 = vperm.xlu0 %3756, %v274
      %v3758 = vpop.permute.xlu0 %3757
      %3761 = vset.pattern.permute.xlu0 0
      %3762 = vperm.xlu0 %3761, %v275
      %v3763 = vpop.permute.xlu0 %3762
      %3766 = vset.pattern.permute.xlu0 0
      %3767 = vperm.xlu0 %3766, %v276
      %v3768 = vpop.permute.xlu0 %3767
      %3771 = vset.pattern.permute.xlu0 0
      %3772 = vperm.xlu0 %3771, %v277
      %v3773 = vpop.permute.xlu0 %3772
      %3776 = vset.pattern.permute.xlu0 0
      %3777 = vperm.xlu0 %3776, %v278
      %v3778 = vpop.permute.xlu0 %3777
      %3781 = vset.pattern.permute.xlu0 0
      %3782 = vperm.xlu0 %3781, %v279
      %v3783 = vpop.permute.xlu0 %3782
      %3786 = vset.pattern.permute.xlu0 0
      %3787 = vperm.xlu0 %3786, %v280
      %v3788 = vpop.permute.xlu0 %3787
      %3791 = vset.pattern.permute.xlu0 0
      %3792 = vperm.xlu0 %3791, %v281
      %v3793 = vpop.permute.xlu0 %3792
      %3796 = vset.pattern.permute.xlu0 0
      %3797 = vperm.xlu0 %3796, %v282
      %v3798 = vpop.permute.xlu0 %3797
      %3801 = vset.pattern.permute.xlu0 0
      %3802 = vperm.xlu0 %3801, %v283
      %v3803 = vpop.permute.xlu0 %3802
      %3806 = vset.pattern.permute.xlu0 0
      %3807 = vperm.xlu0 %3806, %v284
      %v3808 = vpop.permute.xlu0 %3807
      %3811 = vset.pattern.permute.xlu0 0
      %3812 = vperm.xlu0 %3811, %v285
      %v3813 = vpop.permute.xlu0 %3812
      %3816 = vset.pattern.permute.xlu0 0
      %3817 = vperm.xlu0 %3816, %v286
      %v3818 = vpop.permute.xlu0 %3817
      %3821 = vset.pattern.permute.xlu0 0
      %3822 = vperm.xlu0 %3821, %v287
      %v3823 = vpop.permute.xlu0 %3822
      %3826 = vset.pattern.permute.xlu0 0
      %3827 = vperm.xlu0 %3826, %v288
      %v3828 = vpop.permute.xlu0 %3827
      %v3830 = vmul.f32 %v3614, %v3653
      %v3831 = vmul.f32 %v3615, %v3658
      %v3832 = vmul.f32 %v3616, %v3663
      %v3833 = vmul.f32 %v3617, %v3668
      %v3834 = vmul.f32 %v3618, %v3673
      %v3835 = vmul.f32 %v3619, %v3678
      %v3836 = vmul.f32 %v3620, %v3683
      %v3837 = vmul.f32 %v3621, %v3688
      %v3838 = vmul.f32 %v3622, %v3693
      %v3839 = vmul.f32 %v3623, %v3698
      %v3840 = vmul.f32 %v3624, %v3703
      %v3841 = vmul.f32 %v3625, %v3708
      %v3842 = vmul.f32 %v3626, %v3713
      %v3843 = vmul.f32 %v3627, %v3718
      %v3844 = vmul.f32 %v3628, %v3723
      %v3845 = vmul.f32 %v3629, %v3728
      %v3846 = vmul.f32 %v3630, %v3733
      %v3847 = vmul.f32 %v3631, %v3738
      %v3848 = vmul.f32 %v3632, %v3743
      %v3849 = vmul.f32 %v3633, %v3748
      %v3850 = vmul.f32 %v3634, %v3753
      %v3851 = vmul.f32 %v3635, %v3758
      %v3852 = vmul.f32 %v3636, %v3763
      %v3853 = vmul.f32 %v3637, %v3768
      %v3854 = vmul.f32 %v3638, %v3773
      %v3855 = vmul.f32 %v3639, %v3778
      %v3856 = vmul.f32 %v3640, %v3783
      %v3857 = vmul.f32 %v3641, %v3788
      %v3858 = vmul.f32 %v3642, %v3793
      %v3859 = vmul.f32 %v3643, %v3798
      %v3860 = vmul.f32 %v3644, %v3803
      %v3861 = vmul.f32 %v3645, %v3808
      %v3862 = vmul.f32 %v3646, %v3813
      %v3863 = vmul.f32 %v3647, %v3818
      %v3864 = vmul.f32 %v3648, %v3823
      %v3865 = vmul.f32 %v3649, %v3828
      %vm3866 = vcmask 261120
      %3867 = vst.msk [vmem:[#allocation2] sm:$0xff] %vm3866, 0.0
      %3868 = vst.msk [vmem:[#allocation2 + $0x8] sm:$0xff] %vm3866, 0.0
      %3869 = vst.msk [vmem:[#allocation2 + $0x10] sm:$0xff] %vm3866, 0.0
      %3870 = vst.msk [vmem:[#allocation2 + $0x18] sm:$0xff] %vm3866, 0.0
      %3871 = vst.msk [vmem:[#allocation2 + $0x20] sm:$0xff] %vm3866, 0.0
      %3872 = vst.msk [vmem:[#allocation2 + $0x28] sm:$0xff] %vm3866, 0.0
      %3873 = vst.msk [vmem:[#allocation2 + $0x30] sm:$0xff] %vm3866, 0.0
      %3874 = vst.msk [vmem:[#allocation2 + $0x38] sm:$0xff] %vm3866, 0.0
      %3875 = vst.msk [vmem:[#allocation2 + $0x40] sm:$0xff] %vm3866, 0.0
      %3876 = vst.msk [vmem:[#allocation2 + $0x48] sm:$0xff] %vm3866, 0.0
      %3877 = vst.msk [vmem:[#allocation2 + $0x50] sm:$0xff] %vm3866, 0.0
      %3878 = vst.msk [vmem:[#allocation2 + $0x58] sm:$0xff] %vm3866, 0.0
      %3879 = vst.msk [vmem:[#allocation2 + $0x60] sm:$0xff] %vm3866, 0.0
      %3880 = vst.msk [vmem:[#allocation2 + $0x68] sm:$0xff] %vm3866, 0.0
      %3881 = vst.msk [vmem:[#allocation2 + $0x70] sm:$0xff] %vm3866, 0.0
      %3882 = vst.msk [vmem:[#allocation2 + $0x78] sm:$0xff] %vm3866, 0.0
      %3883 = vst.msk [vmem:[#allocation2 + $0x80] sm:$0xff] %vm3866, 0.0
      %3884 = vst.msk [vmem:[#allocation2 + $0x88] sm:$0xff] %vm3866, 0.0
      %3885 = vst.msk [vmem:[#allocation2 + $0x90] sm:$0xff] %vm3866, 0.0
      %3886 = vst.msk [vmem:[#allocation2 + $0x98] sm:$0xff] %vm3866, 0.0
      %3887 = vst.msk [vmem:[#allocation2 + $0xa0] sm:$0xff] %vm3866, 0.0
      %3888 = vst.msk [vmem:[#allocation2 + $0xa8] sm:$0xff] %vm3866, 0.0
      %3889 = vst.msk [vmem:[#allocation2 + $0xb0] sm:$0xff] %vm3866, 0.0
      %3890 = vst.msk [vmem:[#allocation2 + $0xb8] sm:$0xff] %vm3866, 0.0
      %3891 = vst.msk [vmem:[#allocation2 + $0xc0] sm:$0xff] %vm3866, 0.0
      %3892 = vst.msk [vmem:[#allocation2 + $0xc8] sm:$0xff] %vm3866, 0.0
      %3893 = vst.msk [vmem:[#allocation2 + $0xd0] sm:$0xff] %vm3866, 0.0
      %3894 = vst.msk [vmem:[#allocation2 + $0xd8] sm:$0xff] %vm3866, 0.0
      %3895 = vst.msk [vmem:[#allocation2 + $0xe0] sm:$0xff] %vm3866, 0.0
      %3896 = vst.msk [vmem:[#allocation2 + $0xe8] sm:$0xff] %vm3866, 0.0
      %3897 = vst.msk [vmem:[#allocation2 + $0xf0] sm:$0xff] %vm3866, 0.0
      %3898 = vst.msk [vmem:[#allocation2 + $0xf8] sm:$0xff] %vm3866, 0.0
      %3899 = vst.msk [vmem:[#allocation2 + $0x100] sm:$0xff] %vm3866, 0.0
      %3900 = vst.msk [vmem:[#allocation2 + $0x108] sm:$0xff] %vm3866, 0.0
      %3901 = vst.msk [vmem:[#allocation2 + $0x110] sm:$0xff] %vm3866, 0.0
      %3902 = vst.msk [vmem:[#allocation2 + $0x118] sm:$0xff] %vm3866, 0.0
      %3903 = vst.msk [vmem:[#allocation2 + $0x120] sm:$0xff] %vm3866, 0.0
      %3904 = vst.msk [vmem:[#allocation2 + $0x128] sm:$0xff] %vm3866, 0.0
      %3905 = vst.msk [vmem:[#allocation2 + $0x130] sm:$0xff] %vm3866, 0.0
      %3906 = vst.msk [vmem:[#allocation2 + $0x138] sm:$0xff] %vm3866, 0.0
      %3907 = vst.msk [vmem:[#allocation2 + $0x140] sm:$0xff] %vm3866, 0.0
      %3908 = vst.msk [vmem:[#allocation2 + $0x148] sm:$0xff] %vm3866, 0.0
      %3909 = vst.msk [vmem:[#allocation3] sm:$0xff] %vm3866, 0.0
      %3910 = vst.msk [vmem:[#allocation3 + $0x8] sm:$0xff] %vm3866, 0.0
      %3911 = vst.msk [vmem:[#allocation3 + $0x10] sm:$0xff] %vm3866, 0.0
      %3912 = vst.msk [vmem:[#allocation3 + $0x18] sm:$0xff] %vm3866, 0.0
      %3913 = vst.msk [vmem:[#allocation3 + $0x20] sm:$0xff] %vm3866, 0.0
      %3914 = vst.msk [vmem:[#allocation3 + $0x28] sm:$0xff] %vm3866, 0.0
      %3915 = vst.msk [vmem:[#allocation3 + $0x30] sm:$0xff] %vm3866, 0.0
      %3916 = vst.msk [vmem:[#allocation3 + $0x38] sm:$0xff] %vm3866, 0.0
      %3917 = vst.msk [vmem:[#allocation3 + $0x40] sm:$0xff] %vm3866, 0.0
      %3918 = vst.msk [vmem:[#allocation3 + $0x48] sm:$0xff] %vm3866, 0.0
      %3919 = vst.msk [vmem:[#allocation3 + $0x50] sm:$0xff] %vm3866, 0.0
      %3920 = vst.msk [vmem:[#allocation3 + $0x58] sm:$0xff] %vm3866, 0.0
      %3921 = vst.msk [vmem:[#allocation3 + $0x60] sm:$0xff] %vm3866, 0.0
      %3922 = vst.msk [vmem:[#allocation3 + $0x68] sm:$0xff] %vm3866, 0.0
      %3923 = vst.msk [vmem:[#allocation3 + $0x70] sm:$0xff] %vm3866, 0.0
      %3924 = vst.msk [vmem:[#allocation3 + $0x78] sm:$0xff] %vm3866, 0.0
      %3925 = vst.msk [vmem:[#allocation3 + $0x80] sm:$0xff] %vm3866, 0.0
      %3926 = vst.msk [vmem:[#allocation3 + $0x88] sm:$0xff] %vm3866, 0.0
      %3927 = vst.msk [vmem:[#allocation3 + $0x90] sm:$0xff] %vm3866, 0.0
      %3928 = vst.msk [vmem:[#allocation3 + $0x98] sm:$0xff] %vm3866, 0.0
      %3929 = vst.msk [vmem:[#allocation3 + $0xa0] sm:$0xff] %vm3866, 0.0
      %3930 = vst.msk [vmem:[#allocation3 + $0xa8] sm:$0xff] %vm3866, 0.0
      %3931 = vst.msk [vmem:[#allocation3 + $0xb0] sm:$0xff] %vm3866, 0.0
      %3932 = vst.msk [vmem:[#allocation3 + $0xb8] sm:$0xff] %vm3866, 0.0
      %3933 = vst.msk [vmem:[#allocation3 + $0xc0] sm:$0xff] %vm3866, 0.0
      %3934 = vst.msk [vmem:[#allocation3 + $0xc8] sm:$0xff] %vm3866, 0.0
      %3935 = vst.msk [vmem:[#allocation3 + $0xd0] sm:$0xff] %vm3866, 0.0
      %3936 = vst.msk [vmem:[#allocation3 + $0xd8] sm:$0xff] %vm3866, 0.0
      %3937 = vst.msk [vmem:[#allocation3 + $0xe0] sm:$0xff] %vm3866, 0.0
      %3938 = vst.msk [vmem:[#allocation3 + $0xe8] sm:$0xff] %vm3866, 0.0
      %3939 = vst.msk [vmem:[#allocation3 + $0xf0] sm:$0xff] %vm3866, 0.0
      %3940 = vst.msk [vmem:[#allocation3 + $0xf8] sm:$0xff] %vm3866, 0.0
      %3941 = vst.msk [vmem:[#allocation3 + $0x100] sm:$0xff] %vm3866, 0.0
      %3942 = vst.msk [vmem:[#allocation3 + $0x108] sm:$0xff] %vm3866, 0.0
      %3943 = vst.msk [vmem:[#allocation3 + $0x110] sm:$0xff] %vm3866, 0.0
      %3944 = vst.msk [vmem:[#allocation3 + $0x118] sm:$0xff] %vm3866, 0.0
      %3945 = vst.msk [vmem:[#allocation3 + $0x120] sm:$0xff] %vm3866, 0.0
      %3946 = vst.msk [vmem:[#allocation3 + $0x128] sm:$0xff] %vm3866, 0.0
      %3947 = vst.msk [vmem:[#allocation3 + $0x130] sm:$0xff] %vm3866, 0.0
      %3948 = vst.msk [vmem:[#allocation3 + $0x138] sm:$0xff] %vm3866, 0.0
      %3949 = vst.msk [vmem:[#allocation3 + $0x140] sm:$0xff] %vm3866, 0.0
      %3950 = vst.msk [vmem:[#allocation3 + $0x148] sm:$0xff] %vm3866, 0.0
      %3951 = vst.msk [vmem:[#allocation2 + $0x18] sm:$0xff] %vm3866, %v3830
      %3952 = vst.msk [vmem:[#allocation2 + $0x20] sm:$0xff] %vm3866, %v3831
      %3953 = vst.msk [vmem:[#allocation2 + $0x28] sm:$0xff] %vm3866, %v3832
      %3954 = vst.msk [vmem:[#allocation2 + $0x30] sm:$0xff] %vm3866, %v3833
      %3955 = vst.msk [vmem:[#allocation2 + $0x38] sm:$0xff] %vm3866, %v3834
      %3956 = vst.msk [vmem:[#allocation2 + $0x40] sm:$0xff] %vm3866, %v3835
      %3957 = vst.msk [vmem:[#allocation2 + $0x48] sm:$0xff] %vm3866, %v3836
      %3958 = vst.msk [vmem:[#allocation2 + $0x50] sm:$0xff] %vm3866, %v3837
      %3959 = vst.msk [vmem:[#allocation2 + $0x58] sm:$0xff] %vm3866, %v3838
      %3960 = vst.msk [vmem:[#allocation2 + $0x60] sm:$0xff] %vm3866, %v3839
      %3961 = vst.msk [vmem:[#allocation2 + $0x68] sm:$0xff] %vm3866, %v3840
      %3962 = vst.msk [vmem:[#allocation2 + $0x70] sm:$0xff] %vm3866, %v3841
      %3963 = vst.msk [vmem:[#allocation2 + $0x78] sm:$0xff] %vm3866, %v3842
      %3964 = vst.msk [vmem:[#allocation2 + $0x80] sm:$0xff] %vm3866, %v3843
      %3965 = vst.msk [vmem:[#allocation2 + $0x88] sm:$0xff] %vm3866, %v3844
      %3966 = vst.msk [vmem:[#allocation2 + $0x90] sm:$0xff] %vm3866, %v3845
      %3967 = vst.msk [vmem:[#allocation2 + $0x98] sm:$0xff] %vm3866, %v3846
      %3968 = vst.msk [vmem:[#allocation2 + $0xa0] sm:$0xff] %vm3866, %v3847
      %3969 = vst.msk [vmem:[#allocation2 + $0xa8] sm:$0xff] %vm3866, %v3848
      %3970 = vst.msk [vmem:[#allocation2 + $0xb0] sm:$0xff] %vm3866, %v3849
      %3971 = vst.msk [vmem:[#allocation2 + $0xb8] sm:$0xff] %vm3866, %v3850
      %3972 = vst.msk [vmem:[#allocation2 + $0xc0] sm:$0xff] %vm3866, %v3851
      %3973 = vst.msk [vmem:[#allocation2 + $0xc8] sm:$0xff] %vm3866, %v3852
      %3974 = vst.msk [vmem:[#allocation2 + $0xd0] sm:$0xff] %vm3866, %v3853
      %3975 = vst.msk [vmem:[#allocation2 + $0xd8] sm:$0xff] %vm3866, %v3854
      %3976 = vst.msk [vmem:[#allocation2 + $0xe0] sm:$0xff] %vm3866, %v3855
      %3977 = vst.msk [vmem:[#allocation2 + $0xe8] sm:$0xff] %vm3866, %v3856
      %3978 = vst.msk [vmem:[#allocation2 + $0xf0] sm:$0xff] %vm3866, %v3857
      %3979 = vst.msk [vmem:[#allocation2 + $0xf8] sm:$0xff] %vm3866, %v3858
      %3980 = vst.msk [vmem:[#allocation2 + $0x100] sm:$0xff] %vm3866, %v3859
      %3981 = vst.msk [vmem:[#allocation2 + $0x108] sm:$0xff] %vm3866, %v3860
      %3982 = vst.msk [vmem:[#allocation2 + $0x110] sm:$0xff] %vm3866, %v3861
      %3983 = vst.msk [vmem:[#allocation2 + $0x118] sm:$0xff] %vm3866, %v3862
      %3984 = vst.msk [vmem:[#allocation2 + $0x120] sm:$0xff] %vm3866, %v3863
      %3985 = vst.msk [vmem:[#allocation2 + $0x128] sm:$0xff] %vm3866, %v3864
      %3986 = vst.msk [vmem:[#allocation2 + $0x130] sm:$0xff] %vm3866, %v3865
      %v3987 = vld [vmem:[%s4] sm:$0x1]
      %v3989 = vperm.slane %v3987, 0
      %v3991 = vld [vmem:[#allocation2 + $0x5] sm:$0xff]
      %v3992 = vld [vmem:[#allocation2 + $0xd] sm:$0xff]
      %v3993 = vld [vmem:[#allocation2 + $0x15] sm:$0xff]
      %v3994 = vld [vmem:[#allocation2 + $0x1d] sm:$0xff]
      %v3995 = vld [vmem:[#allocation2 + $0x25] sm:$0xff]
      %v3996 = vld [vmem:[#allocation2 + $0x2d] sm:$0xff]
      %v3997 = vld [vmem:[#allocation2 + $0x35] sm:$0xff]
      %v3998 = vld [vmem:[#allocation2 + $0x3d] sm:$0xff]
      %v3999 = vld [vmem:[#allocation2 + $0x45] sm:$0xff]
      %v4000 = vld [vmem:[#allocation2 + $0x4d] sm:$0xff]
      %v4001 = vld [vmem:[#allocation2 + $0x55] sm:$0xff]
      %v4002 = vld [vmem:[#allocation2 + $0x5d] sm:$0xff]
      %v4003 = vld [vmem:[#allocation2 + $0x65] sm:$0xff]
      %v4004 = vld [vmem:[#allocation2 + $0x6d] sm:$0xff]
      %v4005 = vld [vmem:[#allocation2 + $0x75] sm:$0xff]
      %v4006 = vld [vmem:[#allocation2 + $0x7d] sm:$0xff]
      %v4007 = vld [vmem:[#allocation2 + $0x85] sm:$0xff]
      %v4008 = vld [vmem:[#allocation2 + $0x8d] sm:$0xff]
      %v4009 = vld [vmem:[#allocation2 + $0x95] sm:$0xff]
      %v4010 = vld [vmem:[#allocation2 + $0x9d] sm:$0xff]
      %v4011 = vld [vmem:[#allocation2 + $0xa5] sm:$0xff]
      %v4012 = vld [vmem:[#allocation2 + $0xad] sm:$0xff]
      %v4013 = vld [vmem:[#allocation2 + $0xb5] sm:$0xff]
      %v4014 = vld [vmem:[#allocation2 + $0xbd] sm:$0xff]
      %v4015 = vld [vmem:[#allocation2 + $0xc5] sm:$0xff]
      %v4016 = vld [vmem:[#allocation2 + $0xcd] sm:$0xff]
      %v4017 = vld [vmem:[#allocation2 + $0xd5] sm:$0xff]
      %v4018 = vld [vmem:[#allocation2 + $0xdd] sm:$0xff]
      %v4019 = vld [vmem:[#allocation2 + $0xe5] sm:$0xff]
      %v4020 = vld [vmem:[#allocation2 + $0xed] sm:$0xff]
      %v4021 = vld [vmem:[#allocation2 + $0xf5] sm:$0xff]
      %v4022 = vld [vmem:[#allocation2 + $0xfd] sm:$0xff]
      %v4023 = vld [vmem:[#allocation2 + $0x105] sm:$0xff]
      %v4024 = vld [vmem:[#allocation2 + $0x10d] sm:$0xff]
      %v4025 = vld [vmem:[#allocation2 + $0x115] sm:$0xff]
      %v4026 = vld [vmem:[#allocation2 + $0x11d] sm:$0xff]
      %v4027 = vpack.c.bf16 %v3992, %v3991
      %v4028 = vpack.c.bf16 %v3994, %v3993
      %v4029 = vpack.c.bf16 %v3996, %v3995
      %v4030 = vpack.c.bf16 %v3998, %v3997
      %v4031 = vpack.c.bf16 %v4000, %v3999
      %v4032 = vpack.c.bf16 %v4002, %v4001
      %v4033 = vpack.c.bf16 %v4004, %v4003
      %v4034 = vpack.c.bf16 %v4006, %v4005
      %v4035 = vpack.c.bf16 %v4008, %v4007
      %v4036 = vpack.c.bf16 %v4010, %v4009
      %v4037 = vpack.c.bf16 %v4012, %v4011
      %v4038 = vpack.c.bf16 %v4014, %v4013
      %v4039 = vpack.c.bf16 %v4016, %v4015
      %v4040 = vpack.c.bf16 %v4018, %v4017
      %v4041 = vpack.c.bf16 %v4020, %v4019
      %v4042 = vpack.c.bf16 %v4022, %v4021
      %v4043 = vpack.c.bf16 %v4024, %v4023
      %v4044 = vpack.c.bf16 %v4026, %v4025
      %v4045 = vld [vmem:[%s3] sm:$0xf]
      %v4046 = vld [vmem:[%s3 + $0x4] sm:$0xf]
      %v4047 = vld [vmem:[%s3 + $0x8] sm:$0xf]
      %v4048 = vld [vmem:[%s3 + $0xc] sm:$0xf]
      %v4053 = vunpack.c.l.b16 %v4045
      %v4054 = vunpack.c.l.b16 %v4046
      %v4055 = vunpack.c.l.b16 %v4047
      %v4056 = vunpack.c.l.b16 %v4048
      %v4057 = vpack.c.b16 %v4054, %v4053
      %v4058 = vpack.c.b16 %v4056, %v4055
      %v4062 = vsel %vm3866, %v4027, 0
      %v4065 = vsel %vm3866, %v4028, 0
      %v4068 = vsel %vm3866, %v4029, 0
      %v4071 = vsel %vm3866, %v4030, 0
      %v4074 = vsel %vm3866, %v4031, 0
      %v4077 = vsel %vm3866, %v4032, 0
      %v4080 = vsel %vm3866, %v4033, 0
      %v4083 = vsel %vm3866, %v4034, 0
      %v4086 = vsel %vm3866, %v4035, 0
      %v4089 = vsel %vm3866, %v4036, 0
      %v4092 = vsel %vm3866, %v4037, 0
      %v4095 = vsel %vm3866, %v4038, 0
      %v4098 = vsel %vm3866, %v4039, 0
      %v4101 = vsel %vm3866, %v4040, 0
      %v4104 = vsel %vm3866, %v4041, 0
      %v4107 = vsel %vm3866, %v4042, 0
      %v4110 = vsel %vm3866, %v4043, 0
      %v4113 = vsel %vm3866, %v4044, 0
      %4115 = vmatpush.bf16.msra.mxu0 0
      %4116 = vmatpush.bf16.msra.mxu0 0
      %4117 = vmatpush.bf16.msra.mxu0 0
      %4118 = vmatpush.bf16.msra.mxu0 0
      %4119 = vmatpush.bf16.msra.mxu0 0
      %4120 = vmatpush.bf16.msra.mxu0 0
      %4121 = vmatpush.bf16.msra.mxu0 %v4058
      %4122 = vmatpush.bf16.msra.mxu0 %v4057
      %4123 = vmatmul.bf16.gmra.mxu0 %v4062
      %v4124 = vpop.f32.mrf.mxu0
      %v4125 = vadd.f32 0.0, %v4124
      %v4126 = vpop.f32.mrf.mxu0
      %v4127 = vadd.f32 0.0, %v4126
      %4128 = vmatmul.bf16.gmra.mxu0 %v4065
      %v4129 = vpop.f32.mrf.mxu0
      %v4130 = vadd.f32 0.0, %v4129
      %v4131 = vpop.f32.mrf.mxu0
      %v4132 = vadd.f32 0.0, %v4131
      %4133 = vmatmul.bf16.gmra.mxu0 %v4068
      %v4134 = vpop.f32.mrf.mxu0
      %v4135 = vadd.f32 0.0, %v4134
      %v4136 = vpop.f32.mrf.mxu0
      %v4137 = vadd.f32 0.0, %v4136
      %4138 = vmatmul.bf16.gmra.mxu0 %v4071
      %v4139 = vpop.f32.mrf.mxu0
      %v4140 = vadd.f32 0.0, %v4139
      %v4141 = vpop.f32.mrf.mxu0
      %v4142 = vadd.f32 0.0, %v4141
      %4143 = vmatmul.bf16.gmra.mxu0 %v4074
      %v4144 = vpop.f32.mrf.mxu0
      %v4145 = vadd.f32 0.0, %v4144
      %v4146 = vpop.f32.mrf.mxu0
      %v4147 = vadd.f32 0.0, %v4146
      %4148 = vmatmul.bf16.gmra.mxu0 %v4077
      %v4149 = vpop.f32.mrf.mxu0
      %v4150 = vadd.f32 0.0, %v4149
      %v4151 = vpop.f32.mrf.mxu0
      %v4152 = vadd.f32 0.0, %v4151
      %4153 = vmatmul.bf16.gmra.mxu0 %v4080
      %v4154 = vpop.f32.mrf.mxu0
      %v4155 = vadd.f32 0.0, %v4154
      %v4156 = vpop.f32.mrf.mxu0
      %v4157 = vadd.f32 0.0, %v4156
      %4158 = vmatmul.bf16.gmra.mxu0 %v4083
      %v4159 = vpop.f32.mrf.mxu0
      %v4160 = vadd.f32 0.0, %v4159
      %v4161 = vpop.f32.mrf.mxu0
      %v4162 = vadd.f32 0.0, %v4161
      %4163 = vmatmul.bf16.gmra.mxu0 %v4086
      %v4164 = vpop.f32.mrf.mxu0
      %v4165 = vadd.f32 0.0, %v4164
      %v4166 = vpop.f32.mrf.mxu0
      %v4167 = vadd.f32 0.0, %v4166
      %4168 = vmatmul.bf16.gmra.mxu0 %v4089
      %v4169 = vpop.f32.mrf.mxu0
      %v4170 = vadd.f32 0.0, %v4169
      %v4171 = vpop.f32.mrf.mxu0
      %v4172 = vadd.f32 0.0, %v4171
      %4173 = vmatmul.bf16.gmra.mxu0 %v4092
      %v4174 = vpop.f32.mrf.mxu0
      %v4175 = vadd.f32 0.0, %v4174
      %v4176 = vpop.f32.mrf.mxu0
      %v4177 = vadd.f32 0.0, %v4176
      %4178 = vmatmul.bf16.gmra.mxu0 %v4095
      %v4179 = vpop.f32.mrf.mxu0
      %v4180 = vadd.f32 0.0, %v4179
      %v4181 = vpop.f32.mrf.mxu0
      %v4182 = vadd.f32 0.0, %v4181
      %4183 = vmatmul.bf16.gmra.mxu0 %v4098
      %v4184 = vpop.f32.mrf.mxu0
      %v4185 = vadd.f32 0.0, %v4184
      %v4186 = vpop.f32.mrf.mxu0
      %v4187 = vadd.f32 0.0, %v4186
      %4188 = vmatmul.bf16.gmra.mxu0 %v4101
      %v4189 = vpop.f32.mrf.mxu0
      %v4190 = vadd.f32 0.0, %v4189
      %v4191 = vpop.f32.mrf.mxu0
      %v4192 = vadd.f32 0.0, %v4191
      %4193 = vmatmul.bf16.gmra.mxu0 %v4104
      %v4194 = vpop.f32.mrf.mxu0
      %v4195 = vadd.f32 0.0, %v4194
      %v4196 = vpop.f32.mrf.mxu0
      %v4197 = vadd.f32 0.0, %v4196
      %4198 = vmatmul.bf16.gmra.mxu0 %v4107
      %v4199 = vpop.f32.mrf.mxu0
      %v4200 = vadd.f32 0.0, %v4199
      %v4201 = vpop.f32.mrf.mxu0
      %v4202 = vadd.f32 0.0, %v4201
      %4203 = vmatmul.bf16.gmra.mxu0 %v4110
      %v4204 = vpop.f32.mrf.mxu0
      %v4205 = vadd.f32 0.0, %v4204
      %v4206 = vpop.f32.mrf.mxu0
      %v4207 = vadd.f32 0.0, %v4206
      %4208 = vmatmul.bf16.gmra.mxu0 %v4113
      %v4209 = vpop.f32.mrf.mxu0
      %v4210 = vadd.f32 0.0, %v4209
      %v4211 = vpop.f32.mrf.mxu0
      %v4212 = vadd.f32 0.0, %v4211
      %4213 = vdwg.mxu0
      %v4214 = vadd.f32 %v3989, %v4125
      %v4215 = vadd.f32 %v3989, %v4127
      %v4216 = vadd.f32 %v3989, %v4130
      %v4217 = vadd.f32 %v3989, %v4132
      %v4218 = vadd.f32 %v3989, %v4135
      %v4219 = vadd.f32 %v3989, %v4137
      %v4220 = vadd.f32 %v3989, %v4140
      %v4221 = vadd.f32 %v3989, %v4142
      %v4222 = vadd.f32 %v3989, %v4145
      %v4223 = vadd.f32 %v3989, %v4147
      %v4224 = vadd.f32 %v3989, %v4150
      %v4225 = vadd.f32 %v3989, %v4152
      %v4226 = vadd.f32 %v3989, %v4155
      %v4227 = vadd.f32 %v3989, %v4157
      %v4228 = vadd.f32 %v3989, %v4160
      %v4229 = vadd.f32 %v3989, %v4162
      %v4230 = vadd.f32 %v3989, %v4165
      %v4231 = vadd.f32 %v3989, %v4167
      %v4232 = vadd.f32 %v3989, %v4170
      %v4233 = vadd.f32 %v3989, %v4172
      %v4234 = vadd.f32 %v3989, %v4175
      %v4235 = vadd.f32 %v3989, %v4177
      %v4236 = vadd.f32 %v3989, %v4180
      %v4237 = vadd.f32 %v3989, %v4182
      %v4238 = vadd.f32 %v3989, %v4185
      %v4239 = vadd.f32 %v3989, %v4187
      %v4240 = vadd.f32 %v3989, %v4190
      %v4241 = vadd.f32 %v3989, %v4192
      %v4242 = vadd.f32 %v3989, %v4195
      %v4243 = vadd.f32 %v3989, %v4197
      %v4244 = vadd.f32 %v3989, %v4200
      %v4245 = vadd.f32 %v3989, %v4202
      %v4246 = vadd.f32 %v3989, %v4205
      %v4247 = vadd.f32 %v3989, %v4207
      %v4248 = vadd.f32 %v3989, %v4210
      %v4249 = vadd.f32 %v3989, %v4212
      %v4250 = vld [vmem:[#allocation2 + $0x6] sm:$0xff]
      %v4251 = vld [vmem:[#allocation2 + $0xe] sm:$0xff]
      %v4252 = vld [vmem:[#allocation2 + $0x16] sm:$0xff]
      %v4253 = vld [vmem:[#allocation2 + $0x1e] sm:$0xff]
      %v4254 = vld [vmem:[#allocation2 + $0x26] sm:$0xff]
      %v4255 = vld [vmem:[#allocation2 + $0x2e] sm:$0xff]
      %v4256 = vld [vmem:[#allocation2 + $0x36] sm:$0xff]
      %v4257 = vld [vmem:[#allocation2 + $0x3e] sm:$0xff]
      %v4258 = vld [vmem:[#allocation2 + $0x46] sm:$0xff]
      %v4259 = vld [vmem:[#allocation2 + $0x4e] sm:$0xff]
      %v4260 = vld [vmem:[#allocation2 + $0x56] sm:$0xff]
      %v4261 = vld [vmem:[#allocation2 + $0x5e] sm:$0xff]
      %v4262 = vld [vmem:[#allocation2 + $0x66] sm:$0xff]
      %v4263 = vld [vmem:[#allocation2 + $0x6e] sm:$0xff]
      %v4264 = vld [vmem:[#allocation2 + $0x76] sm:$0xff]
      %v4265 = vld [vmem:[#allocation2 + $0x7e] sm:$0xff]
      %v4266 = vld [vmem:[#allocation2 + $0x86] sm:$0xff]
      %v4267 = vld [vmem:[#allocation2 + $0x8e] sm:$0xff]
      %v4268 = vld [vmem:[#allocation2 + $0x96] sm:$0xff]
      %v4269 = vld [vmem:[#allocation2 + $0x9e] sm:$0xff]
      %v4270 = vld [vmem:[#allocation2 + $0xa6] sm:$0xff]
      %v4271 = vld [vmem:[#allocation2 + $0xae] sm:$0xff]
      %v4272 = vld [vmem:[#allocation2 + $0xb6] sm:$0xff]
      %v4273 = vld [vmem:[#allocation2 + $0xbe] sm:$0xff]
      %v4274 = vld [vmem:[#allocation2 + $0xc6] sm:$0xff]
      %v4275 = vld [vmem:[#allocation2 + $0xce] sm:$0xff]
      %v4276 = vld [vmem:[#allocation2 + $0xd6] sm:$0xff]
      %v4277 = vld [vmem:[#allocation2 + $0xde] sm:$0xff]
      %v4278 = vld [vmem:[#allocation2 + $0xe6] sm:$0xff]
      %v4279 = vld [vmem:[#allocation2 + $0xee] sm:$0xff]
      %v4280 = vld [vmem:[#allocation2 + $0xf6] sm:$0xff]
      %v4281 = vld [vmem:[#allocation2 + $0xfe] sm:$0xff]
      %v4282 = vld [vmem:[#allocation2 + $0x106] sm:$0xff]
      %v4283 = vld [vmem:[#allocation2 + $0x10e] sm:$0xff]
      %v4284 = vld [vmem:[#allocation2 + $0x116] sm:$0xff]
      %v4285 = vld [vmem:[#allocation2 + $0x11e] sm:$0xff]
      %v4286 = vpack.c.bf16 %v4251, %v4250
      %v4287 = vpack.c.bf16 %v4253, %v4252
      %v4288 = vpack.c.bf16 %v4255, %v4254
      %v4289 = vpack.c.bf16 %v4257, %v4256
      %v4290 = vpack.c.bf16 %v4259, %v4258
      %v4291 = vpack.c.bf16 %v4261, %v4260
      %v4292 = vpack.c.bf16 %v4263, %v4262
      %v4293 = vpack.c.bf16 %v4265, %v4264
      %v4294 = vpack.c.bf16 %v4267, %v4266
      %v4295 = vpack.c.bf16 %v4269, %v4268
      %v4296 = vpack.c.bf16 %v4271, %v4270
      %v4297 = vpack.c.bf16 %v4273, %v4272
      %v4298 = vpack.c.bf16 %v4275, %v4274
      %v4299 = vpack.c.bf16 %v4277, %v4276
      %v4300 = vpack.c.bf16 %v4279, %v4278
      %v4301 = vpack.c.bf16 %v4281, %v4280
      %v4302 = vpack.c.bf16 %v4283, %v4282
      %v4303 = vpack.c.bf16 %v4285, %v4284
      %s4304 = scalar_lea.vmem %s3, 16
      %v4305 = vld [vmem:[%s4304] sm:$0xf]
      %v4306 = vld [vmem:[%s4304 + $0x4] sm:$0xf]
      %v4307 = vld [vmem:[%s4304 + $0x8] sm:$0xf]
      %v4308 = vld [vmem:[%s4304 + $0xc] sm:$0xf]
      %v4313 = vunpack.c.l.b16 %v4305
      %v4314 = vunpack.c.l.b16 %v4306
      %v4315 = vunpack.c.l.b16 %v4307
      %v4316 = vunpack.c.l.b16 %v4308
      %v4317 = vpack.c.b16 %v4314, %v4313
      %v4318 = vpack.c.b16 %v4316, %v4315
      %v4322 = vsel %vm3866, %v4286, 0
      %v4325 = vsel %vm3866, %v4287, 0
      %v4328 = vsel %vm3866, %v4288, 0
      %v4331 = vsel %vm3866, %v4289, 0
      %v4334 = vsel %vm3866, %v4290, 0
      %v4337 = vsel %vm3866, %v4291, 0
      %v4340 = vsel %vm3866, %v4292, 0
      %v4343 = vsel %vm3866, %v4293, 0
      %v4346 = vsel %vm3866, %v4294, 0
      %v4349 = vsel %vm3866, %v4295, 0
      %v4352 = vsel %vm3866, %v4296, 0
      %v4355 = vsel %vm3866, %v4297, 0
      %v4358 = vsel %vm3866, %v4298, 0
      %v4361 = vsel %vm3866, %v4299, 0
      %v4364 = vsel %vm3866, %v4300, 0
      %v4367 = vsel %vm3866, %v4301, 0
      %v4370 = vsel %vm3866, %v4302, 0
      %v4373 = vsel %vm3866, %v4303, 0
      %4375 = vmatpush.bf16.msra.mxu0 0
      %4376 = vmatpush.bf16.msra.mxu0 0
      %4377 = vmatpush.bf16.msra.mxu0 0
      %4378 = vmatpush.bf16.msra.mxu0 0
      %4379 = vmatpush.bf16.msra.mxu0 0
      %4380 = vmatpush.bf16.msra.mxu0 0
      %4381 = vmatpush.bf16.msra.mxu0 %v4318
      %4382 = vmatpush.bf16.msra.mxu0 %v4317
      %4383 = vmatmul.bf16.gmra.mxu0 %v4322
      %v4384 = vpop.f32.mrf.mxu0
      %v4385 = vadd.f32 0.0, %v4384
      %v4386 = vpop.f32.mrf.mxu0
      %v4387 = vadd.f32 0.0, %v4386
      %4388 = vmatmul.bf16.gmra.mxu0 %v4325
      %v4389 = vpop.f32.mrf.mxu0
      %v4390 = vadd.f32 0.0, %v4389
      %v4391 = vpop.f32.mrf.mxu0
      %v4392 = vadd.f32 0.0, %v4391
      %4393 = vmatmul.bf16.gmra.mxu0 %v4328
      %v4394 = vpop.f32.mrf.mxu0
      %v4395 = vadd.f32 0.0, %v4394
      %v4396 = vpop.f32.mrf.mxu0
      %v4397 = vadd.f32 0.0, %v4396
      %4398 = vmatmul.bf16.gmra.mxu0 %v4331
      %v4399 = vpop.f32.mrf.mxu0
      %v4400 = vadd.f32 0.0, %v4399
      %v4401 = vpop.f32.mrf.mxu0
      %v4402 = vadd.f32 0.0, %v4401
      %4403 = vmatmul.bf16.gmra.mxu0 %v4334
      %v4404 = vpop.f32.mrf.mxu0
      %v4405 = vadd.f32 0.0, %v4404
      %v4406 = vpop.f32.mrf.mxu0
      %v4407 = vadd.f32 0.0, %v4406
      %4408 = vmatmul.bf16.gmra.mxu0 %v4337
      %v4409 = vpop.f32.mrf.mxu0
      %v4410 = vadd.f32 0.0, %v4409
      %v4411 = vpop.f32.mrf.mxu0
      %v4412 = vadd.f32 0.0, %v4411
      %4413 = vmatmul.bf16.gmra.mxu0 %v4340
      %v4414 = vpop.f32.mrf.mxu0
      %v4415 = vadd.f32 0.0, %v4414
      %v4416 = vpop.f32.mrf.mxu0
      %v4417 = vadd.f32 0.0, %v4416
      %4418 = vmatmul.bf16.gmra.mxu0 %v4343
      %v4419 = vpop.f32.mrf.mxu0
      %v4420 = vadd.f32 0.0, %v4419
      %v4421 = vpop.f32.mrf.mxu0
      %v4422 = vadd.f32 0.0, %v4421
      %4423 = vmatmul.bf16.gmra.mxu0 %v4346
      %v4424 = vpop.f32.mrf.mxu0
      %v4425 = vadd.f32 0.0, %v4424
      %v4426 = vpop.f32.mrf.mxu0
      %v4427 = vadd.f32 0.0, %v4426
      %4428 = vmatmul.bf16.gmra.mxu0 %v4349
      %v4429 = vpop.f32.mrf.mxu0
      %v4430 = vadd.f32 0.0, %v4429
      %v4431 = vpop.f32.mrf.mxu0
      %v4432 = vadd.f32 0.0, %v4431
      %4433 = vmatmul.bf16.gmra.mxu0 %v4352
      %v4434 = vpop.f32.mrf.mxu0
      %v4435 = vadd.f32 0.0, %v4434
      %v4436 = vpop.f32.mrf.mxu0
      %v4437 = vadd.f32 0.0, %v4436
      %4438 = vmatmul.bf16.gmra.mxu0 %v4355
      %v4439 = vpop.f32.mrf.mxu0
      %v4440 = vadd.f32 0.0, %v4439
      %v4441 = vpop.f32.mrf.mxu0
      %v4442 = vadd.f32 0.0, %v4441
      %4443 = vmatmul.bf16.gmra.mxu0 %v4358
      %v4444 = vpop.f32.mrf.mxu0
      %v4445 = vadd.f32 0.0, %v4444
      %v4446 = vpop.f32.mrf.mxu0
      %v4447 = vadd.f32 0.0, %v4446
      %4448 = vmatmul.bf16.gmra.mxu0 %v4361
      %v4449 = vpop.f32.mrf.mxu0
      %v4450 = vadd.f32 0.0, %v4449
      %v4451 = vpop.f32.mrf.mxu0
      %v4452 = vadd.f32 0.0, %v4451
      %4453 = vmatmul.bf16.gmra.mxu0 %v4364
      %v4454 = vpop.f32.mrf.mxu0
      %v4455 = vadd.f32 0.0, %v4454
      %v4456 = vpop.f32.mrf.mxu0
      %v4457 = vadd.f32 0.0, %v4456
      %4458 = vmatmul.bf16.gmra.mxu0 %v4367
      %v4459 = vpop.f32.mrf.mxu0
      %v4460 = vadd.f32 0.0, %v4459
      %v4461 = vpop.f32.mrf.mxu0
      %v4462 = vadd.f32 0.0, %v4461
      %4463 = vmatmul.bf16.gmra.mxu0 %v4370
      %v4464 = vpop.f32.mrf.mxu0
      %v4465 = vadd.f32 0.0, %v4464
      %v4466 = vpop.f32.mrf.mxu0
      %v4467 = vadd.f32 0.0, %v4466
      %4468 = vmatmul.bf16.gmra.mxu0 %v4373
      %v4469 = vpop.f32.mrf.mxu0
      %v4470 = vadd.f32 0.0, %v4469
      %v4471 = vpop.f32.mrf.mxu0
      %v4472 = vadd.f32 0.0, %v4471
      %4473 = vdwg.mxu0
      %v4474 = vadd.f32 %v4214, %v4385
      %v4475 = vadd.f32 %v4215, %v4387
      %v4476 = vadd.f32 %v4216, %v4390
      %v4477 = vadd.f32 %v4217, %v4392
      %v4478 = vadd.f32 %v4218, %v4395
      %v4479 = vadd.f32 %v4219, %v4397
      %v4480 = vadd.f32 %v4220, %v4400
      %v4481 = vadd.f32 %v4221, %v4402
      %v4482 = vadd.f32 %v4222, %v4405
      %v4483 = vadd.f32 %v4223, %v4407
      %v4484 = vadd.f32 %v4224, %v4410
      %v4485 = vadd.f32 %v4225, %v4412
      %v4486 = vadd.f32 %v4226, %v4415
      %v4487 = vadd.f32 %v4227, %v4417
      %v4488 = vadd.f32 %v4228, %v4420
      %v4489 = vadd.f32 %v4229, %v4422
      %v4490 = vadd.f32 %v4230, %v4425
      %v4491 = vadd.f32 %v4231, %v4427
      %v4492 = vadd.f32 %v4232, %v4430
      %v4493 = vadd.f32 %v4233, %v4432
      %v4494 = vadd.f32 %v4234, %v4435
      %v4495 = vadd.f32 %v4235, %v4437
      %v4496 = vadd.f32 %v4236, %v4440
      %v4497 = vadd.f32 %v4237, %v4442
      %v4498 = vadd.f32 %v4238, %v4445
      %v4499 = vadd.f32 %v4239, %v4447
      %v4500 = vadd.f32 %v4240, %v4450
      %v4501 = vadd.f32 %v4241, %v4452
      %v4502 = vadd.f32 %v4242, %v4455
      %v4503 = vadd.f32 %v4243, %v4457
      %v4504 = vadd.f32 %v4244, %v4460
      %v4505 = vadd.f32 %v4245, %v4462
      %v4506 = vadd.f32 %v4246, %v4465
      %v4507 = vadd.f32 %v4247, %v4467
      %v4508 = vadd.f32 %v4248, %v4470
      %v4509 = vadd.f32 %v4249, %v4472
      %v4510 = vld [vmem:[#allocation2 + $0x7] sm:$0xff]
      %v4511 = vld [vmem:[#allocation2 + $0xf] sm:$0xff]
      %v4512 = vld [vmem:[#allocation2 + $0x17] sm:$0xff]
      %v4513 = vld [vmem:[#allocation2 + $0x1f] sm:$0xff]
      %v4514 = vld [vmem:[#allocation2 + $0x27] sm:$0xff]
      %v4515 = vld [vmem:[#allocation2 + $0x2f] sm:$0xff]
      %v4516 = vld [vmem:[#allocation2 + $0x37] sm:$0xff]
      %v4517 = vld [vmem:[#allocation2 + $0x3f] sm:$0xff]
      %v4518 = vld [vmem:[#allocation2 + $0x47] sm:$0xff]
      %v4519 = vld [vmem:[#allocation2 + $0x4f] sm:$0xff]
      %v4520 = vld [vmem:[#allocation2 + $0x57] sm:$0xff]
      %v4521 = vld [vmem:[#allocation2 + $0x5f] sm:$0xff]
      %v4522 = vld [vmem:[#allocation2 + $0x67] sm:$0xff]
      %v4523 = vld [vmem:[#allocation2 + $0x6f] sm:$0xff]
      %v4524 = vld [vmem:[#allocation2 + $0x77] sm:$0xff]
      %v4525 = vld [vmem:[#allocation2 + $0x7f] sm:$0xff]
      %v4526 = vld [vmem:[#allocation2 + $0x87] sm:$0xff]
      %v4527 = vld [vmem:[#allocation2 + $0x8f] sm:$0xff]
      %v4528 = vld [vmem:[#allocation2 + $0x97] sm:$0xff]
      %v4529 = vld [vmem:[#allocation2 + $0x9f] sm:$0xff]
      %v4530 = vld [vmem:[#allocation2 + $0xa7] sm:$0xff]
      %v4531 = vld [vmem:[#allocation2 + $0xaf] sm:$0xff]
      %v4532 = vld [vmem:[#allocation2 + $0xb7] sm:$0xff]
      %v4533 = vld [vmem:[#allocation2 + $0xbf] sm:$0xff]
      %v4534 = vld [vmem:[#allocation2 + $0xc7] sm:$0xff]
      %v4535 = vld [vmem:[#allocation2 + $0xcf] sm:$0xff]
      %v4536 = vld [vmem:[#allocation2 + $0xd7] sm:$0xff]
      %v4537 = vld [vmem:[#allocation2 + $0xdf] sm:$0xff]
      %v4538 = vld [vmem:[#allocation2 + $0xe7] sm:$0xff]
      %v4539 = vld [vmem:[#allocation2 + $0xef] sm:$0xff]
      %v4540 = vld [vmem:[#allocation2 + $0xf7] sm:$0xff]
      %v4541 = vld [vmem:[#allocation2 + $0xff] sm:$0xff]
      %v4542 = vld [vmem:[#allocation2 + $0x107] sm:$0xff]
      %v4543 = vld [vmem:[#allocation2 + $0x10f] sm:$0xff]
      %v4544 = vld [vmem:[#allocation2 + $0x117] sm:$0xff]
      %v4545 = vld [vmem:[#allocation2 + $0x11f] sm:$0xff]
      %v4546 = vpack.c.bf16 %v4511, %v4510
      %v4547 = vpack.c.bf16 %v4513, %v4512
      %v4548 = vpack.c.bf16 %v4515, %v4514
      %v4549 = vpack.c.bf16 %v4517, %v4516
      %v4550 = vpack.c.bf16 %v4519, %v4518
      %v4551 = vpack.c.bf16 %v4521, %v4520
      %v4552 = vpack.c.bf16 %v4523, %v4522
      %v4553 = vpack.c.bf16 %v4525, %v4524
      %v4554 = vpack.c.bf16 %v4527, %v4526
      %v4555 = vpack.c.bf16 %v4529, %v4528
      %v4556 = vpack.c.bf16 %v4531, %v4530
      %v4557 = vpack.c.bf16 %v4533, %v4532
      %v4558 = vpack.c.bf16 %v4535, %v4534
      %v4559 = vpack.c.bf16 %v4537, %v4536
      %v4560 = vpack.c.bf16 %v4539, %v4538
      %v4561 = vpack.c.bf16 %v4541, %v4540
      %v4562 = vpack.c.bf16 %v4543, %v4542
      %v4563 = vpack.c.bf16 %v4545, %v4544
      %s4564 = scalar_lea.vmem %s3, 32
      %v4565 = vld [vmem:[%s4564] sm:$0xf]
      %v4566 = vld [vmem:[%s4564 + $0x4] sm:$0xf]
      %v4567 = vld [vmem:[%s4564 + $0x8] sm:$0xf]
      %v4568 = vld [vmem:[%s4564 + $0xc] sm:$0xf]
      %v4573 = vunpack.c.l.b16 %v4565
      %v4574 = vunpack.c.l.b16 %v4566
      %v4575 = vunpack.c.l.b16 %v4567
      %v4576 = vunpack.c.l.b16 %v4568
      %v4577 = vpack.c.b16 %v4574, %v4573
      %v4578 = vpack.c.b16 %v4576, %v4575
      %v4582 = vsel %vm3866, %v4546, 0
      %v4585 = vsel %vm3866, %v4547, 0
      %v4588 = vsel %vm3866, %v4548, 0
      %v4591 = vsel %vm3866, %v4549, 0
      %v4594 = vsel %vm3866, %v4550, 0
      %v4597 = vsel %vm3866, %v4551, 0
      %v4600 = vsel %vm3866, %v4552, 0
      %v4603 = vsel %vm3866, %v4553, 0
      %v4606 = vsel %vm3866, %v4554, 0
      %v4609 = vsel %vm3866, %v4555, 0
      %v4612 = vsel %vm3866, %v4556, 0
      %v4615 = vsel %vm3866, %v4557, 0
      %v4618 = vsel %vm3866, %v4558, 0
      %v4621 = vsel %vm3866, %v4559, 0
      %v4624 = vsel %vm3866, %v4560, 0
      %v4627 = vsel %vm3866, %v4561, 0
      %v4630 = vsel %vm3866, %v4562, 0
      %v4633 = vsel %vm3866, %v4563, 0
      %4635 = vmatpush.bf16.msra.mxu0 0
      %4636 = vmatpush.bf16.msra.mxu0 0
      %4637 = vmatpush.bf16.msra.mxu0 0
      %4638 = vmatpush.bf16.msra.mxu0 0
      %4639 = vmatpush.bf16.msra.mxu0 0
      %4640 = vmatpush.bf16.msra.mxu0 0
      %4641 = vmatpush.bf16.msra.mxu0 %v4578
      %4642 = vmatpush.bf16.msra.mxu0 %v4577
      %4643 = vmatmul.bf16.gmra.mxu0 %v4582
      %v4644 = vpop.f32.mrf.mxu0
      %v4645 = vadd.f32 0.0, %v4644
      %v4646 = vpop.f32.mrf.mxu0
      %v4647 = vadd.f32 0.0, %v4646
      %4648 = vmatmul.bf16.gmra.mxu0 %v4585
      %v4649 = vpop.f32.mrf.mxu0
      %v4650 = vadd.f32 0.0, %v4649
      %v4651 = vpop.f32.mrf.mxu0
      %v4652 = vadd.f32 0.0, %v4651
      %4653 = vmatmul.bf16.gmra.mxu0 %v4588
      %v4654 = vpop.f32.mrf.mxu0
      %v4655 = vadd.f32 0.0, %v4654
      %v4656 = vpop.f32.mrf.mxu0
      %v4657 = vadd.f32 0.0, %v4656
      %4658 = vmatmul.bf16.gmra.mxu0 %v4591
      %v4659 = vpop.f32.mrf.mxu0
      %v4660 = vadd.f32 0.0, %v4659
      %v4661 = vpop.f32.mrf.mxu0
      %v4662 = vadd.f32 0.0, %v4661
      %4663 = vmatmul.bf16.gmra.mxu0 %v4594
      %v4664 = vpop.f32.mrf.mxu0
      %v4665 = vadd.f32 0.0, %v4664
      %v4666 = vpop.f32.mrf.mxu0
      %v4667 = vadd.f32 0.0, %v4666
      %4668 = vmatmul.bf16.gmra.mxu0 %v4597
      %v4669 = vpop.f32.mrf.mxu0
      %v4670 = vadd.f32 0.0, %v4669
      %v4671 = vpop.f32.mrf.mxu0
      %v4672 = vadd.f32 0.0, %v4671
      %4673 = vmatmul.bf16.gmra.mxu0 %v4600
      %v4674 = vpop.f32.mrf.mxu0
      %v4675 = vadd.f32 0.0, %v4674
      %v4676 = vpop.f32.mrf.mxu0
      %v4677 = vadd.f32 0.0, %v4676
      %4678 = vmatmul.bf16.gmra.mxu0 %v4603
      %v4679 = vpop.f32.mrf.mxu0
      %v4680 = vadd.f32 0.0, %v4679
      %v4681 = vpop.f32.mrf.mxu0
      %v4682 = vadd.f32 0.0, %v4681
      %4683 = vmatmul.bf16.gmra.mxu0 %v4606
      %v4684 = vpop.f32.mrf.mxu0
      %v4685 = vadd.f32 0.0, %v4684
      %v4686 = vpop.f32.mrf.mxu0
      %v4687 = vadd.f32 0.0, %v4686
      %4688 = vmatmul.bf16.gmra.mxu0 %v4609
      %v4689 = vpop.f32.mrf.mxu0
      %v4690 = vadd.f32 0.0, %v4689
      %v4691 = vpop.f32.mrf.mxu0
      %v4692 = vadd.f32 0.0, %v4691
      %4693 = vmatmul.bf16.gmra.mxu0 %v4612
      %v4694 = vpop.f32.mrf.mxu0
      %v4695 = vadd.f32 0.0, %v4694
      %v4696 = vpop.f32.mrf.mxu0
      %v4697 = vadd.f32 0.0, %v4696
      %4698 = vmatmul.bf16.gmra.mxu0 %v4615
      %v4699 = vpop.f32.mrf.mxu0
      %v4700 = vadd.f32 0.0, %v4699
      %v4701 = vpop.f32.mrf.mxu0
      %v4702 = vadd.f32 0.0, %v4701
      %4703 = vmatmul.bf16.gmra.mxu0 %v4618
      %v4704 = vpop.f32.mrf.mxu0
      %v4705 = vadd.f32 0.0, %v4704
      %v4706 = vpop.f32.mrf.mxu0
      %v4707 = vadd.f32 0.0, %v4706
      %4708 = vmatmul.bf16.gmra.mxu0 %v4621
      %v4709 = vpop.f32.mrf.mxu0
      %v4710 = vadd.f32 0.0, %v4709
      %v4711 = vpop.f32.mrf.mxu0
      %v4712 = vadd.f32 0.0, %v4711
      %4713 = vmatmul.bf16.gmra.mxu0 %v4624
      %v4714 = vpop.f32.mrf.mxu0
      %v4715 = vadd.f32 0.0, %v4714
      %v4716 = vpop.f32.mrf.mxu0
      %v4717 = vadd.f32 0.0, %v4716
      %4718 = vmatmul.bf16.gmra.mxu0 %v4627
      %v4719 = vpop.f32.mrf.mxu0
      %v4720 = vadd.f32 0.0, %v4719
      %v4721 = vpop.f32.mrf.mxu0
      %v4722 = vadd.f32 0.0, %v4721
      %4723 = vmatmul.bf16.gmra.mxu0 %v4630
      %v4724 = vpop.f32.mrf.mxu0
      %v4725 = vadd.f32 0.0, %v4724
      %v4726 = vpop.f32.mrf.mxu0
      %v4727 = vadd.f32 0.0, %v4726
      %4728 = vmatmul.bf16.gmra.mxu0 %v4633
      %v4729 = vpop.f32.mrf.mxu0
      %v4730 = vadd.f32 0.0, %v4729
      %v4731 = vpop.f32.mrf.mxu0
      %v4732 = vadd.f32 0.0, %v4731
      %4733 = vdwg.mxu0
      %v4734 = vadd.f32 %v4474, %v4645
      %v4735 = vadd.f32 %v4475, %v4647
      %v4736 = vadd.f32 %v4476, %v4650
      %v4737 = vadd.f32 %v4477, %v4652
      %v4738 = vadd.f32 %v4478, %v4655
      %v4739 = vadd.f32 %v4479, %v4657
      %v4740 = vadd.f32 %v4480, %v4660
      %v4741 = vadd.f32 %v4481, %v4662
      %v4742 = vadd.f32 %v4482, %v4665
      %v4743 = vadd.f32 %v4483, %v4667
      %v4744 = vadd.f32 %v4484, %v4670
      %v4745 = vadd.f32 %v4485, %v4672
      %v4746 = vadd.f32 %v4486, %v4675
      %v4747 = vadd.f32 %v4487, %v4677
      %v4748 = vadd.f32 %v4488, %v4680
      %v4749 = vadd.f32 %v4489, %v4682
      %v4750 = vadd.f32 %v4490, %v4685
      %v4751 = vadd.f32 %v4491, %v4687
      %v4752 = vadd.f32 %v4492, %v4690
      %v4753 = vadd.f32 %v4493, %v4692
      %v4754 = vadd.f32 %v4494, %v4695
      %v4755 = vadd.f32 %v4495, %v4697
      %v4756 = vadd.f32 %v4496, %v4700
      %v4757 = vadd.f32 %v4497, %v4702
      %v4758 = vadd.f32 %v4498, %v4705
      %v4759 = vadd.f32 %v4499, %v4707
      %v4760 = vadd.f32 %v4500, %v4710
      %v4761 = vadd.f32 %v4501, %v4712
      %v4762 = vadd.f32 %v4502, %v4715
      %v4763 = vadd.f32 %v4503, %v4717
      %v4764 = vadd.f32 %v4504, %v4720
      %v4765 = vadd.f32 %v4505, %v4722
      %v4766 = vadd.f32 %v4506, %v4725
      %v4767 = vadd.f32 %v4507, %v4727
      %v4768 = vadd.f32 %v4508, %v4730
      %v4769 = vadd.f32 %v4509, %v4732
      %v4770 = vld [vmem:[#allocation2 + $0x17] sm:$0xff]
      %v4771 = vld [vmem:[#allocation2 + $0x1f] sm:$0xff]
      %v4772 = vld [vmem:[#allocation2 + $0x27] sm:$0xff]
      %v4773 = vld [vmem:[#allocation2 + $0x2f] sm:$0xff]
      %v4774 = vld [vmem:[#allocation2 + $0x37] sm:$0xff]
      %v4775 = vld [vmem:[#allocation2 + $0x3f] sm:$0xff]
      %v4776 = vld [vmem:[#allocation2 + $0x47] sm:$0xff]
      %v4777 = vld [vmem:[#allocation2 + $0x4f] sm:$0xff]
      %v4778 = vld [vmem:[#allocation2 + $0x57] sm:$0xff]
      %v4779 = vld [vmem:[#allocation2 + $0x5f] sm:$0xff]
      %v4780 = vld [vmem:[#allocation2 + $0x67] sm:$0xff]
      %v4781 = vld [vmem:[#allocation2 + $0x6f] sm:$0xff]
      %v4782 = vld [vmem:[#allocation2 + $0x77] sm:$0xff]
      %v4783 = vld [vmem:[#allocation2 + $0x7f] sm:$0xff]
      %v4784 = vld [vmem:[#allocation2 + $0x87] sm:$0xff]
      %v4785 = vld [vmem:[#allocation2 + $0x8f] sm:$0xff]
      %v4786 = vld [vmem:[#allocation2 + $0x97] sm:$0xff]
      %v4787 = vld [vmem:[#allocation2 + $0x9f] sm:$0xff]
      %v4788 = vld [vmem:[#allocation2 + $0xa7] sm:$0xff]
      %v4789 = vld [vmem:[#allocation2 + $0xaf] sm:$0xff]
      %v4790 = vld [vmem:[#allocation2 + $0xb7] sm:$0xff]
      %v4791 = vld [vmem:[#allocation2 + $0xbf] sm:$0xff]
      %v4792 = vld [vmem:[#allocation2 + $0xc7] sm:$0xff]
      %v4793 = vld [vmem:[#allocation2 + $0xcf] sm:$0xff]
      %v4794 = vld [vmem:[#allocation2 + $0xd7] sm:$0xff]
      %v4795 = vld [vmem:[#allocation2 + $0xdf] sm:$0xff]
      %v4796 = vld [vmem:[#allocation2 + $0xe7] sm:$0xff]
      %v4797 = vld [vmem:[#allocation2 + $0xef] sm:$0xff]
      %v4798 = vld [vmem:[#allocation2 + $0xf7] sm:$0xff]
      %v4799 = vld [vmem:[#allocation2 + $0xff] sm:$0xff]
      %v4800 = vld [vmem:[#allocation2 + $0x107] sm:$0xff]
      %v4801 = vld [vmem:[#allocation2 + $0x10f] sm:$0xff]
      %v4802 = vld [vmem:[#allocation2 + $0x117] sm:$0xff]
      %v4803 = vld [vmem:[#allocation2 + $0x11f] sm:$0xff]
      %v4804 = vld [vmem:[#allocation2 + $0x127] sm:$0xff]
      %v4805 = vld [vmem:[#allocation2 + $0x12f] sm:$0xff]
      %v4806 = vpack.c.bf16 %v4771, %v4770
      %v4807 = vpack.c.bf16 %v4773, %v4772
      %v4808 = vpack.c.bf16 %v4775, %v4774
      %v4809 = vpack.c.bf16 %v4777, %v4776
      %v4810 = vpack.c.bf16 %v4779, %v4778
      %v4811 = vpack.c.bf16 %v4781, %v4780
      %v4812 = vpack.c.bf16 %v4783, %v4782
      %v4813 = vpack.c.bf16 %v4785, %v4784
      %v4814 = vpack.c.bf16 %v4787, %v4786
      %v4815 = vpack.c.bf16 %v4789, %v4788
      %v4816 = vpack.c.bf16 %v4791, %v4790
      %v4817 = vpack.c.bf16 %v4793, %v4792
      %v4818 = vpack.c.bf16 %v4795, %v4794
      %v4819 = vpack.c.bf16 %v4797, %v4796
      %v4820 = vpack.c.bf16 %v4799, %v4798
      %v4821 = vpack.c.bf16 %v4801, %v4800
      %v4822 = vpack.c.bf16 %v4803, %v4802
      %v4823 = vpack.c.bf16 %v4805, %v4804
      %s4824 = scalar_lea.vmem %s3, 48
      %v4825 = vld [vmem:[%s4824] sm:$0xf]
      %v4826 = vld [vmem:[%s4824 + $0x4] sm:$0xf]
      %v4827 = vld [vmem:[%s4824 + $0x8] sm:$0xf]
      %v4828 = vld [vmem:[%s4824 + $0xc] sm:$0xf]
      %v4833 = vunpack.c.l.b16 %v4825
      %v4834 = vunpack.c.l.b16 %v4826
      %v4835 = vunpack.c.l.b16 %v4827
      %v4836 = vunpack.c.l.b16 %v4828
      %v4837 = vpack.c.b16 %v4834, %v4833
      %v4838 = vpack.c.b16 %v4836, %v4835
      %v4842 = vsel %vm3866, %v4806, 0
      %v4845 = vsel %vm3866, %v4807, 0
      %v4848 = vsel %vm3866, %v4808, 0
      %v4851 = vsel %vm3866, %v4809, 0
      %v4854 = vsel %vm3866, %v4810, 0
      %v4857 = vsel %vm3866, %v4811, 0
      %v4860 = vsel %vm3866, %v4812, 0
      %v4863 = vsel %vm3866, %v4813, 0
      %v4866 = vsel %vm3866, %v4814, 0
      %v4869 = vsel %vm3866, %v4815, 0
      %v4872 = vsel %vm3866, %v4816, 0
      %v4875 = vsel %vm3866, %v4817, 0
      %v4878 = vsel %vm3866, %v4818, 0
      %v4881 = vsel %vm3866, %v4819, 0
      %v4884 = vsel %vm3866, %v4820, 0
      %v4887 = vsel %vm3866, %v4821, 0
      %v4890 = vsel %vm3866, %v4822, 0
      %v4893 = vsel %vm3866, %v4823, 0
      %4895 = vmatpush.bf16.msra.mxu0 0
      %4896 = vmatpush.bf16.msra.mxu0 0
      %4897 = vmatpush.bf16.msra.mxu0 0
      %4898 = vmatpush.bf16.msra.mxu0 0
      %4899 = vmatpush.bf16.msra.mxu0 0
      %4900 = vmatpush.bf16.msra.mxu0 0
      %4901 = vmatpush.bf16.msra.mxu0 %v4838
      %4902 = vmatpush.bf16.msra.mxu0 %v4837
      %4903 = vmatmul.bf16.gmra.mxu0 %v4842
      %v4904 = vpop.f32.mrf.mxu0
      %v4905 = vadd.f32 0.0, %v4904
      %v4906 = vpop.f32.mrf.mxu0
      %v4907 = vadd.f32 0.0, %v4906
      %4908 = vmatmul.bf16.gmra.mxu0 %v4845
      %v4909 = vpop.f32.mrf.mxu0
      %v4910 = vadd.f32 0.0, %v4909
      %v4911 = vpop.f32.mrf.mxu0
      %v4912 = vadd.f32 0.0, %v4911
      %4913 = vmatmul.bf16.gmra.mxu0 %v4848
      %v4914 = vpop.f32.mrf.mxu0
      %v4915 = vadd.f32 0.0, %v4914
      %v4916 = vpop.f32.mrf.mxu0
      %v4917 = vadd.f32 0.0, %v4916
      %4918 = vmatmul.bf16.gmra.mxu0 %v4851
      %v4919 = vpop.f32.mrf.mxu0
      %v4920 = vadd.f32 0.0, %v4919
      %v4921 = vpop.f32.mrf.mxu0
      %v4922 = vadd.f32 0.0, %v4921
      %4923 = vmatmul.bf16.gmra.mxu0 %v4854
      %v4924 = vpop.f32.mrf.mxu0
      %v4925 = vadd.f32 0.0, %v4924
      %v4926 = vpop.f32.mrf.mxu0
      %v4927 = vadd.f32 0.0, %v4926
      %4928 = vmatmul.bf16.gmra.mxu0 %v4857
      %v4929 = vpop.f32.mrf.mxu0
      %v4930 = vadd.f32 0.0, %v4929
      %v4931 = vpop.f32.mrf.mxu0
      %v4932 = vadd.f32 0.0, %v4931
      %4933 = vmatmul.bf16.gmra.mxu0 %v4860
      %v4934 = vpop.f32.mrf.mxu0
      %v4935 = vadd.f32 0.0, %v4934
      %v4936 = vpop.f32.mrf.mxu0
      %v4937 = vadd.f32 0.0, %v4936
      %4938 = vmatmul.bf16.gmra.mxu0 %v4863
      %v4939 = vpop.f32.mrf.mxu0
      %v4940 = vadd.f32 0.0, %v4939
      %v4941 = vpop.f32.mrf.mxu0
      %v4942 = vadd.f32 0.0, %v4941
      %4943 = vmatmul.bf16.gmra.mxu0 %v4866
      %v4944 = vpop.f32.mrf.mxu0
      %v4945 = vadd.f32 0.0, %v4944
      %v4946 = vpop.f32.mrf.mxu0
      %v4947 = vadd.f32 0.0, %v4946
      %4948 = vmatmul.bf16.gmra.mxu0 %v4869
      %v4949 = vpop.f32.mrf.mxu0
      %v4950 = vadd.f32 0.0, %v4949
      %v4951 = vpop.f32.mrf.mxu0
      %v4952 = vadd.f32 0.0, %v4951
      %4953 = vmatmul.bf16.gmra.mxu0 %v4872
      %v4954 = vpop.f32.mrf.mxu0
      %v4955 = vadd.f32 0.0, %v4954
      %v4956 = vpop.f32.mrf.mxu0
      %v4957 = vadd.f32 0.0, %v4956
      %4958 = vmatmul.bf16.gmra.mxu0 %v4875
      %v4959 = vpop.f32.mrf.mxu0
      %v4960 = vadd.f32 0.0, %v4959
      %v4961 = vpop.f32.mrf.mxu0
      %v4962 = vadd.f32 0.0, %v4961
      %4963 = vmatmul.bf16.gmra.mxu0 %v4878
      %v4964 = vpop.f32.mrf.mxu0
      %v4965 = vadd.f32 0.0, %v4964
      %v4966 = vpop.f32.mrf.mxu0
      %v4967 = vadd.f32 0.0, %v4966
      %4968 = vmatmul.bf16.gmra.mxu0 %v4881
      %v4969 = vpop.f32.mrf.mxu0
      %v4970 = vadd.f32 0.0, %v4969
      %v4971 = vpop.f32.mrf.mxu0
      %v4972 = vadd.f32 0.0, %v4971
      %4973 = vmatmul.bf16.gmra.mxu0 %v4884
      %v4974 = vpop.f32.mrf.mxu0
      %v4975 = vadd.f32 0.0, %v4974
      %v4976 = vpop.f32.mrf.mxu0
      %v4977 = vadd.f32 0.0, %v4976
      %4978 = vmatmul.bf16.gmra.mxu0 %v4887
      %v4979 = vpop.f32.mrf.mxu0
      %v4980 = vadd.f32 0.0, %v4979
      %v4981 = vpop.f32.mrf.mxu0
      %v4982 = vadd.f32 0.0, %v4981
      %4983 = vmatmul.bf16.gmra.mxu0 %v4890
      %v4984 = vpop.f32.mrf.mxu0
      %v4985 = vadd.f32 0.0, %v4984
      %v4986 = vpop.f32.mrf.mxu0
      %v4987 = vadd.f32 0.0, %v4986
      %4988 = vmatmul.bf16.gmra.mxu0 %v4893
      %v4989 = vpop.f32.mrf.mxu0
      %v4990 = vadd.f32 0.0, %v4989
      %v4991 = vpop.f32.mrf.mxu0
      %v4992 = vadd.f32 0.0, %v4991
      %4993 = vdwg.mxu0
      %v4994 = vadd.f32 %v4734, %v4905
      %v4995 = vadd.f32 %v4735, %v4907
      %v4996 = vadd.f32 %v4736, %v4910
      %v4997 = vadd.f32 %v4737, %v4912
      %v4998 = vadd.f32 %v4738, %v4915
      %v4999 = vadd.f32 %v4739, %v4917
      %v5000 = vadd.f32 %v4740, %v4920
      %v5001 = vadd.f32 %v4741, %v4922
      %v5002 = vadd.f32 %v4742, %v4925
      %v5003 = vadd.f32 %v4743, %v4927
      %v5004 = vadd.f32 %v4744, %v4930
      %v5005 = vadd.f32 %v4745, %v4932
      %v5006 = vadd.f32 %v4746, %v4935
      %v5007 = vadd.f32 %v4747, %v4937
      %v5008 = vadd.f32 %v4748, %v4940
      %v5009 = vadd.f32 %v4749, %v4942
      %v5010 = vadd.f32 %v4750, %v4945
      %v5011 = vadd.f32 %v4751, %v4947
      %v5012 = vadd.f32 %v4752, %v4950
      %v5013 = vadd.f32 %v4753, %v4952
      %v5014 = vadd.f32 %v4754, %v4955
      %v5015 = vadd.f32 %v4755, %v4957
      %v5016 = vadd.f32 %v4756, %v4960
      %v5017 = vadd.f32 %v4757, %v4962
      %v5018 = vadd.f32 %v4758, %v4965
      %v5019 = vadd.f32 %v4759, %v4967
      %v5020 = vadd.f32 %v4760, %v4970
      %v5021 = vadd.f32 %v4761, %v4972
      %v5022 = vadd.f32 %v4762, %v4975
      %v5023 = vadd.f32 %v4763, %v4977
      %v5024 = vadd.f32 %v4764, %v4980
      %v5025 = vadd.f32 %v4765, %v4982
      %v5026 = vadd.f32 %v4766, %v4985
      %v5027 = vadd.f32 %v4767, %v4987
      %v5028 = vadd.f32 %v4768, %v4990
      %v5029 = vadd.f32 %v4769, %v4992
      %v5030 = vld [vmem:[#allocation2 + $0x18] sm:$0xff]
      %v5031 = vld [vmem:[#allocation2 + $0x20] sm:$0xff]
      %v5032 = vld [vmem:[#allocation2 + $0x28] sm:$0xff]
      %v5033 = vld [vmem:[#allocation2 + $0x30] sm:$0xff]
      %v5034 = vld [vmem:[#allocation2 + $0x38] sm:$0xff]
      %v5035 = vld [vmem:[#allocation2 + $0x40] sm:$0xff]
      %v5036 = vld [vmem:[#allocation2 + $0x48] sm:$0xff]
      %v5037 = vld [vmem:[#allocation2 + $0x50] sm:$0xff]
      %v5038 = vld [vmem:[#allocation2 + $0x58] sm:$0xff]
      %v5039 = vld [vmem:[#allocation2 + $0x60] sm:$0xff]
      %v5040 = vld [vmem:[#allocation2 + $0x68] sm:$0xff]
      %v5041 = vld [vmem:[#allocation2 + $0x70] sm:$0xff]
      %v5042 = vld [vmem:[#allocation2 + $0x78] sm:$0xff]
      %v5043 = vld [vmem:[#allocation2 + $0x80] sm:$0xff]
      %v5044 = vld [vmem:[#allocation2 + $0x88] sm:$0xff]
      %v5045 = vld [vmem:[#allocation2 + $0x90] sm:$0xff]
      %v5046 = vld [vmem:[#allocation2 + $0x98] sm:$0xff]
      %v5047 = vld [vmem:[#allocation2 + $0xa0] sm:$0xff]
      %v5048 = vld [vmem:[#allocation2 + $0xa8] sm:$0xff]
      %v5049 = vld [vmem:[#allocation2 + $0xb0] sm:$0xff]
      %v5050 = vld [vmem:[#allocation2 + $0xb8] sm:$0xff]
      %v5051 = vld [vmem:[#allocation2 + $0xc0] sm:$0xff]
      %v5052 = vld [vmem:[#allocation2 + $0xc8] sm:$0xff]
      %v5053 = vld [vmem:[#allocation2 + $0xd0] sm:$0xff]
      %v5054 = vld [vmem:[#allocation2 + $0xd8] sm:$0xff]
      %v5055 = vld [vmem:[#allocation2 + $0xe0] sm:$0xff]
      %v5056 = vld [vmem:[#allocation2 + $0xe8] sm:$0xff]
      %v5057 = vld [vmem:[#allocation2 + $0xf0] sm:$0xff]
      %v5058 = vld [vmem:[#allocation2 + $0xf8] sm:$0xff]
      %v5059 = vld [vmem:[#allocation2 + $0x100] sm:$0xff]
      %v5060 = vld [vmem:[#allocation2 + $0x108] sm:$0xff]
      %v5061 = vld [vmem:[#allocation2 + $0x110] sm:$0xff]
      %v5062 = vld [vmem:[#allocation2 + $0x118] sm:$0xff]
      %v5063 = vld [vmem:[#allocation2 + $0x120] sm:$0xff]
      %v5064 = vld [vmem:[#allocation2 + $0x128] sm:$0xff]
      %v5065 = vld [vmem:[#allocation2 + $0x130] sm:$0xff]
      %v5066 = vpack.c.bf16 %v5031, %v5030
      %v5067 = vpack.c.bf16 %v5033, %v5032
      %v5068 = vpack.c.bf16 %v5035, %v5034
      %v5069 = vpack.c.bf16 %v5037, %v5036
      %v5070 = vpack.c.bf16 %v5039, %v5038
      %v5071 = vpack.c.bf16 %v5041, %v5040
      %v5072 = vpack.c.bf16 %v5043, %v5042
      %v5073 = vpack.c.bf16 %v5045, %v5044
      %v5074 = vpack.c.bf16 %v5047, %v5046
      %v5075 = vpack.c.bf16 %v5049, %v5048
      %v5076 = vpack.c.bf16 %v5051, %v5050
      %v5077 = vpack.c.bf16 %v5053, %v5052
      %v5078 = vpack.c.bf16 %v5055, %v5054
      %v5079 = vpack.c.bf16 %v5057, %v5056
      %v5080 = vpack.c.bf16 %v5059, %v5058
      %v5081 = vpack.c.bf16 %v5061, %v5060
      %v5082 = vpack.c.bf16 %v5063, %v5062
      %v5083 = vpack.c.bf16 %v5065, %v5064
      %s5084 = scalar_lea.vmem %s3, 64
      %v5085 = vld [vmem:[%s5084] sm:$0xf]
      %v5086 = vld [vmem:[%s5084 + $0x4] sm:$0xf]
      %v5087 = vld [vmem:[%s5084 + $0x8] sm:$0xf]
      %v5088 = vld [vmem:[%s5084 + $0xc] sm:$0xf]
      %v5093 = vunpack.c.l.b16 %v5085
      %v5094 = vunpack.c.l.b16 %v5086
      %v5095 = vunpack.c.l.b16 %v5087
      %v5096 = vunpack.c.l.b16 %v5088
      %v5097 = vpack.c.b16 %v5094, %v5093
      %v5098 = vpack.c.b16 %v5096, %v5095
      %v5102 = vsel %vm3866, %v5066, 0
      %v5105 = vsel %vm3866, %v5067, 0
      %v5108 = vsel %vm3866, %v5068, 0
      %v5111 = vsel %vm3866, %v5069, 0
      %v5114 = vsel %vm3866, %v5070, 0
      %v5117 = vsel %vm3866, %v5071, 0
      %v5120 = vsel %vm3866, %v5072, 0
      %v5123 = vsel %vm3866, %v5073, 0
      %v5126 = vsel %vm3866, %v5074, 0
      %v5129 = vsel %vm3866, %v5075, 0
      %v5132 = vsel %vm3866, %v5076, 0
      %v5135 = vsel %vm3866, %v5077, 0
      %v5138 = vsel %vm3866, %v5078, 0
      %v5141 = vsel %vm3866, %v5079, 0
      %v5144 = vsel %vm3866, %v5080, 0
      %v5147 = vsel %vm3866, %v5081, 0
      %v5150 = vsel %vm3866, %v5082, 0
      %v5153 = vsel %vm3866, %v5083, 0
      %5155 = vmatpush.bf16.msra.mxu0 0
      %5156 = vmatpush.bf16.msra.mxu0 0
      %5157 = vmatpush.bf16.msra.mxu0 0
      %5158 = vmatpush.bf16.msra.mxu0 0
      %5159 = vmatpush.bf16.msra.mxu0 0
      %5160 = vmatpush.bf16.msra.mxu0 0
      %5161 = vmatpush.bf16.msra.mxu0 %v5098
      %5162 = vmatpush.bf16.msra.mxu0 %v5097
      %5163 = vmatmul.bf16.gmra.mxu0 %v5102
      %v5164 = vpop.f32.mrf.mxu0
      %v5165 = vadd.f32 0.0, %v5164
      %v5166 = vpop.f32.mrf.mxu0
      %v5167 = vadd.f32 0.0, %v5166
      %5168 = vmatmul.bf16.gmra.mxu0 %v5105
      %v5169 = vpop.f32.mrf.mxu0
      %v5170 = vadd.f32 0.0, %v5169
      %v5171 = vpop.f32.mrf.mxu0
      %v5172 = vadd.f32 0.0, %v5171
      %5173 = vmatmul.bf16.gmra.mxu0 %v5108
      %v5174 = vpop.f32.mrf.mxu0
      %v5175 = vadd.f32 0.0, %v5174
      %v5176 = vpop.f32.mrf.mxu0
      %v5177 = vadd.f32 0.0, %v5176
      %5178 = vmatmul.bf16.gmra.mxu0 %v5111
      %v5179 = vpop.f32.mrf.mxu0
      %v5180 = vadd.f32 0.0, %v5179
      %v5181 = vpop.f32.mrf.mxu0
      %v5182 = vadd.f32 0.0, %v5181
      %5183 = vmatmul.bf16.gmra.mxu0 %v5114
      %v5184 = vpop.f32.mrf.mxu0
      %v5185 = vadd.f32 0.0, %v5184
      %v5186 = vpop.f32.mrf.mxu0
      %v5187 = vadd.f32 0.0, %v5186
      %5188 = vmatmul.bf16.gmra.mxu0 %v5117
      %v5189 = vpop.f32.mrf.mxu0
      %v5190 = vadd.f32 0.0, %v5189
      %v5191 = vpop.f32.mrf.mxu0
      %v5192 = vadd.f32 0.0, %v5191
      %5193 = vmatmul.bf16.gmra.mxu0 %v5120
      %v5194 = vpop.f32.mrf.mxu0
      %v5195 = vadd.f32 0.0, %v5194
      %v5196 = vpop.f32.mrf.mxu0
      %v5197 = vadd.f32 0.0, %v5196
      %5198 = vmatmul.bf16.gmra.mxu0 %v5123
      %v5199 = vpop.f32.mrf.mxu0
      %v5200 = vadd.f32 0.0, %v5199
      %v5201 = vpop.f32.mrf.mxu0
      %v5202 = vadd.f32 0.0, %v5201
      %5203 = vmatmul.bf16.gmra.mxu0 %v5126
      %v5204 = vpop.f32.mrf.mxu0
      %v5205 = vadd.f32 0.0, %v5204
      %v5206 = vpop.f32.mrf.mxu0
      %v5207 = vadd.f32 0.0, %v5206
      %5208 = vmatmul.bf16.gmra.mxu0 %v5129
      %v5209 = vpop.f32.mrf.mxu0
      %v5210 = vadd.f32 0.0, %v5209
      %v5211 = vpop.f32.mrf.mxu0
      %v5212 = vadd.f32 0.0, %v5211
      %5213 = vmatmul.bf16.gmra.mxu0 %v5132
      %v5214 = vpop.f32.mrf.mxu0
      %v5215 = vadd.f32 0.0, %v5214
      %v5216 = vpop.f32.mrf.mxu0
      %v5217 = vadd.f32 0.0, %v5216
      %5218 = vmatmul.bf16.gmra.mxu0 %v5135
      %v5219 = vpop.f32.mrf.mxu0
      %v5220 = vadd.f32 0.0, %v5219
      %v5221 = vpop.f32.mrf.mxu0
      %v5222 = vadd.f32 0.0, %v5221
      %5223 = vmatmul.bf16.gmra.mxu0 %v5138
      %v5224 = vpop.f32.mrf.mxu0
      %v5225 = vadd.f32 0.0, %v5224
      %v5226 = vpop.f32.mrf.mxu0
      %v5227 = vadd.f32 0.0, %v5226
      %5228 = vmatmul.bf16.gmra.mxu0 %v5141
      %v5229 = vpop.f32.mrf.mxu0
      %v5230 = vadd.f32 0.0, %v5229
      %v5231 = vpop.f32.mrf.mxu0
      %v5232 = vadd.f32 0.0, %v5231
      %5233 = vmatmul.bf16.gmra.mxu0 %v5144
      %v5234 = vpop.f32.mrf.mxu0
      %v5235 = vadd.f32 0.0, %v5234
      %v5236 = vpop.f32.mrf.mxu0
      %v5237 = vadd.f32 0.0, %v5236
      %5238 = vmatmul.bf16.gmra.mxu0 %v5147
      %v5239 = vpop.f32.mrf.mxu0
      %v5240 = vadd.f32 0.0, %v5239
      %v5241 = vpop.f32.mrf.mxu0
      %v5242 = vadd.f32 0.0, %v5241
      %5243 = vmatmul.bf16.gmra.mxu0 %v5150
      %v5244 = vpop.f32.mrf.mxu0
      %v5245 = vadd.f32 0.0, %v5244
      %v5246 = vpop.f32.mrf.mxu0
      %v5247 = vadd.f32 0.0, %v5246
      %5248 = vmatmul.bf16.gmra.mxu0 %v5153
      %v5249 = vpop.f32.mrf.mxu0
      %v5250 = vadd.f32 0.0, %v5249
      %v5251 = vpop.f32.mrf.mxu0
      %v5252 = vadd.f32 0.0, %v5251
      %5253 = vdwg.mxu0
      %v5254 = vadd.f32 %v4994, %v5165
      %v5255 = vadd.f32 %v4995, %v5167
      %v5256 = vadd.f32 %v4996, %v5170
      %v5257 = vadd.f32 %v4997, %v5172
      %v5258 = vadd.f32 %v4998, %v5175
      %v5259 = vadd.f32 %v4999, %v5177
      %v5260 = vadd.f32 %v5000, %v5180
      %v5261 = vadd.f32 %v5001, %v5182
      %v5262 = vadd.f32 %v5002, %v5185
      %v5263 = vadd.f32 %v5003, %v5187
      %v5264 = vadd.f32 %v5004, %v5190
      %v5265 = vadd.f32 %v5005, %v5192
      %v5266 = vadd.f32 %v5006, %v5195
      %v5267 = vadd.f32 %v5007, %v5197
      %v5268 = vadd.f32 %v5008, %v5200
      %v5269 = vadd.f32 %v5009, %v5202
      %v5270 = vadd.f32 %v5010, %v5205
      %v5271 = vadd.f32 %v5011, %v5207
      %v5272 = vadd.f32 %v5012, %v5210
      %v5273 = vadd.f32 %v5013, %v5212
      %v5274 = vadd.f32 %v5014, %v5215
      %v5275 = vadd.f32 %v5015, %v5217
      %v5276 = vadd.f32 %v5016, %v5220
      %v5277 = vadd.f32 %v5017, %v5222
      %v5278 = vadd.f32 %v5018, %v5225
      %v5279 = vadd.f32 %v5019, %v5227
      %v5280 = vadd.f32 %v5020, %v5230
      %v5281 = vadd.f32 %v5021, %v5232
      %v5282 = vadd.f32 %v5022, %v5235
      %v5283 = vadd.f32 %v5023, %v5237
      %v5284 = vadd.f32 %v5024, %v5240
      %v5285 = vadd.f32 %v5025, %v5242
      %v5286 = vadd.f32 %v5026, %v5245
      %v5287 = vadd.f32 %v5027, %v5247
      %v5288 = vadd.f32 %v5028, %v5250
      %v5289 = vadd.f32 %v5029, %v5252
      %v5290 = vld [vmem:[#allocation2 + $0x19] sm:$0xff]
      %v5291 = vld [vmem:[#allocation2 + $0x21] sm:$0xff]
      %v5292 = vld [vmem:[#allocation2 + $0x29] sm:$0xff]
      %v5293 = vld [vmem:[#allocation2 + $0x31] sm:$0xff]
      %v5294 = vld [vmem:[#allocation2 + $0x39] sm:$0xff]
      %v5295 = vld [vmem:[#allocation2 + $0x41] sm:$0xff]
      %v5296 = vld [vmem:[#allocation2 + $0x49] sm:$0xff]
      %v5297 = vld [vmem:[#allocation2 + $0x51] sm:$0xff]
      %v5298 = vld [vmem:[#allocation2 + $0x59] sm:$0xff]
      %v5299 = vld [vmem:[#allocation2 + $0x61] sm:$0xff]
      %v5300 = vld [vmem:[#allocation2 + $0x69] sm:$0xff]
      %v5301 = vld [vmem:[#allocation2 + $0x71] sm:$0xff]
      %v5302 = vld [vmem:[#allocation2 + $0x79] sm:$0xff]
      %v5303 = vld [vmem:[#allocation2 + $0x81] sm:$0xff]
      %v5304 = vld [vmem:[#allocation2 + $0x89] sm:$0xff]
      %v5305 = vld [vmem:[#allocation2 + $0x91] sm:$0xff]
      %v5306 = vld [vmem:[#allocation2 + $0x99] sm:$0xff]
      %v5307 = vld [vmem:[#allocation2 + $0xa1] sm:$0xff]
      %v5308 = vld [vmem:[#allocation2 + $0xa9] sm:$0xff]
      %v5309 = vld [vmem:[#allocation2 + $0xb1] sm:$0xff]
      %v5310 = vld [vmem:[#allocation2 + $0xb9] sm:$0xff]
      %v5311 = vld [vmem:[#allocation2 + $0xc1] sm:$0xff]
      %v5312 = vld [vmem:[#allocation2 + $0xc9] sm:$0xff]
      %v5313 = vld [vmem:[#allocation2 + $0xd1] sm:$0xff]
      %v5314 = vld [vmem:[#allocation2 + $0xd9] sm:$0xff]
      %v5315 = vld [vmem:[#allocation2 + $0xe1] sm:$0xff]
      %v5316 = vld [vmem:[#allocation2 + $0xe9] sm:$0xff]
      %v5317 = vld [vmem:[#allocation2 + $0xf1] sm:$0xff]
      %v5318 = vld [vmem:[#allocation2 + $0xf9] sm:$0xff]
      %v5319 = vld [vmem:[#allocation2 + $0x101] sm:$0xff]
      %v5320 = vld [vmem:[#allocation2 + $0x109] sm:$0xff]
      %v5321 = vld [vmem:[#allocation2 + $0x111] sm:$0xff]
      %v5322 = vld [vmem:[#allocation2 + $0x119] sm:$0xff]
      %v5323 = vld [vmem:[#allocation2 + $0x121] sm:$0xff]
      %v5324 = vld [vmem:[#allocation2 + $0x129] sm:$0xff]
      %v5325 = vld [vmem:[#allocation2 + $0x131] sm:$0xff]
      %v5326 = vpack.c.bf16 %v5291, %v5290
      %v5327 = vpack.c.bf16 %v5293, %v5292
      %v5328 = vpack.c.bf16 %v5295, %v5294
      %v5329 = vpack.c.bf16 %v5297, %v5296
      %v5330 = vpack.c.bf16 %v5299, %v5298
      %v5331 = vpack.c.bf16 %v5301, %v5300
      %v5332 = vpack.c.bf16 %v5303, %v5302
      %v5333 = vpack.c.bf16 %v5305, %v5304
      %v5334 = vpack.c.bf16 %v5307, %v5306
      %v5335 = vpack.c.bf16 %v5309, %v5308
      %v5336 = vpack.c.bf16 %v5311, %v5310
      %v5337 = vpack.c.bf16 %v5313, %v5312
      %v5338 = vpack.c.bf16 %v5315, %v5314
      %v5339 = vpack.c.bf16 %v5317, %v5316
      %v5340 = vpack.c.bf16 %v5319, %v5318
      %v5341 = vpack.c.bf16 %v5321, %v5320
      %v5342 = vpack.c.bf16 %v5323, %v5322
      %v5343 = vpack.c.bf16 %v5325, %v5324
      %s5344 = scalar_lea.vmem %s3, 80
      %v5345 = vld [vmem:[%s5344] sm:$0xf]
      %v5346 = vld [vmem:[%s5344 + $0x4] sm:$0xf]
      %v5347 = vld [vmem:[%s5344 + $0x8] sm:$0xf]
      %v5348 = vld [vmem:[%s5344 + $0xc] sm:$0xf]
      %v5353 = vunpack.c.l.b16 %v5345
      %v5354 = vunpack.c.l.b16 %v5346
      %v5355 = vunpack.c.l.b16 %v5347
      %v5356 = vunpack.c.l.b16 %v5348
      %v5357 = vpack.c.b16 %v5354, %v5353
      %v5358 = vpack.c.b16 %v5356, %v5355
      %v5362 = vsel %vm3866, %v5326, 0
      %v5365 = vsel %vm3866, %v5327, 0
      %v5368 = vsel %vm3866, %v5328, 0
      %v5371 = vsel %vm3866, %v5329, 0
      %v5374 = vsel %vm3866, %v5330, 0
      %v5377 = vsel %vm3866, %v5331, 0
      %v5380 = vsel %vm3866, %v5332, 0
      %v5383 = vsel %vm3866, %v5333, 0
      %v5386 = vsel %vm3866, %v5334, 0
      %v5389 = vsel %vm3866, %v5335, 0
      %v5392 = vsel %vm3866, %v5336, 0
      %v5395 = vsel %vm3866, %v5337, 0
      %v5398 = vsel %vm3866, %v5338, 0
      %v5401 = vsel %vm3866, %v5339, 0
      %v5404 = vsel %vm3866, %v5340, 0
      %v5407 = vsel %vm3866, %v5341, 0
      %v5410 = vsel %vm3866, %v5342, 0
      %v5413 = vsel %vm3866, %v5343, 0
      %5415 = vmatpush.bf16.msra.mxu0 0
      %5416 = vmatpush.bf16.msra.mxu0 0
      %5417 = vmatpush.bf16.msra.mxu0 0
      %5418 = vmatpush.bf16.msra.mxu0 0
      %5419 = vmatpush.bf16.msra.mxu0 0
      %5420 = vmatpush.bf16.msra.mxu0 0
      %5421 = vmatpush.bf16.msra.mxu0 %v5358
      %5422 = vmatpush.bf16.msra.mxu0 %v5357
      %5423 = vmatmul.bf16.gmra.mxu0 %v5362
      %v5424 = vpop.f32.mrf.mxu0
      %v5425 = vadd.f32 0.0, %v5424
      %v5426 = vpop.f32.mrf.mxu0
      %v5427 = vadd.f32 0.0, %v5426
      %5428 = vmatmul.bf16.gmra.mxu0 %v5365
      %v5429 = vpop.f32.mrf.mxu0
      %v5430 = vadd.f32 0.0, %v5429
      %v5431 = vpop.f32.mrf.mxu0
      %v5432 = vadd.f32 0.0, %v5431
      %5433 = vmatmul.bf16.gmra.mxu0 %v5368
      %v5434 = vpop.f32.mrf.mxu0
      %v5435 = vadd.f32 0.0, %v5434
      %v5436 = vpop.f32.mrf.mxu0
      %v5437 = vadd.f32 0.0, %v5436
      %5438 = vmatmul.bf16.gmra.mxu0 %v5371
      %v5439 = vpop.f32.mrf.mxu0
      %v5440 = vadd.f32 0.0, %v5439
      %v5441 = vpop.f32.mrf.mxu0
      %v5442 = vadd.f32 0.0, %v5441
      %5443 = vmatmul.bf16.gmra.mxu0 %v5374
      %v5444 = vpop.f32.mrf.mxu0
      %v5445 = vadd.f32 0.0, %v5444
      %v5446 = vpop.f32.mrf.mxu0
      %v5447 = vadd.f32 0.0, %v5446
      %5448 = vmatmul.bf16.gmra.mxu0 %v5377
      %v5449 = vpop.f32.mrf.mxu0
      %v5450 = vadd.f32 0.0, %v5449
      %v5451 = vpop.f32.mrf.mxu0
      %v5452 = vadd.f32 0.0, %v5451
      %5453 = vmatmul.bf16.gmra.mxu0 %v5380
      %v5454 = vpop.f32.mrf.mxu0
      %v5455 = vadd.f32 0.0, %v5454
      %v5456 = vpop.f32.mrf.mxu0
      %v5457 = vadd.f32 0.0, %v5456
      %5458 = vmatmul.bf16.gmra.mxu0 %v5383
      %v5459 = vpop.f32.mrf.mxu0
      %v5460 = vadd.f32 0.0, %v5459
      %v5461 = vpop.f32.mrf.mxu0
      %v5462 = vadd.f32 0.0, %v5461
      %5463 = vmatmul.bf16.gmra.mxu0 %v5386
      %v5464 = vpop.f32.mrf.mxu0
      %v5465 = vadd.f32 0.0, %v5464
      %v5466 = vpop.f32.mrf.mxu0
      %v5467 = vadd.f32 0.0, %v5466
      %5468 = vmatmul.bf16.gmra.mxu0 %v5389
      %v5469 = vpop.f32.mrf.mxu0
      %v5470 = vadd.f32 0.0, %v5469
      %v5471 = vpop.f32.mrf.mxu0
      %v5472 = vadd.f32 0.0, %v5471
      %5473 = vmatmul.bf16.gmra.mxu0 %v5392
      %v5474 = vpop.f32.mrf.mxu0
      %v5475 = vadd.f32 0.0, %v5474
      %v5476 = vpop.f32.mrf.mxu0
      %v5477 = vadd.f32 0.0, %v5476
      %5478 = vmatmul.bf16.gmra.mxu0 %v5395
      %v5479 = vpop.f32.mrf.mxu0
      %v5480 = vadd.f32 0.0, %v5479
      %v5481 = vpop.f32.mrf.mxu0
      %v5482 = vadd.f32 0.0, %v5481
      %5483 = vmatmul.bf16.gmra.mxu0 %v5398
      %v5484 = vpop.f32.mrf.mxu0
      %v5485 = vadd.f32 0.0, %v5484
      %v5486 = vpop.f32.mrf.mxu0
      %v5487 = vadd.f32 0.0, %v5486
      %5488 = vmatmul.bf16.gmra.mxu0 %v5401
      %v5489 = vpop.f32.mrf.mxu0
      %v5490 = vadd.f32 0.0, %v5489
      %v5491 = vpop.f32.mrf.mxu0
      %v5492 = vadd.f32 0.0, %v5491
      %5493 = vmatmul.bf16.gmra.mxu0 %v5404
      %v5494 = vpop.f32.mrf.mxu0
      %v5495 = vadd.f32 0.0, %v5494
      %v5496 = vpop.f32.mrf.mxu0
      %v5497 = vadd.f32 0.0, %v5496
      %5498 = vmatmul.bf16.gmra.mxu0 %v5407
      %v5499 = vpop.f32.mrf.mxu0
      %v5500 = vadd.f32 0.0, %v5499
      %v5501 = vpop.f32.mrf.mxu0
      %v5502 = vadd.f32 0.0, %v5501
      %5503 = vmatmul.bf16.gmra.mxu0 %v5410
      %v5504 = vpop.f32.mrf.mxu0
      %v5505 = vadd.f32 0.0, %v5504
      %v5506 = vpop.f32.mrf.mxu0
      %v5507 = vadd.f32 0.0, %v5506
      %5508 = vmatmul.bf16.gmra.mxu0 %v5413
      %v5509 = vpop.f32.mrf.mxu0
      %v5510 = vadd.f32 0.0, %v5509
      %v5511 = vpop.f32.mrf.mxu0
      %v5512 = vadd.f32 0.0, %v5511
      %5513 = vdwg.mxu0
      %v5514 = vadd.f32 %v5254, %v5425
      %v5515 = vadd.f32 %v5255, %v5427
      %v5516 = vadd.f32 %v5256, %v5430
      %v5517 = vadd.f32 %v5257, %v5432
      %v5518 = vadd.f32 %v5258, %v5435
      %v5519 = vadd.f32 %v5259, %v5437
      %v5520 = vadd.f32 %v5260, %v5440
      %v5521 = vadd.f32 %v5261, %v5442
      %v5522 = vadd.f32 %v5262, %v5445
      %v5523 = vadd.f32 %v5263, %v5447
      %v5524 = vadd.f32 %v5264, %v5450
      %v5525 = vadd.f32 %v5265, %v5452
      %v5526 = vadd.f32 %v5266, %v5455
      %v5527 = vadd.f32 %v5267, %v5457
      %v5528 = vadd.f32 %v5268, %v5460
      %v5529 = vadd.f32 %v5269, %v5462
      %v5530 = vadd.f32 %v5270, %v5465
      %v5531 = vadd.f32 %v5271, %v5467
      %v5532 = vadd.f32 %v5272, %v5470
      %v5533 = vadd.f32 %v5273, %v5472
      %v5534 = vadd.f32 %v5274, %v5475
      %v5535 = vadd.f32 %v5275, %v5477
      %v5536 = vadd.f32 %v5276, %v5480
      %v5537 = vadd.f32 %v5277, %v5482
      %v5538 = vadd.f32 %v5278, %v5485
      %v5539 = vadd.f32 %v5279, %v5487
      %v5540 = vadd.f32 %v5280, %v5490
      %v5541 = vadd.f32 %v5281, %v5492
      %v5542 = vadd.f32 %v5282, %v5495
      %v5543 = vadd.f32 %v5283, %v5497
      %v5544 = vadd.f32 %v5284, %v5500
      %v5545 = vadd.f32 %v5285, %v5502
      %v5546 = vadd.f32 %v5286, %v5505
      %v5547 = vadd.f32 %v5287, %v5507
      %v5548 = vadd.f32 %v5288, %v5510
      %v5549 = vadd.f32 %v5289, %v5512
      %v5550 = vld [vmem:[#allocation2 + $0x29] sm:$0xff]
      %v5551 = vld [vmem:[#allocation2 + $0x31] sm:$0xff]
      %v5552 = vld [vmem:[#allocation2 + $0x39] sm:$0xff]
      %v5553 = vld [vmem:[#allocation2 + $0x41] sm:$0xff]
      %v5554 = vld [vmem:[#allocation2 + $0x49] sm:$0xff]
      %v5555 = vld [vmem:[#allocation2 + $0x51] sm:$0xff]
      %v5556 = vld [vmem:[#allocation2 + $0x59] sm:$0xff]
      %v5557 = vld [vmem:[#allocation2 + $0x61] sm:$0xff]
      %v5558 = vld [vmem:[#allocation2 + $0x69] sm:$0xff]
      %v5559 = vld [vmem:[#allocation2 + $0x71] sm:$0xff]
      %v5560 = vld [vmem:[#allocation2 + $0x79] sm:$0xff]
      %v5561 = vld [vmem:[#allocation2 + $0x81] sm:$0xff]
      %v5562 = vld [vmem:[#allocation2 + $0x89] sm:$0xff]
      %v5563 = vld [vmem:[#allocation2 + $0x91] sm:$0xff]
      %v5564 = vld [vmem:[#allocation2 + $0x99] sm:$0xff]
      %v5565 = vld [vmem:[#allocation2 + $0xa1] sm:$0xff]
      %v5566 = vld [vmem:[#allocation2 + $0xa9] sm:$0xff]
      %v5567 = vld [vmem:[#allocation2 + $0xb1] sm:$0xff]
      %v5568 = vld [vmem:[#allocation2 + $0xb9] sm:$0xff]
      %v5569 = vld [vmem:[#allocation2 + $0xc1] sm:$0xff]
      %v5570 = vld [vmem:[#allocation2 + $0xc9] sm:$0xff]
      %v5571 = vld [vmem:[#allocation2 + $0xd1] sm:$0xff]
      %v5572 = vld [vmem:[#allocation2 + $0xd9] sm:$0xff]
      %v5573 = vld [vmem:[#allocation2 + $0xe1] sm:$0xff]
      %v5574 = vld [vmem:[#allocation2 + $0xe9] sm:$0xff]
      %v5575 = vld [vmem:[#allocation2 + $0xf1] sm:$0xff]
      %v5576 = vld [vmem:[#allocation2 + $0xf9] sm:$0xff]
      %v5577 = vld [vmem:[#allocation2 + $0x101] sm:$0xff]
      %v5578 = vld [vmem:[#allocation2 + $0x109] sm:$0xff]
      %v5579 = vld [vmem:[#allocation2 + $0x111] sm:$0xff]
      %v5580 = vld [vmem:[#allocation2 + $0x119] sm:$0xff]
      %v5581 = vld [vmem:[#allocation2 + $0x121] sm:$0xff]
      %v5582 = vld [vmem:[#allocation2 + $0x129] sm:$0xff]
      %v5583 = vld [vmem:[#allocation2 + $0x131] sm:$0xff]
      %v5584 = vld [vmem:[#allocation2 + $0x139] sm:$0xff]
      %v5585 = vld [vmem:[#allocation2 + $0x141] sm:$0xff]
      %v5586 = vpack.c.bf16 %v5551, %v5550
      %v5587 = vpack.c.bf16 %v5553, %v5552
      %v5588 = vpack.c.bf16 %v5555, %v5554
      %v5589 = vpack.c.bf16 %v5557, %v5556
      %v5590 = vpack.c.bf16 %v5559, %v5558
      %v5591 = vpack.c.bf16 %v5561, %v5560
      %v5592 = vpack.c.bf16 %v5563, %v5562
      %v5593 = vpack.c.bf16 %v5565, %v5564
      %v5594 = vpack.c.bf16 %v5567, %v5566
      %v5595 = vpack.c.bf16 %v5569, %v5568
      %v5596 = vpack.c.bf16 %v5571, %v5570
      %v5597 = vpack.c.bf16 %v5573, %v5572
      %v5598 = vpack.c.bf16 %v5575, %v5574
      %v5599 = vpack.c.bf16 %v5577, %v5576
      %v5600 = vpack.c.bf16 %v5579, %v5578
      %v5601 = vpack.c.bf16 %v5581, %v5580
      %v5602 = vpack.c.bf16 %v5583, %v5582
      %v5603 = vpack.c.bf16 %v5585, %v5584
      %s5604 = scalar_lea.vmem %s3, 96
      %v5605 = vld [vmem:[%s5604] sm:$0xf]
      %v5606 = vld [vmem:[%s5604 + $0x4] sm:$0xf]
      %v5607 = vld [vmem:[%s5604 + $0x8] sm:$0xf]
      %v5608 = vld [vmem:[%s5604 + $0xc] sm:$0xf]
      %v5613 = vunpack.c.l.b16 %v5605
      %v5614 = vunpack.c.l.b16 %v5606
      %v5615 = vunpack.c.l.b16 %v5607
      %v5616 = vunpack.c.l.b16 %v5608
      %v5617 = vpack.c.b16 %v5614, %v5613
      %v5618 = vpack.c.b16 %v5616, %v5615
      %v5622 = vsel %vm3866, %v5586, 0
      %v5625 = vsel %vm3866, %v5587, 0
      %v5628 = vsel %vm3866, %v5588, 0
      %v5631 = vsel %vm3866, %v5589, 0
      %v5634 = vsel %vm3866, %v5590, 0
      %v5637 = vsel %vm3866, %v5591, 0
      %v5640 = vsel %vm3866, %v5592, 0
      %v5643 = vsel %vm3866, %v5593, 0
      %v5646 = vsel %vm3866, %v5594, 0
      %v5649 = vsel %vm3866, %v5595, 0
      %v5652 = vsel %vm3866, %v5596, 0
      %v5655 = vsel %vm3866, %v5597, 0
      %v5658 = vsel %vm3866, %v5598, 0
      %v5661 = vsel %vm3866, %v5599, 0
      %v5664 = vsel %vm3866, %v5600, 0
      %v5667 = vsel %vm3866, %v5601, 0
      %v5670 = vsel %vm3866, %v5602, 0
      %v5673 = vsel %vm3866, %v5603, 0
      %5675 = vmatpush.bf16.msra.mxu0 0
      %5676 = vmatpush.bf16.msra.mxu0 0
      %5677 = vmatpush.bf16.msra.mxu0 0
      %5678 = vmatpush.bf16.msra.mxu0 0
      %5679 = vmatpush.bf16.msra.mxu0 0
      %5680 = vmatpush.bf16.msra.mxu0 0
      %5681 = vmatpush.bf16.msra.mxu0 %v5618
      %5682 = vmatpush.bf16.msra.mxu0 %v5617
      %5683 = vmatmul.bf16.gmra.mxu0 %v5622
      %v5684 = vpop.f32.mrf.mxu0
      %v5685 = vadd.f32 0.0, %v5684
      %v5686 = vpop.f32.mrf.mxu0
      %v5687 = vadd.f32 0.0, %v5686
      %5688 = vmatmul.bf16.gmra.mxu0 %v5625
      %v5689 = vpop.f32.mrf.mxu0
      %v5690 = vadd.f32 0.0, %v5689
      %v5691 = vpop.f32.mrf.mxu0
      %v5692 = vadd.f32 0.0, %v5691
      %5693 = vmatmul.bf16.gmra.mxu0 %v5628
      %v5694 = vpop.f32.mrf.mxu0
      %v5695 = vadd.f32 0.0, %v5694
      %v5696 = vpop.f32.mrf.mxu0
      %v5697 = vadd.f32 0.0, %v5696
      %5698 = vmatmul.bf16.gmra.mxu0 %v5631
      %v5699 = vpop.f32.mrf.mxu0
      %v5700 = vadd.f32 0.0, %v5699
      %v5701 = vpop.f32.mrf.mxu0
      %v5702 = vadd.f32 0.0, %v5701
      %5703 = vmatmul.bf16.gmra.mxu0 %v5634
      %v5704 = vpop.f32.mrf.mxu0
      %v5705 = vadd.f32 0.0, %v5704
      %v5706 = vpop.f32.mrf.mxu0
      %v5707 = vadd.f32 0.0, %v5706
      %5708 = vmatmul.bf16.gmra.mxu0 %v5637
      %v5709 = vpop.f32.mrf.mxu0
      %v5710 = vadd.f32 0.0, %v5709
      %v5711 = vpop.f32.mrf.mxu0
      %v5712 = vadd.f32 0.0, %v5711
      %5713 = vmatmul.bf16.gmra.mxu0 %v5640
      %v5714 = vpop.f32.mrf.mxu0
      %v5715 = vadd.f32 0.0, %v5714
      %v5716 = vpop.f32.mrf.mxu0
      %v5717 = vadd.f32 0.0, %v5716
      %5718 = vmatmul.bf16.gmra.mxu0 %v5643
      %v5719 = vpop.f32.mrf.mxu0
      %v5720 = vadd.f32 0.0, %v5719
      %v5721 = vpop.f32.mrf.mxu0
      %v5722 = vadd.f32 0.0, %v5721
      %5723 = vmatmul.bf16.gmra.mxu0 %v5646
      %v5724 = vpop.f32.mrf.mxu0
      %v5725 = vadd.f32 0.0, %v5724
      %v5726 = vpop.f32.mrf.mxu0
      %v5727 = vadd.f32 0.0, %v5726
      %5728 = vmatmul.bf16.gmra.mxu0 %v5649
      %v5729 = vpop.f32.mrf.mxu0
      %v5730 = vadd.f32 0.0, %v5729
      %v5731 = vpop.f32.mrf.mxu0
      %v5732 = vadd.f32 0.0, %v5731
      %5733 = vmatmul.bf16.gmra.mxu0 %v5652
      %v5734 = vpop.f32.mrf.mxu0
      %v5735 = vadd.f32 0.0, %v5734
      %v5736 = vpop.f32.mrf.mxu0
      %v5737 = vadd.f32 0.0, %v5736
      %5738 = vmatmul.bf16.gmra.mxu0 %v5655
      %v5739 = vpop.f32.mrf.mxu0
      %v5740 = vadd.f32 0.0, %v5739
      %v5741 = vpop.f32.mrf.mxu0
      %v5742 = vadd.f32 0.0, %v5741
      %5743 = vmatmul.bf16.gmra.mxu0 %v5658
      %v5744 = vpop.f32.mrf.mxu0
      %v5745 = vadd.f32 0.0, %v5744
      %v5746 = vpop.f32.mrf.mxu0
      %v5747 = vadd.f32 0.0, %v5746
      %5748 = vmatmul.bf16.gmra.mxu0 %v5661
      %v5749 = vpop.f32.mrf.mxu0
      %v5750 = vadd.f32 0.0, %v5749
      %v5751 = vpop.f32.mrf.mxu0
      %v5752 = vadd.f32 0.0, %v5751
      %5753 = vmatmul.bf16.gmra.mxu0 %v5664
      %v5754 = vpop.f32.mrf.mxu0
      %v5755 = vadd.f32 0.0, %v5754
      %v5756 = vpop.f32.mrf.mxu0
      %v5757 = vadd.f32 0.0, %v5756
      %5758 = vmatmul.bf16.gmra.mxu0 %v5667
      %v5759 = vpop.f32.mrf.mxu0
      %v5760 = vadd.f32 0.0, %v5759
      %v5761 = vpop.f32.mrf.mxu0
      %v5762 = vadd.f32 0.0, %v5761
      %5763 = vmatmul.bf16.gmra.mxu0 %v5670
      %v5764 = vpop.f32.mrf.mxu0
      %v5765 = vadd.f32 0.0, %v5764
      %v5766 = vpop.f32.mrf.mxu0
      %v5767 = vadd.f32 0.0, %v5766
      %5768 = vmatmul.bf16.gmra.mxu0 %v5673
      %v5769 = vpop.f32.mrf.mxu0
      %v5770 = vadd.f32 0.0, %v5769
      %v5771 = vpop.f32.mrf.mxu0
      %v5772 = vadd.f32 0.0, %v5771
      %5773 = vdwg.mxu0
      %v5774 = vadd.f32 %v5514, %v5685
      %v5775 = vadd.f32 %v5515, %v5687
      %v5776 = vadd.f32 %v5516, %v5690
      %v5777 = vadd.f32 %v5517, %v5692
      %v5778 = vadd.f32 %v5518, %v5695
      %v5779 = vadd.f32 %v5519, %v5697
      %v5780 = vadd.f32 %v5520, %v5700
      %v5781 = vadd.f32 %v5521, %v5702
      %v5782 = vadd.f32 %v5522, %v5705
      %v5783 = vadd.f32 %v5523, %v5707
      %v5784 = vadd.f32 %v5524, %v5710
      %v5785 = vadd.f32 %v5525, %v5712
      %v5786 = vadd.f32 %v5526, %v5715
      %v5787 = vadd.f32 %v5527, %v5717
      %v5788 = vadd.f32 %v5528, %v5720
      %v5789 = vadd.f32 %v5529, %v5722
      %v5790 = vadd.f32 %v5530, %v5725
      %v5791 = vadd.f32 %v5531, %v5727
      %v5792 = vadd.f32 %v5532, %v5730
      %v5793 = vadd.f32 %v5533, %v5732
      %v5794 = vadd.f32 %v5534, %v5735
      %v5795 = vadd.f32 %v5535, %v5737
      %v5796 = vadd.f32 %v5536, %v5740
      %v5797 = vadd.f32 %v5537, %v5742
      %v5798 = vadd.f32 %v5538, %v5745
      %v5799 = vadd.f32 %v5539, %v5747
      %v5800 = vadd.f32 %v5540, %v5750
      %v5801 = vadd.f32 %v5541, %v5752
      %v5802 = vadd.f32 %v5542, %v5755
      %v5803 = vadd.f32 %v5543, %v5757
      %v5804 = vadd.f32 %v5544, %v5760
      %v5805 = vadd.f32 %v5545, %v5762
      %v5806 = vadd.f32 %v5546, %v5765
      %v5807 = vadd.f32 %v5547, %v5767
      %v5808 = vadd.f32 %v5548, %v5770
      %v5809 = vadd.f32 %v5549, %v5772
      %v5810 = vld [vmem:[#allocation2 + $0x2a] sm:$0xff]
      %v5811 = vld [vmem:[#allocation2 + $0x32] sm:$0xff]
      %v5812 = vld [vmem:[#allocation2 + $0x3a] sm:$0xff]
      %v5813 = vld [vmem:[#allocation2 + $0x42] sm:$0xff]
      %v5814 = vld [vmem:[#allocation2 + $0x4a] sm:$0xff]
      %v5815 = vld [vmem:[#allocation2 + $0x52] sm:$0xff]
      %v5816 = vld [vmem:[#allocation2 + $0x5a] sm:$0xff]
      %v5817 = vld [vmem:[#allocation2 + $0x62] sm:$0xff]
      %v5818 = vld [vmem:[#allocation2 + $0x6a] sm:$0xff]
      %v5819 = vld [vmem:[#allocation2 + $0x72] sm:$0xff]
      %v5820 = vld [vmem:[#allocation2 + $0x7a] sm:$0xff]
      %v5821 = vld [vmem:[#allocation2 + $0x82] sm:$0xff]
      %v5822 = vld [vmem:[#allocation2 + $0x8a] sm:$0xff]
      %v5823 = vld [vmem:[#allocation2 + $0x92] sm:$0xff]
      %v5824 = vld [vmem:[#allocation2 + $0x9a] sm:$0xff]
      %v5825 = vld [vmem:[#allocation2 + $0xa2] sm:$0xff]
      %v5826 = vld [vmem:[#allocation2 + $0xaa] sm:$0xff]
      %v5827 = vld [vmem:[#allocation2 + $0xb2] sm:$0xff]
      %v5828 = vld [vmem:[#allocation2 + $0xba] sm:$0xff]
      %v5829 = vld [vmem:[#allocation2 + $0xc2] sm:$0xff]
      %v5830 = vld [vmem:[#allocation2 + $0xca] sm:$0xff]
      %v5831 = vld [vmem:[#allocation2 + $0xd2] sm:$0xff]
      %v5832 = vld [vmem:[#allocation2 + $0xda] sm:$0xff]
      %v5833 = vld [vmem:[#allocation2 + $0xe2] sm:$0xff]
      %v5834 = vld [vmem:[#allocation2 + $0xea] sm:$0xff]
      %v5835 = vld [vmem:[#allocation2 + $0xf2] sm:$0xff]
      %v5836 = vld [vmem:[#allocation2 + $0xfa] sm:$0xff]
      %v5837 = vld [vmem:[#allocation2 + $0x102] sm:$0xff]
      %v5838 = vld [vmem:[#allocation2 + $0x10a] sm:$0xff]
      %v5839 = vld [vmem:[#allocation2 + $0x112] sm:$0xff]
      %v5840 = vld [vmem:[#allocation2 + $0x11a] sm:$0xff]
      %v5841 = vld [vmem:[#allocation2 + $0x122] sm:$0xff]
      %v5842 = vld [vmem:[#allocation2 + $0x12a] sm:$0xff]
      %v5843 = vld [vmem:[#allocation2 + $0x132] sm:$0xff]
      %v5844 = vld [vmem:[#allocation2 + $0x13a] sm:$0xff]
      %v5845 = vld [vmem:[#allocation2 + $0x142] sm:$0xff]
      %v5846 = vpack.c.bf16 %v5811, %v5810
      %v5847 = vpack.c.bf16 %v5813, %v5812
      %v5848 = vpack.c.bf16 %v5815, %v5814
      %v5849 = vpack.c.bf16 %v5817, %v5816
      %v5850 = vpack.c.bf16 %v5819, %v5818
      %v5851 = vpack.c.bf16 %v5821, %v5820
      %v5852 = vpack.c.bf16 %v5823, %v5822
      %v5853 = vpack.c.bf16 %v5825, %v5824
      %v5854 = vpack.c.bf16 %v5827, %v5826
      %v5855 = vpack.c.bf16 %v5829, %v5828
      %v5856 = vpack.c.bf16 %v5831, %v5830
      %v5857 = vpack.c.bf16 %v5833, %v5832
      %v5858 = vpack.c.bf16 %v5835, %v5834
      %v5859 = vpack.c.bf16 %v5837, %v5836
      %v5860 = vpack.c.bf16 %v5839, %v5838
      %v5861 = vpack.c.bf16 %v5841, %v5840
      %v5862 = vpack.c.bf16 %v5843, %v5842
      %v5863 = vpack.c.bf16 %v5845, %v5844
      %s5864 = scalar_lea.vmem %s3, 112
      %v5865 = vld [vmem:[%s5864] sm:$0xf]
      %v5866 = vld [vmem:[%s5864 + $0x4] sm:$0xf]
      %v5867 = vld [vmem:[%s5864 + $0x8] sm:$0xf]
      %v5868 = vld [vmem:[%s5864 + $0xc] sm:$0xf]
      %v5873 = vunpack.c.l.b16 %v5865
      %v5874 = vunpack.c.l.b16 %v5866
      %v5875 = vunpack.c.l.b16 %v5867
      %v5876 = vunpack.c.l.b16 %v5868
      %v5877 = vpack.c.b16 %v5874, %v5873
      %v5878 = vpack.c.b16 %v5876, %v5875
      %v5882 = vsel %vm3866, %v5846, 0
      %v5885 = vsel %vm3866, %v5847, 0
      %v5888 = vsel %vm3866, %v5848, 0
      %v5891 = vsel %vm3866, %v5849, 0
      %v5894 = vsel %vm3866, %v5850, 0
      %v5897 = vsel %vm3866, %v5851, 0
      %v5900 = vsel %vm3866, %v5852, 0
      %v5903 = vsel %vm3866, %v5853, 0
      %v5906 = vsel %vm3866, %v5854, 0
      %v5909 = vsel %vm3866, %v5855, 0
      %v5912 = vsel %vm3866, %v5856, 0
      %v5915 = vsel %vm3866, %v5857, 0
      %v5918 = vsel %vm3866, %v5858, 0
      %v5921 = vsel %vm3866, %v5859, 0
      %v5924 = vsel %vm3866, %v5860, 0
      %v5927 = vsel %vm3866, %v5861, 0
      %v5930 = vsel %vm3866, %v5862, 0
      %v5933 = vsel %vm3866, %v5863, 0
      %5935 = vmatpush.bf16.msra.mxu0 0
      %5936 = vmatpush.bf16.msra.mxu0 0
      %5937 = vmatpush.bf16.msra.mxu0 0
      %5938 = vmatpush.bf16.msra.mxu0 0
      %5939 = vmatpush.bf16.msra.mxu0 0
      %5940 = vmatpush.bf16.msra.mxu0 0
      %5941 = vmatpush.bf16.msra.mxu0 %v5878
      %5942 = vmatpush.bf16.msra.mxu0 %v5877
      %5943 = vmatmul.bf16.gmra.mxu0 %v5882
      %v5944 = vpop.f32.mrf.mxu0
      %v5945 = vadd.f32 0.0, %v5944
      %v5946 = vpop.f32.mrf.mxu0
      %v5947 = vadd.f32 0.0, %v5946
      %5948 = vmatmul.bf16.gmra.mxu0 %v5885
      %v5949 = vpop.f32.mrf.mxu0
      %v5950 = vadd.f32 0.0, %v5949
      %v5951 = vpop.f32.mrf.mxu0
      %v5952 = vadd.f32 0.0, %v5951
      %5953 = vmatmul.bf16.gmra.mxu0 %v5888
      %v5954 = vpop.f32.mrf.mxu0
      %v5955 = vadd.f32 0.0, %v5954
      %v5956 = vpop.f32.mrf.mxu0
      %v5957 = vadd.f32 0.0, %v5956
      %5958 = vmatmul.bf16.gmra.mxu0 %v5891
      %v5959 = vpop.f32.mrf.mxu0
      %v5960 = vadd.f32 0.0, %v5959
      %v5961 = vpop.f32.mrf.mxu0
      %v5962 = vadd.f32 0.0, %v5961
      %5963 = vmatmul.bf16.gmra.mxu0 %v5894
      %v5964 = vpop.f32.mrf.mxu0
      %v5965 = vadd.f32 0.0, %v5964
      %v5966 = vpop.f32.mrf.mxu0
      %v5967 = vadd.f32 0.0, %v5966
      %5968 = vmatmul.bf16.gmra.mxu0 %v5897
      %v5969 = vpop.f32.mrf.mxu0
      %v5970 = vadd.f32 0.0, %v5969
      %v5971 = vpop.f32.mrf.mxu0
      %v5972 = vadd.f32 0.0, %v5971
      %5973 = vmatmul.bf16.gmra.mxu0 %v5900
      %v5974 = vpop.f32.mrf.mxu0
      %v5975 = vadd.f32 0.0, %v5974
      %v5976 = vpop.f32.mrf.mxu0
      %v5977 = vadd.f32 0.0, %v5976
      %5978 = vmatmul.bf16.gmra.mxu0 %v5903
      %v5979 = vpop.f32.mrf.mxu0
      %v5980 = vadd.f32 0.0, %v5979
      %v5981 = vpop.f32.mrf.mxu0
      %v5982 = vadd.f32 0.0, %v5981
      %5983 = vmatmul.bf16.gmra.mxu0 %v5906
      %v5984 = vpop.f32.mrf.mxu0
      %v5985 = vadd.f32 0.0, %v5984
      %v5986 = vpop.f32.mrf.mxu0
      %v5987 = vadd.f32 0.0, %v5986
      %5988 = vmatmul.bf16.gmra.mxu0 %v5909
      %v5989 = vpop.f32.mrf.mxu0
      %v5990 = vadd.f32 0.0, %v5989
      %v5991 = vpop.f32.mrf.mxu0
      %v5992 = vadd.f32 0.0, %v5991
      %5993 = vmatmul.bf16.gmra.mxu0 %v5912
      %v5994 = vpop.f32.mrf.mxu0
      %v5995 = vadd.f32 0.0, %v5994
      %v5996 = vpop.f32.mrf.mxu0
      %v5997 = vadd.f32 0.0, %v5996
      %5998 = vmatmul.bf16.gmra.mxu0 %v5915
      %v5999 = vpop.f32.mrf.mxu0
      %v6000 = vadd.f32 0.0, %v5999
      %v6001 = vpop.f32.mrf.mxu0
      %v6002 = vadd.f32 0.0, %v6001
      %6003 = vmatmul.bf16.gmra.mxu0 %v5918
      %v6004 = vpop.f32.mrf.mxu0
      %v6005 = vadd.f32 0.0, %v6004
      %v6006 = vpop.f32.mrf.mxu0
      %v6007 = vadd.f32 0.0, %v6006
      %6008 = vmatmul.bf16.gmra.mxu0 %v5921
      %v6009 = vpop.f32.mrf.mxu0
      %v6010 = vadd.f32 0.0, %v6009
      %v6011 = vpop.f32.mrf.mxu0
      %v6012 = vadd.f32 0.0, %v6011
      %6013 = vmatmul.bf16.gmra.mxu0 %v5924
      %v6014 = vpop.f32.mrf.mxu0
      %v6015 = vadd.f32 0.0, %v6014
      %v6016 = vpop.f32.mrf.mxu0
      %v6017 = vadd.f32 0.0, %v6016
      %6018 = vmatmul.bf16.gmra.mxu0 %v5927
      %v6019 = vpop.f32.mrf.mxu0
      %v6020 = vadd.f32 0.0, %v6019
      %v6021 = vpop.f32.mrf.mxu0
      %v6022 = vadd.f32 0.0, %v6021
      %6023 = vmatmul.bf16.gmra.mxu0 %v5930
      %v6024 = vpop.f32.mrf.mxu0
      %v6025 = vadd.f32 0.0, %v6024
      %v6026 = vpop.f32.mrf.mxu0
      %v6027 = vadd.f32 0.0, %v6026
      %6028 = vmatmul.bf16.gmra.mxu0 %v5933
      %v6029 = vpop.f32.mrf.mxu0
      %v6030 = vadd.f32 0.0, %v6029
      %v6031 = vpop.f32.mrf.mxu0
      %v6032 = vadd.f32 0.0, %v6031
      %6033 = vdwg.mxu0
      %v6034 = vadd.f32 %v5774, %v5945
      %v6035 = vadd.f32 %v5775, %v5947
      %v6036 = vadd.f32 %v5776, %v5950
      %v6037 = vadd.f32 %v5777, %v5952
      %v6038 = vadd.f32 %v5778, %v5955
      %v6039 = vadd.f32 %v5779, %v5957
      %v6040 = vadd.f32 %v5780, %v5960
      %v6041 = vadd.f32 %v5781, %v5962
      %v6042 = vadd.f32 %v5782, %v5965
      %v6043 = vadd.f32 %v5783, %v5967
      %v6044 = vadd.f32 %v5784, %v5970
      %v6045 = vadd.f32 %v5785, %v5972
      %v6046 = vadd.f32 %v5786, %v5975
      %v6047 = vadd.f32 %v5787, %v5977
      %v6048 = vadd.f32 %v5788, %v5980
      %v6049 = vadd.f32 %v5789, %v5982
      %v6050 = vadd.f32 %v5790, %v5985
      %v6051 = vadd.f32 %v5791, %v5987
      %v6052 = vadd.f32 %v5792, %v5990
      %v6053 = vadd.f32 %v5793, %v5992
      %v6054 = vadd.f32 %v5794, %v5995
      %v6055 = vadd.f32 %v5795, %v5997
      %v6056 = vadd.f32 %v5796, %v6000
      %v6057 = vadd.f32 %v5797, %v6002
      %v6058 = vadd.f32 %v5798, %v6005
      %v6059 = vadd.f32 %v5799, %v6007
      %v6060 = vadd.f32 %v5800, %v6010
      %v6061 = vadd.f32 %v5801, %v6012
      %v6062 = vadd.f32 %v5802, %v6015
      %v6063 = vadd.f32 %v5803, %v6017
      %v6064 = vadd.f32 %v5804, %v6020
      %v6065 = vadd.f32 %v5805, %v6022
      %v6066 = vadd.f32 %v5806, %v6025
      %v6067 = vadd.f32 %v5807, %v6027
      %v6068 = vadd.f32 %v5808, %v6030
      %v6069 = vadd.f32 %v5809, %v6032
      %v6070 = vld [vmem:[#allocation2 + $0x2b] sm:$0xff]
      %v6071 = vld [vmem:[#allocation2 + $0x33] sm:$0xff]
      %v6072 = vld [vmem:[#allocation2 + $0x3b] sm:$0xff]
      %v6073 = vld [vmem:[#allocation2 + $0x43] sm:$0xff]
      %v6074 = vld [vmem:[#allocation2 + $0x4b] sm:$0xff]
      %v6075 = vld [vmem:[#allocation2 + $0x53] sm:$0xff]
      %v6076 = vld [vmem:[#allocation2 + $0x5b] sm:$0xff]
      %v6077 = vld [vmem:[#allocation2 + $0x63] sm:$0xff]
      %v6078 = vld [vmem:[#allocation2 + $0x6b] sm:$0xff]
      %v6079 = vld [vmem:[#allocation2 + $0x73] sm:$0xff]
      %v6080 = vld [vmem:[#allocation2 + $0x7b] sm:$0xff]
      %v6081 = vld [vmem:[#allocation2 + $0x83] sm:$0xff]
      %v6082 = vld [vmem:[#allocation2 + $0x8b] sm:$0xff]
      %v6083 = vld [vmem:[#allocation2 + $0x93] sm:$0xff]
      %v6084 = vld [vmem:[#allocation2 + $0x9b] sm:$0xff]
      %v6085 = vld [vmem:[#allocation2 + $0xa3] sm:$0xff]
      %v6086 = vld [vmem:[#allocation2 + $0xab] sm:$0xff]
      %v6087 = vld [vmem:[#allocation2 + $0xb3] sm:$0xff]
      %v6088 = vld [vmem:[#allocation2 + $0xbb] sm:$0xff]
      %v6089 = vld [vmem:[#allocation2 + $0xc3] sm:$0xff]
      %v6090 = vld [vmem:[#allocation2 + $0xcb] sm:$0xff]
      %v6091 = vld [vmem:[#allocation2 + $0xd3] sm:$0xff]
      %v6092 = vld [vmem:[#allocation2 + $0xdb] sm:$0xff]
      %v6093 = vld [vmem:[#allocation2 + $0xe3] sm:$0xff]
      %v6094 = vld [vmem:[#allocation2 + $0xeb] sm:$0xff]
      %v6095 = vld [vmem:[#allocation2 + $0xf3] sm:$0xff]
      %v6096 = vld [vmem:[#allocation2 + $0xfb] sm:$0xff]
      %v6097 = vld [vmem:[#allocation2 + $0x103] sm:$0xff]
      %v6098 = vld [vmem:[#allocation2 + $0x10b] sm:$0xff]
      %v6099 = vld [vmem:[#allocation2 + $0x113] sm:$0xff]
      %v6100 = vld [vmem:[#allocation2 + $0x11b] sm:$0xff]
      %v6101 = vld [vmem:[#allocation2 + $0x123] sm:$0xff]
      %v6102 = vld [vmem:[#allocation2 + $0x12b] sm:$0xff]
      %v6103 = vld [vmem:[#allocation2 + $0x133] sm:$0xff]
      %v6104 = vld [vmem:[#allocation2 + $0x13b] sm:$0xff]
      %v6105 = vld [vmem:[#allocation2 + $0x143] sm:$0xff]
      %v6106 = vpack.c.bf16 %v6071, %v6070
      %v6107 = vpack.c.bf16 %v6073, %v6072
      %v6108 = vpack.c.bf16 %v6075, %v6074
      %v6109 = vpack.c.bf16 %v6077, %v6076
      %v6110 = vpack.c.bf16 %v6079, %v6078
      %v6111 = vpack.c.bf16 %v6081, %v6080
      %v6112 = vpack.c.bf16 %v6083, %v6082
      %v6113 = vpack.c.bf16 %v6085, %v6084
      %v6114 = vpack.c.bf16 %v6087, %v6086
      %v6115 = vpack.c.bf16 %v6089, %v6088
      %v6116 = vpack.c.bf16 %v6091, %v6090
      %v6117 = vpack.c.bf16 %v6093, %v6092
      %v6118 = vpack.c.bf16 %v6095, %v6094
      %v6119 = vpack.c.bf16 %v6097, %v6096
      %v6120 = vpack.c.bf16 %v6099, %v6098
      %v6121 = vpack.c.bf16 %v6101, %v6100
      %v6122 = vpack.c.bf16 %v6103, %v6102
      %v6123 = vpack.c.bf16 %v6105, %v6104
      %s6124 = scalar_lea.vmem %s3, 128
      %v6125 = vld [vmem:[%s6124] sm:$0xf]
      %v6126 = vld [vmem:[%s6124 + $0x4] sm:$0xf]
      %v6127 = vld [vmem:[%s6124 + $0x8] sm:$0xf]
      %v6128 = vld [vmem:[%s6124 + $0xc] sm:$0xf]
      %v6133 = vunpack.c.l.b16 %v6125
      %v6134 = vunpack.c.l.b16 %v6126
      %v6135 = vunpack.c.l.b16 %v6127
      %v6136 = vunpack.c.l.b16 %v6128
      %v6137 = vpack.c.b16 %v6134, %v6133
      %v6138 = vpack.c.b16 %v6136, %v6135
      %v6142 = vsel %vm3866, %v6106, 0
      %v6145 = vsel %vm3866, %v6107, 0
      %v6148 = vsel %vm3866, %v6108, 0
      %v6151 = vsel %vm3866, %v6109, 0
      %v6154 = vsel %vm3866, %v6110, 0
      %v6157 = vsel %vm3866, %v6111, 0
      %v6160 = vsel %vm3866, %v6112, 0
      %v6163 = vsel %vm3866, %v6113, 0
      %v6166 = vsel %vm3866, %v6114, 0
      %v6169 = vsel %vm3866, %v6115, 0
      %v6172 = vsel %vm3866, %v6116, 0
      %v6175 = vsel %vm3866, %v6117, 0
      %v6178 = vsel %vm3866, %v6118, 0
      %v6181 = vsel %vm3866, %v6119, 0
      %v6184 = vsel %vm3866, %v6120, 0
      %v6187 = vsel %vm3866, %v6121, 0
      %v6190 = vsel %vm3866, %v6122, 0
      %v6193 = vsel %vm3866, %v6123, 0
      %6195 = vmatpush.bf16.msra.mxu0 0
      %6196 = vmatpush.bf16.msra.mxu0 0
      %6197 = vmatpush.bf16.msra.mxu0 0
      %6198 = vmatpush.bf16.msra.mxu0 0
      %6199 = vmatpush.bf16.msra.mxu0 0
      %6200 = vmatpush.bf16.msra.mxu0 0
      %6201 = vmatpush.bf16.msra.mxu0 %v6138
      %6202 = vmatpush.bf16.msra.mxu0 %v6137
      %6203 = vmatmul.bf16.gmra.mxu0 %v6142
      %v6204 = vpop.f32.mrf.mxu0
      %v6205 = vadd.f32 0.0, %v6204
      %v6206 = vpop.f32.mrf.mxu0
      %v6207 = vadd.f32 0.0, %v6206
      %6208 = vmatmul.bf16.gmra.mxu0 %v6145
      %v6209 = vpop.f32.mrf.mxu0
      %v6210 = vadd.f32 0.0, %v6209
      %v6211 = vpop.f32.mrf.mxu0
      %v6212 = vadd.f32 0.0, %v6211
      %6213 = vmatmul.bf16.gmra.mxu0 %v6148
      %v6214 = vpop.f32.mrf.mxu0
      %v6215 = vadd.f32 0.0, %v6214
      %v6216 = vpop.f32.mrf.mxu0
      %v6217 = vadd.f32 0.0, %v6216
      %6218 = vmatmul.bf16.gmra.mxu0 %v6151
      %v6219 = vpop.f32.mrf.mxu0
      %v6220 = vadd.f32 0.0, %v6219
      %v6221 = vpop.f32.mrf.mxu0
      %v6222 = vadd.f32 0.0, %v6221
      %6223 = vmatmul.bf16.gmra.mxu0 %v6154
      %v6224 = vpop.f32.mrf.mxu0
      %v6225 = vadd.f32 0.0, %v6224
      %v6226 = vpop.f32.mrf.mxu0
      %v6227 = vadd.f32 0.0, %v6226
      %6228 = vmatmul.bf16.gmra.mxu0 %v6157
      %v6229 = vpop.f32.mrf.mxu0
      %v6230 = vadd.f32 0.0, %v6229
      %v6231 = vpop.f32.mrf.mxu0
      %v6232 = vadd.f32 0.0, %v6231
      %6233 = vmatmul.bf16.gmra.mxu0 %v6160
      %v6234 = vpop.f32.mrf.mxu0
      %v6235 = vadd.f32 0.0, %v6234
      %v6236 = vpop.f32.mrf.mxu0
      %v6237 = vadd.f32 0.0, %v6236
      %6238 = vmatmul.bf16.gmra.mxu0 %v6163
      %v6239 = vpop.f32.mrf.mxu0
      %v6240 = vadd.f32 0.0, %v6239
      %v6241 = vpop.f32.mrf.mxu0
      %v6242 = vadd.f32 0.0, %v6241
      %6243 = vmatmul.bf16.gmra.mxu0 %v6166
      %v6244 = vpop.f32.mrf.mxu0
      %v6245 = vadd.f32 0.0, %v6244
      %v6246 = vpop.f32.mrf.mxu0
      %v6247 = vadd.f32 0.0, %v6246
      %6248 = vmatmul.bf16.gmra.mxu0 %v6169
      %v6249 = vpop.f32.mrf.mxu0
      %v6250 = vadd.f32 0.0, %v6249
      %v6251 = vpop.f32.mrf.mxu0
      %v6252 = vadd.f32 0.0, %v6251
      %6253 = vmatmul.bf16.gmra.mxu0 %v6172
      %v6254 = vpop.f32.mrf.mxu0
      %v6255 = vadd.f32 0.0, %v6254
      %v6256 = vpop.f32.mrf.mxu0
      %v6257 = vadd.f32 0.0, %v6256
      %6258 = vmatmul.bf16.gmra.mxu0 %v6175
      %v6259 = vpop.f32.mrf.mxu0
      %v6260 = vadd.f32 0.0, %v6259
      %v6261 = vpop.f32.mrf.mxu0
      %v6262 = vadd.f32 0.0, %v6261
      %6263 = vmatmul.bf16.gmra.mxu0 %v6178
      %v6264 = vpop.f32.mrf.mxu0
      %v6265 = vadd.f32 0.0, %v6264
      %v6266 = vpop.f32.mrf.mxu0
      %v6267 = vadd.f32 0.0, %v6266
      %6268 = vmatmul.bf16.gmra.mxu0 %v6181
      %v6269 = vpop.f32.mrf.mxu0
      %v6270 = vadd.f32 0.0, %v6269
      %v6271 = vpop.f32.mrf.mxu0
      %v6272 = vadd.f32 0.0, %v6271
      %6273 = vmatmul.bf16.gmra.mxu0 %v6184
      %v6274 = vpop.f32.mrf.mxu0
      %v6275 = vadd.f32 0.0, %v6274
      %v6276 = vpop.f32.mrf.mxu0
      %v6277 = vadd.f32 0.0, %v6276
      %6278 = vmatmul.bf16.gmra.mxu0 %v6187
      %v6279 = vpop.f32.mrf.mxu0
      %v6280 = vadd.f32 0.0, %v6279
      %v6281 = vpop.f32.mrf.mxu0
      %v6282 = vadd.f32 0.0, %v6281
      %6283 = vmatmul.bf16.gmra.mxu0 %v6190
      %v6284 = vpop.f32.mrf.mxu0
      %v6285 = vadd.f32 0.0, %v6284
      %v6286 = vpop.f32.mrf.mxu0
      %v6287 = vadd.f32 0.0, %v6286
      %6288 = vmatmul.bf16.gmra.mxu0 %v6193
      %v6289 = vpop.f32.mrf.mxu0
      %v6290 = vadd.f32 0.0, %v6289
      %v6291 = vpop.f32.mrf.mxu0
      %v6292 = vadd.f32 0.0, %v6291
      %6293 = vdwg.mxu0
      %v6294 = vadd.f32 %v6034, %v6205
      %v6295 = vadd.f32 %v6035, %v6207
      %v6296 = vadd.f32 %v6036, %v6210
      %v6297 = vadd.f32 %v6037, %v6212
      %v6298 = vadd.f32 %v6038, %v6215
      %v6299 = vadd.f32 %v6039, %v6217
      %v6300 = vadd.f32 %v6040, %v6220
      %v6301 = vadd.f32 %v6041, %v6222
      %v6302 = vadd.f32 %v6042, %v6225
      %v6303 = vadd.f32 %v6043, %v6227
      %v6304 = vadd.f32 %v6044, %v6230
      %v6305 = vadd.f32 %v6045, %v6232
      %v6306 = vadd.f32 %v6046, %v6235
      %v6307 = vadd.f32 %v6047, %v6237
      %v6308 = vadd.f32 %v6048, %v6240
      %v6309 = vadd.f32 %v6049, %v6242
      %v6310 = vadd.f32 %v6050, %v6245
      %v6311 = vadd.f32 %v6051, %v6247
      %v6312 = vadd.f32 %v6052, %v6250
      %v6313 = vadd.f32 %v6053, %v6252
      %v6314 = vadd.f32 %v6054, %v6255
      %v6315 = vadd.f32 %v6055, %v6257
      %v6316 = vadd.f32 %v6056, %v6260
      %v6317 = vadd.f32 %v6057, %v6262
      %v6318 = vadd.f32 %v6058, %v6265
      %v6319 = vadd.f32 %v6059, %v6267
      %v6320 = vadd.f32 %v6060, %v6270
      %v6321 = vadd.f32 %v6061, %v6272
      %v6322 = vadd.f32 %v6062, %v6275
      %v6323 = vadd.f32 %v6063, %v6277
      %v6324 = vadd.f32 %v6064, %v6280
      %v6325 = vadd.f32 %v6065, %v6282
      %v6326 = vadd.f32 %v6066, %v6285
      %v6327 = vadd.f32 %v6067, %v6287
      %v6328 = vadd.f32 %v6068, %v6290
      %v6329 = vadd.f32 %v6069, %v6292
      %v6330 = vmax.f32 %v6294, 0.0
      %v6331 = vmax.f32 %v6295, 0.0
      %v6332 = vmax.f32 %v6296, 0.0
      %v6333 = vmax.f32 %v6297, 0.0
      %v6334 = vmax.f32 %v6298, 0.0
      %v6335 = vmax.f32 %v6299, 0.0
      %v6336 = vmax.f32 %v6300, 0.0
      %v6337 = vmax.f32 %v6301, 0.0
      %v6338 = vmax.f32 %v6302, 0.0
      %v6339 = vmax.f32 %v6303, 0.0
      %v6340 = vmax.f32 %v6304, 0.0
      %v6341 = vmax.f32 %v6305, 0.0
      %v6342 = vmax.f32 %v6306, 0.0
      %v6343 = vmax.f32 %v6307, 0.0
      %v6344 = vmax.f32 %v6308, 0.0
      %v6345 = vmax.f32 %v6309, 0.0
      %v6346 = vmax.f32 %v6310, 0.0
      %v6347 = vmax.f32 %v6311, 0.0
      %v6348 = vmax.f32 %v6312, 0.0
      %v6349 = vmax.f32 %v6313, 0.0
      %v6350 = vmax.f32 %v6314, 0.0
      %v6351 = vmax.f32 %v6315, 0.0
      %v6352 = vmax.f32 %v6316, 0.0
      %v6353 = vmax.f32 %v6317, 0.0
      %v6354 = vmax.f32 %v6318, 0.0
      %v6355 = vmax.f32 %v6319, 0.0
      %v6356 = vmax.f32 %v6320, 0.0
      %v6357 = vmax.f32 %v6321, 0.0
      %v6358 = vmax.f32 %v6322, 0.0
      %v6359 = vmax.f32 %v6323, 0.0
      %v6360 = vmax.f32 %v6324, 0.0
      %v6361 = vmax.f32 %v6325, 0.0
      %v6362 = vmax.f32 %v6326, 0.0
      %v6363 = vmax.f32 %v6327, 0.0
      %v6364 = vmax.f32 %v6328, 0.0
      %v6365 = vmax.f32 %v6329, 0.0
      %v6366 = vmul.f32 %v6330, %v3653
      %v6367 = vmul.f32 %v6331, %v3658
      %v6368 = vmul.f32 %v6332, %v3663
      %v6369 = vmul.f32 %v6333, %v3668
      %v6370 = vmul.f32 %v6334, %v3673
      %v6371 = vmul.f32 %v6335, %v3678
      %v6372 = vmul.f32 %v6336, %v3683
      %v6373 = vmul.f32 %v6337, %v3688
      %v6374 = vmul.f32 %v6338, %v3693
      %v6375 = vmul.f32 %v6339, %v3698
      %v6376 = vmul.f32 %v6340, %v3703
      %v6377 = vmul.f32 %v6341, %v3708
      %v6378 = vmul.f32 %v6342, %v3713
      %v6379 = vmul.f32 %v6343, %v3718
      %v6380 = vmul.f32 %v6344, %v3723
      %v6381 = vmul.f32 %v6345, %v3728
      %v6382 = vmul.f32 %v6346, %v3733
      %v6383 = vmul.f32 %v6347, %v3738
      %v6384 = vmul.f32 %v6348, %v3743
      %v6385 = vmul.f32 %v6349, %v3748
      %v6386 = vmul.f32 %v6350, %v3753
      %v6387 = vmul.f32 %v6351, %v3758
      %v6388 = vmul.f32 %v6352, %v3763
      %v6389 = vmul.f32 %v6353, %v3768
      %v6390 = vmul.f32 %v6354, %v3773
      %v6391 = vmul.f32 %v6355, %v3778
      %v6392 = vmul.f32 %v6356, %v3783
      %v6393 = vmul.f32 %v6357, %v3788
      %v6394 = vmul.f32 %v6358, %v3793
      %v6395 = vmul.f32 %v6359, %v3798
      %v6396 = vmul.f32 %v6360, %v3803
      %v6397 = vmul.f32 %v6361, %v3808
      %v6398 = vmul.f32 %v6362, %v3813
      %v6399 = vmul.f32 %v6363, %v3818
      %v6400 = vmul.f32 %v6364, %v3823
      %v6401 = vmul.f32 %v6365, %v3828
      %v6402 = vpack.c.bf16 %v6366, %v6366
      %v6403 = vpack.c.bf16 %v6367, %v6367
      %v6404 = vpack.c.bf16 %v6368, %v6368
      %v6405 = vpack.c.bf16 %v6369, %v6369
      %v6406 = vpack.c.bf16 %v6370, %v6370
      %v6407 = vpack.c.bf16 %v6371, %v6371
      %v6408 = vpack.c.bf16 %v6372, %v6372
      %v6409 = vpack.c.bf16 %v6373, %v6373
      %v6410 = vpack.c.bf16 %v6374, %v6374
      %v6411 = vpack.c.bf16 %v6375, %v6375
      %v6412 = vpack.c.bf16 %v6376, %v6376
      %v6413 = vpack.c.bf16 %v6377, %v6377
      %v6414 = vpack.c.bf16 %v6378, %v6378
      %v6415 = vpack.c.bf16 %v6379, %v6379
      %v6416 = vpack.c.bf16 %v6380, %v6380
      %v6417 = vpack.c.bf16 %v6381, %v6381
      %v6418 = vpack.c.bf16 %v6382, %v6382
      %v6419 = vpack.c.bf16 %v6383, %v6383
      %v6420 = vpack.c.bf16 %v6384, %v6384
      %v6421 = vpack.c.bf16 %v6385, %v6385
      %v6422 = vpack.c.bf16 %v6386, %v6386
      %v6423 = vpack.c.bf16 %v6387, %v6387
      %v6424 = vpack.c.bf16 %v6388, %v6388
      %v6425 = vpack.c.bf16 %v6389, %v6389
      %v6426 = vpack.c.bf16 %v6390, %v6390
      %v6427 = vpack.c.bf16 %v6391, %v6391
      %v6428 = vpack.c.bf16 %v6392, %v6392
      %v6429 = vpack.c.bf16 %v6393, %v6393
      %v6430 = vpack.c.bf16 %v6394, %v6394
      %v6431 = vpack.c.bf16 %v6395, %v6395
      %v6432 = vpack.c.bf16 %v6396, %v6396
      %v6433 = vpack.c.bf16 %v6397, %v6397
      %v6434 = vpack.c.bf16 %v6398, %v6398
      %v6435 = vpack.c.bf16 %v6399, %v6399
      %v6436 = vpack.c.bf16 %v6400, %v6400
      %v6437 = vpack.c.bf16 %v6401, %v6401
      %vm6438 = vcmask 257024
      %6439 = vst.msk [vmem:[%s251] sm:$0xf] %vm6438, %v6402
      %6440 = vst.msk [vmem:[%s251 + $0x4] sm:$0xf] %vm6438, %v6403
      %6441 = vst.msk [vmem:[%s251 + $0x8] sm:$0xf] %vm6438, %v6404
      %6442 = vst.msk [vmem:[%s251 + $0xc] sm:$0xf] %vm6438, %v6405
      %6443 = vst.msk [vmem:[%s251 + $0x10] sm:$0xf] %vm6438, %v6406
      %6444 = vst.msk [vmem:[%s251 + $0x14] sm:$0xf] %vm6438, %v6407
      %6445 = vst.msk [vmem:[%s251 + $0x18] sm:$0xf] %vm6438, %v6408
      %6446 = vst.msk [vmem:[%s251 + $0x1c] sm:$0xf] %vm6438, %v6409
      %6447 = vst.msk [vmem:[%s251 + $0x20] sm:$0xf] %vm6438, %v6410
      %6448 = vst.msk [vmem:[%s251 + $0x24] sm:$0xf] %vm6438, %v6411
      %6449 = vst.msk [vmem:[%s251 + $0x28] sm:$0xf] %vm6438, %v6412
      %6450 = vst.msk [vmem:[%s251 + $0x2c] sm:$0xf] %vm6438, %v6413
      %6451 = vst.msk [vmem:[%s251 + $0x30] sm:$0xf] %vm6438, %v6414
      %6452 = vst.msk [vmem:[%s251 + $0x34] sm:$0xf] %vm6438, %v6415
      %6453 = vst.msk [vmem:[%s251 + $0x38] sm:$0xf] %vm6438, %v6416
      %6454 = vst.msk [vmem:[%s251 + $0x3c] sm:$0xf] %vm6438, %v6417
      %6455 = vst.msk [vmem:[%s251 + $0x40] sm:$0xf] %vm6438, %v6418
      %6456 = vst.msk [vmem:[%s251 + $0x44] sm:$0xf] %vm6438, %v6419
      %6457 = vst.msk [vmem:[%s251 + $0x48] sm:$0xf] %vm6438, %v6420
      %6458 = vst.msk [vmem:[%s251 + $0x4c] sm:$0xf] %vm6438, %v6421
      %6459 = vst.msk [vmem:[%s251 + $0x50] sm:$0xf] %vm6438, %v6422
      %6460 = vst.msk [vmem:[%s251 + $0x54] sm:$0xf] %vm6438, %v6423
      %6461 = vst.msk [vmem:[%s251 + $0x58] sm:$0xf] %vm6438, %v6424
      %6462 = vst.msk [vmem:[%s251 + $0x5c] sm:$0xf] %vm6438, %v6425
      %6463 = vst.msk [vmem:[%s251 + $0x60] sm:$0xf] %vm6438, %v6426
      %6464 = vst.msk [vmem:[%s251 + $0x64] sm:$0xf] %vm6438, %v6427
      %6465 = vst.msk [vmem:[%s251 + $0x68] sm:$0xf] %vm6438, %v6428
      %6466 = vst.msk [vmem:[%s251 + $0x6c] sm:$0xf] %vm6438, %v6429
      %6467 = vst.msk [vmem:[%s251 + $0x70] sm:$0xf] %vm6438, %v6430
      %6468 = vst.msk [vmem:[%s251 + $0x74] sm:$0xf] %vm6438, %v6431
      %6469 = vst.msk [vmem:[%s251 + $0x78] sm:$0xf] %vm6438, %v6432
      %6470 = vst.msk [vmem:[%s251 + $0x7c] sm:$0xf] %vm6438, %v6433
      %6471 = vst.msk [vmem:[%s251 + $0x80] sm:$0xf] %vm6438, %v6434
      %6472 = vst.msk [vmem:[%s251 + $0x84] sm:$0xf] %vm6438, %v6435
      %6473 = vst.msk [vmem:[%s251 + $0x88] sm:$0xf] %vm6438, %v6436
      %6474 = vst.msk [vmem:[%s251 + $0x8c] sm:$0xf] %vm6438, %v6437
      %p6475 = scmp.lt.s32.totalorder %s17, 1
      %s6476 = scalar_select %p6475, %s17, 1
      %s6477 = smul.addr %s6476, 36
      %s6478 = smul.addr %s6477, 4
      %s6479 = scalar_lea.vmem %s6, %s6478
      // Predicated region
      $region45: #{convnet_forward.2} parent=43 // pred_check
        %p6480 = pneg %p166
      $region46: #{convnet_forward.2} parent=43 // pred_check_branch
        %6482 = sbr.rel (%p6480) target = $region48
      $region47: #{convnet_forward.2} parent=43 // pred_region
        _
      $region48: #{convnet_forward.2} parent=43 // pred_fallthru
        _
    $region44: #{convnet_forward.2} parent=5 // pred_fallthru
      _
    %p6483 = scmp.le.s32.totalorder 2, %s12
    // Predicated region
    $region49: #{convnet_forward.2} parent=5 // pred_check
      %p6484 = pneg %p6483
    $region50: #{convnet_forward.2} parent=5 // pred_check_branch
      %6486 = sbr.rel (%p6484) target = $region52
    $region51: #{convnet_forward.2} parent=5 // pred_region
      %s6487 = ssub.s32 %s12, 2
      // Predicated region
      $region53: #{convnet_forward.2} parent=51 // pred_check
        %p6488 = pneg %p172
      $region54: #{convnet_forward.2} parent=51 // pred_check_branch
        %6490 = sbr.rel (%p6488) target = $region56
      $region55: #{convnet_forward.2} parent=51 // pred_region
        %p6491 = scmp.lt.s32.totalorder %s18, 1
        %s6492 = scalar_select %p6491, %s18, 1
        %s6493 = smul.addr %s6492, 36
        %s6494 = smul.addr %s6493, 4
        %s6495 = scalar_lea.vmem %s6, %s6494
      $region56: #{convnet_forward.2} parent=51 // pred_fallthru
        _
    $region52: #{convnet_forward.2} parent=5 // pred_fallthru
      _
  $region6: #{convnet_forward.2} parent=0 // loop_footer
    %s16 = sadd.s32 1, %s12
  $region7: #{convnet_forward.2} parent=0 // loop_footer_branch
    %11 = sbr.rel target = $region3
  $region8: #{convnet_forward.2} parent=0 // loop_exit
    _

</llo_original>
